<compile_context>
chip_gen: v7x
topology: tpu7x:2x2x1
jax: 0.10.0
libtpu: 0.0.40
codegen_flags: <defaults>
</compile_context>

<pallas_src>
import functools

import jax
import jax.numpy as jnp
from jax.experimental import pallas as pl
from jax.experimental.pallas import tpu as pltpu

BN_EPS = 1e-5
KSIZE = 5
STRIDE = 2
PAD = 2

VMEM_LIMIT = 32 * 1024 * 1024  # explicit scoped-VMEM limit, safe on v5e/v6e/v7x


# ----------------------------------------------------------------------------
# Pallas kernels (each runs as a single grid step; whole operands in VMEM)
# ----------------------------------------------------------------------------
def _conv_relu_kernel(x_ref, w_ref, b_ref, o_ref):
    """relu(patches @ W + b); f32 accumulation and epilogue, bf16 store."""
    y = jnp.dot(x_ref[...], w_ref[...],
                preferred_element_type=jnp.float32) + b_ref[...]
    o_ref[...] = jnp.maximum(y, 0.0).astype(o_ref.dtype)


def _conv_bn_relu_kernel(x_ref, w_ref, b_ref, g_ref, beta_ref, o_ref, *, inv_m):
    """relu(BN(patches @ W + b)) with training-mode batch statistics computed
    over the full M block (centered / biased variance, matching PyTorch)."""
    y = jnp.dot(x_ref[...], w_ref[...],
                preferred_element_type=jnp.float32) + b_ref[...]
    mean = jnp.sum(y, axis=0, keepdims=True) * inv_m
    d = y - mean
    var = jnp.sum(d * d, axis=0, keepdims=True) * inv_m
    scale = g_ref[...] * jax.lax.rsqrt(var + BN_EPS)
    o_ref[...] = jnp.maximum(d * scale + beta_ref[...], 0.0).astype(o_ref.dtype)


def _conv_bn_relu_pool_kernel(x_ref, w_ref, b_ref, g_ref, beta_ref, pool_ref,
                              o_ref, *, inv_m):
    """Final layer: relu(BN(patches @ W + b)) followed by the fused global
    spatial mean, implemented as a tiny (N, M) @ (M, C) pooling matmul."""
    y = jnp.dot(x_ref[...], w_ref[...],
                preferred_element_type=jnp.float32) + b_ref[...]
    mean = jnp.sum(y, axis=0, keepdims=True) * inv_m
    d = y - mean
    var = jnp.sum(d * d, axis=0, keepdims=True) * inv_m
    scale = g_ref[...] * jax.lax.rsqrt(var + BN_EPS)
    z = jnp.maximum(d * scale + beta_ref[...], 0.0)
    o_ref[...] = jnp.dot(pool_ref[...], z, preferred_element_type=jnp.float32)


# ----------------------------------------------------------------------------
# Wrappers
# ----------------------------------------------------------------------------
def _round_up(x, m):
    return (x + m - 1) // m * m


def _spec2(shape):
    """Full-array 2-D block (legal even when dims aren't (8,128) multiples)."""
    return pl.BlockSpec(shape, lambda i: (0, 0))


def _compiler_params():
    return pltpu.CompilerParams(dimension_semantics=("arbitrary",),
                                vmem_limit_bytes=VMEM_LIMIT)


def conv_layer(patches, p):
    """One intermediate conv layer: relu([BN](patches @ W + b)) -> bf16."""
    M, K = patches.shape
    cout_p = p["w_mat"].shape[1]

    if not p["use_bn"]:
        return pl.pallas_call(
            _conv_relu_kernel,
            out_shape=jax.ShapeDtypeStruct((M, cout_p), jnp.bfloat16),
            grid=(1,),
            in_specs=[_spec2((M, K)), _spec2((K, cout_p)), _spec2((1, cout_p))],
            out_specs=_spec2((M, cout_p)),
            compiler_params=_compiler_params(),
        )(patches, p["w_mat"], p["bias"])

    return pl.pallas_call(
        functools.partial(_conv_bn_relu_kernel, inv_m=1.0 / M),
        out_shape=jax.ShapeDtypeStruct((M, cout_p), jnp.bfloat16),
        grid=(1,),
        in_specs=[_spec2((M, K)), _spec2((K, cout_p)), _spec2((1, cout_p)),
                  _spec2((1, cout_p)), _spec2((1, cout_p))],
        out_specs=_spec2((M, cout_p)),
        compiler_params=_compiler_params(),
    )(patches, p["w_mat"], p["bias"], p["gamma"], p["beta"])


def conv_layer_final(patches, p, pool_mat):
    """Last conv layer (BN) with the global spatial mean fused in -> (N, C) f32."""
    M, K = patches.shape
    cout_p = p["w_mat"].shape[1]
    N = pool_mat.shape[0]
    return pl.pallas_call(
        functools.partial(_conv_bn_relu_pool_kernel, inv_m=1.0 / M),
        out_shape=jax.ShapeDtypeStruct((N, cout_p), jnp.float32),
        grid=(1,),
        in_specs=[_spec2((M, K)), _spec2((K, cout_p)), _spec2((1, cout_p)),
                  _spec2((1, cout_p)), _spec2((1, cout_p)), _spec2((N, M))],
        out_specs=_spec2((N, cout_p)),
        compiler_params=_compiler_params(),
    )(patches, p["w_mat"], p["bias"], p["gamma"], p["beta"], pool_mat)


def im2col(x_nhwc, ksize=KSIZE, stride=STRIDE, pad=PAD):
    """Extract conv patches (glue).  Returns ((M, ksize*ksize*C), (N,Ho,Wo))."""
    # TODO(synk): the whole 4-layer network (~2.7 MB bf16 weights, <0.5 MB
    # activations) fits in VMEM on every generation; fusing it into a single
    # pallas_call with an in-kernel 5x5 tap loop would remove the remaining
    # 4 launches, this HBM patch materialization and the inter-layer HBM
    # round-trips.  Kept in XLA glue here for lowering robustness.
    N, H, W, C = x_nhwc.shape
    xp = jnp.pad(x_nhwc, ((0, 0), (pad, pad), (pad, pad), (0, 0)))
    Ho = (H + 2 * pad - ksize) // stride + 1
    Wo = (W + 2 * pad - ksize) // stride + 1
    cols = []
    for ky in range(ksize):
        for kx in range(ksize):
            cols.append(
                xp[:, ky:ky + stride * Ho:stride, kx:kx + stride * Wo:stride, :]
            )  # (N, Ho, Wo, C)
    patches = jnp.stack(cols, axis=3)  # (N, Ho, Wo, KH*KW, C) ordered (ky,kx,c)
    return patches.reshape(N * Ho * Wo, ksize * ksize * C), (N, Ho, Wo)


LAYER_DEFS = [
    # (Cin, Cout, use_bn)
    (4, 64, False),     # conv1
    (64, 128, True),    # conv2 + bn2
    (128, 128, False),  # conv3
    (128, 256, True),   # conv4 + bn4
]


def init_params(key):
    """Deterministic parameters per ConvBlock.__init__ (PyTorch defaults).
    Weight matrices are pre-transposed to im2col layout; only Cout is
    lane-padded (conv1: 64 -> 128).  K is left unpadded (full-dim blocks)."""
    params = []
    for cin, cout, use_bn in LAYER_DEFS:
        key, kw, kb = jax.random.split(key, 3)
        fan_in = cin * KSIZE * KSIZE
        bound = float(fan_in) ** -0.5
        w = jax.random.uniform(kw, (cout, cin, KSIZE, KSIZE),
                               jnp.float32, -bound, bound)
        b = jax.random.uniform(kb, (cout,), jnp.float32, -bound, bound)

        k_raw = KSIZE * KSIZE * cin
        cout_p = _round_up(cout, 128)
        # (Cout, Cin, KH, KW) -> (KH*KW*Cin, Cout), matching im2col column
        # order (ky, kx, c); zero-pad only the Cout (lane) dim.
        w_mat = jnp.transpose(w, (2, 3, 1, 0)).reshape(k_raw, cout)
        w_mat = jnp.pad(w_mat, ((0, 0), (0, cout_p - cout)))
        entry = dict(
            w_mat=w_mat.astype(jnp.bfloat16),            # bf16 MXU operand
            bias=jnp.pad(b, (0, cout_p - cout)).reshape(1, cout_p),
            use_bn=use_bn,
            cout=cout,
        )
        if use_bn:
            # PyTorch BatchNorm2d default affine params: weight=1, bias=0.
            entry["gamma"] = jnp.ones((1, cout_p), jnp.float32)
            entry["beta"] = jnp.zeros((1, cout_p), jnp.float32)
        params.append(entry)
    return params


def conv_block_forward(x_nchw, params):
    # NCHW (PyTorch) -> NHWC glue layout; bf16 activations between layers.
    x = jnp.transpose(x_nchw, (0, 2, 3, 1)).astype(jnp.bfloat16)
    last = len(params) - 1
    out = None
    for li, p in enumerate(params):
        patches, (N, Ho, Wo) = im2col(x)
        if li == last:
            # Fused global spatial mean: x.mean((-1, -2)) in torch == per-image
            # mean over the Ho*Wo rows of the (M, C) activation matrix.
            S = Ho * Wo
            M = N * S
            pool = (jnp.arange(M, dtype=jnp.int32)[None, :] // S
                    == jnp.arange(N, dtype=jnp.int32)[:, None]
                    ).astype(jnp.float32) / float(S)        # (N, M)
            out = conv_layer_final(patches, p, pool)         # (N, 256) f32
        else:
            y = conv_layer(patches, p)                       # (M, Cout_pad) bf16
            x = y[:, :p["cout"]].reshape(N, Ho, Wo, p["cout"])
    return out
    # TODO(synk): BatchNorm running-stat updates (stateful buffers) are
    # omitted; normalization uses batch statistics, matching a fresh module's
    # forward in training mode.


if __name__ == "__main__":
    key = jax.random.PRNGKey(0)
    kp, kx = jax.random.split(key)
    params = init_params(kp)
    # NCHW input, 4 in-channels, 32x32 spatial -> four stride-2 convs -> 2x2.
    x = jax.random.normal(kx, (2, 4, 32, 32), jnp.float32)

    fwd = jax.jit(lambda inp: conv_block_forward(inp, params))
    out = jax.block_until_ready(fwd(x))

    assert out.shape == (2, 256), out.shape
    assert out.dtype == jnp.float32
    assert bool(jnp.all(jnp.isfinite(out)))
    assert bool(jnp.all(out >= 0.0))  # mean of ReLU outputs is non-negative
    print("KERNEL_OK")
</pallas_src>

<mosaic_0001>
module attributes {stable_mosaic.version = 11 : i64} {
  func.func @_conv_relu_kernel(%arg0: i32, %arg1: memref<512x100xbf16, #tpu.memory_space<vmem>>, %arg2: memref<100x128xbf16, #tpu.memory_space<vmem>>, %arg3: memref<1x128xf32, #tpu.memory_space<vmem>>, %arg4: memref<512x128xbf16, #tpu.memory_space<vmem>>) attributes {dimension_semantics = [#tpu.dimension_semantics<arbitrary>], iteration_bounds = array<i64: 1>, scalar_prefetch = 0 : i64, scratch_operands = 0 : i64, tpu.core_type = #tpu.core_type<tc>, window_params = [{pipeline_mode = #tpu.pipeline_mode<synchronous>, transform_indices = @transform_0, window_bounds = array<i64: 512, 100>}, {pipeline_mode = #tpu.pipeline_mode<synchronous>, transform_indices = @transform_1, window_bounds = array<i64: 100, 128>}, {pipeline_mode = #tpu.pipeline_mode<synchronous>, transform_indices = @transform_2, window_bounds = array<i64: 1, 128>}, {pipeline_mode = #tpu.pipeline_mode<synchronous>, transform_indices = @transform_3, window_bounds = array<i64: 512, 128>}]} {
    %c0 = arith.constant 0 : index
    %c0_0 = arith.constant 0 : index
    %0 = vector.load %arg1[%c0, %c0_0] : memref<512x100xbf16, #tpu.memory_space<vmem>>, vector<512x100xbf16>
    %c0_1 = arith.constant 0 : index
    %c0_2 = arith.constant 0 : index
    %1 = vector.load %arg2[%c0_1, %c0_2] : memref<100x128xbf16, #tpu.memory_space<vmem>>, vector<100x128xbf16>
    %cst = arith.constant dense<0.000000e+00> : vector<512x128xf32>
    %2 = tpu.matmul %0, %1, %cst {dimension_numbers = #tpu.dot_dimension_numbers<[1], [0], [0], [1], [0, 0, 1, 1], [], []>} : vector<512x100xbf16>, vector<100x128xbf16>, vector<512x128xf32> -> vector<512x128xf32>
    %c0_3 = arith.constant 0 : index
    %c0_4 = arith.constant 0 : index
    %3 = vector.load %arg3[%c0_3, %c0_4] : memref<1x128xf32, #tpu.memory_space<vmem>>, vector<1x128xf32>
    %4 = vector.broadcast %3 : vector<1x128xf32> to vector<512x128xf32>
    %5 = arith.addf %2, %4 : vector<512x128xf32>
    %cst_5 = arith.constant 0.000000e+00 : f32
    %6 = vector.broadcast %cst_5 : f32 to vector<512x128xf32>
    %7 = arith.maximumf %5, %6 : vector<512x128xf32>
    %8 = arith.truncf %7 : vector<512x128xf32> to vector<512x128xbf16>
    %c0_6 = arith.constant 0 : index
    %c0_7 = arith.constant 0 : index
    %9 = vector.load %arg4[%c0_6, %c0_7] : memref<512x128xbf16, #tpu.memory_space<vmem>>, vector<512x128xbf16>
    tpu.vector_store %arg4[%c0_6, %c0_7], %8 {strides = array<i32>} : memref<512x128xbf16, #tpu.memory_space<vmem>>, vector<512x128xbf16>,
    return
  }
  func.func @transform_0(%arg0: i32) -> (i32, i32) {
    %c0_i32 = arith.constant 0 : i32
    %c0_i32_0 = arith.constant 0 : i32
    %c0_i32_1 = arith.constant 0 : i32
    return %c0_i32, %c0_i32_0 : i32, i32
  }
  func.func @transform_1(%arg0: i32) -> (i32, i32) {
    %c0_i32 = arith.constant 0 : i32
    %c0_i32_0 = arith.constant 0 : i32
    %c0_i32_1 = arith.constant 0 : i32
    return %c0_i32, %c0_i32_0 : i32, i32
  }
  func.func @transform_2(%arg0: i32) -> (i32, i32) {
    %c0_i32 = arith.constant 0 : i32
    %c0_i32_0 = arith.constant 0 : i32
    %c0_i32_1 = arith.constant 0 : i32
    return %c0_i32, %c0_i32_0 : i32, i32
  }
  func.func @transform_3(%arg0: i32) -> (i32, i32) {
    %c0_i32 = arith.constant 0 : i32
    %c0_i32_0 = arith.constant 0 : i32
    %c0_i32_1 = arith.constant 0 : i32
    return %c0_i32, %c0_i32_0 : i32, i32
  }
}

module attributes {stable_mosaic.version = 11 : i64} {
  func.func @_conv_bn_relu_kernel(%arg0: i32, %arg1: memref<128x1600xbf16, #tpu.memory_space<vmem>>, %arg2: memref<1600x128xbf16, #tpu.memory_space<vmem>>, %arg3: memref<1x128xf32, #tpu.memory_space<vmem>>, %arg4: memref<1x128xf32, #tpu.memory_space<vmem>>, %arg5: memref<1x128xf32, #tpu.memory_space<vmem>>, %arg6: memref<128x128xbf16, #tpu.memory_space<vmem>>) attributes {dimension_semantics = [#tpu.dimension_semantics<arbitrary>], iteration_bounds = array<i64: 1>, scalar_prefetch = 0 : i64, scratch_operands = 0 : i64, tpu.core_type = #tpu.core_type<tc>, window_params = [{pipeline_mode = #tpu.pipeline_mode<synchronous>, transform_indices = @transform_0, window_bounds = array<i64: 128, 1600>}, {pipeline_mode = #tpu.pipeline_mode<synchronous>, transform_indices = @transform_1, window_bounds = array<i64: 1600, 128>}, {pipeline_mode = #tpu.pipeline_mode<synchronous>, transform_indices = @transform_2, window_bounds = array<i64: 1, 128>}, {pipeline_mode = #tpu.pipeline_mode<synchronous>, transform_indices = @transform_3, window_bounds = array<i64: 1, 128>}, {pipeline_mode = #tpu.pipeline_mode<synchronous>, transform_indices = @transform_4, window_bounds = array<i64: 1, 128>}, {pipeline_mode = #tpu.pipeline_mode<synchronous>, transform_indices = @transform_5, window_bounds = array<i64: 128, 128>}]} {
    %c0 = arith.constant 0 : index
    %c0_0 = arith.constant 0 : index
    %0 = vector.load %arg1[%c0, %c0_0] : memref<128x1600xbf16, #tpu.memory_space<vmem>>, vector<128x1600xbf16>
    %c0_1 = arith.constant 0 : index
    %c0_2 = arith.constant 0 : index
    %1 = vector.load %arg2[%c0_1, %c0_2] : memref<1600x128xbf16, #tpu.memory_space<vmem>>, vector<1600x128xbf16>
    %cst = arith.constant dense<0.000000e+00> : vector<128x128xf32>
    %2 = tpu.matmul %0, %1, %cst {dimension_numbers = #tpu.dot_dimension_numbers<[1], [0], [0], [1], [0, 0, 1, 1], [], []>} : vector<128x1600xbf16>, vector<1600x128xbf16>, vector<128x128xf32> -> vector<128x128xf32>
    %c0_3 = arith.constant 0 : index
    %c0_4 = arith.constant 0 : index
    %3 = vector.load %arg3[%c0_3, %c0_4] : memref<1x128xf32, #tpu.memory_space<vmem>>, vector<1x128xf32>
    %4 = vector.broadcast %3 : vector<1x128xf32> to vector<128x128xf32>
    %5 = arith.addf %2, %4 : vector<128x128xf32>
    %cst_5 = arith.constant dense<0.000000e+00> : vector<128xf32>
    %6 = vector.multi_reduction <add>, %5, %cst_5 [0] : vector<128x128xf32> to vector<128xf32>
    %7 = vector.shape_cast %6 : vector<128xf32> to vector<1x128xf32>
    %cst_6 = arith.constant 7.812500e-03 : f32
    %8 = vector.broadcast %cst_6 : f32 to vector<1x128xf32>
    %9 = arith.mulf %7, %8 : vector<1x128xf32>
    %10 = vector.broadcast %9 : vector<1x128xf32> to vector<128x128xf32>
    %11 = arith.subf %5, %10 : vector<128x128xf32>
    %12 = arith.mulf %11, %11 : vector<128x128xf32>
    %cst_7 = arith.constant dense<0.000000e+00> : vector<128xf32>
    %13 = vector.multi_reduction <add>, %12, %cst_7 [0] : vector<128x128xf32> to vector<128xf32>
    %14 = vector.shape_cast %13 : vector<128xf32> to vector<1x128xf32>
    %cst_8 = arith.constant 7.812500e-03 : f32
    %15 = vector.broadcast %cst_8 : f32 to vector<1x128xf32>
    %16 = arith.mulf %14, %15 : vector<1x128xf32>
    %c0_9 = arith.constant 0 : index
    %c0_10 = arith.constant 0 : index
    %17 = vector.load %arg4[%c0_9, %c0_10] : memref<1x128xf32, #tpu.memory_space<vmem>>, vector<1x128xf32>
    %cst_11 = arith.constant 9.99999974E-6 : f32
    %18 = vector.broadcast %cst_11 : f32 to vector<1x128xf32>
    %19 = arith.addf %16, %18 : vector<1x128xf32>
    %20 = math.rsqrt %19 : vector<1x128xf32>
    %21 = arith.mulf %17, %20 : vector<1x128xf32>
    %22 = vector.broadcast %21 : vector<1x128xf32> to vector<128x128xf32>
    %23 = arith.mulf %11, %22 : vector<128x128xf32>
    %c0_12 = arith.constant 0 : index
    %c0_13 = arith.constant 0 : index
    %24 = vector.load %arg5[%c0_12, %c0_13] : memref<1x128xf32, #tpu.memory_space<vmem>>, vector<1x128xf32>
    %25 = vector.broadcast %24 : vector<1x128xf32> to vector<128x128xf32>
    %26 = arith.addf %23, %25 : vector<128x128xf32>
    %cst_14 = arith.constant 0.000000e+00 : f32
    %27 = vector.broadcast %cst_14 : f32 to vector<128x128xf32>
    %28 = arith.maximumf %26, %27 : vector<128x128xf32>
    %29 = arith.truncf %28 : vector<128x128xf32> to vector<128x128xbf16>
    %c0_15 = arith.constant 0 : index
    %c0_16 = arith.constant 0 : index
    %30 = vector.load %arg6[%c0_15, %c0_16] : memref<128x128xbf16, #tpu.memory_space<vmem>>, vector<128x128xbf16>
    tpu.vector_store %arg6[%c0_15, %c0_16], %29 {strides = array<i32>} : memref<128x128xbf16, #tpu.memory_space<vmem>>, vector<128x128xbf16>,
    return
  }
  func.func @transform_0(%arg0: i32) -> (i32, i32) {
    %c0_i32 = arith.constant 0 : i32
    %c0_i32_0 = arith.constant 0 : i32
    %c0_i32_1 = arith.constant 0 : i32
    return %c0_i32, %c0_i32_0 : i32, i32
  }
  func.func @transform_1(%arg0: i32) -> (i32, i32) {
    %c0_i32 = arith.constant 0 : i32
    %c0_i32_0 = arith.constant 0 : i32
    %c0_i32_1 = arith.constant 0 : i32
    return %c0_i32, %c0_i32_0 : i32, i32
  }
  func.func @transform_2(%arg0: i32) -> (i32, i32) {
    %c0_i32 = arith.constant 0 : i32
    %c0_i32_0 = arith.constant 0 : i32
    %c0_i32_1 = arith.constant 0 : i32
    return %c0_i32, %c0_i32_0 : i32, i32
  }
  func.func @transform_3(%arg0: i32) -> (i32, i32) {
    %c0_i32 = arith.constant 0 : i32
    %c0_i32_0 = arith.constant 0 : i32
    %c0_i32_1 = arith.constant 0 : i32
    return %c0_i32, %c0_i32_0 : i32, i32
  }
  func.func @transform_4(%arg0: i32) -> (i32, i32) {
    %c0_i32 = arith.constant 0 : i32
    %c0_i32_0 = arith.constant 0 : i32
    %c0_i32_1 = arith.constant 0 : i32
    return %c0_i32, %c0_i32_0 : i32, i32
  }
  func.func @transform_5(%arg0: i32) -> (i32, i32) {
    %c0_i32 = arith.constant 0 : i32
    %c0_i32_0 = arith.constant 0 : i32
    %c0_i32_1 = arith.constant 0 : i32
    return %c0_i32, %c0_i32_0 : i32, i32
  }
}

module attributes {stable_mosaic.version = 11 : i64} {
  func.func @_conv_relu_kernel(%arg0: i32, %arg1: memref<32x3200xbf16, #tpu.memory_space<vmem>>, %arg2: memref<3200x128xbf16, #tpu.memory_space<vmem>>, %arg3: memref<1x128xf32, #tpu.memory_space<vmem>>, %arg4: memref<32x128xbf16, #tpu.memory_space<vmem>>) attributes {dimension_semantics = [#tpu.dimension_semantics<arbitrary>], iteration_bounds = array<i64: 1>, scalar_prefetch = 0 : i64, scratch_operands = 0 : i64, tpu.core_type = #tpu.core_type<tc>, window_params = [{pipeline_mode = #tpu.pipeline_mode<synchronous>, transform_indices = @transform_0, window_bounds = array<i64: 32, 3200>}, {pipeline_mode = #tpu.pipeline_mode<synchronous>, transform_indices = @transform_1, window_bounds = array<i64: 3200, 128>}, {pipeline_mode = #tpu.pipeline_mode<synchronous>, transform_indices = @transform_2, window_bounds = array<i64: 1, 128>}, {pipeline_mode = #tpu.pipeline_mode<synchronous>, transform_indices = @transform_3, window_bounds = array<i64: 32, 128>}]} {
    %c0 = arith.constant 0 : index
    %c0_0 = arith.constant 0 : index
    %0 = vector.load %arg1[%c0, %c0_0] : memref<32x3200xbf16, #tpu.memory_space<vmem>>, vector<32x3200xbf16>
    %c0_1 = arith.constant 0 : index
    %c0_2 = arith.constant 0 : index
    %1 = vector.load %arg2[%c0_1, %c0_2] : memref<3200x128xbf16, #tpu.memory_space<vmem>>, vector<3200x128xbf16>
    %cst = arith.constant dense<0.000000e+00> : vector<32x128xf32>
    %2 = tpu.matmul %0, %1, %cst {dimension_numbers = #tpu.dot_dimension_numbers<[1], [0], [0], [1], [0, 0, 1, 1], [], []>} : vector<32x3200xbf16>, vector<3200x128xbf16>, vector<32x128xf32> -> vector<32x128xf32>
    %c0_3 = arith.constant 0 : index
    %c0_4 = arith.constant 0 : index
    %3 = vector.load %arg3[%c0_3, %c0_4] : memref<1x128xf32, #tpu.memory_space<vmem>>, vector<1x128xf32>
    %4 = vector.broadcast %3 : vector<1x128xf32> to vector<32x128xf32>
    %5 = arith.addf %2, %4 : vector<32x128xf32>
    %cst_5 = arith.constant 0.000000e+00 : f32
    %6 = vector.broadcast %cst_5 : f32 to vector<32x128xf32>
    %7 = arith.maximumf %5, %6 : vector<32x128xf32>
    %8 = arith.truncf %7 : vector<32x128xf32> to vector<32x128xbf16>
    %c0_6 = arith.constant 0 : index
    %c0_7 = arith.constant 0 : index
    %9 = vector.load %arg4[%c0_6, %c0_7] : memref<32x128xbf16, #tpu.memory_space<vmem>>, vector<32x128xbf16>
    tpu.vector_store %arg4[%c0_6, %c0_7], %8 {strides = array<i32>} : memref<32x128xbf16, #tpu.memory_space<vmem>>, vector<32x128xbf16>,
    return
  }
  func.func @transform_0(%arg0: i32) -> (i32, i32) {
    %c0_i32 = arith.constant 0 : i32
    %c0_i32_0 = arith.constant 0 : i32
    %c0_i32_1 = arith.constant 0 : i32
    return %c0_i32, %c0_i32_0 : i32, i32
  }
  func.func @transform_1(%arg0: i32) -> (i32, i32) {
    %c0_i32 = arith.constant 0 : i32
    %c0_i32_0 = arith.constant 0 : i32
    %c0_i32_1 = arith.constant 0 : i32
    return %c0_i32, %c0_i32_0 : i32, i32
  }
  func.func @transform_2(%arg0: i32) -> (i32, i32) {
    %c0_i32 = arith.constant 0 : i32
    %c0_i32_0 = arith.constant 0 : i32
    %c0_i32_1 = arith.constant 0 : i32
    return %c0_i32, %c0_i32_0 : i32, i32
  }
  func.func @transform_3(%arg0: i32) -> (i32, i32) {
    %c0_i32 = arith.constant 0 : i32
    %c0_i32_0 = arith.constant 0 : i32
    %c0_i32_1 = arith.constant 0 : i32
    return %c0_i32, %c0_i32_0 : i32, i32
  }
}

module attributes {stable_mosaic.version = 11 : i64} {
  func.func @_conv_bn_relu_pool_kernel(%arg0: i32, %arg1: memref<8x3200xbf16, #tpu.memory_space<vmem>>, %arg2: memref<3200x256xbf16, #tpu.memory_space<vmem>>, %arg3: memref<1x256xf32, #tpu.memory_space<vmem>>, %arg4: memref<1x256xf32, #tpu.memory_space<vmem>>, %arg5: memref<1x256xf32, #tpu.memory_space<vmem>>, %arg6: memref<2x8xf32, #tpu.memory_space<vmem>>, %arg7: memref<2x256xf32, #tpu.memory_space<vmem>>) attributes {dimension_semantics = [#tpu.dimension_semantics<arbitrary>], iteration_bounds = array<i64: 1>, scalar_prefetch = 0 : i64, scratch_operands = 0 : i64, tpu.core_type = #tpu.core_type<tc>, window_params = [{pipeline_mode = #tpu.pipeline_mode<synchronous>, transform_indices = @transform_0, window_bounds = array<i64: 8, 3200>}, {pipeline_mode = #tpu.pipeline_mode<synchronous>, transform_indices = @transform_1, window_bounds = array<i64: 3200, 256>}, {pipeline_mode = #tpu.pipeline_mode<synchronous>, transform_indices = @transform_2, window_bounds = array<i64: 1, 256>}, {pipeline_mode = #tpu.pipeline_mode<synchronous>, transform_indices = @transform_3, window_bounds = array<i64: 1, 256>}, {pipeline_mode = #tpu.pipeline_mode<synchronous>, transform_indices = @transform_4, window_bounds = array<i64: 1, 256>}, {pipeline_mode = #tpu.pipeline_mode<synchronous>, transform_indices = @transform_5, window_bounds = array<i64: 2, 8>}, {pipeline_mode = #tpu.pipeline_mode<synchronous>, transform_indices = @transform_6, window_bounds = array<i64: 2, 256>}]} {
    %c0 = arith.constant 0 : index
    %c0_0 = arith.constant 0 : index
    %0 = vector.load %arg1[%c0, %c0_0] : memref<8x3200xbf16, #tpu.memory_space<vmem>>, vector<8x3200xbf16>
    %c0_1 = arith.constant 0 : index
    %c0_2 = arith.constant 0 : index
    %1 = vector.load %arg2[%c0_1, %c0_2] : memref<3200x256xbf16, #tpu.memory_space<vmem>>, vector<3200x256xbf16>
    %cst = arith.constant dense<0.000000e+00> : vector<8x256xf32>
    %2 = tpu.matmul %0, %1, %cst {dimension_numbers = #tpu.dot_dimension_numbers<[1], [0], [0], [1], [0, 0, 1, 1], [], []>} : vector<8x3200xbf16>, vector<3200x256xbf16>, vector<8x256xf32> -> vector<8x256xf32>
    %c0_3 = arith.constant 0 : index
    %c0_4 = arith.constant 0 : index
    %3 = vector.load %arg3[%c0_3, %c0_4] : memref<1x256xf32, #tpu.memory_space<vmem>>, vector<1x256xf32>
    %4 = vector.broadcast %3 : vector<1x256xf32> to vector<8x256xf32>
    %5 = arith.addf %2, %4 : vector<8x256xf32>
    %cst_5 = arith.constant dense<0.000000e+00> : vector<256xf32>
    %6 = vector.multi_reduction <add>, %5, %cst_5 [0] : vector<8x256xf32> to vector<256xf32>
    %7 = vector.shape_cast %6 : vector<256xf32> to vector<1x256xf32>
    %cst_6 = arith.constant 1.250000e-01 : f32
    %8 = vector.broadcast %cst_6 : f32 to vector<1x256xf32>
    %9 = arith.mulf %7, %8 : vector<1x256xf32>
    %10 = vector.broadcast %9 : vector<1x256xf32> to vector<8x256xf32>
    %11 = arith.subf %5, %10 : vector<8x256xf32>
    %12 = arith.mulf %11, %11 : vector<8x256xf32>
    %cst_7 = arith.constant dense<0.000000e+00> : vector<256xf32>
    %13 = vector.multi_reduction <add>, %12, %cst_7 [0] : vector<8x256xf32> to vector<256xf32>
    %14 = vector.shape_cast %13 : vector<256xf32> to vector<1x256xf32>
    %cst_8 = arith.constant 1.250000e-01 : f32
    %15 = vector.broadcast %cst_8 : f32 to vector<1x256xf32>
    %16 = arith.mulf %14, %15 : vector<1x256xf32>
    %c0_9 = arith.constant 0 : index
    %c0_10 = arith.constant 0 : index
    %17 = vector.load %arg4[%c0_9, %c0_10] : memref<1x256xf32, #tpu.memory_space<vmem>>, vector<1x256xf32>
    %cst_11 = arith.constant 9.99999974E-6 : f32
    %18 = vector.broadcast %cst_11 : f32 to vector<1x256xf32>
    %19 = arith.addf %16, %18 : vector<1x256xf32>
    %20 = math.rsqrt %19 : vector<1x256xf32>
    %21 = arith.mulf %17, %20 : vector<1x256xf32>
    %22 = vector.broadcast %21 : vector<1x256xf32> to vector<8x256xf32>
    %23 = arith.mulf %11, %22 : vector<8x256xf32>
    %c0_12 = arith.constant 0 : index
    %c0_13 = arith.constant 0 : index
    %24 = vector.load %arg5[%c0_12, %c0_13] : memref<1x256xf32, #tpu.memory_space<vmem>>, vector<1x256xf32>
    %25 = vector.broadcast %24 : vector<1x256xf32> to vector<8x256xf32>
    %26 = arith.addf %23, %25 : vector<8x256xf32>
    %cst_14 = arith.constant 0.000000e+00 : f32
    %27 = vector.broadcast %cst_14 : f32 to vector<8x256xf32>
    %28 = arith.maximumf %26, %27 : vector<8x256xf32>
    %c0_15 = arith.constant 0 : index
    %c0_16 = arith.constant 0 : index
    %29 = vector.load %arg6[%c0_15, %c0_16] : memref<2x8xf32, #tpu.memory_space<vmem>>, vector<2x8xf32>
    %cst_17 = arith.constant dense<0.000000e+00> : vector<2x256xf32>
    %30 = tpu.matmul %29, %28, %cst_17 {dimension_numbers = #tpu.dot_dimension_numbers<[1], [0], [0], [1], [0, 0, 1, 1], [], []>} : vector<2x8xf32>, vector<8x256xf32>, vector<2x256xf32> -> vector<2x256xf32>
    %c0_18 = arith.constant 0 : index
    %c0_19 = arith.constant 0 : index
    %31 = vector.load %arg7[%c0_18, %c0_19] : memref<2x256xf32, #tpu.memory_space<vmem>>, vector<2x256xf32>
    tpu.vector_store %arg7[%c0_18, %c0_19], %30 {strides = array<i32>} : memref<2x256xf32, #tpu.memory_space<vmem>>, vector<2x256xf32>,
    return
  }
  func.func @transform_0(%arg0: i32) -> (i32, i32) {
    %c0_i32 = arith.constant 0 : i32
    %c0_i32_0 = arith.constant 0 : i32
    %c0_i32_1 = arith.constant 0 : i32
    return %c0_i32, %c0_i32_0 : i32, i32
  }
  func.func @transform_1(%arg0: i32) -> (i32, i32) {
    %c0_i32 = arith.constant 0 : i32
    %c0_i32_0 = arith.constant 0 : i32
    %c0_i32_1 = arith.constant 0 : i32
    return %c0_i32, %c0_i32_0 : i32, i32
  }
  func.func @transform_2(%arg0: i32) -> (i32, i32) {
    %c0_i32 = arith.constant 0 : i32
    %c0_i32_0 = arith.constant 0 : i32
    %c0_i32_1 = arith.constant 0 : i32
    return %c0_i32, %c0_i32_0 : i32, i32
  }
  func.func @transform_3(%arg0: i32) -> (i32, i32) {
    %c0_i32 = arith.constant 0 : i32
    %c0_i32_0 = arith.constant 0 : i32
    %c0_i32_1 = arith.constant 0 : i32
    return %c0_i32, %c0_i32_0 : i32, i32
  }
  func.func @transform_4(%arg0: i32) -> (i32, i32) {
    %c0_i32 = arith.constant 0 : i32
    %c0_i32_0 = arith.constant 0 : i32
    %c0_i32_1 = arith.constant 0 : i32
    return %c0_i32, %c0_i32_0 : i32, i32
  }
  func.func @transform_5(%arg0: i32) -> (i32, i32) {
    %c0_i32 = arith.constant 0 : i32
    %c0_i32_0 = arith.constant 0 : i32
    %c0_i32_1 = arith.constant 0 : i32
    return %c0_i32, %c0_i32_0 : i32, i32
  }
  func.func @transform_6(%arg0: i32) -> (i32, i32) {
    %c0_i32 = arith.constant 0 : i32
    %c0_i32_0 = arith.constant 0 : i32
    %c0_i32_1 = arith.constant 0 : i32
    return %c0_i32, %c0_i32_0 : i32, i32
  }
}

</mosaic_0001>

<llo_original>
// kernel: _lambda_.4
$region0: #{_lambda_.4}
  #allocation0 [shape = 'u32[]', space=smem, size = 0x4, offset = 0x4, fixed_abs, tag = 'smem constant byte address 0x4 - core index']
  #allocation1 [shape = 'u32[144,128]{1,0:T(1,128)}', space=vmem, size = 0x12000, scoped, tag = 'internal scratch']
  %s0 = inlined_call_operand.vmem [shape: bf16[512,100], index: 0, kind: input, shape index: {}]
  %s1 = inlined_call_operand.vmem [shape: bf16[100,128], index: 1, kind: input, shape index: {}]
  %s2 = inlined_call_operand.vmem [shape: f32[1,128], index: 2, kind: input, shape index: {}]
  %s3 = inlined_call_operand.vmem [shape: bf16[512,128], index: 3, kind: output, shape index: {}]
  %s4 = sld [smem:[#allocation0]]
  $region22: #{_lambda_.4} parent=0
    _
  %s6 = ssub.s32 1, %s4
  %s7 = scalar_select 0, %s6, %s4
  // Predicated region
  $region2: #{_lambda_.4} parent=0 // pred_check
    _
  $region3: #{_lambda_.4} parent=0 // pred_check_branch
    %9 = sbr.rel (0) target = $region5
  $region4: #{_lambda_.4} parent=0 // pred_region
    _
  $region5: #{_lambda_.4} parent=0 // pred_fallthru
    _
  // Predicated region
  $region6: #{_lambda_.4} parent=0 // pred_check
    _
  $region7: #{_lambda_.4} parent=0 // pred_check_branch
    %11 = sbr.rel (0) target = $region9
  $region8: #{_lambda_.4} parent=0 // pred_region
    _
  $region9: #{_lambda_.4} parent=0 // pred_fallthru
    _
  // Predicated region
  $region10: #{_lambda_.4} parent=0 // pred_check
    _
  $region11: #{_lambda_.4} parent=0 // pred_check_branch
    %13 = sbr.rel (0) target = $region13
  $region12: #{_lambda_.4} parent=0 // pred_region
    _
  $region13: #{_lambda_.4} parent=0 // pred_fallthru
    _
  %v15 = vld [vmem:[%s0] sm:$0xf]
  %v16 = vld [vmem:[%s0 + $0x4] sm:$0xf]
  %v17 = vld [vmem:[%s0 + $0x8] sm:$0xf]
  %v18 = vld [vmem:[%s0 + $0xc] sm:$0xf]
  %v19 = vld [vmem:[%s0 + $0x10] sm:$0xf]
  %v20 = vld [vmem:[%s0 + $0x14] sm:$0xf]
  %v21 = vld [vmem:[%s0 + $0x18] sm:$0xf]
  %v22 = vld [vmem:[%s0 + $0x1c] sm:$0xf]
  %v23 = vld [vmem:[%s0 + $0x20] sm:$0xf]
  %v24 = vld [vmem:[%s0 + $0x24] sm:$0xf]
  %v25 = vld [vmem:[%s0 + $0x28] sm:$0xf]
  %v26 = vld [vmem:[%s0 + $0x2c] sm:$0xf]
  %v27 = vld [vmem:[%s0 + $0x30] sm:$0xf]
  %v28 = vld [vmem:[%s0 + $0x34] sm:$0xf]
  %v29 = vld [vmem:[%s0 + $0x38] sm:$0xf]
  %v30 = vld [vmem:[%s0 + $0x3c] sm:$0xf]
  %v31 = vld [vmem:[%s0 + $0x40] sm:$0xf]
  %v32 = vld [vmem:[%s0 + $0x44] sm:$0xf]
  %v33 = vld [vmem:[%s0 + $0x48] sm:$0xf]
  %v34 = vld [vmem:[%s0 + $0x4c] sm:$0xf]
  %v35 = vld [vmem:[%s0 + $0x50] sm:$0xf]
  %v36 = vld [vmem:[%s0 + $0x54] sm:$0xf]
  %v37 = vld [vmem:[%s0 + $0x58] sm:$0xf]
  %v38 = vld [vmem:[%s0 + $0x5c] sm:$0xf]
  %v39 = vld [vmem:[%s0 + $0x60] sm:$0xf]
  %v40 = vld [vmem:[%s0 + $0x64] sm:$0xf]
  %v41 = vld [vmem:[%s0 + $0x68] sm:$0xf]
  %v42 = vld [vmem:[%s0 + $0x6c] sm:$0xf]
  %v43 = vld [vmem:[%s0 + $0x70] sm:$0xf]
  %v44 = vld [vmem:[%s0 + $0x74] sm:$0xf]
  %v45 = vld [vmem:[%s0 + $0x78] sm:$0xf]
  %v46 = vld [vmem:[%s0 + $0x7c] sm:$0xf]
  %v47 = vld [vmem:[%s0 + $0x80] sm:$0xf]
  %v48 = vld [vmem:[%s0 + $0x84] sm:$0xf]
  %v49 = vld [vmem:[%s0 + $0x88] sm:$0xf]
  %v50 = vld [vmem:[%s0 + $0x8c] sm:$0xf]
  %v51 = vld [vmem:[%s0 + $0x90] sm:$0xf]
  %v52 = vld [vmem:[%s0 + $0x94] sm:$0xf]
  %v53 = vld [vmem:[%s0 + $0x98] sm:$0xf]
  %v54 = vld [vmem:[%s0 + $0x9c] sm:$0xf]
  %v55 = vld [vmem:[%s0 + $0xa0] sm:$0xf]
  %v56 = vld [vmem:[%s0 + $0xa4] sm:$0xf]
  %v57 = vld [vmem:[%s0 + $0xa8] sm:$0xf]
  %v58 = vld [vmem:[%s0 + $0xac] sm:$0xf]
  %v59 = vld [vmem:[%s0 + $0xb0] sm:$0xf]
  %v60 = vld [vmem:[%s0 + $0xb4] sm:$0xf]
  %v61 = vld [vmem:[%s0 + $0xb8] sm:$0xf]
  %v62 = vld [vmem:[%s0 + $0xbc] sm:$0xf]
  %v63 = vld [vmem:[%s0 + $0xc0] sm:$0xf]
  %v64 = vld [vmem:[%s0 + $0xc4] sm:$0xf]
  %v65 = vld [vmem:[%s0 + $0xc8] sm:$0xf]
  %v66 = vld [vmem:[%s0 + $0xcc] sm:$0xf]
  %v67 = vld [vmem:[%s0 + $0xd0] sm:$0xf]
  %v68 = vld [vmem:[%s0 + $0xd4] sm:$0xf]
  %v69 = vld [vmem:[%s0 + $0xd8] sm:$0xf]
  %v70 = vld [vmem:[%s0 + $0xdc] sm:$0xf]
  %v71 = vld [vmem:[%s0 + $0xe0] sm:$0xf]
  %v72 = vld [vmem:[%s0 + $0xe4] sm:$0xf]
  %v73 = vld [vmem:[%s0 + $0xe8] sm:$0xf]
  %v74 = vld [vmem:[%s0 + $0xec] sm:$0xf]
  %v75 = vld [vmem:[%s0 + $0xf0] sm:$0xf]
  %v76 = vld [vmem:[%s0 + $0xf4] sm:$0xf]
  %v77 = vld [vmem:[%s0 + $0xf8] sm:$0xf]
  %v78 = vld [vmem:[%s0 + $0xfc] sm:$0xf]
  %v79 = vld [vmem:[%s1] sm:$0xf]
  %v80 = vld [vmem:[%s1 + $0x4] sm:$0xf]
  %v81 = vld [vmem:[%s1 + $0x8] sm:$0xf]
  %v82 = vld [vmem:[%s1 + $0xc] sm:$0xf]
  %v83 = vld [vmem:[%s1 + $0x10] sm:$0xf]
  %v84 = vld [vmem:[%s1 + $0x14] sm:$0xf]
  %v85 = vld [vmem:[%s1 + $0x18] sm:$0xf]
  %v86 = vld [vmem:[%s1 + $0x1c] sm:$0xf]
  %v87 = vld [vmem:[%s1 + $0x20] sm:$0xf]
  %v88 = vld [vmem:[%s1 + $0x24] sm:$0xf]
  %v89 = vld [vmem:[%s1 + $0x28] sm:$0xf]
  %v90 = vld [vmem:[%s1 + $0x2c] sm:$0xf]
  %v91 = vld [vmem:[%s1 + $0x30] sm:$0x3]
  %v92 = vld [vmem:[%s2] sm:$0x1]
  %v94 = vlaneseq
  %v95 = vshrl.u32 %v94, 7
  %v96 = vsub.s32 0, %v95
  %v97 = vrot.slane %v92, %v96
  %v163 = vunpack.c.l.b16 %v15
  %v164 = vunpack.c.l.b16 %v16
  %v165 = vunpack.c.l.b16 %v17
  %v166 = vunpack.c.l.b16 %v18
  %v167 = vunpack.c.l.b16 %v19
  %v168 = vunpack.c.l.b16 %v20
  %v169 = vunpack.c.l.b16 %v21
  %v170 = vunpack.c.l.b16 %v22
  %v171 = vunpack.c.l.b16 %v23
  %v172 = vunpack.c.l.b16 %v24
  %v173 = vunpack.c.l.b16 %v25
  %v174 = vunpack.c.l.b16 %v26
  %v175 = vunpack.c.l.b16 %v27
  %v176 = vunpack.c.l.b16 %v28
  %v177 = vunpack.c.l.b16 %v29
  %v178 = vunpack.c.l.b16 %v30
  %v179 = vunpack.c.l.b16 %v31
  %v180 = vunpack.c.l.b16 %v32
  %v181 = vunpack.c.l.b16 %v33
  %v182 = vunpack.c.l.b16 %v34
  %v183 = vunpack.c.l.b16 %v35
  %v184 = vunpack.c.l.b16 %v36
  %v185 = vunpack.c.l.b16 %v37
  %v186 = vunpack.c.l.b16 %v38
  %v187 = vunpack.c.l.b16 %v39
  %v188 = vunpack.c.l.b16 %v40
  %v189 = vunpack.c.l.b16 %v41
  %v190 = vunpack.c.l.b16 %v42
  %v191 = vunpack.c.l.b16 %v43
  %v192 = vunpack.c.l.b16 %v44
  %v193 = vunpack.c.l.b16 %v45
  %v194 = vunpack.c.l.b16 %v46
  %v195 = vunpack.c.l.b16 %v47
  %v196 = vunpack.c.l.b16 %v48
  %v197 = vunpack.c.l.b16 %v49
  %v198 = vunpack.c.l.b16 %v50
  %v199 = vunpack.c.l.b16 %v51
  %v200 = vunpack.c.l.b16 %v52
  %v201 = vunpack.c.l.b16 %v53
  %v202 = vunpack.c.l.b16 %v54
  %v203 = vunpack.c.l.b16 %v55
  %v204 = vunpack.c.l.b16 %v56
  %v205 = vunpack.c.l.b16 %v57
  %v206 = vunpack.c.l.b16 %v58
  %v207 = vunpack.c.l.b16 %v59
  %v208 = vunpack.c.l.b16 %v60
  %v209 = vunpack.c.l.b16 %v61
  %v210 = vunpack.c.l.b16 %v62
  %v211 = vunpack.c.l.b16 %v63
  %v212 = vunpack.c.l.b16 %v64
  %v213 = vunpack.c.l.b16 %v65
  %v214 = vunpack.c.l.b16 %v66
  %v215 = vunpack.c.l.b16 %v67
  %v216 = vunpack.c.l.b16 %v68
  %v217 = vunpack.c.l.b16 %v69
  %v218 = vunpack.c.l.b16 %v70
  %v219 = vunpack.c.l.b16 %v71
  %v220 = vunpack.c.l.b16 %v72
  %v221 = vunpack.c.l.b16 %v73
  %v222 = vunpack.c.l.b16 %v74
  %v223 = vunpack.c.l.b16 %v75
  %v224 = vunpack.c.l.b16 %v76
  %v225 = vunpack.c.l.b16 %v77
  %v226 = vunpack.c.l.b16 %v78
  %v227 = vpack.c.b16 %v164, %v163
  %v228 = vpack.c.b16 %v166, %v165
  %v229 = vpack.c.b16 %v168, %v167
  %v230 = vpack.c.b16 %v170, %v169
  %v231 = vpack.c.b16 %v172, %v171
  %v232 = vpack.c.b16 %v174, %v173
  %v233 = vpack.c.b16 %v176, %v175
  %v234 = vpack.c.b16 %v178, %v177
  %v235 = vpack.c.b16 %v180, %v179
  %v236 = vpack.c.b16 %v182, %v181
  %v237 = vpack.c.b16 %v184, %v183
  %v238 = vpack.c.b16 %v186, %v185
  %v239 = vpack.c.b16 %v188, %v187
  %v240 = vpack.c.b16 %v190, %v189
  %v241 = vpack.c.b16 %v192, %v191
  %v242 = vpack.c.b16 %v194, %v193
  %v243 = vpack.c.b16 %v196, %v195
  %v244 = vpack.c.b16 %v198, %v197
  %v245 = vpack.c.b16 %v200, %v199
  %v246 = vpack.c.b16 %v202, %v201
  %v247 = vpack.c.b16 %v204, %v203
  %v248 = vpack.c.b16 %v206, %v205
  %v249 = vpack.c.b16 %v208, %v207
  %v250 = vpack.c.b16 %v210, %v209
  %v251 = vpack.c.b16 %v212, %v211
  %v252 = vpack.c.b16 %v214, %v213
  %v253 = vpack.c.b16 %v216, %v215
  %v254 = vpack.c.b16 %v218, %v217
  %v255 = vpack.c.b16 %v220, %v219
  %v256 = vpack.c.b16 %v222, %v221
  %v257 = vpack.c.b16 %v224, %v223
  %v258 = vpack.c.b16 %v226, %v225
  %v272 = vunpack.c.l.b16 %v79
  %v273 = vunpack.c.l.b16 %v80
  %v274 = vunpack.c.l.b16 %v81
  %v275 = vunpack.c.l.b16 %v82
  %v276 = vunpack.c.l.b16 %v83
  %v277 = vunpack.c.l.b16 %v84
  %v278 = vunpack.c.l.b16 %v85
  %v279 = vunpack.c.l.b16 %v86
  %v280 = vunpack.c.l.b16 %v87
  %v281 = vunpack.c.l.b16 %v88
  %v282 = vunpack.c.l.b16 %v89
  %v283 = vunpack.c.l.b16 %v90
  %v284 = vunpack.c.l.b16 %v91
  %v285 = vpack.c.b16 %v273, %v272
  %v286 = vpack.c.b16 %v275, %v274
  %v287 = vpack.c.b16 %v277, %v276
  %v288 = vpack.c.b16 %v279, %v278
  %v289 = vpack.c.b16 %v281, %v280
  %v290 = vpack.c.b16 %v283, %v282
  %v291 = vpack.c.b16 %v284, %v284
  %vm298 = vcmask 818176
  %v300 = vsel %vm298, %v227, 0
  %v303 = vsel %vm298, %v228, 0
  %v306 = vsel %vm298, %v229, 0
  %v309 = vsel %vm298, %v230, 0
  %v312 = vsel %vm298, %v231, 0
  %v315 = vsel %vm298, %v232, 0
  %v318 = vsel %vm298, %v233, 0
  %v321 = vsel %vm298, %v234, 0
  %v324 = vsel %vm298, %v235, 0
  %v327 = vsel %vm298, %v236, 0
  %v330 = vsel %vm298, %v237, 0
  %v333 = vsel %vm298, %v238, 0
  %v336 = vsel %vm298, %v239, 0
  %v339 = vsel %vm298, %v240, 0
  %v342 = vsel %vm298, %v241, 0
  %v345 = vsel %vm298, %v242, 0
  %v348 = vsel %vm298, %v243, 0
  %v351 = vsel %vm298, %v244, 0
  %v354 = vsel %vm298, %v245, 0
  %v357 = vsel %vm298, %v246, 0
  %v360 = vsel %vm298, %v247, 0
  %v363 = vsel %vm298, %v248, 0
  %v366 = vsel %vm298, %v249, 0
  %v369 = vsel %vm298, %v250, 0
  %v372 = vsel %vm298, %v251, 0
  %v375 = vsel %vm298, %v252, 0
  %v378 = vsel %vm298, %v253, 0
  %v381 = vsel %vm298, %v254, 0
  %v384 = vsel %vm298, %v255, 0
  %v387 = vsel %vm298, %v256, 0
  %v390 = vsel %vm298, %v257, 0
  %v393 = vsel %vm298, %v258, 0
  %vm395 = vcmask 1041408
  %v397 = vsel %vm395, %v291, 0
  %399 = vmatprep.subr.bf16.mxu0 0
  %400 = vmatpush1.bf16.msra.mxu0 %v285
  %401 = vmatprep.subr.bf16.mxu0 0
  %402 = vmatpush1.bf16.msra.mxu0 %v286
  %403 = vmatprep.subr.bf16.mxu0 0
  %404 = vmatpush1.bf16.msra.mxu0 %v287
  %405 = vmatprep.subr.bf16.mxu0 0
  %406 = vmatpush1.bf16.msra.mxu0 %v288
  %407 = vmatprep.subr.bf16.mxu0 0
  %408 = vmatpush1.bf16.msra.mxu0 %v289
  %409 = vmatprep.subr.bf16.mxu0 0
  %410 = vmatpush1.bf16.msra.mxu0 %v290
  %411 = vmatprep.subr.bf16.mxu0 0
  %412 = vmatpush1.bf16.msra.mxu0 %v397
  %413 = vmatprep.subr.bf16.mxu0 0
  %414 = vmatpush1.bf16.msra.mxu0 0
  %415 = vmatprep.subr.bf16.mxu0 0
  %416 = vmatpush1.bf16.msra.mxu0 0
  %417 = vmatprep.subr.bf16.mxu0 0
  %418 = vmatpush1.bf16.msra.mxu0 0
  %419 = vmatprep.subr.bf16.mxu0 0
  %420 = vmatpush1.bf16.msra.mxu0 0
  %421 = vmatprep.subr.bf16.mxu0 0
  %422 = vmatpush1.bf16.msra.mxu0 0
  %423 = vmatprep.subr.bf16.mxu0 0
  %424 = vmatpush1.bf16.msra.mxu0 0
  %425 = vmatprep.subr.bf16.mxu0 0
  %426 = vmatpush1.bf16.msra.mxu0 0
  %427 = vmatprep.subr.bf16.mxu0 0
  %428 = vmatpush1.bf16.msra.mxu0 0
  %429 = vmatprep.subr.bf16.mxu0 0
  %430 = vmatpush1.bf16.msra.mxu0 0
  %431 = vmatprep.mubr.bf16.mxu0 0
  %432 = vmatmul.mubr.bf16.gmra.mrb[0].mxu0 %v300
  %v433 = vpop.f32.mrb[0].mxu0
  %v434 = vadd.f32 %v97, %v433
  %v435 = vpop.f32.mrb[0].mxu0
  %v436 = vpop.f32.mrb[0].mxu0
  %v437 = vadd.f32 %v97, %v436
  %v438 = vpop.f32.mrb[0].mxu0
  %439 = vmatprep.mubr.bf16.mxu0 0
  %440 = vmatmul.mubr.bf16.gmra.mrb[0].mxu0 %v303
  %v441 = vpop.f32.mrb[0].mxu0
  %v442 = vadd.f32 %v97, %v441
  %v443 = vpop.f32.mrb[0].mxu0
  %v444 = vpop.f32.mrb[0].mxu0
  %v445 = vadd.f32 %v97, %v444
  %v446 = vpop.f32.mrb[0].mxu0
  %447 = vmatprep.mubr.bf16.mxu0 0
  %448 = vmatmul.mubr.bf16.gmra.mrb[0].mxu0 %v306
  %v449 = vpop.f32.mrb[0].mxu0
  %v450 = vadd.f32 %v97, %v449
  %v451 = vpop.f32.mrb[0].mxu0
  %v452 = vpop.f32.mrb[0].mxu0
  %v453 = vadd.f32 %v97, %v452
  %v454 = vpop.f32.mrb[0].mxu0
  %455 = vmatprep.mubr.bf16.mxu0 0
  %456 = vmatmul.mubr.bf16.gmra.mrb[0].mxu0 %v309
  %v457 = vpop.f32.mrb[0].mxu0
  %v458 = vadd.f32 %v97, %v457
  %v459 = vpop.f32.mrb[0].mxu0
  %v460 = vpop.f32.mrb[0].mxu0
  %v461 = vadd.f32 %v97, %v460
  %v462 = vpop.f32.mrb[0].mxu0
  %463 = vmatprep.mubr.bf16.mxu0 0
  %464 = vmatmul.mubr.bf16.gmra.mrb[0].mxu0 %v312
  %v465 = vpop.f32.mrb[0].mxu0
  %v466 = vadd.f32 %v97, %v465
  %v467 = vpop.f32.mrb[0].mxu0
  %v468 = vpop.f32.mrb[0].mxu0
  %v469 = vadd.f32 %v97, %v468
  %v470 = vpop.f32.mrb[0].mxu0
  %471 = vmatprep.mubr.bf16.mxu0 0
  %472 = vmatmul.mubr.bf16.gmra.mrb[0].mxu0 %v315
  %v473 = vpop.f32.mrb[0].mxu0
  %v474 = vadd.f32 %v97, %v473
  %v475 = vpop.f32.mrb[0].mxu0
  %v476 = vpop.f32.mrb[0].mxu0
  %v477 = vadd.f32 %v97, %v476
  %v478 = vpop.f32.mrb[0].mxu0
  %479 = vmatprep.mubr.bf16.mxu0 0
  %480 = vmatmul.mubr.bf16.gmra.mrb[0].mxu0 %v318
  %v481 = vpop.f32.mrb[0].mxu0
  %v482 = vadd.f32 %v97, %v481
  %v483 = vpop.f32.mrb[0].mxu0
  %v484 = vpop.f32.mrb[0].mxu0
  %v485 = vadd.f32 %v97, %v484
  %v486 = vpop.f32.mrb[0].mxu0
  %487 = vmatprep.mubr.bf16.mxu0 0
  %488 = vmatmul.mubr.bf16.gmra.mrb[0].mxu0 %v321
  %v489 = vpop.f32.mrb[0].mxu0
  %v490 = vadd.f32 %v97, %v489
  %v491 = vpop.f32.mrb[0].mxu0
  %v492 = vpop.f32.mrb[0].mxu0
  %v493 = vadd.f32 %v97, %v492
  %v494 = vpop.f32.mrb[0].mxu0
  %495 = vmatprep.mubr.bf16.mxu0 0
  %496 = vmatmul.mubr.bf16.gmra.mrb[0].mxu0 %v324
  %v497 = vpop.f32.mrb[0].mxu0
  %v498 = vadd.f32 %v97, %v497
  %v499 = vpop.f32.mrb[0].mxu0
  %v500 = vpop.f32.mrb[0].mxu0
  %v501 = vadd.f32 %v97, %v500
  %v502 = vpop.f32.mrb[0].mxu0
  %503 = vmatprep.mubr.bf16.mxu0 0
  %504 = vmatmul.mubr.bf16.gmra.mrb[0].mxu0 %v327
  %v505 = vpop.f32.mrb[0].mxu0
  %v506 = vadd.f32 %v97, %v505
  %v507 = vpop.f32.mrb[0].mxu0
  %v508 = vpop.f32.mrb[0].mxu0
  %v509 = vadd.f32 %v97, %v508
  %v510 = vpop.f32.mrb[0].mxu0
  %511 = vmatprep.mubr.bf16.mxu0 0
  %512 = vmatmul.mubr.bf16.gmra.mrb[0].mxu0 %v330
  %v513 = vpop.f32.mrb[0].mxu0
  %v514 = vadd.f32 %v97, %v513
  %v515 = vpop.f32.mrb[0].mxu0
  %v516 = vpop.f32.mrb[0].mxu0
  %v517 = vadd.f32 %v97, %v516
  %v518 = vpop.f32.mrb[0].mxu0
  %519 = vmatprep.mubr.bf16.mxu0 0
  %520 = vmatmul.mubr.bf16.gmra.mrb[0].mxu0 %v333
  %v521 = vpop.f32.mrb[0].mxu0
  %v522 = vadd.f32 %v97, %v521
  %v523 = vpop.f32.mrb[0].mxu0
  %v524 = vpop.f32.mrb[0].mxu0
  %v525 = vadd.f32 %v97, %v524
  %v526 = vpop.f32.mrb[0].mxu0
  %527 = vmatprep.mubr.bf16.mxu0 0
  %528 = vmatmul.mubr.bf16.gmra.mrb[0].mxu0 %v336
  %v529 = vpop.f32.mrb[0].mxu0
  %v530 = vadd.f32 %v97, %v529
  %v531 = vpop.f32.mrb[0].mxu0
  %v532 = vpop.f32.mrb[0].mxu0
  %v533 = vadd.f32 %v97, %v532
  %v534 = vpop.f32.mrb[0].mxu0
  %535 = vmatprep.mubr.bf16.mxu0 0
  %536 = vmatmul.mubr.bf16.gmra.mrb[0].mxu0 %v339
  %v537 = vpop.f32.mrb[0].mxu0
  %v538 = vadd.f32 %v97, %v537
  %v539 = vpop.f32.mrb[0].mxu0
  %v540 = vpop.f32.mrb[0].mxu0
  %v541 = vadd.f32 %v97, %v540
  %v542 = vpop.f32.mrb[0].mxu0
  %543 = vmatprep.mubr.bf16.mxu0 0
  %544 = vmatmul.mubr.bf16.gmra.mrb[0].mxu0 %v342
  %v545 = vpop.f32.mrb[0].mxu0
  %v546 = vadd.f32 %v97, %v545
  %v547 = vpop.f32.mrb[0].mxu0
  %v548 = vpop.f32.mrb[0].mxu0
  %v549 = vadd.f32 %v97, %v548
  %v550 = vpop.f32.mrb[0].mxu0
  %551 = vmatprep.mubr.bf16.mxu0 0
  %552 = vmatmul.mubr.bf16.gmra.mrb[0].mxu0 %v345
  %v553 = vpop.f32.mrb[0].mxu0
  %v554 = vadd.f32 %v97, %v553
  %v555 = vpop.f32.mrb[0].mxu0
  %v556 = vpop.f32.mrb[0].mxu0
  %v557 = vadd.f32 %v97, %v556
  %v558 = vpop.f32.mrb[0].mxu0
  %559 = vmatprep.mubr.bf16.mxu0 0
  %560 = vmatmul.mubr.bf16.gmra.mrb[0].mxu0 %v348
  %v561 = vpop.f32.mrb[0].mxu0
  %v562 = vadd.f32 %v97, %v561
  %v563 = vpop.f32.mrb[0].mxu0
  %v564 = vpop.f32.mrb[0].mxu0
  %v565 = vadd.f32 %v97, %v564
  %v566 = vpop.f32.mrb[0].mxu0
  %567 = vmatprep.mubr.bf16.mxu0 0
  %568 = vmatmul.mubr.bf16.gmra.mrb[0].mxu0 %v351
  %v569 = vpop.f32.mrb[0].mxu0
  %v570 = vadd.f32 %v97, %v569
  %v571 = vpop.f32.mrb[0].mxu0
  %v572 = vpop.f32.mrb[0].mxu0
  %v573 = vadd.f32 %v97, %v572
  %v574 = vpop.f32.mrb[0].mxu0
  %575 = vmatprep.mubr.bf16.mxu0 0
  %576 = vmatmul.mubr.bf16.gmra.mrb[0].mxu0 %v354
  %v577 = vpop.f32.mrb[0].mxu0
  %v578 = vadd.f32 %v97, %v577
  %v579 = vpop.f32.mrb[0].mxu0
  %v580 = vpop.f32.mrb[0].mxu0
  %v581 = vadd.f32 %v97, %v580
  %v582 = vpop.f32.mrb[0].mxu0
  %583 = vmatprep.mubr.bf16.mxu0 0
  %584 = vmatmul.mubr.bf16.gmra.mrb[0].mxu0 %v357
  %v585 = vpop.f32.mrb[0].mxu0
  %v586 = vadd.f32 %v97, %v585
  %v587 = vpop.f32.mrb[0].mxu0
  %v588 = vpop.f32.mrb[0].mxu0
  %v589 = vadd.f32 %v97, %v588
  %v590 = vpop.f32.mrb[0].mxu0
  %591 = vmatprep.mubr.bf16.mxu0 0
  %592 = vmatmul.mubr.bf16.gmra.mrb[0].mxu0 %v360
  %v593 = vpop.f32.mrb[0].mxu0
  %v594 = vadd.f32 %v97, %v593
  %v595 = vpop.f32.mrb[0].mxu0
  %v596 = vpop.f32.mrb[0].mxu0
  %v597 = vadd.f32 %v97, %v596
  %v598 = vpop.f32.mrb[0].mxu0
  %599 = vmatprep.mubr.bf16.mxu0 0
  %600 = vmatmul.mubr.bf16.gmra.mrb[0].mxu0 %v363
  %v601 = vpop.f32.mrb[0].mxu0
  %v602 = vadd.f32 %v97, %v601
  %v603 = vpop.f32.mrb[0].mxu0
  %v604 = vpop.f32.mrb[0].mxu0
  %v605 = vadd.f32 %v97, %v604
  %v606 = vpop.f32.mrb[0].mxu0
  %607 = vmatprep.mubr.bf16.mxu0 0
  %608 = vmatmul.mubr.bf16.gmra.mrb[0].mxu0 %v366
  %v609 = vpop.f32.mrb[0].mxu0
  %v610 = vadd.f32 %v97, %v609
  %v611 = vpop.f32.mrb[0].mxu0
  %v612 = vpop.f32.mrb[0].mxu0
  %v613 = vadd.f32 %v97, %v612
  %v614 = vpop.f32.mrb[0].mxu0
  %615 = vmatprep.mubr.bf16.mxu0 0
  %616 = vmatmul.mubr.bf16.gmra.mrb[0].mxu0 %v369
  %v617 = vpop.f32.mrb[0].mxu0
  %v618 = vadd.f32 %v97, %v617
  %v619 = vpop.f32.mrb[0].mxu0
  %v620 = vpop.f32.mrb[0].mxu0
  %v621 = vadd.f32 %v97, %v620
  %v622 = vpop.f32.mrb[0].mxu0
  %623 = vmatprep.mubr.bf16.mxu0 0
  %624 = vmatmul.mubr.bf16.gmra.mrb[0].mxu0 %v372
  %v625 = vpop.f32.mrb[0].mxu0
  %v626 = vadd.f32 %v97, %v625
  %v627 = vpop.f32.mrb[0].mxu0
  %v628 = vpop.f32.mrb[0].mxu0
  %v629 = vadd.f32 %v97, %v628
  %v630 = vpop.f32.mrb[0].mxu0
  %631 = vmatprep.mubr.bf16.mxu0 0
  %632 = vmatmul.mubr.bf16.gmra.mrb[0].mxu0 %v375
  %v633 = vpop.f32.mrb[0].mxu0
  %v634 = vadd.f32 %v97, %v633
  %v635 = vpop.f32.mrb[0].mxu0
  %v636 = vpop.f32.mrb[0].mxu0
  %v637 = vadd.f32 %v97, %v636
  %v638 = vpop.f32.mrb[0].mxu0
  %639 = vmatprep.mubr.bf16.mxu0 0
  %640 = vmatmul.mubr.bf16.gmra.mrb[0].mxu0 %v378
  %v641 = vpop.f32.mrb[0].mxu0
  %v642 = vadd.f32 %v97, %v641
  %v643 = vpop.f32.mrb[0].mxu0
  %v644 = vpop.f32.mrb[0].mxu0
  %v645 = vadd.f32 %v97, %v644
  %v646 = vpop.f32.mrb[0].mxu0
  %647 = vmatprep.mubr.bf16.mxu0 0
  %648 = vmatmul.mubr.bf16.gmra.mrb[0].mxu0 %v381
  %v649 = vpop.f32.mrb[0].mxu0
  %v650 = vadd.f32 %v97, %v649
  %v651 = vpop.f32.mrb[0].mxu0
  %v652 = vpop.f32.mrb[0].mxu0
  %v653 = vadd.f32 %v97, %v652
  %v654 = vpop.f32.mrb[0].mxu0
  %655 = vmatprep.mubr.bf16.mxu0 0
  %656 = vmatmul.mubr.bf16.gmra.mrb[0].mxu0 %v384
  %v657 = vpop.f32.mrb[0].mxu0
  %v658 = vadd.f32 %v97, %v657
  %v659 = vpop.f32.mrb[0].mxu0
  %v660 = vpop.f32.mrb[0].mxu0
  %v661 = vadd.f32 %v97, %v660
  %v662 = vpop.f32.mrb[0].mxu0
  %663 = vmatprep.mubr.bf16.mxu0 0
  %664 = vmatmul.mubr.bf16.gmra.mrb[0].mxu0 %v387
  %v665 = vpop.f32.mrb[0].mxu0
  %v666 = vadd.f32 %v97, %v665
  %v667 = vpop.f32.mrb[0].mxu0
  %v668 = vpop.f32.mrb[0].mxu0
  %v669 = vadd.f32 %v97, %v668
  %v670 = vpop.f32.mrb[0].mxu0
  %671 = vmatprep.mubr.bf16.mxu0 0
  %672 = vmatmul.mubr.bf16.gmra.mrb[0].mxu0 %v390
  %v673 = vpop.f32.mrb[0].mxu0
  %v674 = vadd.f32 %v97, %v673
  %v675 = vpop.f32.mrb[0].mxu0
  %v676 = vpop.f32.mrb[0].mxu0
  %v677 = vadd.f32 %v97, %v676
  %v678 = vpop.f32.mrb[0].mxu0
  %679 = vmatprep.mubr.bf16.mxu0 0
  %680 = vmatmul.mubr.bf16.gmra.mrb[0].mxu0 %v393
  %v681 = vpop.f32.mrb[0].mxu0
  %v682 = vadd.f32 %v97, %v681
  %v683 = vpop.f32.mrb[0].mxu0
  %v684 = vpop.f32.mrb[0].mxu0
  %v685 = vadd.f32 %v97, %v684
  %v686 = vpop.f32.mrb[0].mxu0
  %687 = vdwg.mxu0
  %v688 = vmax.f32 %v434, 0.0
  %v689 = vmax.f32 %v437, 0.0
  %v690 = vmax.f32 %v442, 0.0
  %v691 = vmax.f32 %v445, 0.0
  %v692 = vmax.f32 %v450, 0.0
  %v693 = vmax.f32 %v453, 0.0
  %v694 = vmax.f32 %v458, 0.0
  %v695 = vmax.f32 %v461, 0.0
  %v696 = vmax.f32 %v466, 0.0
  %v697 = vmax.f32 %v469, 0.0
  %v698 = vmax.f32 %v474, 0.0
  %v699 = vmax.f32 %v477, 0.0
  %v700 = vmax.f32 %v482, 0.0
  %v701 = vmax.f32 %v485, 0.0
  %v702 = vmax.f32 %v490, 0.0
  %v703 = vmax.f32 %v493, 0.0
  %v704 = vmax.f32 %v498, 0.0
  %v705 = vmax.f32 %v501, 0.0
  %v706 = vmax.f32 %v506, 0.0
  %v707 = vmax.f32 %v509, 0.0
  %v708 = vmax.f32 %v514, 0.0
  %v709 = vmax.f32 %v517, 0.0
  %v710 = vmax.f32 %v522, 0.0
  %v711 = vmax.f32 %v525, 0.0
  %v712 = vmax.f32 %v530, 0.0
  %v713 = vmax.f32 %v533, 0.0
  %v714 = vmax.f32 %v538, 0.0
  %v715 = vmax.f32 %v541, 0.0
  %v716 = vmax.f32 %v546, 0.0
  %v717 = vmax.f32 %v549, 0.0
  %v718 = vmax.f32 %v554, 0.0
  %v719 = vmax.f32 %v557, 0.0
  %v720 = vmax.f32 %v562, 0.0
  %v721 = vmax.f32 %v565, 0.0
  %v722 = vmax.f32 %v570, 0.0
  %v723 = vmax.f32 %v573, 0.0
  %v724 = vmax.f32 %v578, 0.0
  %v725 = vmax.f32 %v581, 0.0
  %v726 = vmax.f32 %v586, 0.0
  %v727 = vmax.f32 %v589, 0.0
  %v728 = vmax.f32 %v594, 0.0
  %v729 = vmax.f32 %v597, 0.0
  %v730 = vmax.f32 %v602, 0.0
  %v731 = vmax.f32 %v605, 0.0
  %v732 = vmax.f32 %v610, 0.0
  %v733 = vmax.f32 %v613, 0.0
  %v734 = vmax.f32 %v618, 0.0
  %v735 = vmax.f32 %v621, 0.0
  %v736 = vmax.f32 %v626, 0.0
  %v737 = vmax.f32 %v629, 0.0
  %v738 = vmax.f32 %v634, 0.0
  %v739 = vmax.f32 %v637, 0.0
  %v740 = vmax.f32 %v642, 0.0
  %v741 = vmax.f32 %v645, 0.0
  %v742 = vmax.f32 %v650, 0.0
  %v743 = vmax.f32 %v653, 0.0
  %v744 = vmax.f32 %v658, 0.0
  %v745 = vmax.f32 %v661, 0.0
  %v746 = vmax.f32 %v666, 0.0
  %v747 = vmax.f32 %v669, 0.0
  %v748 = vmax.f32 %v674, 0.0
  %v749 = vmax.f32 %v677, 0.0
  %v750 = vmax.f32 %v682, 0.0
  %v751 = vmax.f32 %v685, 0.0
  %v752 = vpack.c.bf16 %v689, %v688
  %v753 = vpack.c.bf16 %v691, %v690
  %v754 = vpack.c.bf16 %v693, %v692
  %v755 = vpack.c.bf16 %v695, %v694
  %v756 = vpack.c.bf16 %v697, %v696
  %v757 = vpack.c.bf16 %v699, %v698
  %v758 = vpack.c.bf16 %v701, %v700
  %v759 = vpack.c.bf16 %v703, %v702
  %v760 = vpack.c.bf16 %v705, %v704
  %v761 = vpack.c.bf16 %v707, %v706
  %v762 = vpack.c.bf16 %v709, %v708
  %v763 = vpack.c.bf16 %v711, %v710
  %v764 = vpack.c.bf16 %v713, %v712
  %v765 = vpack.c.bf16 %v715, %v714
  %v766 = vpack.c.bf16 %v717, %v716
  %v767 = vpack.c.bf16 %v719, %v718
  %v768 = vpack.c.bf16 %v721, %v720
  %v769 = vpack.c.bf16 %v723, %v722
  %v770 = vpack.c.bf16 %v725, %v724
  %v771 = vpack.c.bf16 %v727, %v726
  %v772 = vpack.c.bf16 %v729, %v728
  %v773 = vpack.c.bf16 %v731, %v730
  %v774 = vpack.c.bf16 %v733, %v732
  %v775 = vpack.c.bf16 %v735, %v734
  %v776 = vpack.c.bf16 %v737, %v736
  %v777 = vpack.c.bf16 %v739, %v738
  %v778 = vpack.c.bf16 %v741, %v740
  %v779 = vpack.c.bf16 %v743, %v742
  %v780 = vpack.c.bf16 %v745, %v744
  %v781 = vpack.c.bf16 %v747, %v746
  %v782 = vpack.c.bf16 %v749, %v748
  %v783 = vpack.c.bf16 %v751, %v750
  %v816 = vunpack.c.l.b16 %v752
  %v817 = vunpack.c.h.b16 %v752
  %v818 = vunpack.c.l.b16 %v753
  %v819 = vunpack.c.h.b16 %v753
  %v820 = vunpack.c.l.b16 %v754
  %v821 = vunpack.c.h.b16 %v754
  %v822 = vunpack.c.l.b16 %v755
  %v823 = vunpack.c.h.b16 %v755
  %v824 = vunpack.c.l.b16 %v756
  %v825 = vunpack.c.h.b16 %v756
  %v826 = vunpack.c.l.b16 %v757
  %v827 = vunpack.c.h.b16 %v757
  %v828 = vunpack.c.l.b16 %v758
  %v829 = vunpack.c.h.b16 %v758
  %v830 = vunpack.c.l.b16 %v759
  %v831 = vunpack.c.h.b16 %v759
  %v832 = vunpack.c.l.b16 %v760
  %v833 = vunpack.c.h.b16 %v760
  %v834 = vunpack.c.l.b16 %v761
  %v835 = vunpack.c.h.b16 %v761
  %v836 = vunpack.c.l.b16 %v762
  %v837 = vunpack.c.h.b16 %v762
  %v838 = vunpack.c.l.b16 %v763
  %v839 = vunpack.c.h.b16 %v763
  %v840 = vunpack.c.l.b16 %v764
  %v841 = vunpack.c.h.b16 %v764
  %v842 = vunpack.c.l.b16 %v765
  %v843 = vunpack.c.h.b16 %v765
  %v844 = vunpack.c.l.b16 %v766
  %v845 = vunpack.c.h.b16 %v766
  %v846 = vunpack.c.l.b16 %v767
  %v847 = vunpack.c.h.b16 %v767
  %v848 = vunpack.c.l.b16 %v768
  %v849 = vunpack.c.h.b16 %v768
  %v850 = vunpack.c.l.b16 %v769
  %v851 = vunpack.c.h.b16 %v769
  %v852 = vunpack.c.l.b16 %v770
  %v853 = vunpack.c.h.b16 %v770
  %v854 = vunpack.c.l.b16 %v771
  %v855 = vunpack.c.h.b16 %v771
  %v856 = vunpack.c.l.b16 %v772
  %v857 = vunpack.c.h.b16 %v772
  %v858 = vunpack.c.l.b16 %v773
  %v859 = vunpack.c.h.b16 %v773
  %v860 = vunpack.c.l.b16 %v774
  %v861 = vunpack.c.h.b16 %v774
  %v862 = vunpack.c.l.b16 %v775
  %v863 = vunpack.c.h.b16 %v775
  %v864 = vunpack.c.l.b16 %v776
  %v865 = vunpack.c.h.b16 %v776
  %v866 = vunpack.c.l.b16 %v777
  %v867 = vunpack.c.h.b16 %v777
  %v868 = vunpack.c.l.b16 %v778
  %v869 = vunpack.c.h.b16 %v778
  %v870 = vunpack.c.l.b16 %v779
  %v871 = vunpack.c.h.b16 %v779
  %v872 = vunpack.c.l.b16 %v780
  %v873 = vunpack.c.h.b16 %v780
  %v874 = vunpack.c.l.b16 %v781
  %v875 = vunpack.c.h.b16 %v781
  %v876 = vunpack.c.l.b16 %v782
  %v877 = vunpack.c.h.b16 %v782
  %v878 = vunpack.c.l.b16 %v783
  %v879 = vunpack.c.h.b16 %v783
  %v880 = vpack.c.b16 %v816, %v816
  %v881 = vpack.c.b16 %v817, %v817
  %v882 = vpack.c.b16 %v818, %v818
  %v883 = vpack.c.b16 %v819, %v819
  %v884 = vpack.c.b16 %v820, %v820
  %v885 = vpack.c.b16 %v821, %v821
  %v886 = vpack.c.b16 %v822, %v822
  %v887 = vpack.c.b16 %v823, %v823
  %v888 = vpack.c.b16 %v824, %v824
  %v889 = vpack.c.b16 %v825, %v825
  %v890 = vpack.c.b16 %v826, %v826
  %v891 = vpack.c.b16 %v827, %v827
  %v892 = vpack.c.b16 %v828, %v828
  %v893 = vpack.c.b16 %v829, %v829
  %v894 = vpack.c.b16 %v830, %v830
  %v895 = vpack.c.b16 %v831, %v831
  %v896 = vpack.c.b16 %v832, %v832
  %v897 = vpack.c.b16 %v833, %v833
  %v898 = vpack.c.b16 %v834, %v834
  %v899 = vpack.c.b16 %v835, %v835
  %v900 = vpack.c.b16 %v836, %v836
  %v901 = vpack.c.b16 %v837, %v837
  %v902 = vpack.c.b16 %v838, %v838
  %v903 = vpack.c.b16 %v839, %v839
  %v904 = vpack.c.b16 %v840, %v840
  %v905 = vpack.c.b16 %v841, %v841
  %v906 = vpack.c.b16 %v842, %v842
  %v907 = vpack.c.b16 %v843, %v843
  %v908 = vpack.c.b16 %v844, %v844
  %v909 = vpack.c.b16 %v845, %v845
  %v910 = vpack.c.b16 %v846, %v846
  %v911 = vpack.c.b16 %v847, %v847
  %v912 = vpack.c.b16 %v848, %v848
  %v913 = vpack.c.b16 %v849, %v849
  %v914 = vpack.c.b16 %v850, %v850
  %v915 = vpack.c.b16 %v851, %v851
  %v916 = vpack.c.b16 %v852, %v852
  %v917 = vpack.c.b16 %v853, %v853
  %v918 = vpack.c.b16 %v854, %v854
  %v919 = vpack.c.b16 %v855, %v855
  %v920 = vpack.c.b16 %v856, %v856
  %v921 = vpack.c.b16 %v857, %v857
  %v922 = vpack.c.b16 %v858, %v858
  %v923 = vpack.c.b16 %v859, %v859
  %v924 = vpack.c.b16 %v860, %v860
  %v925 = vpack.c.b16 %v861, %v861
  %v926 = vpack.c.b16 %v862, %v862
  %v927 = vpack.c.b16 %v863, %v863
  %v928 = vpack.c.b16 %v864, %v864
  %v929 = vpack.c.b16 %v865, %v865
  %v930 = vpack.c.b16 %v866, %v866
  %v931 = vpack.c.b16 %v867, %v867
  %v932 = vpack.c.b16 %v868, %v868
  %v933 = vpack.c.b16 %v869, %v869
  %v934 = vpack.c.b16 %v870, %v870
  %v935 = vpack.c.b16 %v871, %v871
  %v936 = vpack.c.b16 %v872, %v872
  %v937 = vpack.c.b16 %v873, %v873
  %v938 = vpack.c.b16 %v874, %v874
  %v939 = vpack.c.b16 %v875, %v875
  %v940 = vpack.c.b16 %v876, %v876
  %v941 = vpack.c.b16 %v877, %v877
  %v942 = vpack.c.b16 %v878, %v878
  %v943 = vpack.c.b16 %v879, %v879
  %1008 = vst [vmem:[%s3] sm:$0xf] %v880
  %1009 = vst [vmem:[%s3 + $0x4] sm:$0xf] %v881
  %1010 = vst [vmem:[%s3 + $0x8] sm:$0xf] %v882
  %1011 = vst [vmem:[%s3 + $0xc] sm:$0xf] %v883
  %1012 = vst [vmem:[%s3 + $0x10] sm:$0xf] %v884
  %1013 = vst [vmem:[%s3 + $0x14] sm:$0xf] %v885
  %1014 = vst [vmem:[%s3 + $0x18] sm:$0xf] %v886
  %1015 = vst [vmem:[%s3 + $0x1c] sm:$0xf] %v887
  %1016 = vst [vmem:[%s3 + $0x20] sm:$0xf] %v888
  %1017 = vst [vmem:[%s3 + $0x24] sm:$0xf] %v889
  %1018 = vst [vmem:[%s3 + $0x28] sm:$0xf] %v890
  %1019 = vst [vmem:[%s3 + $0x2c] sm:$0xf] %v891
  %1020 = vst [vmem:[%s3 + $0x30] sm:$0xf] %v892
  %1021 = vst [vmem:[%s3 + $0x34] sm:$0xf] %v893
  %1022 = vst [vmem:[%s3 + $0x38] sm:$0xf] %v894
  %1023 = vst [vmem:[%s3 + $0x3c] sm:$0xf] %v895
  %1024 = vst [vmem:[%s3 + $0x40] sm:$0xf] %v896
  %1025 = vst [vmem:[%s3 + $0x44] sm:$0xf] %v897
  %1026 = vst [vmem:[%s3 + $0x48] sm:$0xf] %v898
  %1027 = vst [vmem:[%s3 + $0x4c] sm:$0xf] %v899
  %1028 = vst [vmem:[%s3 + $0x50] sm:$0xf] %v900
  %1029 = vst [vmem:[%s3 + $0x54] sm:$0xf] %v901
  %1030 = vst [vmem:[%s3 + $0x58] sm:$0xf] %v902
  %1031 = vst [vmem:[%s3 + $0x5c] sm:$0xf] %v903
  %1032 = vst [vmem:[%s3 + $0x60] sm:$0xf] %v904
  %1033 = vst [vmem:[%s3 + $0x64] sm:$0xf] %v905
  %1034 = vst [vmem:[%s3 + $0x68] sm:$0xf] %v906
  %1035 = vst [vmem:[%s3 + $0x6c] sm:$0xf] %v907
  %1036 = vst [vmem:[%s3 + $0x70] sm:$0xf] %v908
  %1037 = vst [vmem:[%s3 + $0x74] sm:$0xf] %v909
  %1038 = vst [vmem:[%s3 + $0x78] sm:$0xf] %v910
  %1039 = vst [vmem:[%s3 + $0x7c] sm:$0xf] %v911
  %1040 = vst [vmem:[%s3 + $0x80] sm:$0xf] %v912
  %1041 = vst [vmem:[%s3 + $0x84] sm:$0xf] %v913
  %1042 = vst [vmem:[%s3 + $0x88] sm:$0xf] %v914
  %1043 = vst [vmem:[%s3 + $0x8c] sm:$0xf] %v915
  %1044 = vst [vmem:[%s3 + $0x90] sm:$0xf] %v916
  %1045 = vst [vmem:[%s3 + $0x94] sm:$0xf] %v917
  %1046 = vst [vmem:[%s3 + $0x98] sm:$0xf] %v918
  %1047 = vst [vmem:[%s3 + $0x9c] sm:$0xf] %v919
  %1048 = vst [vmem:[%s3 + $0xa0] sm:$0xf] %v920
  %1049 = vst [vmem:[%s3 + $0xa4] sm:$0xf] %v921
  %1050 = vst [vmem:[%s3 + $0xa8] sm:$0xf] %v922
  %1051 = vst [vmem:[%s3 + $0xac] sm:$0xf] %v923
  %1052 = vst [vmem:[%s3 + $0xb0] sm:$0xf] %v924
  %1053 = vst [vmem:[%s3 + $0xb4] sm:$0xf] %v925
  %1054 = vst [vmem:[%s3 + $0xb8] sm:$0xf] %v926
  %1055 = vst [vmem:[%s3 + $0xbc] sm:$0xf] %v927
  %1056 = vst [vmem:[%s3 + $0xc0] sm:$0xf] %v928
  %1057 = vst [vmem:[%s3 + $0xc4] sm:$0xf] %v929
  %1058 = vst [vmem:[%s3 + $0xc8] sm:$0xf] %v930
  %1059 = vst [vmem:[%s3 + $0xcc] sm:$0xf] %v931
  %1060 = vst [vmem:[%s3 + $0xd0] sm:$0xf] %v932
  %1061 = vst [vmem:[%s3 + $0xd4] sm:$0xf] %v933
  %1062 = vst [vmem:[%s3 + $0xd8] sm:$0xf] %v934
  %1063 = vst [vmem:[%s3 + $0xdc] sm:$0xf] %v935
  %1064 = vst [vmem:[%s3 + $0xe0] sm:$0xf] %v936
  %1065 = vst [vmem:[%s3 + $0xe4] sm:$0xf] %v937
  %1066 = vst [vmem:[%s3 + $0xe8] sm:$0xf] %v938
  %1067 = vst [vmem:[%s3 + $0xec] sm:$0xf] %v939
  %1068 = vst [vmem:[%s3 + $0xf0] sm:$0xf] %v940
  %1069 = vst [vmem:[%s3 + $0xf4] sm:$0xf] %v941
  %1070 = vst [vmem:[%s3 + $0xf8] sm:$0xf] %v942
  %1071 = vst [vmem:[%s3 + $0xfc] sm:$0xf] %v943
  // Predicated region
  $region14: #{_lambda_.4} parent=0 // pred_check
    _
  $region15: #{_lambda_.4} parent=0 // pred_check_branch
    %1073 = sbr.rel (0) target = $region17
  $region16: #{_lambda_.4} parent=0 // pred_region
    _
  $region17: #{_lambda_.4} parent=0 // pred_fallthru
    _
  // Predicated region
  $region18: #{_lambda_.4} parent=0 // pred_check
    _
  $region19: #{_lambda_.4} parent=0 // pred_check_branch
    %1075 = sbr.rel (0) target = $region21
  $region20: #{_lambda_.4} parent=0 // pred_region
    _
  $region21: #{_lambda_.4} parent=0 // pred_fallthru
    _

// kernel: _lambda_.5
$region0: #{_lambda_.5}
  #allocation0 [shape = 'u32[]', space=smem, size = 0x4, offset = 0x4, fixed_abs, tag = 'smem constant byte address 0x4 - core index']
  #allocation1 [shape = 'u32[144,128]{1,0:T(1,128)}', space=vmem, size = 0x12000, scoped, tag = 'internal scratch']
  %s0 = inlined_call_operand.vmem [shape: bf16[128,1600], index: 0, kind: input, shape index: {}]
  %s1 = inlined_call_operand.vmem [shape: bf16[1600,128], index: 1, kind: input, shape index: {}]
  %s2 = inlined_call_operand.vmem [shape: f32[1,128], index: 2, kind: input, shape index: {}]
  %s3 = inlined_call_operand.vmem [shape: f32[1,128], index: 3, kind: input, shape index: {}]
  %s4 = inlined_call_operand.vmem [shape: f32[1,128], index: 4, kind: input, shape index: {}]
  %s5 = inlined_call_operand.vmem [shape: bf16[128,128], index: 5, kind: output, shape index: {}]
  %s6 = sld [smem:[#allocation0]]
  $region30: #{_lambda_.5} parent=0
    _
  %s8 = ssub.s32 1, %s6
  %s9 = scalar_select 0, %s8, %s6
  // Predicated region
  $region2: #{_lambda_.5} parent=0 // pred_check
    _
  $region3: #{_lambda_.5} parent=0 // pred_check_branch
    %11 = sbr.rel (0) target = $region5
  $region4: #{_lambda_.5} parent=0 // pred_region
    _
  $region5: #{_lambda_.5} parent=0 // pred_fallthru
    _
  // Predicated region
  $region6: #{_lambda_.5} parent=0 // pred_check
    _
  $region7: #{_lambda_.5} parent=0 // pred_check_branch
    %13 = sbr.rel (0) target = $region9
  $region8: #{_lambda_.5} parent=0 // pred_region
    _
  $region9: #{_lambda_.5} parent=0 // pred_fallthru
    _
  // Predicated region
  $region10: #{_lambda_.5} parent=0 // pred_check
    _
  $region11: #{_lambda_.5} parent=0 // pred_check_branch
    %15 = sbr.rel (0) target = $region13
  $region12: #{_lambda_.5} parent=0 // pred_region
    _
  $region13: #{_lambda_.5} parent=0 // pred_fallthru
    _
  // Predicated region
  $region14: #{_lambda_.5} parent=0 // pred_check
    _
  $region15: #{_lambda_.5} parent=0 // pred_check_branch
    %17 = sbr.rel (0) target = $region17
  $region16: #{_lambda_.5} parent=0 // pred_region
    _
  $region17: #{_lambda_.5} parent=0 // pred_fallthru
    _
  // Predicated region
  $region18: #{_lambda_.5} parent=0 // pred_check
    _
  $region19: #{_lambda_.5} parent=0 // pred_check_branch
    %19 = sbr.rel (0) target = $region21
  $region20: #{_lambda_.5} parent=0 // pred_region
    _
  $region21: #{_lambda_.5} parent=0 // pred_fallthru
    _
  %v21 = vld [vmem:[%s0] sm:$0xff]
  %v22 = vld [vmem:[%s0 + $0x8] sm:$0xff]
  %v23 = vld [vmem:[%s0 + $0x10] sm:$0xff]
  %v24 = vld [vmem:[%s0 + $0x18] sm:$0xff]
  %v25 = vld [vmem:[%s0 + $0x20] sm:$0xff]
  %v26 = vld [vmem:[%s0 + $0x28] sm:$0xff]
  %v27 = vld [vmem:[%s0 + $0x30] sm:$0xf]
  %v28 = vld [vmem:[%s0 + $0x34] sm:$0xff]
  %v29 = vld [vmem:[%s0 + $0x3c] sm:$0xff]
  %v30 = vld [vmem:[%s0 + $0x44] sm:$0xff]
  %v31 = vld [vmem:[%s0 + $0x4c] sm:$0xff]
  %v32 = vld [vmem:[%s0 + $0x54] sm:$0xff]
  %v33 = vld [vmem:[%s0 + $0x5c] sm:$0xff]
  %v34 = vld [vmem:[%s0 + $0x64] sm:$0xf]
  %v35 = vld [vmem:[%s0 + $0x68] sm:$0xff]
  %v36 = vld [vmem:[%s0 + $0x70] sm:$0xff]
  %v37 = vld [vmem:[%s0 + $0x78] sm:$0xff]
  %v38 = vld [vmem:[%s0 + $0x80] sm:$0xff]
  %v39 = vld [vmem:[%s0 + $0x88] sm:$0xff]
  %v40 = vld [vmem:[%s0 + $0x90] sm:$0xff]
  %v41 = vld [vmem:[%s0 + $0x98] sm:$0xf]
  %v42 = vld [vmem:[%s0 + $0x9c] sm:$0xff]
  %v43 = vld [vmem:[%s0 + $0xa4] sm:$0xff]
  %v44 = vld [vmem:[%s0 + $0xac] sm:$0xff]
  %v45 = vld [vmem:[%s0 + $0xb4] sm:$0xff]
  %v46 = vld [vmem:[%s0 + $0xbc] sm:$0xff]
  %v47 = vld [vmem:[%s0 + $0xc4] sm:$0xff]
  %v48 = vld [vmem:[%s0 + $0xcc] sm:$0xf]
  %v49 = vld [vmem:[%s0 + $0xd0] sm:$0xff]
  %v50 = vld [vmem:[%s0 + $0xd8] sm:$0xff]
  %v51 = vld [vmem:[%s0 + $0xe0] sm:$0xff]
  %v52 = vld [vmem:[%s0 + $0xe8] sm:$0xff]
  %v53 = vld [vmem:[%s0 + $0xf0] sm:$0xff]
  %v54 = vld [vmem:[%s0 + $0xf8] sm:$0xff]
  %v55 = vld [vmem:[%s0 + $0x100] sm:$0xf]
  %v56 = vld [vmem:[%s0 + $0x104] sm:$0xff]
  %v57 = vld [vmem:[%s0 + $0x10c] sm:$0xff]
  %v58 = vld [vmem:[%s0 + $0x114] sm:$0xff]
  %v59 = vld [vmem:[%s0 + $0x11c] sm:$0xff]
  %v60 = vld [vmem:[%s0 + $0x124] sm:$0xff]
  %v61 = vld [vmem:[%s0 + $0x12c] sm:$0xff]
  %v62 = vld [vmem:[%s0 + $0x134] sm:$0xf]
  %v63 = vld [vmem:[%s0 + $0x138] sm:$0xff]
  %v64 = vld [vmem:[%s0 + $0x140] sm:$0xff]
  %v65 = vld [vmem:[%s0 + $0x148] sm:$0xff]
  %v66 = vld [vmem:[%s0 + $0x150] sm:$0xff]
  %v67 = vld [vmem:[%s0 + $0x158] sm:$0xff]
  %v68 = vld [vmem:[%s0 + $0x160] sm:$0xff]
  %v69 = vld [vmem:[%s0 + $0x168] sm:$0xf]
  %v70 = vld [vmem:[%s0 + $0x16c] sm:$0xff]
  %v71 = vld [vmem:[%s0 + $0x174] sm:$0xff]
  %v72 = vld [vmem:[%s0 + $0x17c] sm:$0xff]
  %v73 = vld [vmem:[%s0 + $0x184] sm:$0xff]
  %v74 = vld [vmem:[%s0 + $0x18c] sm:$0xff]
  %v75 = vld [vmem:[%s0 + $0x194] sm:$0xff]
  %v76 = vld [vmem:[%s0 + $0x19c] sm:$0xf]
  %v77 = vld [vmem:[%s0 + $0x1a0] sm:$0xff]
  %v78 = vld [vmem:[%s0 + $0x1a8] sm:$0xff]
  %v79 = vld [vmem:[%s0 + $0x1b0] sm:$0xff]
  %v80 = vld [vmem:[%s0 + $0x1b8] sm:$0xff]
  %v81 = vld [vmem:[%s0 + $0x1c0] sm:$0xff]
  %v82 = vld [vmem:[%s0 + $0x1c8] sm:$0xff]
  %v83 = vld [vmem:[%s0 + $0x1d0] sm:$0xf]
  %v84 = vld [vmem:[%s0 + $0x1d4] sm:$0xff]
  %v85 = vld [vmem:[%s0 + $0x1dc] sm:$0xff]
  %v86 = vld [vmem:[%s0 + $0x1e4] sm:$0xff]
  %v87 = vld [vmem:[%s0 + $0x1ec] sm:$0xff]
  %v88 = vld [vmem:[%s0 + $0x1f4] sm:$0xff]
  %v89 = vld [vmem:[%s0 + $0x1fc] sm:$0xff]
  %v90 = vld [vmem:[%s0 + $0x204] sm:$0xf]
  %v91 = vld [vmem:[%s0 + $0x208] sm:$0xff]
  %v92 = vld [vmem:[%s0 + $0x210] sm:$0xff]
  %v93 = vld [vmem:[%s0 + $0x218] sm:$0xff]
  %v94 = vld [vmem:[%s0 + $0x220] sm:$0xff]
  %v95 = vld [vmem:[%s0 + $0x228] sm:$0xff]
  %v96 = vld [vmem:[%s0 + $0x230] sm:$0xff]
  %v97 = vld [vmem:[%s0 + $0x238] sm:$0xf]
  %v98 = vld [vmem:[%s0 + $0x23c] sm:$0xff]
  %v99 = vld [vmem:[%s0 + $0x244] sm:$0xff]
  %v100 = vld [vmem:[%s0 + $0x24c] sm:$0xff]
  %v101 = vld [vmem:[%s0 + $0x254] sm:$0xff]
  %v102 = vld [vmem:[%s0 + $0x25c] sm:$0xff]
  %v103 = vld [vmem:[%s0 + $0x264] sm:$0xff]
  %v104 = vld [vmem:[%s0 + $0x26c] sm:$0xf]
  %v105 = vld [vmem:[%s0 + $0x270] sm:$0xff]
  %v106 = vld [vmem:[%s0 + $0x278] sm:$0xff]
  %v107 = vld [vmem:[%s0 + $0x280] sm:$0xff]
  %v108 = vld [vmem:[%s0 + $0x288] sm:$0xff]
  %v109 = vld [vmem:[%s0 + $0x290] sm:$0xff]
  %v110 = vld [vmem:[%s0 + $0x298] sm:$0xff]
  %v111 = vld [vmem:[%s0 + $0x2a0] sm:$0xf]
  %v112 = vld [vmem:[%s0 + $0x2a4] sm:$0xff]
  %v113 = vld [vmem:[%s0 + $0x2ac] sm:$0xff]
  %v114 = vld [vmem:[%s0 + $0x2b4] sm:$0xff]
  %v115 = vld [vmem:[%s0 + $0x2bc] sm:$0xff]
  %v116 = vld [vmem:[%s0 + $0x2c4] sm:$0xff]
  %v117 = vld [vmem:[%s0 + $0x2cc] sm:$0xff]
  %v118 = vld [vmem:[%s0 + $0x2d4] sm:$0xf]
  %v119 = vld [vmem:[%s0 + $0x2d8] sm:$0xff]
  %v120 = vld [vmem:[%s0 + $0x2e0] sm:$0xff]
  %v121 = vld [vmem:[%s0 + $0x2e8] sm:$0xff]
  %v122 = vld [vmem:[%s0 + $0x2f0] sm:$0xff]
  %v123 = vld [vmem:[%s0 + $0x2f8] sm:$0xff]
  %v124 = vld [vmem:[%s0 + $0x300] sm:$0xff]
  %v125 = vld [vmem:[%s0 + $0x308] sm:$0xf]
  %v126 = vld [vmem:[%s0 + $0x30c] sm:$0xff]
  %v127 = vld [vmem:[%s0 + $0x314] sm:$0xff]
  %v128 = vld [vmem:[%s0 + $0x31c] sm:$0xff]
  %v129 = vld [vmem:[%s0 + $0x324] sm:$0xff]
  %v130 = vld [vmem:[%s0 + $0x32c] sm:$0xff]
  %v131 = vld [vmem:[%s0 + $0x334] sm:$0xff]
  %v132 = vld [vmem:[%s0 + $0x33c] sm:$0xf]
  %v133 = vld [vmem:[%s1] sm:$0xf]
  %v134 = vld [vmem:[%s1 + $0x4] sm:$0xf]
  %v135 = vld [vmem:[%s1 + $0x8] sm:$0xf]
  %v136 = vld [vmem:[%s1 + $0xc] sm:$0xf]
  %v137 = vld [vmem:[%s1 + $0x10] sm:$0xf]
  %v138 = vld [vmem:[%s1 + $0x14] sm:$0xf]
  %v139 = vld [vmem:[%s1 + $0x18] sm:$0xf]
  %v140 = vld [vmem:[%s1 + $0x1c] sm:$0xf]
  %v141 = vld [vmem:[%s1 + $0x20] sm:$0xf]
  %v142 = vld [vmem:[%s1 + $0x24] sm:$0xf]
  %v143 = vld [vmem:[%s1 + $0x28] sm:$0xf]
  %v144 = vld [vmem:[%s1 + $0x2c] sm:$0xf]
  %v145 = vld [vmem:[%s1 + $0x30] sm:$0xf]
  %v146 = vld [vmem:[%s1 + $0x34] sm:$0xf]
  %v147 = vld [vmem:[%s1 + $0x38] sm:$0xf]
  %v148 = vld [vmem:[%s1 + $0x3c] sm:$0xf]
  %v149 = vld [vmem:[%s1 + $0x40] sm:$0xf]
  %v150 = vld [vmem:[%s1 + $0x44] sm:$0xf]
  %v151 = vld [vmem:[%s1 + $0x48] sm:$0xf]
  %v152 = vld [vmem:[%s1 + $0x4c] sm:$0xf]
  %v153 = vld [vmem:[%s1 + $0x50] sm:$0xf]
  %v154 = vld [vmem:[%s1 + $0x54] sm:$0xf]
  %v155 = vld [vmem:[%s1 + $0x58] sm:$0xf]
  %v156 = vld [vmem:[%s1 + $0x5c] sm:$0xf]
  %v157 = vld [vmem:[%s1 + $0x60] sm:$0xf]
  %v158 = vld [vmem:[%s1 + $0x64] sm:$0xf]
  %v159 = vld [vmem:[%s1 + $0x68] sm:$0xf]
  %v160 = vld [vmem:[%s1 + $0x6c] sm:$0xf]
  %v161 = vld [vmem:[%s1 + $0x70] sm:$0xf]
  %v162 = vld [vmem:[%s1 + $0x74] sm:$0xf]
  %v163 = vld [vmem:[%s1 + $0x78] sm:$0xf]
  %v164 = vld [vmem:[%s1 + $0x7c] sm:$0xf]
  %v165 = vld [vmem:[%s1 + $0x80] sm:$0xf]
  %v166 = vld [vmem:[%s1 + $0x84] sm:$0xf]
  %v167 = vld [vmem:[%s1 + $0x88] sm:$0xf]
  %v168 = vld [vmem:[%s1 + $0x8c] sm:$0xf]
  %v169 = vld [vmem:[%s1 + $0x90] sm:$0xf]
  %v170 = vld [vmem:[%s1 + $0x94] sm:$0xf]
  %v171 = vld [vmem:[%s1 + $0x98] sm:$0xf]
  %v172 = vld [vmem:[%s1 + $0x9c] sm:$0xf]
  %v173 = vld [vmem:[%s1 + $0xa0] sm:$0xf]
  %v174 = vld [vmem:[%s1 + $0xa4] sm:$0xf]
  %v175 = vld [vmem:[%s1 + $0xa8] sm:$0xf]
  %v176 = vld [vmem:[%s1 + $0xac] sm:$0xf]
  %v177 = vld [vmem:[%s1 + $0xb0] sm:$0xf]
  %v178 = vld [vmem:[%s1 + $0xb4] sm:$0xf]
  %v179 = vld [vmem:[%s1 + $0xb8] sm:$0xf]
  %v180 = vld [vmem:[%s1 + $0xbc] sm:$0xf]
  %v181 = vld [vmem:[%s1 + $0xc0] sm:$0xf]
  %v182 = vld [vmem:[%s1 + $0xc4] sm:$0xf]
  %v183 = vld [vmem:[%s1 + $0xc8] sm:$0xf]
  %v184 = vld [vmem:[%s1 + $0xcc] sm:$0xf]
  %v185 = vld [vmem:[%s1 + $0xd0] sm:$0xf]
  %v186 = vld [vmem:[%s1 + $0xd4] sm:$0xf]
  %v187 = vld [vmem:[%s1 + $0xd8] sm:$0xf]
  %v188 = vld [vmem:[%s1 + $0xdc] sm:$0xf]
  %v189 = vld [vmem:[%s1 + $0xe0] sm:$0xf]
  %v190 = vld [vmem:[%s1 + $0xe4] sm:$0xf]
  %v191 = vld [vmem:[%s1 + $0xe8] sm:$0xf]
  %v192 = vld [vmem:[%s1 + $0xec] sm:$0xf]
  %v193 = vld [vmem:[%s1 + $0xf0] sm:$0xf]
  %v194 = vld [vmem:[%s1 + $0xf4] sm:$0xf]
  %v195 = vld [vmem:[%s1 + $0xf8] sm:$0xf]
  %v196 = vld [vmem:[%s1 + $0xfc] sm:$0xf]
  %v197 = vld [vmem:[%s1 + $0x100] sm:$0xf]
  %v198 = vld [vmem:[%s1 + $0x104] sm:$0xf]
  %v199 = vld [vmem:[%s1 + $0x108] sm:$0xf]
  %v200 = vld [vmem:[%s1 + $0x10c] sm:$0xf]
  %v201 = vld [vmem:[%s1 + $0x110] sm:$0xf]
  %v202 = vld [vmem:[%s1 + $0x114] sm:$0xf]
  %v203 = vld [vmem:[%s1 + $0x118] sm:$0xf]
  %v204 = vld [vmem:[%s1 + $0x11c] sm:$0xf]
  %v205 = vld [vmem:[%s1 + $0x120] sm:$0xf]
  %v206 = vld [vmem:[%s1 + $0x124] sm:$0xf]
  %v207 = vld [vmem:[%s1 + $0x128] sm:$0xf]
  %v208 = vld [vmem:[%s1 + $0x12c] sm:$0xf]
  %v209 = vld [vmem:[%s1 + $0x130] sm:$0xf]
  %v210 = vld [vmem:[%s1 + $0x134] sm:$0xf]
  %v211 = vld [vmem:[%s1 + $0x138] sm:$0xf]
  %v212 = vld [vmem:[%s1 + $0x13c] sm:$0xf]
  %v213 = vld [vmem:[%s1 + $0x140] sm:$0xf]
  %v214 = vld [vmem:[%s1 + $0x144] sm:$0xf]
  %v215 = vld [vmem:[%s1 + $0x148] sm:$0xf]
  %v216 = vld [vmem:[%s1 + $0x14c] sm:$0xf]
  %v217 = vld [vmem:[%s1 + $0x150] sm:$0xf]
  %v218 = vld [vmem:[%s1 + $0x154] sm:$0xf]
  %v219 = vld [vmem:[%s1 + $0x158] sm:$0xf]
  %v220 = vld [vmem:[%s1 + $0x15c] sm:$0xf]
  %v221 = vld [vmem:[%s1 + $0x160] sm:$0xf]
  %v222 = vld [vmem:[%s1 + $0x164] sm:$0xf]
  %v223 = vld [vmem:[%s1 + $0x168] sm:$0xf]
  %v224 = vld [vmem:[%s1 + $0x16c] sm:$0xf]
  %v225 = vld [vmem:[%s1 + $0x170] sm:$0xf]
  %v226 = vld [vmem:[%s1 + $0x174] sm:$0xf]
  %v227 = vld [vmem:[%s1 + $0x178] sm:$0xf]
  %v228 = vld [vmem:[%s1 + $0x17c] sm:$0xf]
  %v229 = vld [vmem:[%s1 + $0x180] sm:$0xf]
  %v230 = vld [vmem:[%s1 + $0x184] sm:$0xf]
  %v231 = vld [vmem:[%s1 + $0x188] sm:$0xf]
  %v232 = vld [vmem:[%s1 + $0x18c] sm:$0xf]
  %v233 = vld [vmem:[%s1 + $0x190] sm:$0xf]
  %v234 = vld [vmem:[%s1 + $0x194] sm:$0xf]
  %v235 = vld [vmem:[%s1 + $0x198] sm:$0xf]
  %v236 = vld [vmem:[%s1 + $0x19c] sm:$0xf]
  %v237 = vld [vmem:[%s1 + $0x1a0] sm:$0xf]
  %v238 = vld [vmem:[%s1 + $0x1a4] sm:$0xf]
  %v239 = vld [vmem:[%s1 + $0x1a8] sm:$0xf]
  %v240 = vld [vmem:[%s1 + $0x1ac] sm:$0xf]
  %v241 = vld [vmem:[%s1 + $0x1b0] sm:$0xf]
  %v242 = vld [vmem:[%s1 + $0x1b4] sm:$0xf]
  %v243 = vld [vmem:[%s1 + $0x1b8] sm:$0xf]
  %v244 = vld [vmem:[%s1 + $0x1bc] sm:$0xf]
  %v245 = vld [vmem:[%s1 + $0x1c0] sm:$0xf]
  %v246 = vld [vmem:[%s1 + $0x1c4] sm:$0xf]
  %v247 = vld [vmem:[%s1 + $0x1c8] sm:$0xf]
  %v248 = vld [vmem:[%s1 + $0x1cc] sm:$0xf]
  %v249 = vld [vmem:[%s1 + $0x1d0] sm:$0xf]
  %v250 = vld [vmem:[%s1 + $0x1d4] sm:$0xf]
  %v251 = vld [vmem:[%s1 + $0x1d8] sm:$0xf]
  %v252 = vld [vmem:[%s1 + $0x1dc] sm:$0xf]
  %v253 = vld [vmem:[%s1 + $0x1e0] sm:$0xf]
  %v254 = vld [vmem:[%s1 + $0x1e4] sm:$0xf]
  %v255 = vld [vmem:[%s1 + $0x1e8] sm:$0xf]
  %v256 = vld [vmem:[%s1 + $0x1ec] sm:$0xf]
  %v257 = vld [vmem:[%s1 + $0x1f0] sm:$0xf]
  %v258 = vld [vmem:[%s1 + $0x1f4] sm:$0xf]
  %v259 = vld [vmem:[%s1 + $0x1f8] sm:$0xf]
  %v260 = vld [vmem:[%s1 + $0x1fc] sm:$0xf]
  %v261 = vld [vmem:[%s1 + $0x200] sm:$0xf]
  %v262 = vld [vmem:[%s1 + $0x204] sm:$0xf]
  %v263 = vld [vmem:[%s1 + $0x208] sm:$0xf]
  %v264 = vld [vmem:[%s1 + $0x20c] sm:$0xf]
  %v265 = vld [vmem:[%s1 + $0x210] sm:$0xf]
  %v266 = vld [vmem:[%s1 + $0x214] sm:$0xf]
  %v267 = vld [vmem:[%s1 + $0x218] sm:$0xf]
  %v268 = vld [vmem:[%s1 + $0x21c] sm:$0xf]
  %v269 = vld [vmem:[%s1 + $0x220] sm:$0xf]
  %v270 = vld [vmem:[%s1 + $0x224] sm:$0xf]
  %v271 = vld [vmem:[%s1 + $0x228] sm:$0xf]
  %v272 = vld [vmem:[%s1 + $0x22c] sm:$0xf]
  %v273 = vld [vmem:[%s1 + $0x230] sm:$0xf]
  %v274 = vld [vmem:[%s1 + $0x234] sm:$0xf]
  %v275 = vld [vmem:[%s1 + $0x238] sm:$0xf]
  %v276 = vld [vmem:[%s1 + $0x23c] sm:$0xf]
  %v277 = vld [vmem:[%s1 + $0x240] sm:$0xf]
  %v278 = vld [vmem:[%s1 + $0x244] sm:$0xf]
  %v279 = vld [vmem:[%s1 + $0x248] sm:$0xf]
  %v280 = vld [vmem:[%s1 + $0x24c] sm:$0xf]
  %v281 = vld [vmem:[%s1 + $0x250] sm:$0xf]
  %v282 = vld [vmem:[%s1 + $0x254] sm:$0xf]
  %v283 = vld [vmem:[%s1 + $0x258] sm:$0xf]
  %v284 = vld [vmem:[%s1 + $0x25c] sm:$0xf]
  %v285 = vld [vmem:[%s1 + $0x260] sm:$0xf]
  %v286 = vld [vmem:[%s1 + $0x264] sm:$0xf]
  %v287 = vld [vmem:[%s1 + $0x268] sm:$0xf]
  %v288 = vld [vmem:[%s1 + $0x26c] sm:$0xf]
  %v289 = vld [vmem:[%s1 + $0x270] sm:$0xf]
  %v290 = vld [vmem:[%s1 + $0x274] sm:$0xf]
  %v291 = vld [vmem:[%s1 + $0x278] sm:$0xf]
  %v292 = vld [vmem:[%s1 + $0x27c] sm:$0xf]
  %v293 = vld [vmem:[%s1 + $0x280] sm:$0xf]
  %v294 = vld [vmem:[%s1 + $0x284] sm:$0xf]
  %v295 = vld [vmem:[%s1 + $0x288] sm:$0xf]
  %v296 = vld [vmem:[%s1 + $0x28c] sm:$0xf]
  %v297 = vld [vmem:[%s1 + $0x290] sm:$0xf]
  %v298 = vld [vmem:[%s1 + $0x294] sm:$0xf]
  %v299 = vld [vmem:[%s1 + $0x298] sm:$0xf]
  %v300 = vld [vmem:[%s1 + $0x29c] sm:$0xf]
  %v301 = vld [vmem:[%s1 + $0x2a0] sm:$0xf]
  %v302 = vld [vmem:[%s1 + $0x2a4] sm:$0xf]
  %v303 = vld [vmem:[%s1 + $0x2a8] sm:$0xf]
  %v304 = vld [vmem:[%s1 + $0x2ac] sm:$0xf]
  %v305 = vld [vmem:[%s1 + $0x2b0] sm:$0xf]
  %v306 = vld [vmem:[%s1 + $0x2b4] sm:$0xf]
  %v307 = vld [vmem:[%s1 + $0x2b8] sm:$0xf]
  %v308 = vld [vmem:[%s1 + $0x2bc] sm:$0xf]
  %v309 = vld [vmem:[%s1 + $0x2c0] sm:$0xf]
  %v310 = vld [vmem:[%s1 + $0x2c4] sm:$0xf]
  %v311 = vld [vmem:[%s1 + $0x2c8] sm:$0xf]
  %v312 = vld [vmem:[%s1 + $0x2cc] sm:$0xf]
  %v313 = vld [vmem:[%s1 + $0x2d0] sm:$0xf]
  %v314 = vld [vmem:[%s1 + $0x2d4] sm:$0xf]
  %v315 = vld [vmem:[%s1 + $0x2d8] sm:$0xf]
  %v316 = vld [vmem:[%s1 + $0x2dc] sm:$0xf]
  %v317 = vld [vmem:[%s1 + $0x2e0] sm:$0xf]
  %v318 = vld [vmem:[%s1 + $0x2e4] sm:$0xf]
  %v319 = vld [vmem:[%s1 + $0x2e8] sm:$0xf]
  %v320 = vld [vmem:[%s1 + $0x2ec] sm:$0xf]
  %v321 = vld [vmem:[%s1 + $0x2f0] sm:$0xf]
  %v322 = vld [vmem:[%s1 + $0x2f4] sm:$0xf]
  %v323 = vld [vmem:[%s1 + $0x2f8] sm:$0xf]
  %v324 = vld [vmem:[%s1 + $0x2fc] sm:$0xf]
  %v325 = vld [vmem:[%s1 + $0x300] sm:$0xf]
  %v326 = vld [vmem:[%s1 + $0x304] sm:$0xf]
  %v327 = vld [vmem:[%s1 + $0x308] sm:$0xf]
  %v328 = vld [vmem:[%s1 + $0x30c] sm:$0xf]
  %v329 = vld [vmem:[%s1 + $0x310] sm:$0xf]
  %v330 = vld [vmem:[%s1 + $0x314] sm:$0xf]
  %v331 = vld [vmem:[%s1 + $0x318] sm:$0xf]
  %v332 = vld [vmem:[%s1 + $0x31c] sm:$0xf]
  %v333 = vld [vmem:[%s2] sm:$0x1]
  %v335 = vlaneseq
  %v336 = vshrl.u32 %v335, 7
  %v337 = vsub.s32 0, %v336
  %v338 = vrot.slane %v333, %v337
  %v452 = vunpack.c.l.b16 %v21
  %v453 = vunpack.c.h.b16 %v21
  %v454 = vunpack.c.l.b16 %v22
  %v455 = vunpack.c.h.b16 %v22
  %v456 = vunpack.c.l.b16 %v23
  %v457 = vunpack.c.h.b16 %v23
  %v458 = vunpack.c.l.b16 %v24
  %v459 = vunpack.c.h.b16 %v24
  %v460 = vunpack.c.l.b16 %v25
  %v461 = vunpack.c.h.b16 %v25
  %v462 = vunpack.c.l.b16 %v26
  %v463 = vunpack.c.h.b16 %v26
  %v464 = vunpack.c.l.b16 %v27
  %v465 = vunpack.c.l.b16 %v28
  %v466 = vunpack.c.h.b16 %v28
  %v467 = vunpack.c.l.b16 %v29
  %v468 = vunpack.c.h.b16 %v29
  %v469 = vunpack.c.l.b16 %v30
  %v470 = vunpack.c.h.b16 %v30
  %v471 = vunpack.c.l.b16 %v31
  %v472 = vunpack.c.h.b16 %v31
  %v473 = vunpack.c.l.b16 %v32
  %v474 = vunpack.c.h.b16 %v32
  %v475 = vunpack.c.l.b16 %v33
  %v476 = vunpack.c.h.b16 %v33
  %v477 = vunpack.c.l.b16 %v34
  %v478 = vunpack.c.l.b16 %v35
  %v479 = vunpack.c.h.b16 %v35
  %v480 = vunpack.c.l.b16 %v36
  %v481 = vunpack.c.h.b16 %v36
  %v482 = vunpack.c.l.b16 %v37
  %v483 = vunpack.c.h.b16 %v37
  %v484 = vunpack.c.l.b16 %v38
  %v485 = vunpack.c.h.b16 %v38
  %v486 = vunpack.c.l.b16 %v39
  %v487 = vunpack.c.h.b16 %v39
  %v488 = vunpack.c.l.b16 %v40
  %v489 = vunpack.c.h.b16 %v40
  %v490 = vunpack.c.l.b16 %v41
  %v491 = vunpack.c.l.b16 %v42
  %v492 = vunpack.c.h.b16 %v42
  %v493 = vunpack.c.l.b16 %v43
  %v494 = vunpack.c.h.b16 %v43
  %v495 = vunpack.c.l.b16 %v44
  %v496 = vunpack.c.h.b16 %v44
  %v497 = vunpack.c.l.b16 %v45
  %v498 = vunpack.c.h.b16 %v45
  %v499 = vunpack.c.l.b16 %v46
  %v500 = vunpack.c.h.b16 %v46
  %v501 = vunpack.c.l.b16 %v47
  %v502 = vunpack.c.h.b16 %v47
  %v503 = vunpack.c.l.b16 %v48
  %v504 = vunpack.c.l.b16 %v49
  %v505 = vunpack.c.h.b16 %v49
  %v506 = vunpack.c.l.b16 %v50
  %v507 = vunpack.c.h.b16 %v50
  %v508 = vunpack.c.l.b16 %v51
  %v509 = vunpack.c.h.b16 %v51
  %v510 = vunpack.c.l.b16 %v52
  %v511 = vunpack.c.h.b16 %v52
  %v512 = vunpack.c.l.b16 %v53
  %v513 = vunpack.c.h.b16 %v53
  %v514 = vunpack.c.l.b16 %v54
  %v515 = vunpack.c.h.b16 %v54
  %v516 = vunpack.c.l.b16 %v55
  %v517 = vunpack.c.l.b16 %v56
  %v518 = vunpack.c.h.b16 %v56
  %v519 = vunpack.c.l.b16 %v57
  %v520 = vunpack.c.h.b16 %v57
  %v521 = vunpack.c.l.b16 %v58
  %v522 = vunpack.c.h.b16 %v58
  %v523 = vunpack.c.l.b16 %v59
  %v524 = vunpack.c.h.b16 %v59
  %v525 = vunpack.c.l.b16 %v60
  %v526 = vunpack.c.h.b16 %v60
  %v527 = vunpack.c.l.b16 %v61
  %v528 = vunpack.c.h.b16 %v61
  %v529 = vunpack.c.l.b16 %v62
  %v530 = vunpack.c.l.b16 %v63
  %v531 = vunpack.c.h.b16 %v63
  %v532 = vunpack.c.l.b16 %v64
  %v533 = vunpack.c.h.b16 %v64
  %v534 = vunpack.c.l.b16 %v65
  %v535 = vunpack.c.h.b16 %v65
  %v536 = vunpack.c.l.b16 %v66
  %v537 = vunpack.c.h.b16 %v66
  %v538 = vunpack.c.l.b16 %v67
  %v539 = vunpack.c.h.b16 %v67
  %v540 = vunpack.c.l.b16 %v68
  %v541 = vunpack.c.h.b16 %v68
  %v542 = vunpack.c.l.b16 %v69
  %v543 = vunpack.c.l.b16 %v70
  %v544 = vunpack.c.h.b16 %v70
  %v545 = vunpack.c.l.b16 %v71
  %v546 = vunpack.c.h.b16 %v71
  %v547 = vunpack.c.l.b16 %v72
  %v548 = vunpack.c.h.b16 %v72
  %v549 = vunpack.c.l.b16 %v73
  %v550 = vunpack.c.h.b16 %v73
  %v551 = vunpack.c.l.b16 %v74
  %v552 = vunpack.c.h.b16 %v74
  %v553 = vunpack.c.l.b16 %v75
  %v554 = vunpack.c.h.b16 %v75
  %v555 = vunpack.c.l.b16 %v76
  %v556 = vunpack.c.l.b16 %v77
  %v557 = vunpack.c.h.b16 %v77
  %v558 = vunpack.c.l.b16 %v78
  %v559 = vunpack.c.h.b16 %v78
  %v560 = vunpack.c.l.b16 %v79
  %v561 = vunpack.c.h.b16 %v79
  %v562 = vunpack.c.l.b16 %v80
  %v563 = vunpack.c.h.b16 %v80
  %v564 = vunpack.c.l.b16 %v81
  %v565 = vunpack.c.h.b16 %v81
  %v566 = vunpack.c.l.b16 %v82
  %v567 = vunpack.c.h.b16 %v82
  %v568 = vunpack.c.l.b16 %v83
  %v569 = vunpack.c.l.b16 %v84
  %v570 = vunpack.c.h.b16 %v84
  %v571 = vunpack.c.l.b16 %v85
  %v572 = vunpack.c.h.b16 %v85
  %v573 = vunpack.c.l.b16 %v86
  %v574 = vunpack.c.h.b16 %v86
  %v575 = vunpack.c.l.b16 %v87
  %v576 = vunpack.c.h.b16 %v87
  %v577 = vunpack.c.l.b16 %v88
  %v578 = vunpack.c.h.b16 %v88
  %v579 = vunpack.c.l.b16 %v89
  %v580 = vunpack.c.h.b16 %v89
  %v581 = vunpack.c.l.b16 %v90
  %v582 = vunpack.c.l.b16 %v91
  %v583 = vunpack.c.h.b16 %v91
  %v584 = vunpack.c.l.b16 %v92
  %v585 = vunpack.c.h.b16 %v92
  %v586 = vunpack.c.l.b16 %v93
  %v587 = vunpack.c.h.b16 %v93
  %v588 = vunpack.c.l.b16 %v94
  %v589 = vunpack.c.h.b16 %v94
  %v590 = vunpack.c.l.b16 %v95
  %v591 = vunpack.c.h.b16 %v95
  %v592 = vunpack.c.l.b16 %v96
  %v593 = vunpack.c.h.b16 %v96
  %v594 = vunpack.c.l.b16 %v97
  %v595 = vunpack.c.l.b16 %v98
  %v596 = vunpack.c.h.b16 %v98
  %v597 = vunpack.c.l.b16 %v99
  %v598 = vunpack.c.h.b16 %v99
  %v599 = vunpack.c.l.b16 %v100
  %v600 = vunpack.c.h.b16 %v100
  %v601 = vunpack.c.l.b16 %v101
  %v602 = vunpack.c.h.b16 %v101
  %v603 = vunpack.c.l.b16 %v102
  %v604 = vunpack.c.h.b16 %v102
  %v605 = vunpack.c.l.b16 %v103
  %v606 = vunpack.c.h.b16 %v103
  %v607 = vunpack.c.l.b16 %v104
  %v608 = vunpack.c.l.b16 %v105
  %v609 = vunpack.c.h.b16 %v105
  %v610 = vunpack.c.l.b16 %v106
  %v611 = vunpack.c.h.b16 %v106
  %v612 = vunpack.c.l.b16 %v107
  %v613 = vunpack.c.h.b16 %v107
  %v614 = vunpack.c.l.b16 %v108
  %v615 = vunpack.c.h.b16 %v108
  %v616 = vunpack.c.l.b16 %v109
  %v617 = vunpack.c.h.b16 %v109
  %v618 = vunpack.c.l.b16 %v110
  %v619 = vunpack.c.h.b16 %v110
  %v620 = vunpack.c.l.b16 %v111
  %v621 = vunpack.c.l.b16 %v112
  %v622 = vunpack.c.h.b16 %v112
  %v623 = vunpack.c.l.b16 %v113
  %v624 = vunpack.c.h.b16 %v113
  %v625 = vunpack.c.l.b16 %v114
  %v626 = vunpack.c.h.b16 %v114
  %v627 = vunpack.c.l.b16 %v115
  %v628 = vunpack.c.h.b16 %v115
  %v629 = vunpack.c.l.b16 %v116
  %v630 = vunpack.c.h.b16 %v116
  %v631 = vunpack.c.l.b16 %v117
  %v632 = vunpack.c.h.b16 %v117
  %v633 = vunpack.c.l.b16 %v118
  %v634 = vunpack.c.l.b16 %v119
  %v635 = vunpack.c.h.b16 %v119
  %v636 = vunpack.c.l.b16 %v120
  %v637 = vunpack.c.h.b16 %v120
  %v638 = vunpack.c.l.b16 %v121
  %v639 = vunpack.c.h.b16 %v121
  %v640 = vunpack.c.l.b16 %v122
  %v641 = vunpack.c.h.b16 %v122
  %v642 = vunpack.c.l.b16 %v123
  %v643 = vunpack.c.h.b16 %v123
  %v644 = vunpack.c.l.b16 %v124
  %v645 = vunpack.c.h.b16 %v124
  %v646 = vunpack.c.l.b16 %v125
  %v647 = vunpack.c.l.b16 %v126
  %v648 = vunpack.c.h.b16 %v126
  %v649 = vunpack.c.l.b16 %v127
  %v650 = vunpack.c.h.b16 %v127
  %v651 = vunpack.c.l.b16 %v128
  %v652 = vunpack.c.h.b16 %v128
  %v653 = vunpack.c.l.b16 %v129
  %v654 = vunpack.c.h.b16 %v129
  %v655 = vunpack.c.l.b16 %v130
  %v656 = vunpack.c.h.b16 %v130
  %v657 = vunpack.c.l.b16 %v131
  %v658 = vunpack.c.h.b16 %v131
  %v659 = vunpack.c.l.b16 %v132
  %v660 = vpack.c.b16 %v465, %v452
  %v661 = vpack.c.b16 %v466, %v453
  %v662 = vpack.c.b16 %v467, %v454
  %v663 = vpack.c.b16 %v468, %v455
  %v664 = vpack.c.b16 %v469, %v456
  %v665 = vpack.c.b16 %v470, %v457
  %v666 = vpack.c.b16 %v471, %v458
  %v667 = vpack.c.b16 %v472, %v459
  %v668 = vpack.c.b16 %v473, %v460
  %v669 = vpack.c.b16 %v474, %v461
  %v670 = vpack.c.b16 %v475, %v462
  %v671 = vpack.c.b16 %v476, %v463
  %v672 = vpack.c.b16 %v477, %v464
  %v673 = vpack.c.b16 %v491, %v478
  %v674 = vpack.c.b16 %v492, %v479
  %v675 = vpack.c.b16 %v493, %v480
  %v676 = vpack.c.b16 %v494, %v481
  %v677 = vpack.c.b16 %v495, %v482
  %v678 = vpack.c.b16 %v496, %v483
  %v679 = vpack.c.b16 %v497, %v484
  %v680 = vpack.c.b16 %v498, %v485
  %v681 = vpack.c.b16 %v499, %v486
  %v682 = vpack.c.b16 %v500, %v487
  %v683 = vpack.c.b16 %v501, %v488
  %v684 = vpack.c.b16 %v502, %v489
  %v685 = vpack.c.b16 %v503, %v490
  %v686 = vpack.c.b16 %v517, %v504
  %v687 = vpack.c.b16 %v518, %v505
  %v688 = vpack.c.b16 %v519, %v506
  %v689 = vpack.c.b16 %v520, %v507
  %v690 = vpack.c.b16 %v521, %v508
  %v691 = vpack.c.b16 %v522, %v509
  %v692 = vpack.c.b16 %v523, %v510
  %v693 = vpack.c.b16 %v524, %v511
  %v694 = vpack.c.b16 %v525, %v512
  %v695 = vpack.c.b16 %v526, %v513
  %v696 = vpack.c.b16 %v527, %v514
  %v697 = vpack.c.b16 %v528, %v515
  %v698 = vpack.c.b16 %v529, %v516
  %v699 = vpack.c.b16 %v543, %v530
  %v700 = vpack.c.b16 %v544, %v531
  %v701 = vpack.c.b16 %v545, %v532
  %v702 = vpack.c.b16 %v546, %v533
  %v703 = vpack.c.b16 %v547, %v534
  %v704 = vpack.c.b16 %v548, %v535
  %v705 = vpack.c.b16 %v549, %v536
  %v706 = vpack.c.b16 %v550, %v537
  %v707 = vpack.c.b16 %v551, %v538
  %v708 = vpack.c.b16 %v552, %v539
  %v709 = vpack.c.b16 %v553, %v540
  %v710 = vpack.c.b16 %v554, %v541
  %v711 = vpack.c.b16 %v555, %v542
  %v712 = vpack.c.b16 %v569, %v556
  %v713 = vpack.c.b16 %v570, %v557
  %v714 = vpack.c.b16 %v571, %v558
  %v715 = vpack.c.b16 %v572, %v559
  %v716 = vpack.c.b16 %v573, %v560
  %v717 = vpack.c.b16 %v574, %v561
  %v718 = vpack.c.b16 %v575, %v562
  %v719 = vpack.c.b16 %v576, %v563
  %v720 = vpack.c.b16 %v577, %v564
  %v721 = vpack.c.b16 %v578, %v565
  %v722 = vpack.c.b16 %v579, %v566
  %v723 = vpack.c.b16 %v580, %v567
  %v724 = vpack.c.b16 %v581, %v568
  %v725 = vpack.c.b16 %v595, %v582
  %v726 = vpack.c.b16 %v596, %v583
  %v727 = vpack.c.b16 %v597, %v584
  %v728 = vpack.c.b16 %v598, %v585
  %v729 = vpack.c.b16 %v599, %v586
  %v730 = vpack.c.b16 %v600, %v587
  %v731 = vpack.c.b16 %v601, %v588
  %v732 = vpack.c.b16 %v602, %v589
  %v733 = vpack.c.b16 %v603, %v590
  %v734 = vpack.c.b16 %v604, %v591
  %v735 = vpack.c.b16 %v605, %v592
  %v736 = vpack.c.b16 %v606, %v593
  %v737 = vpack.c.b16 %v607, %v594
  %v738 = vpack.c.b16 %v621, %v608
  %v739 = vpack.c.b16 %v622, %v609
  %v740 = vpack.c.b16 %v623, %v610
  %v741 = vpack.c.b16 %v624, %v611
  %v742 = vpack.c.b16 %v625, %v612
  %v743 = vpack.c.b16 %v626, %v613
  %v744 = vpack.c.b16 %v627, %v614
  %v745 = vpack.c.b16 %v628, %v615
  %v746 = vpack.c.b16 %v629, %v616
  %v747 = vpack.c.b16 %v630, %v617
  %v748 = vpack.c.b16 %v631, %v618
  %v749 = vpack.c.b16 %v632, %v619
  %v750 = vpack.c.b16 %v633, %v620
  %v751 = vpack.c.b16 %v647, %v634
  %v752 = vpack.c.b16 %v648, %v635
  %v753 = vpack.c.b16 %v649, %v636
  %v754 = vpack.c.b16 %v650, %v637
  %v755 = vpack.c.b16 %v651, %v638
  %v756 = vpack.c.b16 %v652, %v639
  %v757 = vpack.c.b16 %v653, %v640
  %v758 = vpack.c.b16 %v654, %v641
  %v759 = vpack.c.b16 %v655, %v642
  %v760 = vpack.c.b16 %v656, %v643
  %v761 = vpack.c.b16 %v657, %v644
  %v762 = vpack.c.b16 %v658, %v645
  %v763 = vpack.c.b16 %v659, %v646
  %v1060 = vunpack.c.l.b16 %v133
  %v1061 = vunpack.c.l.b16 %v134
  %v1062 = vunpack.c.l.b16 %v135
  %v1063 = vunpack.c.l.b16 %v136
  %v1064 = vunpack.c.l.b16 %v137
  %v1065 = vunpack.c.l.b16 %v138
  %v1066 = vunpack.c.l.b16 %v139
  %v1067 = vunpack.c.l.b16 %v140
  %v1068 = vunpack.c.l.b16 %v141
  %v1069 = vunpack.c.l.b16 %v142
  %v1070 = vunpack.c.l.b16 %v143
  %v1071 = vunpack.c.l.b16 %v144
  %v1072 = vunpack.c.l.b16 %v145
  %v1073 = vunpack.c.l.b16 %v146
  %v1074 = vunpack.c.l.b16 %v147
  %v1075 = vunpack.c.l.b16 %v148
  %v1076 = vunpack.c.l.b16 %v149
  %v1077 = vunpack.c.l.b16 %v150
  %v1078 = vunpack.c.l.b16 %v151
  %v1079 = vunpack.c.l.b16 %v152
  %v1080 = vunpack.c.l.b16 %v153
  %v1081 = vunpack.c.l.b16 %v154
  %v1082 = vunpack.c.l.b16 %v155
  %v1083 = vunpack.c.l.b16 %v156
  %v1084 = vunpack.c.l.b16 %v157
  %v1085 = vunpack.c.l.b16 %v158
  %v1086 = vunpack.c.l.b16 %v159
  %v1087 = vunpack.c.l.b16 %v160
  %v1088 = vunpack.c.l.b16 %v161
  %v1089 = vunpack.c.l.b16 %v162
  %v1090 = vunpack.c.l.b16 %v163
  %v1091 = vunpack.c.l.b16 %v164
  %v1092 = vunpack.c.l.b16 %v165
  %v1093 = vunpack.c.l.b16 %v166
  %v1094 = vunpack.c.l.b16 %v167
  %v1095 = vunpack.c.l.b16 %v168
  %v1096 = vunpack.c.l.b16 %v169
  %v1097 = vunpack.c.l.b16 %v170
  %v1098 = vunpack.c.l.b16 %v171
  %v1099 = vunpack.c.l.b16 %v172
  %v1100 = vunpack.c.l.b16 %v173
  %v1101 = vunpack.c.l.b16 %v174
  %v1102 = vunpack.c.l.b16 %v175
  %v1103 = vunpack.c.l.b16 %v176
  %v1104 = vunpack.c.l.b16 %v177
  %v1105 = vunpack.c.l.b16 %v178
  %v1106 = vunpack.c.l.b16 %v179
  %v1107 = vunpack.c.l.b16 %v180
  %v1108 = vunpack.c.l.b16 %v181
  %v1109 = vunpack.c.l.b16 %v182
  %v1110 = vunpack.c.l.b16 %v183
  %v1111 = vunpack.c.l.b16 %v184
  %v1112 = vunpack.c.l.b16 %v185
  %v1113 = vunpack.c.l.b16 %v186
  %v1114 = vunpack.c.l.b16 %v187
  %v1115 = vunpack.c.l.b16 %v188
  %v1116 = vunpack.c.l.b16 %v189
  %v1117 = vunpack.c.l.b16 %v190
  %v1118 = vunpack.c.l.b16 %v191
  %v1119 = vunpack.c.l.b16 %v192
  %v1120 = vunpack.c.l.b16 %v193
  %v1121 = vunpack.c.l.b16 %v194
  %v1122 = vunpack.c.l.b16 %v195
  %v1123 = vunpack.c.l.b16 %v196
  %v1124 = vunpack.c.l.b16 %v197
  %v1125 = vunpack.c.l.b16 %v198
  %v1126 = vunpack.c.l.b16 %v199
  %v1127 = vunpack.c.l.b16 %v200
  %v1128 = vunpack.c.l.b16 %v201
  %v1129 = vunpack.c.l.b16 %v202
  %v1130 = vunpack.c.l.b16 %v203
  %v1131 = vunpack.c.l.b16 %v204
  %v1132 = vunpack.c.l.b16 %v205
  %v1133 = vunpack.c.l.b16 %v206
  %v1134 = vunpack.c.l.b16 %v207
  %v1135 = vunpack.c.l.b16 %v208
  %v1136 = vunpack.c.l.b16 %v209
  %v1137 = vunpack.c.l.b16 %v210
  %v1138 = vunpack.c.l.b16 %v211
  %v1139 = vunpack.c.l.b16 %v212
  %v1140 = vunpack.c.l.b16 %v213
  %v1141 = vunpack.c.l.b16 %v214
  %v1142 = vunpack.c.l.b16 %v215
  %v1143 = vunpack.c.l.b16 %v216
  %v1144 = vunpack.c.l.b16 %v217
  %v1145 = vunpack.c.l.b16 %v218
  %v1146 = vunpack.c.l.b16 %v219
  %v1147 = vunpack.c.l.b16 %v220
  %v1148 = vunpack.c.l.b16 %v221
  %v1149 = vunpack.c.l.b16 %v222
  %v1150 = vunpack.c.l.b16 %v223
  %v1151 = vunpack.c.l.b16 %v224
  %v1152 = vunpack.c.l.b16 %v225
  %v1153 = vunpack.c.l.b16 %v226
  %v1154 = vunpack.c.l.b16 %v227
  %v1155 = vunpack.c.l.b16 %v228
  %v1156 = vunpack.c.l.b16 %v229
  %v1157 = vunpack.c.l.b16 %v230
  %v1158 = vunpack.c.l.b16 %v231
  %v1159 = vunpack.c.l.b16 %v232
  %v1160 = vunpack.c.l.b16 %v233
  %v1161 = vunpack.c.l.b16 %v234
  %v1162 = vunpack.c.l.b16 %v235
  %v1163 = vunpack.c.l.b16 %v236
  %v1164 = vunpack.c.l.b16 %v237
  %v1165 = vunpack.c.l.b16 %v238
  %v1166 = vunpack.c.l.b16 %v239
  %v1167 = vunpack.c.l.b16 %v240
  %v1168 = vunpack.c.l.b16 %v241
  %v1169 = vunpack.c.l.b16 %v242
  %v1170 = vunpack.c.l.b16 %v243
  %v1171 = vunpack.c.l.b16 %v244
  %v1172 = vunpack.c.l.b16 %v245
  %v1173 = vunpack.c.l.b16 %v246
  %v1174 = vunpack.c.l.b16 %v247
  %v1175 = vunpack.c.l.b16 %v248
  %v1176 = vunpack.c.l.b16 %v249
  %v1177 = vunpack.c.l.b16 %v250
  %v1178 = vunpack.c.l.b16 %v251
  %v1179 = vunpack.c.l.b16 %v252
  %v1180 = vunpack.c.l.b16 %v253
  %v1181 = vunpack.c.l.b16 %v254
  %v1182 = vunpack.c.l.b16 %v255
  %v1183 = vunpack.c.l.b16 %v256
  %v1184 = vunpack.c.l.b16 %v257
  %v1185 = vunpack.c.l.b16 %v258
  %v1186 = vunpack.c.l.b16 %v259
  %v1187 = vunpack.c.l.b16 %v260
  %v1188 = vunpack.c.l.b16 %v261
  %v1189 = vunpack.c.l.b16 %v262
  %v1190 = vunpack.c.l.b16 %v263
  %v1191 = vunpack.c.l.b16 %v264
  %v1192 = vunpack.c.l.b16 %v265
  %v1193 = vunpack.c.l.b16 %v266
  %v1194 = vunpack.c.l.b16 %v267
  %v1195 = vunpack.c.l.b16 %v268
  %v1196 = vunpack.c.l.b16 %v269
  %v1197 = vunpack.c.l.b16 %v270
  %v1198 = vunpack.c.l.b16 %v271
  %v1199 = vunpack.c.l.b16 %v272
  %v1200 = vunpack.c.l.b16 %v273
  %v1201 = vunpack.c.l.b16 %v274
  %v1202 = vunpack.c.l.b16 %v275
  %v1203 = vunpack.c.l.b16 %v276
  %v1204 = vunpack.c.l.b16 %v277
  %v1205 = vunpack.c.l.b16 %v278
  %v1206 = vunpack.c.l.b16 %v279
  %v1207 = vunpack.c.l.b16 %v280
  %v1208 = vunpack.c.l.b16 %v281
  %v1209 = vunpack.c.l.b16 %v282
  %v1210 = vunpack.c.l.b16 %v283
  %v1211 = vunpack.c.l.b16 %v284
  %v1212 = vunpack.c.l.b16 %v285
  %v1213 = vunpack.c.l.b16 %v286
  %v1214 = vunpack.c.l.b16 %v287
  %v1215 = vunpack.c.l.b16 %v288
  %v1216 = vunpack.c.l.b16 %v289
  %v1217 = vunpack.c.l.b16 %v290
  %v1218 = vunpack.c.l.b16 %v291
  %v1219 = vunpack.c.l.b16 %v292
  %v1220 = vunpack.c.l.b16 %v293
  %v1221 = vunpack.c.l.b16 %v294
  %v1222 = vunpack.c.l.b16 %v295
  %v1223 = vunpack.c.l.b16 %v296
  %v1224 = vunpack.c.l.b16 %v297
  %v1225 = vunpack.c.l.b16 %v298
  %v1226 = vunpack.c.l.b16 %v299
  %v1227 = vunpack.c.l.b16 %v300
  %v1228 = vunpack.c.l.b16 %v301
  %v1229 = vunpack.c.l.b16 %v302
  %v1230 = vunpack.c.l.b16 %v303
  %v1231 = vunpack.c.l.b16 %v304
  %v1232 = vunpack.c.l.b16 %v305
  %v1233 = vunpack.c.l.b16 %v306
  %v1234 = vunpack.c.l.b16 %v307
  %v1235 = vunpack.c.l.b16 %v308
  %v1236 = vunpack.c.l.b16 %v309
  %v1237 = vunpack.c.l.b16 %v310
  %v1238 = vunpack.c.l.b16 %v311
  %v1239 = vunpack.c.l.b16 %v312
  %v1240 = vunpack.c.l.b16 %v313
  %v1241 = vunpack.c.l.b16 %v314
  %v1242 = vunpack.c.l.b16 %v315
  %v1243 = vunpack.c.l.b16 %v316
  %v1244 = vunpack.c.l.b16 %v317
  %v1245 = vunpack.c.l.b16 %v318
  %v1246 = vunpack.c.l.b16 %v319
  %v1247 = vunpack.c.l.b16 %v320
  %v1248 = vunpack.c.l.b16 %v321
  %v1249 = vunpack.c.l.b16 %v322
  %v1250 = vunpack.c.l.b16 %v323
  %v1251 = vunpack.c.l.b16 %v324
  %v1252 = vunpack.c.l.b16 %v325
  %v1253 = vunpack.c.l.b16 %v326
  %v1254 = vunpack.c.l.b16 %v327
  %v1255 = vunpack.c.l.b16 %v328
  %v1256 = vunpack.c.l.b16 %v329
  %v1257 = vunpack.c.l.b16 %v330
  %v1258 = vunpack.c.l.b16 %v331
  %v1259 = vunpack.c.l.b16 %v332
  %v1260 = vpack.c.b16 %v1061, %v1060
  %v1261 = vpack.c.b16 %v1063, %v1062
  %v1262 = vpack.c.b16 %v1065, %v1064
  %v1263 = vpack.c.b16 %v1067, %v1066
  %v1264 = vpack.c.b16 %v1069, %v1068
  %v1265 = vpack.c.b16 %v1071, %v1070
  %v1266 = vpack.c.b16 %v1073, %v1072
  %v1267 = vpack.c.b16 %v1075, %v1074
  %v1268 = vpack.c.b16 %v1077, %v1076
  %v1269 = vpack.c.b16 %v1079, %v1078
  %v1270 = vpack.c.b16 %v1081, %v1080
  %v1271 = vpack.c.b16 %v1083, %v1082
  %v1272 = vpack.c.b16 %v1085, %v1084
  %v1273 = vpack.c.b16 %v1087, %v1086
  %v1274 = vpack.c.b16 %v1089, %v1088
  %v1275 = vpack.c.b16 %v1091, %v1090
  %v1276 = vpack.c.b16 %v1093, %v1092
  %v1277 = vpack.c.b16 %v1095, %v1094
  %v1278 = vpack.c.b16 %v1097, %v1096
  %v1279 = vpack.c.b16 %v1099, %v1098
  %v1280 = vpack.c.b16 %v1101, %v1100
  %v1281 = vpack.c.b16 %v1103, %v1102
  %v1282 = vpack.c.b16 %v1105, %v1104
  %v1283 = vpack.c.b16 %v1107, %v1106
  %v1284 = vpack.c.b16 %v1109, %v1108
  %v1285 = vpack.c.b16 %v1111, %v1110
  %v1286 = vpack.c.b16 %v1113, %v1112
  %v1287 = vpack.c.b16 %v1115, %v1114
  %v1288 = vpack.c.b16 %v1117, %v1116
  %v1289 = vpack.c.b16 %v1119, %v1118
  %v1290 = vpack.c.b16 %v1121, %v1120
  %v1291 = vpack.c.b16 %v1123, %v1122
  %v1292 = vpack.c.b16 %v1125, %v1124
  %v1293 = vpack.c.b16 %v1127, %v1126
  %v1294 = vpack.c.b16 %v1129, %v1128
  %v1295 = vpack.c.b16 %v1131, %v1130
  %v1296 = vpack.c.b16 %v1133, %v1132
  %v1297 = vpack.c.b16 %v1135, %v1134
  %v1298 = vpack.c.b16 %v1137, %v1136
  %v1299 = vpack.c.b16 %v1139, %v1138
  %v1300 = vpack.c.b16 %v1141, %v1140
  %v1301 = vpack.c.b16 %v1143, %v1142
  %v1302 = vpack.c.b16 %v1145, %v1144
  %v1303 = vpack.c.b16 %v1147, %v1146
  %v1304 = vpack.c.b16 %v1149, %v1148
  %v1305 = vpack.c.b16 %v1151, %v1150
  %v1306 = vpack.c.b16 %v1153, %v1152
  %v1307 = vpack.c.b16 %v1155, %v1154
  %v1308 = vpack.c.b16 %v1157, %v1156
  %v1309 = vpack.c.b16 %v1159, %v1158
  %v1310 = vpack.c.b16 %v1161, %v1160
  %v1311 = vpack.c.b16 %v1163, %v1162
  %v1312 = vpack.c.b16 %v1165, %v1164
  %v1313 = vpack.c.b16 %v1167, %v1166
  %v1314 = vpack.c.b16 %v1169, %v1168
  %v1315 = vpack.c.b16 %v1171, %v1170
  %v1316 = vpack.c.b16 %v1173, %v1172
  %v1317 = vpack.c.b16 %v1175, %v1174
  %v1318 = vpack.c.b16 %v1177, %v1176
  %v1319 = vpack.c.b16 %v1179, %v1178
  %v1320 = vpack.c.b16 %v1181, %v1180
  %v1321 = vpack.c.b16 %v1183, %v1182
  %v1322 = vpack.c.b16 %v1185, %v1184
  %v1323 = vpack.c.b16 %v1187, %v1186
  %v1324 = vpack.c.b16 %v1189, %v1188
  %v1325 = vpack.c.b16 %v1191, %v1190
  %v1326 = vpack.c.b16 %v1193, %v1192
  %v1327 = vpack.c.b16 %v1195, %v1194
  %v1328 = vpack.c.b16 %v1197, %v1196
  %v1329 = vpack.c.b16 %v1199, %v1198
  %v1330 = vpack.c.b16 %v1201, %v1200
  %v1331 = vpack.c.b16 %v1203, %v1202
  %v1332 = vpack.c.b16 %v1205, %v1204
  %v1333 = vpack.c.b16 %v1207, %v1206
  %v1334 = vpack.c.b16 %v1209, %v1208
  %v1335 = vpack.c.b16 %v1211, %v1210
  %v1336 = vpack.c.b16 %v1213, %v1212
  %v1337 = vpack.c.b16 %v1215, %v1214
  %v1338 = vpack.c.b16 %v1217, %v1216
  %v1339 = vpack.c.b16 %v1219, %v1218
  %v1340 = vpack.c.b16 %v1221, %v1220
  %v1341 = vpack.c.b16 %v1223, %v1222
  %v1342 = vpack.c.b16 %v1225, %v1224
  %v1343 = vpack.c.b16 %v1227, %v1226
  %v1344 = vpack.c.b16 %v1229, %v1228
  %v1345 = vpack.c.b16 %v1231, %v1230
  %v1346 = vpack.c.b16 %v1233, %v1232
  %v1347 = vpack.c.b16 %v1235, %v1234
  %v1348 = vpack.c.b16 %v1237, %v1236
  %v1349 = vpack.c.b16 %v1239, %v1238
  %v1350 = vpack.c.b16 %v1241, %v1240
  %v1351 = vpack.c.b16 %v1243, %v1242
  %v1352 = vpack.c.b16 %v1245, %v1244
  %v1353 = vpack.c.b16 %v1247, %v1246
  %v1354 = vpack.c.b16 %v1249, %v1248
  %v1355 = vpack.c.b16 %v1251, %v1250
  %v1356 = vpack.c.b16 %v1253, %v1252
  %v1357 = vpack.c.b16 %v1255, %v1254
  %v1358 = vpack.c.b16 %v1257, %v1256
  %v1359 = vpack.c.b16 %v1259, %v1258
  %vm1460 = vcmask 523264
  %v1462 = vsel %vm1460, %v672, 0
  %v1465 = vsel %vm1460, %v685, 0
  %v1468 = vsel %vm1460, %v698, 0
  %v1471 = vsel %vm1460, %v711, 0
  %v1474 = vsel %vm1460, %v724, 0
  %v1477 = vsel %vm1460, %v737, 0
  %v1480 = vsel %vm1460, %v750, 0
  %v1483 = vsel %vm1460, %v763, 0
  %1485 = vmatprep.subr.bf16.mxu0 0
  %1486 = vmatpush1.bf16.msra.mxu0 %v1260
  %1487 = vmatprep.subr.bf16.mxu0 0
  %1488 = vmatpush1.bf16.msra.mxu0 %v1261
  %1489 = vmatprep.subr.bf16.mxu0 0
  %1490 = vmatpush1.bf16.msra.mxu0 %v1262
  %1491 = vmatprep.subr.bf16.mxu0 0
  %1492 = vmatpush1.bf16.msra.mxu0 %v1263
  %1493 = vmatprep.subr.bf16.mxu0 0
  %1494 = vmatpush1.bf16.msra.mxu0 %v1264
  %1495 = vmatprep.subr.bf16.mxu0 0
  %1496 = vmatpush1.bf16.msra.mxu0 %v1265
  %1497 = vmatprep.subr.bf16.mxu0 0
  %1498 = vmatpush1.bf16.msra.mxu0 %v1266
  %1499 = vmatprep.subr.bf16.mxu0 0
  %1500 = vmatpush1.bf16.msra.mxu0 %v1267
  %1501 = vmatprep.subr.bf16.mxu0 0
  %1502 = vmatpush1.bf16.msra.mxu0 %v1268
  %1503 = vmatprep.subr.bf16.mxu0 0
  %1504 = vmatpush1.bf16.msra.mxu0 %v1269
  %1505 = vmatprep.subr.bf16.mxu0 0
  %1506 = vmatpush1.bf16.msra.mxu0 %v1270
  %1507 = vmatprep.subr.bf16.mxu0 0
  %1508 = vmatpush1.bf16.msra.mxu0 %v1271
  %1509 = vmatprep.subr.bf16.mxu0 0
  %1510 = vmatpush1.bf16.msra.mxu0 %v1272
  %1511 = vmatprep.subr.bf16.mxu0 0
  %1512 = vmatpush1.bf16.msra.mxu0 %v1273
  %1513 = vmatprep.subr.bf16.mxu0 0
  %1514 = vmatpush1.bf16.msra.mxu0 %v1274
  %1515 = vmatprep.subr.bf16.mxu0 0
  %1516 = vmatpush1.bf16.msra.mxu0 %v1275
  %1517 = vmatprep.mubr.bf16.mxu0 %v661
  %1518 = vmatmul.mubr.bf16.gmra.mrb[0].mxu0 %v660
  %v1519 = vpop.f32.mrb[0].mxu0
  %v1520 = vadd.f32 %v338, %v1519
  %v1521 = vpop.f32.mrb[0].mxu0
  %v1522 = vpop.f32.mrb[0].mxu0
  %v1523 = vadd.f32 %v338, %v1522
  %v1524 = vpop.f32.mrb[0].mxu0
  %1525 = vmatprep.mubr.bf16.mxu0 %v674
  %1526 = vmatmul.mubr.bf16.gmra.mrb[0].mxu0 %v673
  %v1527 = vpop.f32.mrb[0].mxu0
  %v1528 = vadd.f32 %v338, %v1527
  %v1529 = vpop.f32.mrb[0].mxu0
  %v1530 = vpop.f32.mrb[0].mxu0
  %v1531 = vadd.f32 %v338, %v1530
  %v1532 = vpop.f32.mrb[0].mxu0
  %1533 = vmatprep.mubr.bf16.mxu0 %v687
  %1534 = vmatmul.mubr.bf16.gmra.mrb[0].mxu0 %v686
  %v1535 = vpop.f32.mrb[0].mxu0
  %v1536 = vadd.f32 %v338, %v1535
  %v1537 = vpop.f32.mrb[0].mxu0
  %v1538 = vpop.f32.mrb[0].mxu0
  %v1539 = vadd.f32 %v338, %v1538
  %v1540 = vpop.f32.mrb[0].mxu0
  %1541 = vmatprep.mubr.bf16.mxu0 %v700
  %1542 = vmatmul.mubr.bf16.gmra.mrb[0].mxu0 %v699
  %v1543 = vpop.f32.mrb[0].mxu0
  %v1544 = vadd.f32 %v338, %v1543
  %v1545 = vpop.f32.mrb[0].mxu0
  %v1546 = vpop.f32.mrb[0].mxu0
  %v1547 = vadd.f32 %v338, %v1546
  %v1548 = vpop.f32.mrb[0].mxu0
  %1549 = vmatprep.mubr.bf16.mxu0 %v713
  %1550 = vmatmul.mubr.bf16.gmra.mrb[0].mxu0 %v712
  %v1551 = vpop.f32.mrb[0].mxu0
  %v1552 = vadd.f32 %v338, %v1551
  %v1553 = vpop.f32.mrb[0].mxu0
  %v1554 = vpop.f32.mrb[0].mxu0
  %v1555 = vadd.f32 %v338, %v1554
  %v1556 = vpop.f32.mrb[0].mxu0
  %1557 = vmatprep.mubr.bf16.mxu0 %v726
  %1558 = vmatmul.mubr.bf16.gmra.mrb[0].mxu0 %v725
  %v1559 = vpop.f32.mrb[0].mxu0
  %v1560 = vadd.f32 %v338, %v1559
  %v1561 = vpop.f32.mrb[0].mxu0
  %v1562 = vpop.f32.mrb[0].mxu0
  %v1563 = vadd.f32 %v338, %v1562
  %v1564 = vpop.f32.mrb[0].mxu0
  %1565 = vmatprep.mubr.bf16.mxu0 %v739
  %1566 = vmatmul.mubr.bf16.gmra.mrb[0].mxu0 %v738
  %v1567 = vpop.f32.mrb[0].mxu0
  %v1568 = vadd.f32 %v338, %v1567
  %v1569 = vpop.f32.mrb[0].mxu0
  %v1570 = vpop.f32.mrb[0].mxu0
  %v1571 = vadd.f32 %v338, %v1570
  %v1572 = vpop.f32.mrb[0].mxu0
  %1573 = vmatprep.mubr.bf16.mxu0 %v752
  %1574 = vmatmul.mubr.bf16.gmra.mrb[0].mxu0 %v751
  %v1575 = vpop.f32.mrb[0].mxu0
  %v1576 = vadd.f32 %v338, %v1575
  %v1577 = vpop.f32.mrb[0].mxu0
  %v1578 = vpop.f32.mrb[0].mxu0
  %v1579 = vadd.f32 %v338, %v1578
  %v1580 = vpop.f32.mrb[0].mxu0
  %1581 = vdwg.mxu0
  %1582 = vmatprep.subr.bf16.mxu0 0
  %1583 = vmatpush1.bf16.msra.mxu0 %v1276
  %1584 = vmatprep.subr.bf16.mxu0 0
  %1585 = vmatpush1.bf16.msra.mxu0 %v1277
  %1586 = vmatprep.subr.bf16.mxu0 0
  %1587 = vmatpush1.bf16.msra.mxu0 %v1278
  %1588 = vmatprep.subr.bf16.mxu0 0
  %1589 = vmatpush1.bf16.msra.mxu0 %v1279
  %1590 = vmatprep.subr.bf16.mxu0 0
  %1591 = vmatpush1.bf16.msra.mxu0 %v1280
  %1592 = vmatprep.subr.bf16.mxu0 0
  %1593 = vmatpush1.bf16.msra.mxu0 %v1281
  %1594 = vmatprep.subr.bf16.mxu0 0
  %1595 = vmatpush1.bf16.msra.mxu0 %v1282
  %1596 = vmatprep.subr.bf16.mxu0 0
  %1597 = vmatpush1.bf16.msra.mxu0 %v1283
  %1598 = vmatprep.subr.bf16.mxu0 0
  %1599 = vmatpush1.bf16.msra.mxu0 %v1284
  %1600 = vmatprep.subr.bf16.mxu0 0
  %1601 = vmatpush1.bf16.msra.mxu0 %v1285
  %1602 = vmatprep.subr.bf16.mxu0 0
  %1603 = vmatpush1.bf16.msra.mxu0 %v1286
  %1604 = vmatprep.subr.bf16.mxu0 0
  %1605 = vmatpush1.bf16.msra.mxu0 %v1287
  %1606 = vmatprep.subr.bf16.mxu0 0
  %1607 = vmatpush1.bf16.msra.mxu0 %v1288
  %1608 = vmatprep.subr.bf16.mxu0 0
  %1609 = vmatpush1.bf16.msra.mxu0 %v1289
  %1610 = vmatprep.subr.bf16.mxu0 0
  %1611 = vmatpush1.bf16.msra.mxu0 %v1290
  %1612 = vmatprep.subr.bf16.mxu0 0
  %1613 = vmatpush1.bf16.msra.mxu0 %v1291
  %1614 = vmatprep.mubr.bf16.mxu0 %v663
  %1615 = vmatmul.mubr.bf16.gmra.mrb[0].mxu0 %v662
  %v1616 = vpop.f32.mrb[0].mxu0
  %v1617 = vadd.f32 %v1520, %v1616
  %v1618 = vpop.f32.mrb[0].mxu0
  %v1619 = vpop.f32.mrb[0].mxu0
  %v1620 = vadd.f32 %v1523, %v1619
  %v1621 = vpop.f32.mrb[0].mxu0
  %1622 = vmatprep.mubr.bf16.mxu0 %v676
  %1623 = vmatmul.mubr.bf16.gmra.mrb[0].mxu0 %v675
  %v1624 = vpop.f32.mrb[0].mxu0
  %v1625 = vadd.f32 %v1528, %v1624
  %v1626 = vpop.f32.mrb[0].mxu0
  %v1627 = vpop.f32.mrb[0].mxu0
  %v1628 = vadd.f32 %v1531, %v1627
  %v1629 = vpop.f32.mrb[0].mxu0
  %1630 = vmatprep.mubr.bf16.mxu0 %v689
  %1631 = vmatmul.mubr.bf16.gmra.mrb[0].mxu0 %v688
  %v1632 = vpop.f32.mrb[0].mxu0
  %v1633 = vadd.f32 %v1536, %v1632
  %v1634 = vpop.f32.mrb[0].mxu0
  %v1635 = vpop.f32.mrb[0].mxu0
  %v1636 = vadd.f32 %v1539, %v1635
  %v1637 = vpop.f32.mrb[0].mxu0
  %1638 = vmatprep.mubr.bf16.mxu0 %v702
  %1639 = vmatmul.mubr.bf16.gmra.mrb[0].mxu0 %v701
  %v1640 = vpop.f32.mrb[0].mxu0
  %v1641 = vadd.f32 %v1544, %v1640
  %v1642 = vpop.f32.mrb[0].mxu0
  %v1643 = vpop.f32.mrb[0].mxu0
  %v1644 = vadd.f32 %v1547, %v1643
  %v1645 = vpop.f32.mrb[0].mxu0
  %1646 = vmatprep.mubr.bf16.mxu0 %v715
  %1647 = vmatmul.mubr.bf16.gmra.mrb[0].mxu0 %v714
  %v1648 = vpop.f32.mrb[0].mxu0
  %v1649 = vadd.f32 %v1552, %v1648
  %v1650 = vpop.f32.mrb[0].mxu0
  %v1651 = vpop.f32.mrb[0].mxu0
  %v1652 = vadd.f32 %v1555, %v1651
  %v1653 = vpop.f32.mrb[0].mxu0
  %1654 = vmatprep.mubr.bf16.mxu0 %v728
  %1655 = vmatmul.mubr.bf16.gmra.mrb[0].mxu0 %v727
  %v1656 = vpop.f32.mrb[0].mxu0
  %v1657 = vadd.f32 %v1560, %v1656
  %v1658 = vpop.f32.mrb[0].mxu0
  %v1659 = vpop.f32.mrb[0].mxu0
  %v1660 = vadd.f32 %v1563, %v1659
  %v1661 = vpop.f32.mrb[0].mxu0
  %1662 = vmatprep.mubr.bf16.mxu0 %v741
  %1663 = vmatmul.mubr.bf16.gmra.mrb[0].mxu0 %v740
  %v1664 = vpop.f32.mrb[0].mxu0
  %v1665 = vadd.f32 %v1568, %v1664
  %v1666 = vpop.f32.mrb[0].mxu0
  %v1667 = vpop.f32.mrb[0].mxu0
  %v1668 = vadd.f32 %v1571, %v1667
  %v1669 = vpop.f32.mrb[0].mxu0
  %1670 = vmatprep.mubr.bf16.mxu0 %v754
  %1671 = vmatmul.mubr.bf16.gmra.mrb[0].mxu0 %v753
  %v1672 = vpop.f32.mrb[0].mxu0
  %v1673 = vadd.f32 %v1576, %v1672
  %v1674 = vpop.f32.mrb[0].mxu0
  %v1675 = vpop.f32.mrb[0].mxu0
  %v1676 = vadd.f32 %v1579, %v1675
  %v1677 = vpop.f32.mrb[0].mxu0
  %1678 = vdwg.mxu0
  %1679 = vmatprep.subr.bf16.mxu0 0
  %1680 = vmatpush1.bf16.msra.mxu0 %v1292
  %1681 = vmatprep.subr.bf16.mxu0 0
  %1682 = vmatpush1.bf16.msra.mxu0 %v1293
  %1683 = vmatprep.subr.bf16.mxu0 0
  %1684 = vmatpush1.bf16.msra.mxu0 %v1294
  %1685 = vmatprep.subr.bf16.mxu0 0
  %1686 = vmatpush1.bf16.msra.mxu0 %v1295
  %1687 = vmatprep.subr.bf16.mxu0 0
  %1688 = vmatpush1.bf16.msra.mxu0 %v1296
  %1689 = vmatprep.subr.bf16.mxu0 0
  %1690 = vmatpush1.bf16.msra.mxu0 %v1297
  %1691 = vmatprep.subr.bf16.mxu0 0
  %1692 = vmatpush1.bf16.msra.mxu0 %v1298
  %1693 = vmatprep.subr.bf16.mxu0 0
  %1694 = vmatpush1.bf16.msra.mxu0 %v1299
  %1695 = vmatprep.subr.bf16.mxu0 0
  %1696 = vmatpush1.bf16.msra.mxu0 %v1300
  %1697 = vmatprep.subr.bf16.mxu0 0
  %1698 = vmatpush1.bf16.msra.mxu0 %v1301
  %1699 = vmatprep.subr.bf16.mxu0 0
  %1700 = vmatpush1.bf16.msra.mxu0 %v1302
  %1701 = vmatprep.subr.bf16.mxu0 0
  %1702 = vmatpush1.bf16.msra.mxu0 %v1303
  %1703 = vmatprep.subr.bf16.mxu0 0
  %1704 = vmatpush1.bf16.msra.mxu0 %v1304
  %1705 = vmatprep.subr.bf16.mxu0 0
  %1706 = vmatpush1.bf16.msra.mxu0 %v1305
  %1707 = vmatprep.subr.bf16.mxu0 0
  %1708 = vmatpush1.bf16.msra.mxu0 %v1306
  %1709 = vmatprep.subr.bf16.mxu0 0
  %1710 = vmatpush1.bf16.msra.mxu0 %v1307
  %1711 = vmatprep.mubr.bf16.mxu0 %v665
  %1712 = vmatmul.mubr.bf16.gmra.mrb[0].mxu0 %v664
  %v1713 = vpop.f32.mrb[0].mxu0
  %v1714 = vadd.f32 %v1617, %v1713
  %v1715 = vpop.f32.mrb[0].mxu0
  %v1716 = vpop.f32.mrb[0].mxu0
  %v1717 = vadd.f32 %v1620, %v1716
  %v1718 = vpop.f32.mrb[0].mxu0
  %1719 = vmatprep.mubr.bf16.mxu0 %v678
  %1720 = vmatmul.mubr.bf16.gmra.mrb[0].mxu0 %v677
  %v1721 = vpop.f32.mrb[0].mxu0
  %v1722 = vadd.f32 %v1625, %v1721
  %v1723 = vpop.f32.mrb[0].mxu0
  %v1724 = vpop.f32.mrb[0].mxu0
  %v1725 = vadd.f32 %v1628, %v1724
  %v1726 = vpop.f32.mrb[0].mxu0
  %1727 = vmatprep.mubr.bf16.mxu0 %v691
  %1728 = vmatmul.mubr.bf16.gmra.mrb[0].mxu0 %v690
  %v1729 = vpop.f32.mrb[0].mxu0
  %v1730 = vadd.f32 %v1633, %v1729
  %v1731 = vpop.f32.mrb[0].mxu0
  %v1732 = vpop.f32.mrb[0].mxu0
  %v1733 = vadd.f32 %v1636, %v1732
  %v1734 = vpop.f32.mrb[0].mxu0
  %1735 = vmatprep.mubr.bf16.mxu0 %v704
  %1736 = vmatmul.mubr.bf16.gmra.mrb[0].mxu0 %v703
  %v1737 = vpop.f32.mrb[0].mxu0
  %v1738 = vadd.f32 %v1641, %v1737
  %v1739 = vpop.f32.mrb[0].mxu0
  %v1740 = vpop.f32.mrb[0].mxu0
  %v1741 = vadd.f32 %v1644, %v1740
  %v1742 = vpop.f32.mrb[0].mxu0
  %1743 = vmatprep.mubr.bf16.mxu0 %v717
  %1744 = vmatmul.mubr.bf16.gmra.mrb[0].mxu0 %v716
  %v1745 = vpop.f32.mrb[0].mxu0
  %v1746 = vadd.f32 %v1649, %v1745
  %v1747 = vpop.f32.mrb[0].mxu0
  %v1748 = vpop.f32.mrb[0].mxu0
  %v1749 = vadd.f32 %v1652, %v1748
  %v1750 = vpop.f32.mrb[0].mxu0
  %1751 = vmatprep.mubr.bf16.mxu0 %v730
  %1752 = vmatmul.mubr.bf16.gmra.mrb[0].mxu0 %v729
  %v1753 = vpop.f32.mrb[0].mxu0
  %v1754 = vadd.f32 %v1657, %v1753
  %v1755 = vpop.f32.mrb[0].mxu0
  %v1756 = vpop.f32.mrb[0].mxu0
  %v1757 = vadd.f32 %v1660, %v1756
  %v1758 = vpop.f32.mrb[0].mxu0
  %1759 = vmatprep.mubr.bf16.mxu0 %v743
  %1760 = vmatmul.mubr.bf16.gmra.mrb[0].mxu0 %v742
  %v1761 = vpop.f32.mrb[0].mxu0
  %v1762 = vadd.f32 %v1665, %v1761
  %v1763 = vpop.f32.mrb[0].mxu0
  %v1764 = vpop.f32.mrb[0].mxu0
  %v1765 = vadd.f32 %v1668, %v1764
  %v1766 = vpop.f32.mrb[0].mxu0
  %1767 = vmatprep.mubr.bf16.mxu0 %v756
  %1768 = vmatmul.mubr.bf16.gmra.mrb[0].mxu0 %v755
  %v1769 = vpop.f32.mrb[0].mxu0
  %v1770 = vadd.f32 %v1673, %v1769
  %v1771 = vpop.f32.mrb[0].mxu0
  %v1772 = vpop.f32.mrb[0].mxu0
  %v1773 = vadd.f32 %v1676, %v1772
  %v1774 = vpop.f32.mrb[0].mxu0
  %1775 = vdwg.mxu0
  %1776 = vmatprep.subr.bf16.mxu0 0
  %1777 = vmatpush1.bf16.msra.mxu0 %v1308
  %1778 = vmatprep.subr.bf16.mxu0 0
  %1779 = vmatpush1.bf16.msra.mxu0 %v1309
  %1780 = vmatprep.subr.bf16.mxu0 0
  %1781 = vmatpush1.bf16.msra.mxu0 %v1310
  %1782 = vmatprep.subr.bf16.mxu0 0
  %1783 = vmatpush1.bf16.msra.mxu0 %v1311
  %1784 = vmatprep.subr.bf16.mxu0 0
  %1785 = vmatpush1.bf16.msra.mxu0 %v1312
  %1786 = vmatprep.subr.bf16.mxu0 0
  %1787 = vmatpush1.bf16.msra.mxu0 %v1313
  %1788 = vmatprep.subr.bf16.mxu0 0
  %1789 = vmatpush1.bf16.msra.mxu0 %v1314
  %1790 = vmatprep.subr.bf16.mxu0 0
  %1791 = vmatpush1.bf16.msra.mxu0 %v1315
  %1792 = vmatprep.subr.bf16.mxu0 0
  %1793 = vmatpush1.bf16.msra.mxu0 %v1316
  %1794 = vmatprep.subr.bf16.mxu0 0
  %1795 = vmatpush1.bf16.msra.mxu0 %v1317
  %1796 = vmatprep.subr.bf16.mxu0 0
  %1797 = vmatpush1.bf16.msra.mxu0 %v1318
  %1798 = vmatprep.subr.bf16.mxu0 0
  %1799 = vmatpush1.bf16.msra.mxu0 %v1319
  %1800 = vmatprep.subr.bf16.mxu0 0
  %1801 = vmatpush1.bf16.msra.mxu0 %v1320
  %1802 = vmatprep.subr.bf16.mxu0 0
  %1803 = vmatpush1.bf16.msra.mxu0 %v1321
  %1804 = vmatprep.subr.bf16.mxu0 0
  %1805 = vmatpush1.bf16.msra.mxu0 %v1322
  %1806 = vmatprep.subr.bf16.mxu0 0
  %1807 = vmatpush1.bf16.msra.mxu0 %v1323
  %1808 = vmatprep.mubr.bf16.mxu0 %v667
  %1809 = vmatmul.mubr.bf16.gmra.mrb[0].mxu0 %v666
  %v1810 = vpop.f32.mrb[0].mxu0
  %v1811 = vadd.f32 %v1714, %v1810
  %v1812 = vpop.f32.mrb[0].mxu0
  %v1813 = vpop.f32.mrb[0].mxu0
  %v1814 = vadd.f32 %v1717, %v1813
  %v1815 = vpop.f32.mrb[0].mxu0
  %1816 = vmatprep.mubr.bf16.mxu0 %v680
  %1817 = vmatmul.mubr.bf16.gmra.mrb[0].mxu0 %v679
  %v1818 = vpop.f32.mrb[0].mxu0
  %v1819 = vadd.f32 %v1722, %v1818
  %v1820 = vpop.f32.mrb[0].mxu0
  %v1821 = vpop.f32.mrb[0].mxu0
  %v1822 = vadd.f32 %v1725, %v1821
  %v1823 = vpop.f32.mrb[0].mxu0
  %1824 = vmatprep.mubr.bf16.mxu0 %v693
  %1825 = vmatmul.mubr.bf16.gmra.mrb[0].mxu0 %v692
  %v1826 = vpop.f32.mrb[0].mxu0
  %v1827 = vadd.f32 %v1730, %v1826
  %v1828 = vpop.f32.mrb[0].mxu0
  %v1829 = vpop.f32.mrb[0].mxu0
  %v1830 = vadd.f32 %v1733, %v1829
  %v1831 = vpop.f32.mrb[0].mxu0
  %1832 = vmatprep.mubr.bf16.mxu0 %v706
  %1833 = vmatmul.mubr.bf16.gmra.mrb[0].mxu0 %v705
  %v1834 = vpop.f32.mrb[0].mxu0
  %v1835 = vadd.f32 %v1738, %v1834
  %v1836 = vpop.f32.mrb[0].mxu0
  %v1837 = vpop.f32.mrb[0].mxu0
  %v1838 = vadd.f32 %v1741, %v1837
  %v1839 = vpop.f32.mrb[0].mxu0
  %1840 = vmatprep.mubr.bf16.mxu0 %v719
  %1841 = vmatmul.mubr.bf16.gmra.mrb[0].mxu0 %v718
  %v1842 = vpop.f32.mrb[0].mxu0
  %v1843 = vadd.f32 %v1746, %v1842
  %v1844 = vpop.f32.mrb[0].mxu0
  %v1845 = vpop.f32.mrb[0].mxu0
  %v1846 = vadd.f32 %v1749, %v1845
  %v1847 = vpop.f32.mrb[0].mxu0
  %1848 = vmatprep.mubr.bf16.mxu0 %v732
  %1849 = vmatmul.mubr.bf16.gmra.mrb[0].mxu0 %v731
  %v1850 = vpop.f32.mrb[0].mxu0
  %v1851 = vadd.f32 %v1754, %v1850
  %v1852 = vpop.f32.mrb[0].mxu0
  %v1853 = vpop.f32.mrb[0].mxu0
  %v1854 = vadd.f32 %v1757, %v1853
  %v1855 = vpop.f32.mrb[0].mxu0
  %1856 = vmatprep.mubr.bf16.mxu0 %v745
  %1857 = vmatmul.mubr.bf16.gmra.mrb[0].mxu0 %v744
  %v1858 = vpop.f32.mrb[0].mxu0
  %v1859 = vadd.f32 %v1762, %v1858
  %v1860 = vpop.f32.mrb[0].mxu0
  %v1861 = vpop.f32.mrb[0].mxu0
  %v1862 = vadd.f32 %v1765, %v1861
  %v1863 = vpop.f32.mrb[0].mxu0
  %1864 = vmatprep.mubr.bf16.mxu0 %v758
  %1865 = vmatmul.mubr.bf16.gmra.mrb[0].mxu0 %v757
  %v1866 = vpop.f32.mrb[0].mxu0
  %v1867 = vadd.f32 %v1770, %v1866
  %v1868 = vpop.f32.mrb[0].mxu0
  %v1869 = vpop.f32.mrb[0].mxu0
  %v1870 = vadd.f32 %v1773, %v1869
  %v1871 = vpop.f32.mrb[0].mxu0
  %1872 = vdwg.mxu0
  %1873 = vmatprep.subr.bf16.mxu0 0
  %1874 = vmatpush1.bf16.msra.mxu0 %v1324
  %1875 = vmatprep.subr.bf16.mxu0 0
  %1876 = vmatpush1.bf16.msra.mxu0 %v1325
  %1877 = vmatprep.subr.bf16.mxu0 0
  %1878 = vmatpush1.bf16.msra.mxu0 %v1326
  %1879 = vmatprep.subr.bf16.mxu0 0
  %1880 = vmatpush1.bf16.msra.mxu0 %v1327
  %1881 = vmatprep.subr.bf16.mxu0 0
  %1882 = vmatpush1.bf16.msra.mxu0 %v1328
  %1883 = vmatprep.subr.bf16.mxu0 0
  %1884 = vmatpush1.bf16.msra.mxu0 %v1329
  %1885 = vmatprep.subr.bf16.mxu0 0
  %1886 = vmatpush1.bf16.msra.mxu0 %v1330
  %1887 = vmatprep.subr.bf16.mxu0 0
  %1888 = vmatpush1.bf16.msra.mxu0 %v1331
  %1889 = vmatprep.subr.bf16.mxu0 0
  %1890 = vmatpush1.bf16.msra.mxu0 %v1332
  %1891 = vmatprep.subr.bf16.mxu0 0
  %1892 = vmatpush1.bf16.msra.mxu0 %v1333
  %1893 = vmatprep.subr.bf16.mxu0 0
  %1894 = vmatpush1.bf16.msra.mxu0 %v1334
  %1895 = vmatprep.subr.bf16.mxu0 0
  %1896 = vmatpush1.bf16.msra.mxu0 %v1335
  %1897 = vmatprep.subr.bf16.mxu0 0
  %1898 = vmatpush1.bf16.msra.mxu0 %v1336
  %1899 = vmatprep.subr.bf16.mxu0 0
  %1900 = vmatpush1.bf16.msra.mxu0 %v1337
  %1901 = vmatprep.subr.bf16.mxu0 0
  %1902 = vmatpush1.bf16.msra.mxu0 %v1338
  %1903 = vmatprep.subr.bf16.mxu0 0
  %1904 = vmatpush1.bf16.msra.mxu0 %v1339
  %1905 = vmatprep.mubr.bf16.mxu0 %v669
  %1906 = vmatmul.mubr.bf16.gmra.mrb[0].mxu0 %v668
  %v1907 = vpop.f32.mrb[0].mxu0
  %v1908 = vadd.f32 %v1811, %v1907
  %v1909 = vpop.f32.mrb[0].mxu0
  %v1910 = vpop.f32.mrb[0].mxu0
  %v1911 = vadd.f32 %v1814, %v1910
  %v1912 = vpop.f32.mrb[0].mxu0
  %1913 = vmatprep.mubr.bf16.mxu0 %v682
  %1914 = vmatmul.mubr.bf16.gmra.mrb[0].mxu0 %v681
  %v1915 = vpop.f32.mrb[0].mxu0
  %v1916 = vadd.f32 %v1819, %v1915
  %v1917 = vpop.f32.mrb[0].mxu0
  %v1918 = vpop.f32.mrb[0].mxu0
  %v1919 = vadd.f32 %v1822, %v1918
  %v1920 = vpop.f32.mrb[0].mxu0
  %1921 = vmatprep.mubr.bf16.mxu0 %v695
  %1922 = vmatmul.mubr.bf16.gmra.mrb[0].mxu0 %v694
  %v1923 = vpop.f32.mrb[0].mxu0
  %v1924 = vadd.f32 %v1827, %v1923
  %v1925 = vpop.f32.mrb[0].mxu0
  %v1926 = vpop.f32.mrb[0].mxu0
  %v1927 = vadd.f32 %v1830, %v1926
  %v1928 = vpop.f32.mrb[0].mxu0
  %1929 = vmatprep.mubr.bf16.mxu0 %v708
  %1930 = vmatmul.mubr.bf16.gmra.mrb[0].mxu0 %v707
  %v1931 = vpop.f32.mrb[0].mxu0
  %v1932 = vadd.f32 %v1835, %v1931
  %v1933 = vpop.f32.mrb[0].mxu0
  %v1934 = vpop.f32.mrb[0].mxu0
  %v1935 = vadd.f32 %v1838, %v1934
  %v1936 = vpop.f32.mrb[0].mxu0
  %1937 = vmatprep.mubr.bf16.mxu0 %v721
  %1938 = vmatmul.mubr.bf16.gmra.mrb[0].mxu0 %v720
  %v1939 = vpop.f32.mrb[0].mxu0
  %v1940 = vadd.f32 %v1843, %v1939
  %v1941 = vpop.f32.mrb[0].mxu0
  %v1942 = vpop.f32.mrb[0].mxu0
  %v1943 = vadd.f32 %v1846, %v1942
  %v1944 = vpop.f32.mrb[0].mxu0
  %1945 = vmatprep.mubr.bf16.mxu0 %v734
  %1946 = vmatmul.mubr.bf16.gmra.mrb[0].mxu0 %v733
  %v1947 = vpop.f32.mrb[0].mxu0
  %v1948 = vadd.f32 %v1851, %v1947
  %v1949 = vpop.f32.mrb[0].mxu0
  %v1950 = vpop.f32.mrb[0].mxu0
  %v1951 = vadd.f32 %v1854, %v1950
  %v1952 = vpop.f32.mrb[0].mxu0
  %1953 = vmatprep.mubr.bf16.mxu0 %v747
  %1954 = vmatmul.mubr.bf16.gmra.mrb[0].mxu0 %v746
  %v1955 = vpop.f32.mrb[0].mxu0
  %v1956 = vadd.f32 %v1859, %v1955
  %v1957 = vpop.f32.mrb[0].mxu0
  %v1958 = vpop.f32.mrb[0].mxu0
  %v1959 = vadd.f32 %v1862, %v1958
  %v1960 = vpop.f32.mrb[0].mxu0
  %1961 = vmatprep.mubr.bf16.mxu0 %v760
  %1962 = vmatmul.mubr.bf16.gmra.mrb[0].mxu0 %v759
  %v1963 = vpop.f32.mrb[0].mxu0
  %v1964 = vadd.f32 %v1867, %v1963
  %v1965 = vpop.f32.mrb[0].mxu0
  %v1966 = vpop.f32.mrb[0].mxu0
  %v1967 = vadd.f32 %v1870, %v1966
  %v1968 = vpop.f32.mrb[0].mxu0
  %1969 = vdwg.mxu0
  %1970 = vmatprep.subr.bf16.mxu0 0
  %1971 = vmatpush1.bf16.msra.mxu0 %v1340
  %1972 = vmatprep.subr.bf16.mxu0 0
  %1973 = vmatpush1.bf16.msra.mxu0 %v1341
  %1974 = vmatprep.subr.bf16.mxu0 0
  %1975 = vmatpush1.bf16.msra.mxu0 %v1342
  %1976 = vmatprep.subr.bf16.mxu0 0
  %1977 = vmatpush1.bf16.msra.mxu0 %v1343
  %1978 = vmatprep.subr.bf16.mxu0 0
  %1979 = vmatpush1.bf16.msra.mxu0 %v1344
  %1980 = vmatprep.subr.bf16.mxu0 0
  %1981 = vmatpush1.bf16.msra.mxu0 %v1345
  %1982 = vmatprep.subr.bf16.mxu0 0
  %1983 = vmatpush1.bf16.msra.mxu0 %v1346
  %1984 = vmatprep.subr.bf16.mxu0 0
  %1985 = vmatpush1.bf16.msra.mxu0 %v1347
  %1986 = vmatprep.subr.bf16.mxu0 0
  %1987 = vmatpush1.bf16.msra.mxu0 %v1348
  %1988 = vmatprep.subr.bf16.mxu0 0
  %1989 = vmatpush1.bf16.msra.mxu0 %v1349
  %1990 = vmatprep.subr.bf16.mxu0 0
  %1991 = vmatpush1.bf16.msra.mxu0 %v1350
  %1992 = vmatprep.subr.bf16.mxu0 0
  %1993 = vmatpush1.bf16.msra.mxu0 %v1351
  %1994 = vmatprep.subr.bf16.mxu0 0
  %1995 = vmatpush1.bf16.msra.mxu0 %v1352
  %1996 = vmatprep.subr.bf16.mxu0 0
  %1997 = vmatpush1.bf16.msra.mxu0 %v1353
  %1998 = vmatprep.subr.bf16.mxu0 0
  %1999 = vmatpush1.bf16.msra.mxu0 %v1354
  %2000 = vmatprep.subr.bf16.mxu0 0
  %2001 = vmatpush1.bf16.msra.mxu0 %v1355
  %2002 = vmatprep.mubr.bf16.mxu0 %v671
  %2003 = vmatmul.mubr.bf16.gmra.mrb[0].mxu0 %v670
  %v2004 = vpop.f32.mrb[0].mxu0
  %v2005 = vadd.f32 %v1908, %v2004
  %v2006 = vpop.f32.mrb[0].mxu0
  %v2007 = vpop.f32.mrb[0].mxu0
  %v2008 = vadd.f32 %v1911, %v2007
  %v2009 = vpop.f32.mrb[0].mxu0
  %2010 = vmatprep.mubr.bf16.mxu0 %v684
  %2011 = vmatmul.mubr.bf16.gmra.mrb[0].mxu0 %v683
  %v2012 = vpop.f32.mrb[0].mxu0
  %v2013 = vadd.f32 %v1916, %v2012
  %v2014 = vpop.f32.mrb[0].mxu0
  %v2015 = vpop.f32.mrb[0].mxu0
  %v2016 = vadd.f32 %v1919, %v2015
  %v2017 = vpop.f32.mrb[0].mxu0
  %2018 = vmatprep.mubr.bf16.mxu0 %v697
  %2019 = vmatmul.mubr.bf16.gmra.mrb[0].mxu0 %v696
  %v2020 = vpop.f32.mrb[0].mxu0
  %v2021 = vadd.f32 %v1924, %v2020
  %v2022 = vpop.f32.mrb[0].mxu0
  %v2023 = vpop.f32.mrb[0].mxu0
  %v2024 = vadd.f32 %v1927, %v2023
  %v2025 = vpop.f32.mrb[0].mxu0
  %2026 = vmatprep.mubr.bf16.mxu0 %v710
  %2027 = vmatmul.mubr.bf16.gmra.mrb[0].mxu0 %v709
  %v2028 = vpop.f32.mrb[0].mxu0
  %v2029 = vadd.f32 %v1932, %v2028
  %v2030 = vpop.f32.mrb[0].mxu0
  %v2031 = vpop.f32.mrb[0].mxu0
  %v2032 = vadd.f32 %v1935, %v2031
  %v2033 = vpop.f32.mrb[0].mxu0
  %2034 = vmatprep.mubr.bf16.mxu0 %v723
  %2035 = vmatmul.mubr.bf16.gmra.mrb[0].mxu0 %v722
  %v2036 = vpop.f32.mrb[0].mxu0
  %v2037 = vadd.f32 %v1940, %v2036
  %v2038 = vpop.f32.mrb[0].mxu0
  %v2039 = vpop.f32.mrb[0].mxu0
  %v2040 = vadd.f32 %v1943, %v2039
  %v2041 = vpop.f32.mrb[0].mxu0
  %2042 = vmatprep.mubr.bf16.mxu0 %v736
  %2043 = vmatmul.mubr.bf16.gmra.mrb[0].mxu0 %v735
  %v2044 = vpop.f32.mrb[0].mxu0
  %v2045 = vadd.f32 %v1948, %v2044
  %v2046 = vpop.f32.mrb[0].mxu0
  %v2047 = vpop.f32.mrb[0].mxu0
  %v2048 = vadd.f32 %v1951, %v2047
  %v2049 = vpop.f32.mrb[0].mxu0
  %2050 = vmatprep.mubr.bf16.mxu0 %v749
  %2051 = vmatmul.mubr.bf16.gmra.mrb[0].mxu0 %v748
  %v2052 = vpop.f32.mrb[0].mxu0
  %v2053 = vadd.f32 %v1956, %v2052
  %v2054 = vpop.f32.mrb[0].mxu0
  %v2055 = vpop.f32.mrb[0].mxu0
  %v2056 = vadd.f32 %v1959, %v2055
  %v2057 = vpop.f32.mrb[0].mxu0
  %2058 = vmatprep.mubr.bf16.mxu0 %v762
  %2059 = vmatmul.mubr.bf16.gmra.mrb[0].mxu0 %v761
  %v2060 = vpop.f32.mrb[0].mxu0
  %v2061 = vadd.f32 %v1964, %v2060
  %v2062 = vpop.f32.mrb[0].mxu0
  %v2063 = vpop.f32.mrb[0].mxu0
  %v2064 = vadd.f32 %v1967, %v2063
  %v2065 = vpop.f32.mrb[0].mxu0
  %2066 = vdwg.mxu0
  %2067 = vmatprep.subr.bf16.mxu0 0
  %2068 = vmatpush1.bf16.msra.mxu0 %v1356
  %2069 = vmatprep.subr.bf16.mxu0 0
  %2070 = vmatpush1.bf16.msra.mxu0 %v1357
  %2071 = vmatprep.subr.bf16.mxu0 0
  %2072 = vmatpush1.bf16.msra.mxu0 %v1358
  %2073 = vmatprep.subr.bf16.mxu0 0
  %2074 = vmatpush1.bf16.msra.mxu0 %v1359
  %2075 = vmatprep.subr.bf16.mxu0 0
  %2076 = vmatpush1.bf16.msra.mxu0 0
  %2077 = vmatprep.subr.bf16.mxu0 0
  %2078 = vmatpush1.bf16.msra.mxu0 0
  %2079 = vmatprep.subr.bf16.mxu0 0
  %2080 = vmatpush1.bf16.msra.mxu0 0
  %2081 = vmatprep.subr.bf16.mxu0 0
  %2082 = vmatpush1.bf16.msra.mxu0 0
  %2083 = vmatprep.subr.bf16.mxu0 0
  %2084 = vmatpush1.bf16.msra.mxu0 0
  %2085 = vmatprep.subr.bf16.mxu0 0
  %2086 = vmatpush1.bf16.msra.mxu0 0
  %2087 = vmatprep.subr.bf16.mxu0 0
  %2088 = vmatpush1.bf16.msra.mxu0 0
  %2089 = vmatprep.subr.bf16.mxu0 0
  %2090 = vmatpush1.bf16.msra.mxu0 0
  %2091 = vmatprep.subr.bf16.mxu0 0
  %2092 = vmatpush1.bf16.msra.mxu0 0
  %2093 = vmatprep.subr.bf16.mxu0 0
  %2094 = vmatpush1.bf16.msra.mxu0 0
  %2095 = vmatprep.subr.bf16.mxu0 0
  %2096 = vmatpush1.bf16.msra.mxu0 0
  %2097 = vmatprep.subr.bf16.mxu0 0
  %2098 = vmatpush1.bf16.msra.mxu0 0
  %2099 = vmatprep.mubr.bf16.mxu0 0
  %2100 = vmatmul.mubr.bf16.gmra.mrb[0].mxu0 %v1462
  %v2101 = vpop.f32.mrb[0].mxu0
  %v2102 = vadd.f32 %v2005, %v2101
  %v2103 = vpop.f32.mrb[0].mxu0
  %v2104 = vpop.f32.mrb[0].mxu0
  %v2105 = vadd.f32 %v2008, %v2104
  %v2106 = vpop.f32.mrb[0].mxu0
  %2107 = vmatprep.mubr.bf16.mxu0 0
  %2108 = vmatmul.mubr.bf16.gmra.mrb[0].mxu0 %v1465
  %v2109 = vpop.f32.mrb[0].mxu0
  %v2110 = vadd.f32 %v2013, %v2109
  %v2111 = vpop.f32.mrb[0].mxu0
  %v2112 = vpop.f32.mrb[0].mxu0
  %v2113 = vadd.f32 %v2016, %v2112
  %v2114 = vpop.f32.mrb[0].mxu0
  %2115 = vmatprep.mubr.bf16.mxu0 0
  %2116 = vmatmul.mubr.bf16.gmra.mrb[0].mxu0 %v1468
  %v2117 = vpop.f32.mrb[0].mxu0
  %v2118 = vadd.f32 %v2021, %v2117
  %v2119 = vpop.f32.mrb[0].mxu0
  %v2120 = vpop.f32.mrb[0].mxu0
  %v2121 = vadd.f32 %v2024, %v2120
  %v2122 = vpop.f32.mrb[0].mxu0
  %2123 = vmatprep.mubr.bf16.mxu0 0
  %2124 = vmatmul.mubr.bf16.gmra.mrb[0].mxu0 %v1471
  %v2125 = vpop.f32.mrb[0].mxu0
  %v2126 = vadd.f32 %v2029, %v2125
  %v2127 = vpop.f32.mrb[0].mxu0
  %v2128 = vpop.f32.mrb[0].mxu0
  %v2129 = vadd.f32 %v2032, %v2128
  %v2130 = vpop.f32.mrb[0].mxu0
  %2131 = vmatprep.mubr.bf16.mxu0 0
  %2132 = vmatmul.mubr.bf16.gmra.mrb[0].mxu0 %v1474
  %v2133 = vpop.f32.mrb[0].mxu0
  %v2134 = vadd.f32 %v2037, %v2133
  %v2135 = vpop.f32.mrb[0].mxu0
  %v2136 = vpop.f32.mrb[0].mxu0
  %v2137 = vadd.f32 %v2040, %v2136
  %v2138 = vpop.f32.mrb[0].mxu0
  %2139 = vmatprep.mubr.bf16.mxu0 0
  %2140 = vmatmul.mubr.bf16.gmra.mrb[0].mxu0 %v1477
  %v2141 = vpop.f32.mrb[0].mxu0
  %v2142 = vadd.f32 %v2045, %v2141
  %v2143 = vpop.f32.mrb[0].mxu0
  %v2144 = vpop.f32.mrb[0].mxu0
  %v2145 = vadd.f32 %v2048, %v2144
  %v2146 = vpop.f32.mrb[0].mxu0
  %2147 = vmatprep.mubr.bf16.mxu0 0
  %2148 = vmatmul.mubr.bf16.gmra.mrb[0].mxu0 %v1480
  %v2149 = vpop.f32.mrb[0].mxu0
  %v2150 = vadd.f32 %v2053, %v2149
  %v2151 = vpop.f32.mrb[0].mxu0
  %v2152 = vpop.f32.mrb[0].mxu0
  %v2153 = vadd.f32 %v2056, %v2152
  %v2154 = vpop.f32.mrb[0].mxu0
  %2155 = vmatprep.mubr.bf16.mxu0 0
  %2156 = vmatmul.mubr.bf16.gmra.mrb[0].mxu0 %v1483
  %v2157 = vpop.f32.mrb[0].mxu0
  %v2158 = vadd.f32 %v2061, %v2157
  %v2159 = vpop.f32.mrb[0].mxu0
  %v2160 = vpop.f32.mrb[0].mxu0
  %v2161 = vadd.f32 %v2064, %v2160
  %v2162 = vpop.f32.mrb[0].mxu0
  %2163 = vdwg.mxu0
  %v2164 = vadd.f32 %v2102, %v2105
  %v2165 = vadd.f32 %v2164, %v2110
  %v2166 = vadd.f32 %v2165, %v2113
  %v2167 = vadd.f32 %v2166, %v2118
  %v2168 = vadd.f32 %v2167, %v2121
  %v2169 = vadd.f32 %v2168, %v2126
  %v2170 = vadd.f32 %v2169, %v2129
  %v2171 = vadd.f32 %v2170, %v2134
  %v2172 = vadd.f32 %v2171, %v2137
  %v2173 = vadd.f32 %v2172, %v2142
  %v2174 = vadd.f32 %v2173, %v2145
  %v2175 = vadd.f32 %v2174, %v2150
  %v2176 = vadd.f32 %v2175, %v2153
  %v2177 = vadd.f32 %v2176, %v2158
  %v2178 = vadd.f32 %v2177, %v2161
  %v2179 = vrot.slane %v2178, 4
  %v2180 = vadd.f32 %v2178, %v2179
  %v2181 = vrot.slane %v2180, 2
  %v2182 = vadd.f32 %v2180, %v2181
  %v2183 = vrot.slane %v2182, 1
  %v2184 = vadd.f32 %v2182, %v2183
  %v2185 = vmul.f32 %v2184, 0.0078125
  %v2186 = vsub.f32 %v2102, %v2185
  %v2187 = vsub.f32 %v2105, %v2185
  %v2188 = vsub.f32 %v2110, %v2185
  %v2189 = vsub.f32 %v2113, %v2185
  %v2190 = vsub.f32 %v2118, %v2185
  %v2191 = vsub.f32 %v2121, %v2185
  %v2192 = vsub.f32 %v2126, %v2185
  %v2193 = vsub.f32 %v2129, %v2185
  %v2194 = vsub.f32 %v2134, %v2185
  %v2195 = vsub.f32 %v2137, %v2185
  %v2196 = vsub.f32 %v2142, %v2185
  %v2197 = vsub.f32 %v2145, %v2185
  %v2198 = vsub.f32 %v2150, %v2185
  %v2199 = vsub.f32 %v2153, %v2185
  %v2200 = vsub.f32 %v2158, %v2185
  %v2201 = vsub.f32 %v2161, %v2185
  %v2202 = vmul.f32 %v2186, %v2186
  %v2203 = vmul.f32 %v2187, %v2187
  %v2204 = vmul.f32 %v2188, %v2188
  %v2205 = vmul.f32 %v2189, %v2189
  %v2206 = vmul.f32 %v2190, %v2190
  %v2207 = vmul.f32 %v2191, %v2191
  %v2208 = vmul.f32 %v2192, %v2192
  %v2209 = vmul.f32 %v2193, %v2193
  %v2210 = vmul.f32 %v2194, %v2194
  %v2211 = vmul.f32 %v2195, %v2195
  %v2212 = vmul.f32 %v2196, %v2196
  %v2213 = vmul.f32 %v2197, %v2197
  %v2214 = vmul.f32 %v2198, %v2198
  %v2215 = vmul.f32 %v2199, %v2199
  %v2216 = vmul.f32 %v2200, %v2200
  %v2217 = vmul.f32 %v2201, %v2201
  %v2218 = vadd.f32 %v2202, %v2203
  %v2219 = vadd.f32 %v2218, %v2204
  %v2220 = vadd.f32 %v2219, %v2205
  %v2221 = vadd.f32 %v2220, %v2206
  %v2222 = vadd.f32 %v2221, %v2207
  %v2223 = vadd.f32 %v2222, %v2208
  %v2224 = vadd.f32 %v2223, %v2209
  %v2225 = vadd.f32 %v2224, %v2210
  %v2226 = vadd.f32 %v2225, %v2211
  %v2227 = vadd.f32 %v2226, %v2212
  %v2228 = vadd.f32 %v2227, %v2213
  %v2229 = vadd.f32 %v2228, %v2214
  %v2230 = vadd.f32 %v2229, %v2215
  %v2231 = vadd.f32 %v2230, %v2216
  %v2232 = vadd.f32 %v2231, %v2217
  %v2233 = vrot.slane %v2232, 4
  %v2234 = vadd.f32 %v2232, %v2233
  %v2235 = vrot.slane %v2234, 2
  %v2236 = vadd.f32 %v2234, %v2235
  %v2237 = vrot.slane %v2236, 1
  %v2238 = vadd.f32 %v2236, %v2237
  %v2239 = vmul.f32 %v2238, 0.0078125
  %v2240 = vld [vmem:[%s3] sm:$0x1]
  %v2241 = vadd.f32 %v2239, 1e-05
  %v2242 = vrsqrt.pop %v2241
  %v2243 = vmul.f32 %v2240, %v2242
  %v2245 = vlaneseq
  %v2246 = vshrl.u32 %v2245, 7
  %v2247 = vsub.s32 0, %v2246
  %v2248 = vrot.slane %v2243, %v2247
  %v2250 = vmul.f32 %v2186, %v2248
  %v2251 = vmul.f32 %v2187, %v2248
  %v2252 = vmul.f32 %v2188, %v2248
  %v2253 = vmul.f32 %v2189, %v2248
  %v2254 = vmul.f32 %v2190, %v2248
  %v2255 = vmul.f32 %v2191, %v2248
  %v2256 = vmul.f32 %v2192, %v2248
  %v2257 = vmul.f32 %v2193, %v2248
  %v2258 = vmul.f32 %v2194, %v2248
  %v2259 = vmul.f32 %v2195, %v2248
  %v2260 = vmul.f32 %v2196, %v2248
  %v2261 = vmul.f32 %v2197, %v2248
  %v2262 = vmul.f32 %v2198, %v2248
  %v2263 = vmul.f32 %v2199, %v2248
  %v2264 = vmul.f32 %v2200, %v2248
  %v2265 = vmul.f32 %v2201, %v2248
  %v2266 = vld [vmem:[%s4] sm:$0x1]
  %v2268 = vlaneseq
  %v2269 = vshrl.u32 %v2268, 7
  %v2270 = vsub.s32 0, %v2269
  %v2271 = vrot.slane %v2266, %v2270
  %v2273 = vadd.f32 %v2250, %v2271
  %v2274 = vadd.f32 %v2251, %v2271
  %v2275 = vadd.f32 %v2252, %v2271
  %v2276 = vadd.f32 %v2253, %v2271
  %v2277 = vadd.f32 %v2254, %v2271
  %v2278 = vadd.f32 %v2255, %v2271
  %v2279 = vadd.f32 %v2256, %v2271
  %v2280 = vadd.f32 %v2257, %v2271
  %v2281 = vadd.f32 %v2258, %v2271
  %v2282 = vadd.f32 %v2259, %v2271
  %v2283 = vadd.f32 %v2260, %v2271
  %v2284 = vadd.f32 %v2261, %v2271
  %v2285 = vadd.f32 %v2262, %v2271
  %v2286 = vadd.f32 %v2263, %v2271
  %v2287 = vadd.f32 %v2264, %v2271
  %v2288 = vadd.f32 %v2265, %v2271
  %v2289 = vmax.f32 %v2273, 0.0
  %v2290 = vmax.f32 %v2274, 0.0
  %v2291 = vmax.f32 %v2275, 0.0
  %v2292 = vmax.f32 %v2276, 0.0
  %v2293 = vmax.f32 %v2277, 0.0
  %v2294 = vmax.f32 %v2278, 0.0
  %v2295 = vmax.f32 %v2279, 0.0
  %v2296 = vmax.f32 %v2280, 0.0
  %v2297 = vmax.f32 %v2281, 0.0
  %v2298 = vmax.f32 %v2282, 0.0
  %v2299 = vmax.f32 %v2283, 0.0
  %v2300 = vmax.f32 %v2284, 0.0
  %v2301 = vmax.f32 %v2285, 0.0
  %v2302 = vmax.f32 %v2286, 0.0
  %v2303 = vmax.f32 %v2287, 0.0
  %v2304 = vmax.f32 %v2288, 0.0
  %v2305 = vpack.c.bf16 %v2290, %v2289
  %v2306 = vpack.c.bf16 %v2292, %v2291
  %v2307 = vpack.c.bf16 %v2294, %v2293
  %v2308 = vpack.c.bf16 %v2296, %v2295
  %v2309 = vpack.c.bf16 %v2298, %v2297
  %v2310 = vpack.c.bf16 %v2300, %v2299
  %v2311 = vpack.c.bf16 %v2302, %v2301
  %v2312 = vpack.c.bf16 %v2304, %v2303
  %v2321 = vunpack.c.l.b16 %v2305
  %v2322 = vunpack.c.h.b16 %v2305
  %v2323 = vunpack.c.l.b16 %v2306
  %v2324 = vunpack.c.h.b16 %v2306
  %v2325 = vunpack.c.l.b16 %v2307
  %v2326 = vunpack.c.h.b16 %v2307
  %v2327 = vunpack.c.l.b16 %v2308
  %v2328 = vunpack.c.h.b16 %v2308
  %v2329 = vunpack.c.l.b16 %v2309
  %v2330 = vunpack.c.h.b16 %v2309
  %v2331 = vunpack.c.l.b16 %v2310
  %v2332 = vunpack.c.h.b16 %v2310
  %v2333 = vunpack.c.l.b16 %v2311
  %v2334 = vunpack.c.h.b16 %v2311
  %v2335 = vunpack.c.l.b16 %v2312
  %v2336 = vunpack.c.h.b16 %v2312
  %v2337 = vpack.c.b16 %v2321, %v2321
  %v2338 = vpack.c.b16 %v2322, %v2322
  %v2339 = vpack.c.b16 %v2323, %v2323
  %v2340 = vpack.c.b16 %v2324, %v2324
  %v2341 = vpack.c.b16 %v2325, %v2325
  %v2342 = vpack.c.b16 %v2326, %v2326
  %v2343 = vpack.c.b16 %v2327, %v2327
  %v2344 = vpack.c.b16 %v2328, %v2328
  %v2345 = vpack.c.b16 %v2329, %v2329
  %v2346 = vpack.c.b16 %v2330, %v2330
  %v2347 = vpack.c.b16 %v2331, %v2331
  %v2348 = vpack.c.b16 %v2332, %v2332
  %v2349 = vpack.c.b16 %v2333, %v2333
  %v2350 = vpack.c.b16 %v2334, %v2334
  %v2351 = vpack.c.b16 %v2335, %v2335
  %v2352 = vpack.c.b16 %v2336, %v2336
  %2369 = vst [vmem:[%s5] sm:$0xf] %v2337
  %2370 = vst [vmem:[%s5 + $0x4] sm:$0xf] %v2338
  %2371 = vst [vmem:[%s5 + $0x8] sm:$0xf] %v2339
  %2372 = vst [vmem:[%s5 + $0xc] sm:$0xf] %v2340
  %2373 = vst [vmem:[%s5 + $0x10] sm:$0xf] %v2341
  %2374 = vst [vmem:[%s5 + $0x14] sm:$0xf] %v2342
  %2375 = vst [vmem:[%s5 + $0x18] sm:$0xf] %v2343
  %2376 = vst [vmem:[%s5 + $0x1c] sm:$0xf] %v2344
  %2377 = vst [vmem:[%s5 + $0x20] sm:$0xf] %v2345
  %2378 = vst [vmem:[%s5 + $0x24] sm:$0xf] %v2346
  %2379 = vst [vmem:[%s5 + $0x28] sm:$0xf] %v2347
  %2380 = vst [vmem:[%s5 + $0x2c] sm:$0xf] %v2348
  %2381 = vst [vmem:[%s5 + $0x30] sm:$0xf] %v2349
  %2382 = vst [vmem:[%s5 + $0x34] sm:$0xf] %v2350
  %2383 = vst [vmem:[%s5 + $0x38] sm:$0xf] %v2351
  %2384 = vst [vmem:[%s5 + $0x3c] sm:$0xf] %v2352
  // Predicated region
  $region22: #{_lambda_.5} parent=0 // pred_check
    _
  $region23: #{_lambda_.5} parent=0 // pred_check_branch
    %2386 = sbr.rel (0) target = $region25
  $region24: #{_lambda_.5} parent=0 // pred_region
    _
  $region25: #{_lambda_.5} parent=0 // pred_fallthru
    _
  // Predicated region
  $region26: #{_lambda_.5} parent=0 // pred_check
    _
  $region27: #{_lambda_.5} parent=0 // pred_check_branch
    %2388 = sbr.rel (0) target = $region29
  $region28: #{_lambda_.5} parent=0 // pred_region
    _
  $region29: #{_lambda_.5} parent=0 // pred_fallthru
    _

// kernel: _lambda_.6
$region0: #{_lambda_.6}
  #allocation0 [shape = 'u32[]', space=smem, size = 0x4, offset = 0x4, fixed_abs, tag = 'smem constant byte address 0x4 - core index']
  #allocation1 [shape = 'u32[144,128]{1,0:T(1,128)}', space=vmem, size = 0x12000, scoped, tag = 'internal scratch']
  %s0 = inlined_call_operand.vmem [shape: bf16[32,3200], index: 0, kind: input, shape index: {}]
  %s1 = inlined_call_operand.vmem [shape: bf16[3200,128], index: 1, kind: input, shape index: {}]
  %s2 = inlined_call_operand.vmem [shape: f32[1,128], index: 2, kind: input, shape index: {}]
  %s3 = inlined_call_operand.vmem [shape: bf16[32,128], index: 3, kind: output, shape index: {}]
  %s4 = sld [smem:[#allocation0]]
  $region22: #{_lambda_.6} parent=0
    _
  %s6 = ssub.s32 1, %s4
  %s7 = scalar_select 0, %s6, %s4
  // Predicated region
  $region2: #{_lambda_.6} parent=0 // pred_check
    _
  $region3: #{_lambda_.6} parent=0 // pred_check_branch
    %9 = sbr.rel (0) target = $region5
  $region4: #{_lambda_.6} parent=0 // pred_region
    _
  $region5: #{_lambda_.6} parent=0 // pred_fallthru
    _
  // Predicated region
  $region6: #{_lambda_.6} parent=0 // pred_check
    _
  $region7: #{_lambda_.6} parent=0 // pred_check_branch
    %11 = sbr.rel (0) target = $region9
  $region8: #{_lambda_.6} parent=0 // pred_region
    _
  $region9: #{_lambda_.6} parent=0 // pred_fallthru
    _
  // Predicated region
  $region10: #{_lambda_.6} parent=0 // pred_check
    _
  $region11: #{_lambda_.6} parent=0 // pred_check_branch
    %13 = sbr.rel (0) target = $region13
  $region12: #{_lambda_.6} parent=0 // pred_region
    _
  $region13: #{_lambda_.6} parent=0 // pred_fallthru
    _
  %v15 = vld [vmem:[%s0] sm:$0xff]
  %v16 = vld [vmem:[%s0 + $0x8] sm:$0xff]
  %v17 = vld [vmem:[%s0 + $0x10] sm:$0xff]
  %v18 = vld [vmem:[%s0 + $0x18] sm:$0xff]
  %v19 = vld [vmem:[%s0 + $0x20] sm:$0xff]
  %v20 = vld [vmem:[%s0 + $0x28] sm:$0xff]
  %v21 = vld [vmem:[%s0 + $0x30] sm:$0xff]
  %v22 = vld [vmem:[%s0 + $0x38] sm:$0xff]
  %v23 = vld [vmem:[%s0 + $0x40] sm:$0xff]
  %v24 = vld [vmem:[%s0 + $0x48] sm:$0xff]
  %v25 = vld [vmem:[%s0 + $0x50] sm:$0xff]
  %v26 = vld [vmem:[%s0 + $0x58] sm:$0xff]
  %v27 = vld [vmem:[%s0 + $0x60] sm:$0xf]
  %v28 = vld [vmem:[%s0 + $0x64] sm:$0xff]
  %v29 = vld [vmem:[%s0 + $0x6c] sm:$0xff]
  %v30 = vld [vmem:[%s0 + $0x74] sm:$0xff]
  %v31 = vld [vmem:[%s0 + $0x7c] sm:$0xff]
  %v32 = vld [vmem:[%s0 + $0x84] sm:$0xff]
  %v33 = vld [vmem:[%s0 + $0x8c] sm:$0xff]
  %v34 = vld [vmem:[%s0 + $0x94] sm:$0xff]
  %v35 = vld [vmem:[%s0 + $0x9c] sm:$0xff]
  %v36 = vld [vmem:[%s0 + $0xa4] sm:$0xff]
  %v37 = vld [vmem:[%s0 + $0xac] sm:$0xff]
  %v38 = vld [vmem:[%s0 + $0xb4] sm:$0xff]
  %v39 = vld [vmem:[%s0 + $0xbc] sm:$0xff]
  %v40 = vld [vmem:[%s0 + $0xc4] sm:$0xf]
  %v41 = vld [vmem:[%s0 + $0xc8] sm:$0xff]
  %v42 = vld [vmem:[%s0 + $0xd0] sm:$0xff]
  %v43 = vld [vmem:[%s0 + $0xd8] sm:$0xff]
  %v44 = vld [vmem:[%s0 + $0xe0] sm:$0xff]
  %v45 = vld [vmem:[%s0 + $0xe8] sm:$0xff]
  %v46 = vld [vmem:[%s0 + $0xf0] sm:$0xff]
  %v47 = vld [vmem:[%s0 + $0xf8] sm:$0xff]
  %v48 = vld [vmem:[%s0 + $0x100] sm:$0xff]
  %v49 = vld [vmem:[%s0 + $0x108] sm:$0xff]
  %v50 = vld [vmem:[%s0 + $0x110] sm:$0xff]
  %v51 = vld [vmem:[%s0 + $0x118] sm:$0xff]
  %v52 = vld [vmem:[%s0 + $0x120] sm:$0xff]
  %v53 = vld [vmem:[%s0 + $0x128] sm:$0xf]
  %v54 = vld [vmem:[%s0 + $0x12c] sm:$0xff]
  %v55 = vld [vmem:[%s0 + $0x134] sm:$0xff]
  %v56 = vld [vmem:[%s0 + $0x13c] sm:$0xff]
  %v57 = vld [vmem:[%s0 + $0x144] sm:$0xff]
  %v58 = vld [vmem:[%s0 + $0x14c] sm:$0xff]
  %v59 = vld [vmem:[%s0 + $0x154] sm:$0xff]
  %v60 = vld [vmem:[%s0 + $0x15c] sm:$0xff]
  %v61 = vld [vmem:[%s0 + $0x164] sm:$0xff]
  %v62 = vld [vmem:[%s0 + $0x16c] sm:$0xff]
  %v63 = vld [vmem:[%s0 + $0x174] sm:$0xff]
  %v64 = vld [vmem:[%s0 + $0x17c] sm:$0xff]
  %v65 = vld [vmem:[%s0 + $0x184] sm:$0xff]
  %v66 = vld [vmem:[%s0 + $0x18c] sm:$0xf]
  %v67 = vld [vmem:[%s1] sm:$0xf]
  %v68 = vld [vmem:[%s1 + $0x4] sm:$0xf]
  %v69 = vld [vmem:[%s1 + $0x8] sm:$0xf]
  %v70 = vld [vmem:[%s1 + $0xc] sm:$0xf]
  %v71 = vld [vmem:[%s1 + $0x10] sm:$0xf]
  %v72 = vld [vmem:[%s1 + $0x14] sm:$0xf]
  %v73 = vld [vmem:[%s1 + $0x18] sm:$0xf]
  %v74 = vld [vmem:[%s1 + $0x1c] sm:$0xf]
  %v75 = vld [vmem:[%s1 + $0x20] sm:$0xf]
  %v76 = vld [vmem:[%s1 + $0x24] sm:$0xf]
  %v77 = vld [vmem:[%s1 + $0x28] sm:$0xf]
  %v78 = vld [vmem:[%s1 + $0x2c] sm:$0xf]
  %v79 = vld [vmem:[%s1 + $0x30] sm:$0xf]
  %v80 = vld [vmem:[%s1 + $0x34] sm:$0xf]
  %v81 = vld [vmem:[%s1 + $0x38] sm:$0xf]
  %v82 = vld [vmem:[%s1 + $0x3c] sm:$0xf]
  %v83 = vld [vmem:[%s1 + $0x40] sm:$0xf]
  %v84 = vld [vmem:[%s1 + $0x44] sm:$0xf]
  %v85 = vld [vmem:[%s1 + $0x48] sm:$0xf]
  %v86 = vld [vmem:[%s1 + $0x4c] sm:$0xf]
  %v87 = vld [vmem:[%s1 + $0x50] sm:$0xf]
  %v88 = vld [vmem:[%s1 + $0x54] sm:$0xf]
  %v89 = vld [vmem:[%s1 + $0x58] sm:$0xf]
  %v90 = vld [vmem:[%s1 + $0x5c] sm:$0xf]
  %v91 = vld [vmem:[%s1 + $0x60] sm:$0xf]
  %v92 = vld [vmem:[%s1 + $0x64] sm:$0xf]
  %v93 = vld [vmem:[%s1 + $0x68] sm:$0xf]
  %v94 = vld [vmem:[%s1 + $0x6c] sm:$0xf]
  %v95 = vld [vmem:[%s1 + $0x70] sm:$0xf]
  %v96 = vld [vmem:[%s1 + $0x74] sm:$0xf]
  %v97 = vld [vmem:[%s1 + $0x78] sm:$0xf]
  %v98 = vld [vmem:[%s1 + $0x7c] sm:$0xf]
  %v99 = vld [vmem:[%s1 + $0x80] sm:$0xf]
  %v100 = vld [vmem:[%s1 + $0x84] sm:$0xf]
  %v101 = vld [vmem:[%s1 + $0x88] sm:$0xf]
  %v102 = vld [vmem:[%s1 + $0x8c] sm:$0xf]
  %v103 = vld [vmem:[%s1 + $0x90] sm:$0xf]
  %v104 = vld [vmem:[%s1 + $0x94] sm:$0xf]
  %v105 = vld [vmem:[%s1 + $0x98] sm:$0xf]
  %v106 = vld [vmem:[%s1 + $0x9c] sm:$0xf]
  %v107 = vld [vmem:[%s1 + $0xa0] sm:$0xf]
  %v108 = vld [vmem:[%s1 + $0xa4] sm:$0xf]
  %v109 = vld [vmem:[%s1 + $0xa8] sm:$0xf]
  %v110 = vld [vmem:[%s1 + $0xac] sm:$0xf]
  %v111 = vld [vmem:[%s1 + $0xb0] sm:$0xf]
  %v112 = vld [vmem:[%s1 + $0xb4] sm:$0xf]
  %v113 = vld [vmem:[%s1 + $0xb8] sm:$0xf]
  %v114 = vld [vmem:[%s1 + $0xbc] sm:$0xf]
  %v115 = vld [vmem:[%s1 + $0xc0] sm:$0xf]
  %v116 = vld [vmem:[%s1 + $0xc4] sm:$0xf]
  %v117 = vld [vmem:[%s1 + $0xc8] sm:$0xf]
  %v118 = vld [vmem:[%s1 + $0xcc] sm:$0xf]
  %v119 = vld [vmem:[%s1 + $0xd0] sm:$0xf]
  %v120 = vld [vmem:[%s1 + $0xd4] sm:$0xf]
  %v121 = vld [vmem:[%s1 + $0xd8] sm:$0xf]
  %v122 = vld [vmem:[%s1 + $0xdc] sm:$0xf]
  %v123 = vld [vmem:[%s1 + $0xe0] sm:$0xf]
  %v124 = vld [vmem:[%s1 + $0xe4] sm:$0xf]
  %v125 = vld [vmem:[%s1 + $0xe8] sm:$0xf]
  %v126 = vld [vmem:[%s1 + $0xec] sm:$0xf]
  %v127 = vld [vmem:[%s1 + $0xf0] sm:$0xf]
  %v128 = vld [vmem:[%s1 + $0xf4] sm:$0xf]
  %v129 = vld [vmem:[%s1 + $0xf8] sm:$0xf]
  %v130 = vld [vmem:[%s1 + $0xfc] sm:$0xf]
  %v131 = vld [vmem:[%s1 + $0x100] sm:$0xf]
  %v132 = vld [vmem:[%s1 + $0x104] sm:$0xf]
  %v133 = vld [vmem:[%s1 + $0x108] sm:$0xf]
  %v134 = vld [vmem:[%s1 + $0x10c] sm:$0xf]
  %v135 = vld [vmem:[%s1 + $0x110] sm:$0xf]
  %v136 = vld [vmem:[%s1 + $0x114] sm:$0xf]
  %v137 = vld [vmem:[%s1 + $0x118] sm:$0xf]
  %v138 = vld [vmem:[%s1 + $0x11c] sm:$0xf]
  %v139 = vld [vmem:[%s1 + $0x120] sm:$0xf]
  %v140 = vld [vmem:[%s1 + $0x124] sm:$0xf]
  %v141 = vld [vmem:[%s1 + $0x128] sm:$0xf]
  %v142 = vld [vmem:[%s1 + $0x12c] sm:$0xf]
  %v143 = vld [vmem:[%s1 + $0x130] sm:$0xf]
  %v144 = vld [vmem:[%s1 + $0x134] sm:$0xf]
  %v145 = vld [vmem:[%s1 + $0x138] sm:$0xf]
  %v146 = vld [vmem:[%s1 + $0x13c] sm:$0xf]
  %v147 = vld [vmem:[%s1 + $0x140] sm:$0xf]
  %v148 = vld [vmem:[%s1 + $0x144] sm:$0xf]
  %v149 = vld [vmem:[%s1 + $0x148] sm:$0xf]
  %v150 = vld [vmem:[%s1 + $0x14c] sm:$0xf]
  %v151 = vld [vmem:[%s1 + $0x150] sm:$0xf]
  %v152 = vld [vmem:[%s1 + $0x154] sm:$0xf]
  %v153 = vld [vmem:[%s1 + $0x158] sm:$0xf]
  %v154 = vld [vmem:[%s1 + $0x15c] sm:$0xf]
  %v155 = vld [vmem:[%s1 + $0x160] sm:$0xf]
  %v156 = vld [vmem:[%s1 + $0x164] sm:$0xf]
  %v157 = vld [vmem:[%s1 + $0x168] sm:$0xf]
  %v158 = vld [vmem:[%s1 + $0x16c] sm:$0xf]
  %v159 = vld [vmem:[%s1 + $0x170] sm:$0xf]
  %v160 = vld [vmem:[%s1 + $0x174] sm:$0xf]
  %v161 = vld [vmem:[%s1 + $0x178] sm:$0xf]
  %v162 = vld [vmem:[%s1 + $0x17c] sm:$0xf]
  %v163 = vld [vmem:[%s1 + $0x180] sm:$0xf]
  %v164 = vld [vmem:[%s1 + $0x184] sm:$0xf]
  %v165 = vld [vmem:[%s1 + $0x188] sm:$0xf]
  %v166 = vld [vmem:[%s1 + $0x18c] sm:$0xf]
  %v167 = vld [vmem:[%s1 + $0x190] sm:$0xf]
  %v168 = vld [vmem:[%s1 + $0x194] sm:$0xf]
  %v169 = vld [vmem:[%s1 + $0x198] sm:$0xf]
  %v170 = vld [vmem:[%s1 + $0x19c] sm:$0xf]
  %v171 = vld [vmem:[%s1 + $0x1a0] sm:$0xf]
  %v172 = vld [vmem:[%s1 + $0x1a4] sm:$0xf]
  %v173 = vld [vmem:[%s1 + $0x1a8] sm:$0xf]
  %v174 = vld [vmem:[%s1 + $0x1ac] sm:$0xf]
  %v175 = vld [vmem:[%s1 + $0x1b0] sm:$0xf]
  %v176 = vld [vmem:[%s1 + $0x1b4] sm:$0xf]
  %v177 = vld [vmem:[%s1 + $0x1b8] sm:$0xf]
  %v178 = vld [vmem:[%s1 + $0x1bc] sm:$0xf]
  %v179 = vld [vmem:[%s1 + $0x1c0] sm:$0xf]
  %v180 = vld [vmem:[%s1 + $0x1c4] sm:$0xf]
  %v181 = vld [vmem:[%s1 + $0x1c8] sm:$0xf]
  %v182 = vld [vmem:[%s1 + $0x1cc] sm:$0xf]
  %v183 = vld [vmem:[%s1 + $0x1d0] sm:$0xf]
  %v184 = vld [vmem:[%s1 + $0x1d4] sm:$0xf]
  %v185 = vld [vmem:[%s1 + $0x1d8] sm:$0xf]
  %v186 = vld [vmem:[%s1 + $0x1dc] sm:$0xf]
  %v187 = vld [vmem:[%s1 + $0x1e0] sm:$0xf]
  %v188 = vld [vmem:[%s1 + $0x1e4] sm:$0xf]
  %v189 = vld [vmem:[%s1 + $0x1e8] sm:$0xf]
  %v190 = vld [vmem:[%s1 + $0x1ec] sm:$0xf]
  %v191 = vld [vmem:[%s1 + $0x1f0] sm:$0xf]
  %v192 = vld [vmem:[%s1 + $0x1f4] sm:$0xf]
  %v193 = vld [vmem:[%s1 + $0x1f8] sm:$0xf]
  %v194 = vld [vmem:[%s1 + $0x1fc] sm:$0xf]
  %v195 = vld [vmem:[%s1 + $0x200] sm:$0xf]
  %v196 = vld [vmem:[%s1 + $0x204] sm:$0xf]
  %v197 = vld [vmem:[%s1 + $0x208] sm:$0xf]
  %v198 = vld [vmem:[%s1 + $0x20c] sm:$0xf]
  %v199 = vld [vmem:[%s1 + $0x210] sm:$0xf]
  %v200 = vld [vmem:[%s1 + $0x214] sm:$0xf]
  %v201 = vld [vmem:[%s1 + $0x218] sm:$0xf]
  %v202 = vld [vmem:[%s1 + $0x21c] sm:$0xf]
  %v203 = vld [vmem:[%s1 + $0x220] sm:$0xf]
  %v204 = vld [vmem:[%s1 + $0x224] sm:$0xf]
  %v205 = vld [vmem:[%s1 + $0x228] sm:$0xf]
  %v206 = vld [vmem:[%s1 + $0x22c] sm:$0xf]
  %v207 = vld [vmem:[%s1 + $0x230] sm:$0xf]
  %v208 = vld [vmem:[%s1 + $0x234] sm:$0xf]
  %v209 = vld [vmem:[%s1 + $0x238] sm:$0xf]
  %v210 = vld [vmem:[%s1 + $0x23c] sm:$0xf]
  %v211 = vld [vmem:[%s1 + $0x240] sm:$0xf]
  %v212 = vld [vmem:[%s1 + $0x244] sm:$0xf]
  %v213 = vld [vmem:[%s1 + $0x248] sm:$0xf]
  %v214 = vld [vmem:[%s1 + $0x24c] sm:$0xf]
  %v215 = vld [vmem:[%s1 + $0x250] sm:$0xf]
  %v216 = vld [vmem:[%s1 + $0x254] sm:$0xf]
  %v217 = vld [vmem:[%s1 + $0x258] sm:$0xf]
  %v218 = vld [vmem:[%s1 + $0x25c] sm:$0xf]
  %v219 = vld [vmem:[%s1 + $0x260] sm:$0xf]
  %v220 = vld [vmem:[%s1 + $0x264] sm:$0xf]
  %v221 = vld [vmem:[%s1 + $0x268] sm:$0xf]
  %v222 = vld [vmem:[%s1 + $0x26c] sm:$0xf]
  %v223 = vld [vmem:[%s1 + $0x270] sm:$0xf]
  %v224 = vld [vmem:[%s1 + $0x274] sm:$0xf]
  %v225 = vld [vmem:[%s1 + $0x278] sm:$0xf]
  %v226 = vld [vmem:[%s1 + $0x27c] sm:$0xf]
  %v227 = vld [vmem:[%s1 + $0x280] sm:$0xf]
  %v228 = vld [vmem:[%s1 + $0x284] sm:$0xf]
  %v229 = vld [vmem:[%s1 + $0x288] sm:$0xf]
  %v230 = vld [vmem:[%s1 + $0x28c] sm:$0xf]
  %v231 = vld [vmem:[%s1 + $0x290] sm:$0xf]
  %v232 = vld [vmem:[%s1 + $0x294] sm:$0xf]
  %v233 = vld [vmem:[%s1 + $0x298] sm:$0xf]
  %v234 = vld [vmem:[%s1 + $0x29c] sm:$0xf]
  %v235 = vld [vmem:[%s1 + $0x2a0] sm:$0xf]
  %v236 = vld [vmem:[%s1 + $0x2a4] sm:$0xf]
  %v237 = vld [vmem:[%s1 + $0x2a8] sm:$0xf]
  %v238 = vld [vmem:[%s1 + $0x2ac] sm:$0xf]
  %v239 = vld [vmem:[%s1 + $0x2b0] sm:$0xf]
  %v240 = vld [vmem:[%s1 + $0x2b4] sm:$0xf]
  %v241 = vld [vmem:[%s1 + $0x2b8] sm:$0xf]
  %v242 = vld [vmem:[%s1 + $0x2bc] sm:$0xf]
  %v243 = vld [vmem:[%s1 + $0x2c0] sm:$0xf]
  %v244 = vld [vmem:[%s1 + $0x2c4] sm:$0xf]
  %v245 = vld [vmem:[%s1 + $0x2c8] sm:$0xf]
  %v246 = vld [vmem:[%s1 + $0x2cc] sm:$0xf]
  %v247 = vld [vmem:[%s1 + $0x2d0] sm:$0xf]
  %v248 = vld [vmem:[%s1 + $0x2d4] sm:$0xf]
  %v249 = vld [vmem:[%s1 + $0x2d8] sm:$0xf]
  %v250 = vld [vmem:[%s1 + $0x2dc] sm:$0xf]
  %v251 = vld [vmem:[%s1 + $0x2e0] sm:$0xf]
  %v252 = vld [vmem:[%s1 + $0x2e4] sm:$0xf]
  %v253 = vld [vmem:[%s1 + $0x2e8] sm:$0xf]
  %v254 = vld [vmem:[%s1 + $0x2ec] sm:$0xf]
  %v255 = vld [vmem:[%s1 + $0x2f0] sm:$0xf]
  %v256 = vld [vmem:[%s1 + $0x2f4] sm:$0xf]
  %v257 = vld [vmem:[%s1 + $0x2f8] sm:$0xf]
  %v258 = vld [vmem:[%s1 + $0x2fc] sm:$0xf]
  %v259 = vld [vmem:[%s1 + $0x300] sm:$0xf]
  %v260 = vld [vmem:[%s1 + $0x304] sm:$0xf]
  %v261 = vld [vmem:[%s1 + $0x308] sm:$0xf]
  %v262 = vld [vmem:[%s1 + $0x30c] sm:$0xf]
  %v263 = vld [vmem:[%s1 + $0x310] sm:$0xf]
  %v264 = vld [vmem:[%s1 + $0x314] sm:$0xf]
  %v265 = vld [vmem:[%s1 + $0x318] sm:$0xf]
  %v266 = vld [vmem:[%s1 + $0x31c] sm:$0xf]
  %v267 = vld [vmem:[%s1 + $0x320] sm:$0xf]
  %v268 = vld [vmem:[%s1 + $0x324] sm:$0xf]
  %v269 = vld [vmem:[%s1 + $0x328] sm:$0xf]
  %v270 = vld [vmem:[%s1 + $0x32c] sm:$0xf]
  %v271 = vld [vmem:[%s1 + $0x330] sm:$0xf]
  %v272 = vld [vmem:[%s1 + $0x334] sm:$0xf]
  %v273 = vld [vmem:[%s1 + $0x338] sm:$0xf]
  %v274 = vld [vmem:[%s1 + $0x33c] sm:$0xf]
  %v275 = vld [vmem:[%s1 + $0x340] sm:$0xf]
  %v276 = vld [vmem:[%s1 + $0x344] sm:$0xf]
  %v277 = vld [vmem:[%s1 + $0x348] sm:$0xf]
  %v278 = vld [vmem:[%s1 + $0x34c] sm:$0xf]
  %v279 = vld [vmem:[%s1 + $0x350] sm:$0xf]
  %v280 = vld [vmem:[%s1 + $0x354] sm:$0xf]
  %v281 = vld [vmem:[%s1 + $0x358] sm:$0xf]
  %v282 = vld [vmem:[%s1 + $0x35c] sm:$0xf]
  %v283 = vld [vmem:[%s1 + $0x360] sm:$0xf]
  %v284 = vld [vmem:[%s1 + $0x364] sm:$0xf]
  %v285 = vld [vmem:[%s1 + $0x368] sm:$0xf]
  %v286 = vld [vmem:[%s1 + $0x36c] sm:$0xf]
  %v287 = vld [vmem:[%s1 + $0x370] sm:$0xf]
  %v288 = vld [vmem:[%s1 + $0x374] sm:$0xf]
  %v289 = vld [vmem:[%s1 + $0x378] sm:$0xf]
  %v290 = vld [vmem:[%s1 + $0x37c] sm:$0xf]
  %v291 = vld [vmem:[%s1 + $0x380] sm:$0xf]
  %v292 = vld [vmem:[%s1 + $0x384] sm:$0xf]
  %v293 = vld [vmem:[%s1 + $0x388] sm:$0xf]
  %v294 = vld [vmem:[%s1 + $0x38c] sm:$0xf]
  %v295 = vld [vmem:[%s1 + $0x390] sm:$0xf]
  %v296 = vld [vmem:[%s1 + $0x394] sm:$0xf]
  %v297 = vld [vmem:[%s1 + $0x398] sm:$0xf]
  %v298 = vld [vmem:[%s1 + $0x39c] sm:$0xf]
  %v299 = vld [vmem:[%s1 + $0x3a0] sm:$0xf]
  %v300 = vld [vmem:[%s1 + $0x3a4] sm:$0xf]
  %v301 = vld [vmem:[%s1 + $0x3a8] sm:$0xf]
  %v302 = vld [vmem:[%s1 + $0x3ac] sm:$0xf]
  %v303 = vld [vmem:[%s1 + $0x3b0] sm:$0xf]
  %v304 = vld [vmem:[%s1 + $0x3b4] sm:$0xf]
  %v305 = vld [vmem:[%s1 + $0x3b8] sm:$0xf]
  %v306 = vld [vmem:[%s1 + $0x3bc] sm:$0xf]
  %v307 = vld [vmem:[%s1 + $0x3c0] sm:$0xf]
  %v308 = vld [vmem:[%s1 + $0x3c4] sm:$0xf]
  %v309 = vld [vmem:[%s1 + $0x3c8] sm:$0xf]
  %v310 = vld [vmem:[%s1 + $0x3cc] sm:$0xf]
  %v311 = vld [vmem:[%s1 + $0x3d0] sm:$0xf]
  %v312 = vld [vmem:[%s1 + $0x3d4] sm:$0xf]
  %v313 = vld [vmem:[%s1 + $0x3d8] sm:$0xf]
  %v314 = vld [vmem:[%s1 + $0x3dc] sm:$0xf]
  %v315 = vld [vmem:[%s1 + $0x3e0] sm:$0xf]
  %v316 = vld [vmem:[%s1 + $0x3e4] sm:$0xf]
  %v317 = vld [vmem:[%s1 + $0x3e8] sm:$0xf]
  %v318 = vld [vmem:[%s1 + $0x3ec] sm:$0xf]
  %v319 = vld [vmem:[%s1 + $0x3f0] sm:$0xf]
  %v320 = vld [vmem:[%s1 + $0x3f4] sm:$0xf]
  %v321 = vld [vmem:[%s1 + $0x3f8] sm:$0xf]
  %v322 = vld [vmem:[%s1 + $0x3fc] sm:$0xf]
  %v323 = vld [vmem:[%s1 + $0x400] sm:$0xf]
  %v324 = vld [vmem:[%s1 + $0x404] sm:$0xf]
  %v325 = vld [vmem:[%s1 + $0x408] sm:$0xf]
  %v326 = vld [vmem:[%s1 + $0x40c] sm:$0xf]
  %v327 = vld [vmem:[%s1 + $0x410] sm:$0xf]
  %v328 = vld [vmem:[%s1 + $0x414] sm:$0xf]
  %v329 = vld [vmem:[%s1 + $0x418] sm:$0xf]
  %v330 = vld [vmem:[%s1 + $0x41c] sm:$0xf]
  %v331 = vld [vmem:[%s1 + $0x420] sm:$0xf]
  %v332 = vld [vmem:[%s1 + $0x424] sm:$0xf]
  %v333 = vld [vmem:[%s1 + $0x428] sm:$0xf]
  %v334 = vld [vmem:[%s1 + $0x42c] sm:$0xf]
  %v335 = vld [vmem:[%s1 + $0x430] sm:$0xf]
  %v336 = vld [vmem:[%s1 + $0x434] sm:$0xf]
  %v337 = vld [vmem:[%s1 + $0x438] sm:$0xf]
  %v338 = vld [vmem:[%s1 + $0x43c] sm:$0xf]
  %v339 = vld [vmem:[%s1 + $0x440] sm:$0xf]
  %v340 = vld [vmem:[%s1 + $0x444] sm:$0xf]
  %v341 = vld [vmem:[%s1 + $0x448] sm:$0xf]
  %v342 = vld [vmem:[%s1 + $0x44c] sm:$0xf]
  %v343 = vld [vmem:[%s1 + $0x450] sm:$0xf]
  %v344 = vld [vmem:[%s1 + $0x454] sm:$0xf]
  %v345 = vld [vmem:[%s1 + $0x458] sm:$0xf]
  %v346 = vld [vmem:[%s1 + $0x45c] sm:$0xf]
  %v347 = vld [vmem:[%s1 + $0x460] sm:$0xf]
  %v348 = vld [vmem:[%s1 + $0x464] sm:$0xf]
  %v349 = vld [vmem:[%s1 + $0x468] sm:$0xf]
  %v350 = vld [vmem:[%s1 + $0x46c] sm:$0xf]
  %v351 = vld [vmem:[%s1 + $0x470] sm:$0xf]
  %v352 = vld [vmem:[%s1 + $0x474] sm:$0xf]
  %v353 = vld [vmem:[%s1 + $0x478] sm:$0xf]
  %v354 = vld [vmem:[%s1 + $0x47c] sm:$0xf]
  %v355 = vld [vmem:[%s1 + $0x480] sm:$0xf]
  %v356 = vld [vmem:[%s1 + $0x484] sm:$0xf]
  %v357 = vld [vmem:[%s1 + $0x488] sm:$0xf]
  %v358 = vld [vmem:[%s1 + $0x48c] sm:$0xf]
  %v359 = vld [vmem:[%s1 + $0x490] sm:$0xf]
  %v360 = vld [vmem:[%s1 + $0x494] sm:$0xf]
  %v361 = vld [vmem:[%s1 + $0x498] sm:$0xf]
  %v362 = vld [vmem:[%s1 + $0x49c] sm:$0xf]
  %v363 = vld [vmem:[%s1 + $0x4a0] sm:$0xf]
  %v364 = vld [vmem:[%s1 + $0x4a4] sm:$0xf]
  %v365 = vld [vmem:[%s1 + $0x4a8] sm:$0xf]
  %v366 = vld [vmem:[%s1 + $0x4ac] sm:$0xf]
  %v367 = vld [vmem:[%s1 + $0x4b0] sm:$0xf]
  %v368 = vld [vmem:[%s1 + $0x4b4] sm:$0xf]
  %v369 = vld [vmem:[%s1 + $0x4b8] sm:$0xf]
  %v370 = vld [vmem:[%s1 + $0x4bc] sm:$0xf]
  %v371 = vld [vmem:[%s1 + $0x4c0] sm:$0xf]
  %v372 = vld [vmem:[%s1 + $0x4c4] sm:$0xf]
  %v373 = vld [vmem:[%s1 + $0x4c8] sm:$0xf]
  %v374 = vld [vmem:[%s1 + $0x4cc] sm:$0xf]
  %v375 = vld [vmem:[%s1 + $0x4d0] sm:$0xf]
  %v376 = vld [vmem:[%s1 + $0x4d4] sm:$0xf]
  %v377 = vld [vmem:[%s1 + $0x4d8] sm:$0xf]
  %v378 = vld [vmem:[%s1 + $0x4dc] sm:$0xf]
  %v379 = vld [vmem:[%s1 + $0x4e0] sm:$0xf]
  %v380 = vld [vmem:[%s1 + $0x4e4] sm:$0xf]
  %v381 = vld [vmem:[%s1 + $0x4e8] sm:$0xf]
  %v382 = vld [vmem:[%s1 + $0x4ec] sm:$0xf]
  %v383 = vld [vmem:[%s1 + $0x4f0] sm:$0xf]
  %v384 = vld [vmem:[%s1 + $0x4f4] sm:$0xf]
  %v385 = vld [vmem:[%s1 + $0x4f8] sm:$0xf]
  %v386 = vld [vmem:[%s1 + $0x4fc] sm:$0xf]
  %v387 = vld [vmem:[%s1 + $0x500] sm:$0xf]
  %v388 = vld [vmem:[%s1 + $0x504] sm:$0xf]
  %v389 = vld [vmem:[%s1 + $0x508] sm:$0xf]
  %v390 = vld [vmem:[%s1 + $0x50c] sm:$0xf]
  %v391 = vld [vmem:[%s1 + $0x510] sm:$0xf]
  %v392 = vld [vmem:[%s1 + $0x514] sm:$0xf]
  %v393 = vld [vmem:[%s1 + $0x518] sm:$0xf]
  %v394 = vld [vmem:[%s1 + $0x51c] sm:$0xf]
  %v395 = vld [vmem:[%s1 + $0x520] sm:$0xf]
  %v396 = vld [vmem:[%s1 + $0x524] sm:$0xf]
  %v397 = vld [vmem:[%s1 + $0x528] sm:$0xf]
  %v398 = vld [vmem:[%s1 + $0x52c] sm:$0xf]
  %v399 = vld [vmem:[%s1 + $0x530] sm:$0xf]
  %v400 = vld [vmem:[%s1 + $0x534] sm:$0xf]
  %v401 = vld [vmem:[%s1 + $0x538] sm:$0xf]
  %v402 = vld [vmem:[%s1 + $0x53c] sm:$0xf]
  %v403 = vld [vmem:[%s1 + $0x540] sm:$0xf]
  %v404 = vld [vmem:[%s1 + $0x544] sm:$0xf]
  %v405 = vld [vmem:[%s1 + $0x548] sm:$0xf]
  %v406 = vld [vmem:[%s1 + $0x54c] sm:$0xf]
  %v407 = vld [vmem:[%s1 + $0x550] sm:$0xf]
  %v408 = vld [vmem:[%s1 + $0x554] sm:$0xf]
  %v409 = vld [vmem:[%s1 + $0x558] sm:$0xf]
  %v410 = vld [vmem:[%s1 + $0x55c] sm:$0xf]
  %v411 = vld [vmem:[%s1 + $0x560] sm:$0xf]
  %v412 = vld [vmem:[%s1 + $0x564] sm:$0xf]
  %v413 = vld [vmem:[%s1 + $0x568] sm:$0xf]
  %v414 = vld [vmem:[%s1 + $0x56c] sm:$0xf]
  %v415 = vld [vmem:[%s1 + $0x570] sm:$0xf]
  %v416 = vld [vmem:[%s1 + $0x574] sm:$0xf]
  %v417 = vld [vmem:[%s1 + $0x578] sm:$0xf]
  %v418 = vld [vmem:[%s1 + $0x57c] sm:$0xf]
  %v419 = vld [vmem:[%s1 + $0x580] sm:$0xf]
  %v420 = vld [vmem:[%s1 + $0x584] sm:$0xf]
  %v421 = vld [vmem:[%s1 + $0x588] sm:$0xf]
  %v422 = vld [vmem:[%s1 + $0x58c] sm:$0xf]
  %v423 = vld [vmem:[%s1 + $0x590] sm:$0xf]
  %v424 = vld [vmem:[%s1 + $0x594] sm:$0xf]
  %v425 = vld [vmem:[%s1 + $0x598] sm:$0xf]
  %v426 = vld [vmem:[%s1 + $0x59c] sm:$0xf]
  %v427 = vld [vmem:[%s1 + $0x5a0] sm:$0xf]
  %v428 = vld [vmem:[%s1 + $0x5a4] sm:$0xf]
  %v429 = vld [vmem:[%s1 + $0x5a8] sm:$0xf]
  %v430 = vld [vmem:[%s1 + $0x5ac] sm:$0xf]
  %v431 = vld [vmem:[%s1 + $0x5b0] sm:$0xf]
  %v432 = vld [vmem:[%s1 + $0x5b4] sm:$0xf]
  %v433 = vld [vmem:[%s1 + $0x5b8] sm:$0xf]
  %v434 = vld [vmem:[%s1 + $0x5bc] sm:$0xf]
  %v435 = vld [vmem:[%s1 + $0x5c0] sm:$0xf]
  %v436 = vld [vmem:[%s1 + $0x5c4] sm:$0xf]
  %v437 = vld [vmem:[%s1 + $0x5c8] sm:$0xf]
  %v438 = vld [vmem:[%s1 + $0x5cc] sm:$0xf]
  %v439 = vld [vmem:[%s1 + $0x5d0] sm:$0xf]
  %v440 = vld [vmem:[%s1 + $0x5d4] sm:$0xf]
  %v441 = vld [vmem:[%s1 + $0x5d8] sm:$0xf]
  %v442 = vld [vmem:[%s1 + $0x5dc] sm:$0xf]
  %v443 = vld [vmem:[%s1 + $0x5e0] sm:$0xf]
  %v444 = vld [vmem:[%s1 + $0x5e4] sm:$0xf]
  %v445 = vld [vmem:[%s1 + $0x5e8] sm:$0xf]
  %v446 = vld [vmem:[%s1 + $0x5ec] sm:$0xf]
  %v447 = vld [vmem:[%s1 + $0x5f0] sm:$0xf]
  %v448 = vld [vmem:[%s1 + $0x5f4] sm:$0xf]
  %v449 = vld [vmem:[%s1 + $0x5f8] sm:$0xf]
  %v450 = vld [vmem:[%s1 + $0x5fc] sm:$0xf]
  %v451 = vld [vmem:[%s1 + $0x600] sm:$0xf]
  %v452 = vld [vmem:[%s1 + $0x604] sm:$0xf]
  %v453 = vld [vmem:[%s1 + $0x608] sm:$0xf]
  %v454 = vld [vmem:[%s1 + $0x60c] sm:$0xf]
  %v455 = vld [vmem:[%s1 + $0x610] sm:$0xf]
  %v456 = vld [vmem:[%s1 + $0x614] sm:$0xf]
  %v457 = vld [vmem:[%s1 + $0x618] sm:$0xf]
  %v458 = vld [vmem:[%s1 + $0x61c] sm:$0xf]
  %v459 = vld [vmem:[%s1 + $0x620] sm:$0xf]
  %v460 = vld [vmem:[%s1 + $0x624] sm:$0xf]
  %v461 = vld [vmem:[%s1 + $0x628] sm:$0xf]
  %v462 = vld [vmem:[%s1 + $0x62c] sm:$0xf]
  %v463 = vld [vmem:[%s1 + $0x630] sm:$0xf]
  %v464 = vld [vmem:[%s1 + $0x634] sm:$0xf]
  %v465 = vld [vmem:[%s1 + $0x638] sm:$0xf]
  %v466 = vld [vmem:[%s1 + $0x63c] sm:$0xf]
  %v467 = vld [vmem:[%s2] sm:$0x1]
  %v469 = vlaneseq
  %v470 = vshrl.u32 %v469, 7
  %v471 = vsub.s32 0, %v470
  %v472 = vrot.slane %v467, %v471
  %v526 = vunpack.c.l.b16 %v15
  %v527 = vunpack.c.h.b16 %v15
  %v528 = vunpack.c.l.b16 %v16
  %v529 = vunpack.c.h.b16 %v16
  %v530 = vunpack.c.l.b16 %v17
  %v531 = vunpack.c.h.b16 %v17
  %v532 = vunpack.c.l.b16 %v18
  %v533 = vunpack.c.h.b16 %v18
  %v534 = vunpack.c.l.b16 %v19
  %v535 = vunpack.c.h.b16 %v19
  %v536 = vunpack.c.l.b16 %v20
  %v537 = vunpack.c.h.b16 %v20
  %v538 = vunpack.c.l.b16 %v21
  %v539 = vunpack.c.h.b16 %v21
  %v540 = vunpack.c.l.b16 %v22
  %v541 = vunpack.c.h.b16 %v22
  %v542 = vunpack.c.l.b16 %v23
  %v543 = vunpack.c.h.b16 %v23
  %v544 = vunpack.c.l.b16 %v24
  %v545 = vunpack.c.h.b16 %v24
  %v546 = vunpack.c.l.b16 %v25
  %v547 = vunpack.c.h.b16 %v25
  %v548 = vunpack.c.l.b16 %v26
  %v549 = vunpack.c.h.b16 %v26
  %v550 = vunpack.c.l.b16 %v27
  %v551 = vunpack.c.l.b16 %v28
  %v552 = vunpack.c.h.b16 %v28
  %v553 = vunpack.c.l.b16 %v29
  %v554 = vunpack.c.h.b16 %v29
  %v555 = vunpack.c.l.b16 %v30
  %v556 = vunpack.c.h.b16 %v30
  %v557 = vunpack.c.l.b16 %v31
  %v558 = vunpack.c.h.b16 %v31
  %v559 = vunpack.c.l.b16 %v32
  %v560 = vunpack.c.h.b16 %v32
  %v561 = vunpack.c.l.b16 %v33
  %v562 = vunpack.c.h.b16 %v33
  %v563 = vunpack.c.l.b16 %v34
  %v564 = vunpack.c.h.b16 %v34
  %v565 = vunpack.c.l.b16 %v35
  %v566 = vunpack.c.h.b16 %v35
  %v567 = vunpack.c.l.b16 %v36
  %v568 = vunpack.c.h.b16 %v36
  %v569 = vunpack.c.l.b16 %v37
  %v570 = vunpack.c.h.b16 %v37
  %v571 = vunpack.c.l.b16 %v38
  %v572 = vunpack.c.h.b16 %v38
  %v573 = vunpack.c.l.b16 %v39
  %v574 = vunpack.c.h.b16 %v39
  %v575 = vunpack.c.l.b16 %v40
  %v576 = vunpack.c.l.b16 %v41
  %v577 = vunpack.c.h.b16 %v41
  %v578 = vunpack.c.l.b16 %v42
  %v579 = vunpack.c.h.b16 %v42
  %v580 = vunpack.c.l.b16 %v43
  %v581 = vunpack.c.h.b16 %v43
  %v582 = vunpack.c.l.b16 %v44
  %v583 = vunpack.c.h.b16 %v44
  %v584 = vunpack.c.l.b16 %v45
  %v585 = vunpack.c.h.b16 %v45
  %v586 = vunpack.c.l.b16 %v46
  %v587 = vunpack.c.h.b16 %v46
  %v588 = vunpack.c.l.b16 %v47
  %v589 = vunpack.c.h.b16 %v47
  %v590 = vunpack.c.l.b16 %v48
  %v591 = vunpack.c.h.b16 %v48
  %v592 = vunpack.c.l.b16 %v49
  %v593 = vunpack.c.h.b16 %v49
  %v594 = vunpack.c.l.b16 %v50
  %v595 = vunpack.c.h.b16 %v50
  %v596 = vunpack.c.l.b16 %v51
  %v597 = vunpack.c.h.b16 %v51
  %v598 = vunpack.c.l.b16 %v52
  %v599 = vunpack.c.h.b16 %v52
  %v600 = vunpack.c.l.b16 %v53
  %v601 = vunpack.c.l.b16 %v54
  %v602 = vunpack.c.h.b16 %v54
  %v603 = vunpack.c.l.b16 %v55
  %v604 = vunpack.c.h.b16 %v55
  %v605 = vunpack.c.l.b16 %v56
  %v606 = vunpack.c.h.b16 %v56
  %v607 = vunpack.c.l.b16 %v57
  %v608 = vunpack.c.h.b16 %v57
  %v609 = vunpack.c.l.b16 %v58
  %v610 = vunpack.c.h.b16 %v58
  %v611 = vunpack.c.l.b16 %v59
  %v612 = vunpack.c.h.b16 %v59
  %v613 = vunpack.c.l.b16 %v60
  %v614 = vunpack.c.h.b16 %v60
  %v615 = vunpack.c.l.b16 %v61
  %v616 = vunpack.c.h.b16 %v61
  %v617 = vunpack.c.l.b16 %v62
  %v618 = vunpack.c.h.b16 %v62
  %v619 = vunpack.c.l.b16 %v63
  %v620 = vunpack.c.h.b16 %v63
  %v621 = vunpack.c.l.b16 %v64
  %v622 = vunpack.c.h.b16 %v64
  %v623 = vunpack.c.l.b16 %v65
  %v624 = vunpack.c.h.b16 %v65
  %v625 = vunpack.c.l.b16 %v66
  %v626 = vpack.c.b16 %v551, %v526
  %v627 = vpack.c.b16 %v552, %v527
  %v628 = vpack.c.b16 %v553, %v528
  %v629 = vpack.c.b16 %v554, %v529
  %v630 = vpack.c.b16 %v555, %v530
  %v631 = vpack.c.b16 %v556, %v531
  %v632 = vpack.c.b16 %v557, %v532
  %v633 = vpack.c.b16 %v558, %v533
  %v634 = vpack.c.b16 %v559, %v534
  %v635 = vpack.c.b16 %v560, %v535
  %v636 = vpack.c.b16 %v561, %v536
  %v637 = vpack.c.b16 %v562, %v537
  %v638 = vpack.c.b16 %v563, %v538
  %v639 = vpack.c.b16 %v564, %v539
  %v640 = vpack.c.b16 %v565, %v540
  %v641 = vpack.c.b16 %v566, %v541
  %v642 = vpack.c.b16 %v567, %v542
  %v643 = vpack.c.b16 %v568, %v543
  %v644 = vpack.c.b16 %v569, %v544
  %v645 = vpack.c.b16 %v570, %v545
  %v646 = vpack.c.b16 %v571, %v546
  %v647 = vpack.c.b16 %v572, %v547
  %v648 = vpack.c.b16 %v573, %v548
  %v649 = vpack.c.b16 %v574, %v549
  %v650 = vpack.c.b16 %v575, %v550
  %v651 = vpack.c.b16 %v601, %v576
  %v652 = vpack.c.b16 %v602, %v577
  %v653 = vpack.c.b16 %v603, %v578
  %v654 = vpack.c.b16 %v604, %v579
  %v655 = vpack.c.b16 %v605, %v580
  %v656 = vpack.c.b16 %v606, %v581
  %v657 = vpack.c.b16 %v607, %v582
  %v658 = vpack.c.b16 %v608, %v583
  %v659 = vpack.c.b16 %v609, %v584
  %v660 = vpack.c.b16 %v610, %v585
  %v661 = vpack.c.b16 %v611, %v586
  %v662 = vpack.c.b16 %v612, %v587
  %v663 = vpack.c.b16 %v613, %v588
  %v664 = vpack.c.b16 %v614, %v589
  %v665 = vpack.c.b16 %v615, %v590
  %v666 = vpack.c.b16 %v616, %v591
  %v667 = vpack.c.b16 %v617, %v592
  %v668 = vpack.c.b16 %v618, %v593
  %v669 = vpack.c.b16 %v619, %v594
  %v670 = vpack.c.b16 %v620, %v595
  %v671 = vpack.c.b16 %v621, %v596
  %v672 = vpack.c.b16 %v622, %v597
  %v673 = vpack.c.b16 %v623, %v598
  %v674 = vpack.c.b16 %v624, %v599
  %v675 = vpack.c.b16 %v625, %v600
  %v1126 = vunpack.c.l.b16 %v67
  %v1127 = vunpack.c.l.b16 %v68
  %v1128 = vunpack.c.l.b16 %v69
  %v1129 = vunpack.c.l.b16 %v70
  %v1130 = vunpack.c.l.b16 %v71
  %v1131 = vunpack.c.l.b16 %v72
  %v1132 = vunpack.c.l.b16 %v73
  %v1133 = vunpack.c.l.b16 %v74
  %v1134 = vunpack.c.l.b16 %v75
  %v1135 = vunpack.c.l.b16 %v76
  %v1136 = vunpack.c.l.b16 %v77
  %v1137 = vunpack.c.l.b16 %v78
  %v1138 = vunpack.c.l.b16 %v79
  %v1139 = vunpack.c.l.b16 %v80
  %v1140 = vunpack.c.l.b16 %v81
  %v1141 = vunpack.c.l.b16 %v82
  %v1142 = vunpack.c.l.b16 %v83
  %v1143 = vunpack.c.l.b16 %v84
  %v1144 = vunpack.c.l.b16 %v85
  %v1145 = vunpack.c.l.b16 %v86
  %v1146 = vunpack.c.l.b16 %v87
  %v1147 = vunpack.c.l.b16 %v88
  %v1148 = vunpack.c.l.b16 %v89
  %v1149 = vunpack.c.l.b16 %v90
  %v1150 = vunpack.c.l.b16 %v91
  %v1151 = vunpack.c.l.b16 %v92
  %v1152 = vunpack.c.l.b16 %v93
  %v1153 = vunpack.c.l.b16 %v94
  %v1154 = vunpack.c.l.b16 %v95
  %v1155 = vunpack.c.l.b16 %v96
  %v1156 = vunpack.c.l.b16 %v97
  %v1157 = vunpack.c.l.b16 %v98
  %v1158 = vunpack.c.l.b16 %v99
  %v1159 = vunpack.c.l.b16 %v100
  %v1160 = vunpack.c.l.b16 %v101
  %v1161 = vunpack.c.l.b16 %v102
  %v1162 = vunpack.c.l.b16 %v103
  %v1163 = vunpack.c.l.b16 %v104
  %v1164 = vunpack.c.l.b16 %v105
  %v1165 = vunpack.c.l.b16 %v106
  %v1166 = vunpack.c.l.b16 %v107
  %v1167 = vunpack.c.l.b16 %v108
  %v1168 = vunpack.c.l.b16 %v109
  %v1169 = vunpack.c.l.b16 %v110
  %v1170 = vunpack.c.l.b16 %v111
  %v1171 = vunpack.c.l.b16 %v112
  %v1172 = vunpack.c.l.b16 %v113
  %v1173 = vunpack.c.l.b16 %v114
  %v1174 = vunpack.c.l.b16 %v115
  %v1175 = vunpack.c.l.b16 %v116
  %v1176 = vunpack.c.l.b16 %v117
  %v1177 = vunpack.c.l.b16 %v118
  %v1178 = vunpack.c.l.b16 %v119
  %v1179 = vunpack.c.l.b16 %v120
  %v1180 = vunpack.c.l.b16 %v121
  %v1181 = vunpack.c.l.b16 %v122
  %v1182 = vunpack.c.l.b16 %v123
  %v1183 = vunpack.c.l.b16 %v124
  %v1184 = vunpack.c.l.b16 %v125
  %v1185 = vunpack.c.l.b16 %v126
  %v1186 = vunpack.c.l.b16 %v127
  %v1187 = vunpack.c.l.b16 %v128
  %v1188 = vunpack.c.l.b16 %v129
  %v1189 = vunpack.c.l.b16 %v130
  %v1190 = vunpack.c.l.b16 %v131
  %v1191 = vunpack.c.l.b16 %v132
  %v1192 = vunpack.c.l.b16 %v133
  %v1193 = vunpack.c.l.b16 %v134
  %v1194 = vunpack.c.l.b16 %v135
  %v1195 = vunpack.c.l.b16 %v136
  %v1196 = vunpack.c.l.b16 %v137
  %v1197 = vunpack.c.l.b16 %v138
  %v1198 = vunpack.c.l.b16 %v139
  %v1199 = vunpack.c.l.b16 %v140
  %v1200 = vunpack.c.l.b16 %v141
  %v1201 = vunpack.c.l.b16 %v142
  %v1202 = vunpack.c.l.b16 %v143
  %v1203 = vunpack.c.l.b16 %v144
  %v1204 = vunpack.c.l.b16 %v145
  %v1205 = vunpack.c.l.b16 %v146
  %v1206 = vunpack.c.l.b16 %v147
  %v1207 = vunpack.c.l.b16 %v148
  %v1208 = vunpack.c.l.b16 %v149
  %v1209 = vunpack.c.l.b16 %v150
  %v1210 = vunpack.c.l.b16 %v151
  %v1211 = vunpack.c.l.b16 %v152
  %v1212 = vunpack.c.l.b16 %v153
  %v1213 = vunpack.c.l.b16 %v154
  %v1214 = vunpack.c.l.b16 %v155
  %v1215 = vunpack.c.l.b16 %v156
  %v1216 = vunpack.c.l.b16 %v157
  %v1217 = vunpack.c.l.b16 %v158
  %v1218 = vunpack.c.l.b16 %v159
  %v1219 = vunpack.c.l.b16 %v160
  %v1220 = vunpack.c.l.b16 %v161
  %v1221 = vunpack.c.l.b16 %v162
  %v1222 = vunpack.c.l.b16 %v163
  %v1223 = vunpack.c.l.b16 %v164
  %v1224 = vunpack.c.l.b16 %v165
  %v1225 = vunpack.c.l.b16 %v166
  %v1226 = vunpack.c.l.b16 %v167
  %v1227 = vunpack.c.l.b16 %v168
  %v1228 = vunpack.c.l.b16 %v169
  %v1229 = vunpack.c.l.b16 %v170
  %v1230 = vunpack.c.l.b16 %v171
  %v1231 = vunpack.c.l.b16 %v172
  %v1232 = vunpack.c.l.b16 %v173
  %v1233 = vunpack.c.l.b16 %v174
  %v1234 = vunpack.c.l.b16 %v175
  %v1235 = vunpack.c.l.b16 %v176
  %v1236 = vunpack.c.l.b16 %v177
  %v1237 = vunpack.c.l.b16 %v178
  %v1238 = vunpack.c.l.b16 %v179
  %v1239 = vunpack.c.l.b16 %v180
  %v1240 = vunpack.c.l.b16 %v181
  %v1241 = vunpack.c.l.b16 %v182
  %v1242 = vunpack.c.l.b16 %v183
  %v1243 = vunpack.c.l.b16 %v184
  %v1244 = vunpack.c.l.b16 %v185
  %v1245 = vunpack.c.l.b16 %v186
  %v1246 = vunpack.c.l.b16 %v187
  %v1247 = vunpack.c.l.b16 %v188
  %v1248 = vunpack.c.l.b16 %v189
  %v1249 = vunpack.c.l.b16 %v190
  %v1250 = vunpack.c.l.b16 %v191
  %v1251 = vunpack.c.l.b16 %v192
  %v1252 = vunpack.c.l.b16 %v193
  %v1253 = vunpack.c.l.b16 %v194
  %v1254 = vunpack.c.l.b16 %v195
  %v1255 = vunpack.c.l.b16 %v196
  %v1256 = vunpack.c.l.b16 %v197
  %v1257 = vunpack.c.l.b16 %v198
  %v1258 = vunpack.c.l.b16 %v199
  %v1259 = vunpack.c.l.b16 %v200
  %v1260 = vunpack.c.l.b16 %v201
  %v1261 = vunpack.c.l.b16 %v202
  %v1262 = vunpack.c.l.b16 %v203
  %v1263 = vunpack.c.l.b16 %v204
  %v1264 = vunpack.c.l.b16 %v205
  %v1265 = vunpack.c.l.b16 %v206
  %v1266 = vunpack.c.l.b16 %v207
  %v1267 = vunpack.c.l.b16 %v208
  %v1268 = vunpack.c.l.b16 %v209
  %v1269 = vunpack.c.l.b16 %v210
  %v1270 = vunpack.c.l.b16 %v211
  %v1271 = vunpack.c.l.b16 %v212
  %v1272 = vunpack.c.l.b16 %v213
  %v1273 = vunpack.c.l.b16 %v214
  %v1274 = vunpack.c.l.b16 %v215
  %v1275 = vunpack.c.l.b16 %v216
  %v1276 = vunpack.c.l.b16 %v217
  %v1277 = vunpack.c.l.b16 %v218
  %v1278 = vunpack.c.l.b16 %v219
  %v1279 = vunpack.c.l.b16 %v220
  %v1280 = vunpack.c.l.b16 %v221
  %v1281 = vunpack.c.l.b16 %v222
  %v1282 = vunpack.c.l.b16 %v223
  %v1283 = vunpack.c.l.b16 %v224
  %v1284 = vunpack.c.l.b16 %v225
  %v1285 = vunpack.c.l.b16 %v226
  %v1286 = vunpack.c.l.b16 %v227
  %v1287 = vunpack.c.l.b16 %v228
  %v1288 = vunpack.c.l.b16 %v229
  %v1289 = vunpack.c.l.b16 %v230
  %v1290 = vunpack.c.l.b16 %v231
  %v1291 = vunpack.c.l.b16 %v232
  %v1292 = vunpack.c.l.b16 %v233
  %v1293 = vunpack.c.l.b16 %v234
  %v1294 = vunpack.c.l.b16 %v235
  %v1295 = vunpack.c.l.b16 %v236
  %v1296 = vunpack.c.l.b16 %v237
  %v1297 = vunpack.c.l.b16 %v238
  %v1298 = vunpack.c.l.b16 %v239
  %v1299 = vunpack.c.l.b16 %v240
  %v1300 = vunpack.c.l.b16 %v241
  %v1301 = vunpack.c.l.b16 %v242
  %v1302 = vunpack.c.l.b16 %v243
  %v1303 = vunpack.c.l.b16 %v244
  %v1304 = vunpack.c.l.b16 %v245
  %v1305 = vunpack.c.l.b16 %v246
  %v1306 = vunpack.c.l.b16 %v247
  %v1307 = vunpack.c.l.b16 %v248
  %v1308 = vunpack.c.l.b16 %v249
  %v1309 = vunpack.c.l.b16 %v250
  %v1310 = vunpack.c.l.b16 %v251
  %v1311 = vunpack.c.l.b16 %v252
  %v1312 = vunpack.c.l.b16 %v253
  %v1313 = vunpack.c.l.b16 %v254
  %v1314 = vunpack.c.l.b16 %v255
  %v1315 = vunpack.c.l.b16 %v256
  %v1316 = vunpack.c.l.b16 %v257
  %v1317 = vunpack.c.l.b16 %v258
  %v1318 = vunpack.c.l.b16 %v259
  %v1319 = vunpack.c.l.b16 %v260
  %v1320 = vunpack.c.l.b16 %v261
  %v1321 = vunpack.c.l.b16 %v262
  %v1322 = vunpack.c.l.b16 %v263
  %v1323 = vunpack.c.l.b16 %v264
  %v1324 = vunpack.c.l.b16 %v265
  %v1325 = vunpack.c.l.b16 %v266
  %v1326 = vunpack.c.l.b16 %v267
  %v1327 = vunpack.c.l.b16 %v268
  %v1328 = vunpack.c.l.b16 %v269
  %v1329 = vunpack.c.l.b16 %v270
  %v1330 = vunpack.c.l.b16 %v271
  %v1331 = vunpack.c.l.b16 %v272
  %v1332 = vunpack.c.l.b16 %v273
  %v1333 = vunpack.c.l.b16 %v274
  %v1334 = vunpack.c.l.b16 %v275
  %v1335 = vunpack.c.l.b16 %v276
  %v1336 = vunpack.c.l.b16 %v277
  %v1337 = vunpack.c.l.b16 %v278
  %v1338 = vunpack.c.l.b16 %v279
  %v1339 = vunpack.c.l.b16 %v280
  %v1340 = vunpack.c.l.b16 %v281
  %v1341 = vunpack.c.l.b16 %v282
  %v1342 = vunpack.c.l.b16 %v283
  %v1343 = vunpack.c.l.b16 %v284
  %v1344 = vunpack.c.l.b16 %v285
  %v1345 = vunpack.c.l.b16 %v286
  %v1346 = vunpack.c.l.b16 %v287
  %v1347 = vunpack.c.l.b16 %v288
  %v1348 = vunpack.c.l.b16 %v289
  %v1349 = vunpack.c.l.b16 %v290
  %v1350 = vunpack.c.l.b16 %v291
  %v1351 = vunpack.c.l.b16 %v292
  %v1352 = vunpack.c.l.b16 %v293
  %v1353 = vunpack.c.l.b16 %v294
  %v1354 = vunpack.c.l.b16 %v295
  %v1355 = vunpack.c.l.b16 %v296
  %v1356 = vunpack.c.l.b16 %v297
  %v1357 = vunpack.c.l.b16 %v298
  %v1358 = vunpack.c.l.b16 %v299
  %v1359 = vunpack.c.l.b16 %v300
  %v1360 = vunpack.c.l.b16 %v301
  %v1361 = vunpack.c.l.b16 %v302
  %v1362 = vunpack.c.l.b16 %v303
  %v1363 = vunpack.c.l.b16 %v304
  %v1364 = vunpack.c.l.b16 %v305
  %v1365 = vunpack.c.l.b16 %v306
  %v1366 = vunpack.c.l.b16 %v307
  %v1367 = vunpack.c.l.b16 %v308
  %v1368 = vunpack.c.l.b16 %v309
  %v1369 = vunpack.c.l.b16 %v310
  %v1370 = vunpack.c.l.b16 %v311
  %v1371 = vunpack.c.l.b16 %v312
  %v1372 = vunpack.c.l.b16 %v313
  %v1373 = vunpack.c.l.b16 %v314
  %v1374 = vunpack.c.l.b16 %v315
  %v1375 = vunpack.c.l.b16 %v316
  %v1376 = vunpack.c.l.b16 %v317
  %v1377 = vunpack.c.l.b16 %v318
  %v1378 = vunpack.c.l.b16 %v319
  %v1379 = vunpack.c.l.b16 %v320
  %v1380 = vunpack.c.l.b16 %v321
  %v1381 = vunpack.c.l.b16 %v322
  %v1382 = vunpack.c.l.b16 %v323
  %v1383 = vunpack.c.l.b16 %v324
  %v1384 = vunpack.c.l.b16 %v325
  %v1385 = vunpack.c.l.b16 %v326
  %v1386 = vunpack.c.l.b16 %v327
  %v1387 = vunpack.c.l.b16 %v328
  %v1388 = vunpack.c.l.b16 %v329
  %v1389 = vunpack.c.l.b16 %v330
  %v1390 = vunpack.c.l.b16 %v331
  %v1391 = vunpack.c.l.b16 %v332
  %v1392 = vunpack.c.l.b16 %v333
  %v1393 = vunpack.c.l.b16 %v334
  %v1394 = vunpack.c.l.b16 %v335
  %v1395 = vunpack.c.l.b16 %v336
  %v1396 = vunpack.c.l.b16 %v337
  %v1397 = vunpack.c.l.b16 %v338
  %v1398 = vunpack.c.l.b16 %v339
  %v1399 = vunpack.c.l.b16 %v340
  %v1400 = vunpack.c.l.b16 %v341
  %v1401 = vunpack.c.l.b16 %v342
  %v1402 = vunpack.c.l.b16 %v343
  %v1403 = vunpack.c.l.b16 %v344
  %v1404 = vunpack.c.l.b16 %v345
  %v1405 = vunpack.c.l.b16 %v346
  %v1406 = vunpack.c.l.b16 %v347
  %v1407 = vunpack.c.l.b16 %v348
  %v1408 = vunpack.c.l.b16 %v349
  %v1409 = vunpack.c.l.b16 %v350
  %v1410 = vunpack.c.l.b16 %v351
  %v1411 = vunpack.c.l.b16 %v352
  %v1412 = vunpack.c.l.b16 %v353
  %v1413 = vunpack.c.l.b16 %v354
  %v1414 = vunpack.c.l.b16 %v355
  %v1415 = vunpack.c.l.b16 %v356
  %v1416 = vunpack.c.l.b16 %v357
  %v1417 = vunpack.c.l.b16 %v358
  %v1418 = vunpack.c.l.b16 %v359
  %v1419 = vunpack.c.l.b16 %v360
  %v1420 = vunpack.c.l.b16 %v361
  %v1421 = vunpack.c.l.b16 %v362
  %v1422 = vunpack.c.l.b16 %v363
  %v1423 = vunpack.c.l.b16 %v364
  %v1424 = vunpack.c.l.b16 %v365
  %v1425 = vunpack.c.l.b16 %v366
  %v1426 = vunpack.c.l.b16 %v367
  %v1427 = vunpack.c.l.b16 %v368
  %v1428 = vunpack.c.l.b16 %v369
  %v1429 = vunpack.c.l.b16 %v370
  %v1430 = vunpack.c.l.b16 %v371
  %v1431 = vunpack.c.l.b16 %v372
  %v1432 = vunpack.c.l.b16 %v373
  %v1433 = vunpack.c.l.b16 %v374
  %v1434 = vunpack.c.l.b16 %v375
  %v1435 = vunpack.c.l.b16 %v376
  %v1436 = vunpack.c.l.b16 %v377
  %v1437 = vunpack.c.l.b16 %v378
  %v1438 = vunpack.c.l.b16 %v379
  %v1439 = vunpack.c.l.b16 %v380
  %v1440 = vunpack.c.l.b16 %v381
  %v1441 = vunpack.c.l.b16 %v382
  %v1442 = vunpack.c.l.b16 %v383
  %v1443 = vunpack.c.l.b16 %v384
  %v1444 = vunpack.c.l.b16 %v385
  %v1445 = vunpack.c.l.b16 %v386
  %v1446 = vunpack.c.l.b16 %v387
  %v1447 = vunpack.c.l.b16 %v388
  %v1448 = vunpack.c.l.b16 %v389
  %v1449 = vunpack.c.l.b16 %v390
  %v1450 = vunpack.c.l.b16 %v391
  %v1451 = vunpack.c.l.b16 %v392
  %v1452 = vunpack.c.l.b16 %v393
  %v1453 = vunpack.c.l.b16 %v394
  %v1454 = vunpack.c.l.b16 %v395
  %v1455 = vunpack.c.l.b16 %v396
  %v1456 = vunpack.c.l.b16 %v397
  %v1457 = vunpack.c.l.b16 %v398
  %v1458 = vunpack.c.l.b16 %v399
  %v1459 = vunpack.c.l.b16 %v400
  %v1460 = vunpack.c.l.b16 %v401
  %v1461 = vunpack.c.l.b16 %v402
  %v1462 = vunpack.c.l.b16 %v403
  %v1463 = vunpack.c.l.b16 %v404
  %v1464 = vunpack.c.l.b16 %v405
  %v1465 = vunpack.c.l.b16 %v406
  %v1466 = vunpack.c.l.b16 %v407
  %v1467 = vunpack.c.l.b16 %v408
  %v1468 = vunpack.c.l.b16 %v409
  %v1469 = vunpack.c.l.b16 %v410
  %v1470 = vunpack.c.l.b16 %v411
  %v1471 = vunpack.c.l.b16 %v412
  %v1472 = vunpack.c.l.b16 %v413
  %v1473 = vunpack.c.l.b16 %v414
  %v1474 = vunpack.c.l.b16 %v415
  %v1475 = vunpack.c.l.b16 %v416
  %v1476 = vunpack.c.l.b16 %v417
  %v1477 = vunpack.c.l.b16 %v418
  %v1478 = vunpack.c.l.b16 %v419
  %v1479 = vunpack.c.l.b16 %v420
  %v1480 = vunpack.c.l.b16 %v421
  %v1481 = vunpack.c.l.b16 %v422
  %v1482 = vunpack.c.l.b16 %v423
  %v1483 = vunpack.c.l.b16 %v424
  %v1484 = vunpack.c.l.b16 %v425
  %v1485 = vunpack.c.l.b16 %v426
  %v1486 = vunpack.c.l.b16 %v427
  %v1487 = vunpack.c.l.b16 %v428
  %v1488 = vunpack.c.l.b16 %v429
  %v1489 = vunpack.c.l.b16 %v430
  %v1490 = vunpack.c.l.b16 %v431
  %v1491 = vunpack.c.l.b16 %v432
  %v1492 = vunpack.c.l.b16 %v433
  %v1493 = vunpack.c.l.b16 %v434
  %v1494 = vunpack.c.l.b16 %v435
  %v1495 = vunpack.c.l.b16 %v436
  %v1496 = vunpack.c.l.b16 %v437
  %v1497 = vunpack.c.l.b16 %v438
  %v1498 = vunpack.c.l.b16 %v439
  %v1499 = vunpack.c.l.b16 %v440
  %v1500 = vunpack.c.l.b16 %v441
  %v1501 = vunpack.c.l.b16 %v442
  %v1502 = vunpack.c.l.b16 %v443
  %v1503 = vunpack.c.l.b16 %v444
  %v1504 = vunpack.c.l.b16 %v445
  %v1505 = vunpack.c.l.b16 %v446
  %v1506 = vunpack.c.l.b16 %v447
  %v1507 = vunpack.c.l.b16 %v448
  %v1508 = vunpack.c.l.b16 %v449
  %v1509 = vunpack.c.l.b16 %v450
  %v1510 = vunpack.c.l.b16 %v451
  %v1511 = vunpack.c.l.b16 %v452
  %v1512 = vunpack.c.l.b16 %v453
  %v1513 = vunpack.c.l.b16 %v454
  %v1514 = vunpack.c.l.b16 %v455
  %v1515 = vunpack.c.l.b16 %v456
  %v1516 = vunpack.c.l.b16 %v457
  %v1517 = vunpack.c.l.b16 %v458
  %v1518 = vunpack.c.l.b16 %v459
  %v1519 = vunpack.c.l.b16 %v460
  %v1520 = vunpack.c.l.b16 %v461
  %v1521 = vunpack.c.l.b16 %v462
  %v1522 = vunpack.c.l.b16 %v463
  %v1523 = vunpack.c.l.b16 %v464
  %v1524 = vunpack.c.l.b16 %v465
  %v1525 = vunpack.c.l.b16 %v466
  %v1526 = vpack.c.b16 %v1127, %v1126
  %v1527 = vpack.c.b16 %v1129, %v1128
  %v1528 = vpack.c.b16 %v1131, %v1130
  %v1529 = vpack.c.b16 %v1133, %v1132
  %v1530 = vpack.c.b16 %v1135, %v1134
  %v1531 = vpack.c.b16 %v1137, %v1136
  %v1532 = vpack.c.b16 %v1139, %v1138
  %v1533 = vpack.c.b16 %v1141, %v1140
  %v1534 = vpack.c.b16 %v1143, %v1142
  %v1535 = vpack.c.b16 %v1145, %v1144
  %v1536 = vpack.c.b16 %v1147, %v1146
  %v1537 = vpack.c.b16 %v1149, %v1148
  %v1538 = vpack.c.b16 %v1151, %v1150
  %v1539 = vpack.c.b16 %v1153, %v1152
  %v1540 = vpack.c.b16 %v1155, %v1154
  %v1541 = vpack.c.b16 %v1157, %v1156
  %v1542 = vpack.c.b16 %v1159, %v1158
  %v1543 = vpack.c.b16 %v1161, %v1160
  %v1544 = vpack.c.b16 %v1163, %v1162
  %v1545 = vpack.c.b16 %v1165, %v1164
  %v1546 = vpack.c.b16 %v1167, %v1166
  %v1547 = vpack.c.b16 %v1169, %v1168
  %v1548 = vpack.c.b16 %v1171, %v1170
  %v1549 = vpack.c.b16 %v1173, %v1172
  %v1550 = vpack.c.b16 %v1175, %v1174
  %v1551 = vpack.c.b16 %v1177, %v1176
  %v1552 = vpack.c.b16 %v1179, %v1178
  %v1553 = vpack.c.b16 %v1181, %v1180
  %v1554 = vpack.c.b16 %v1183, %v1182
  %v1555 = vpack.c.b16 %v1185, %v1184
  %v1556 = vpack.c.b16 %v1187, %v1186
  %v1557 = vpack.c.b16 %v1189, %v1188
  %v1558 = vpack.c.b16 %v1191, %v1190
  %v1559 = vpack.c.b16 %v1193, %v1192
  %v1560 = vpack.c.b16 %v1195, %v1194
  %v1561 = vpack.c.b16 %v1197, %v1196
  %v1562 = vpack.c.b16 %v1199, %v1198
  %v1563 = vpack.c.b16 %v1201, %v1200
  %v1564 = vpack.c.b16 %v1203, %v1202
  %v1565 = vpack.c.b16 %v1205, %v1204
  %v1566 = vpack.c.b16 %v1207, %v1206
  %v1567 = vpack.c.b16 %v1209, %v1208
  %v1568 = vpack.c.b16 %v1211, %v1210
  %v1569 = vpack.c.b16 %v1213, %v1212
  %v1570 = vpack.c.b16 %v1215, %v1214
  %v1571 = vpack.c.b16 %v1217, %v1216
  %v1572 = vpack.c.b16 %v1219, %v1218
  %v1573 = vpack.c.b16 %v1221, %v1220
  %v1574 = vpack.c.b16 %v1223, %v1222
  %v1575 = vpack.c.b16 %v1225, %v1224
  %v1576 = vpack.c.b16 %v1227, %v1226
  %v1577 = vpack.c.b16 %v1229, %v1228
  %v1578 = vpack.c.b16 %v1231, %v1230
  %v1579 = vpack.c.b16 %v1233, %v1232
  %v1580 = vpack.c.b16 %v1235, %v1234
  %v1581 = vpack.c.b16 %v1237, %v1236
  %v1582 = vpack.c.b16 %v1239, %v1238
  %v1583 = vpack.c.b16 %v1241, %v1240
  %v1584 = vpack.c.b16 %v1243, %v1242
  %v1585 = vpack.c.b16 %v1245, %v1244
  %v1586 = vpack.c.b16 %v1247, %v1246
  %v1587 = vpack.c.b16 %v1249, %v1248
  %v1588 = vpack.c.b16 %v1251, %v1250
  %v1589 = vpack.c.b16 %v1253, %v1252
  %v1590 = vpack.c.b16 %v1255, %v1254
  %v1591 = vpack.c.b16 %v1257, %v1256
  %v1592 = vpack.c.b16 %v1259, %v1258
  %v1593 = vpack.c.b16 %v1261, %v1260
  %v1594 = vpack.c.b16 %v1263, %v1262
  %v1595 = vpack.c.b16 %v1265, %v1264
  %v1596 = vpack.c.b16 %v1267, %v1266
  %v1597 = vpack.c.b16 %v1269, %v1268
  %v1598 = vpack.c.b16 %v1271, %v1270
  %v1599 = vpack.c.b16 %v1273, %v1272
  %v1600 = vpack.c.b16 %v1275, %v1274
  %v1601 = vpack.c.b16 %v1277, %v1276
  %v1602 = vpack.c.b16 %v1279, %v1278
  %v1603 = vpack.c.b16 %v1281, %v1280
  %v1604 = vpack.c.b16 %v1283, %v1282
  %v1605 = vpack.c.b16 %v1285, %v1284
  %v1606 = vpack.c.b16 %v1287, %v1286
  %v1607 = vpack.c.b16 %v1289, %v1288
  %v1608 = vpack.c.b16 %v1291, %v1290
  %v1609 = vpack.c.b16 %v1293, %v1292
  %v1610 = vpack.c.b16 %v1295, %v1294
  %v1611 = vpack.c.b16 %v1297, %v1296
  %v1612 = vpack.c.b16 %v1299, %v1298
  %v1613 = vpack.c.b16 %v1301, %v1300
  %v1614 = vpack.c.b16 %v1303, %v1302
  %v1615 = vpack.c.b16 %v1305, %v1304
  %v1616 = vpack.c.b16 %v1307, %v1306
  %v1617 = vpack.c.b16 %v1309, %v1308
  %v1618 = vpack.c.b16 %v1311, %v1310
  %v1619 = vpack.c.b16 %v1313, %v1312
  %v1620 = vpack.c.b16 %v1315, %v1314
  %v1621 = vpack.c.b16 %v1317, %v1316
  %v1622 = vpack.c.b16 %v1319, %v1318
  %v1623 = vpack.c.b16 %v1321, %v1320
  %v1624 = vpack.c.b16 %v1323, %v1322
  %v1625 = vpack.c.b16 %v1325, %v1324
  %v1626 = vpack.c.b16 %v1327, %v1326
  %v1627 = vpack.c.b16 %v1329, %v1328
  %v1628 = vpack.c.b16 %v1331, %v1330
  %v1629 = vpack.c.b16 %v1333, %v1332
  %v1630 = vpack.c.b16 %v1335, %v1334
  %v1631 = vpack.c.b16 %v1337, %v1336
  %v1632 = vpack.c.b16 %v1339, %v1338
  %v1633 = vpack.c.b16 %v1341, %v1340
  %v1634 = vpack.c.b16 %v1343, %v1342
  %v1635 = vpack.c.b16 %v1345, %v1344
  %v1636 = vpack.c.b16 %v1347, %v1346
  %v1637 = vpack.c.b16 %v1349, %v1348
  %v1638 = vpack.c.b16 %v1351, %v1350
  %v1639 = vpack.c.b16 %v1353, %v1352
  %v1640 = vpack.c.b16 %v1355, %v1354
  %v1641 = vpack.c.b16 %v1357, %v1356
  %v1642 = vpack.c.b16 %v1359, %v1358
  %v1643 = vpack.c.b16 %v1361, %v1360
  %v1644 = vpack.c.b16 %v1363, %v1362
  %v1645 = vpack.c.b16 %v1365, %v1364
  %v1646 = vpack.c.b16 %v1367, %v1366
  %v1647 = vpack.c.b16 %v1369, %v1368
  %v1648 = vpack.c.b16 %v1371, %v1370
  %v1649 = vpack.c.b16 %v1373, %v1372
  %v1650 = vpack.c.b16 %v1375, %v1374
  %v1651 = vpack.c.b16 %v1377, %v1376
  %v1652 = vpack.c.b16 %v1379, %v1378
  %v1653 = vpack.c.b16 %v1381, %v1380
  %v1654 = vpack.c.b16 %v1383, %v1382
  %v1655 = vpack.c.b16 %v1385, %v1384
  %v1656 = vpack.c.b16 %v1387, %v1386
  %v1657 = vpack.c.b16 %v1389, %v1388
  %v1658 = vpack.c.b16 %v1391, %v1390
  %v1659 = vpack.c.b16 %v1393, %v1392
  %v1660 = vpack.c.b16 %v1395, %v1394
  %v1661 = vpack.c.b16 %v1397, %v1396
  %v1662 = vpack.c.b16 %v1399, %v1398
  %v1663 = vpack.c.b16 %v1401, %v1400
  %v1664 = vpack.c.b16 %v1403, %v1402
  %v1665 = vpack.c.b16 %v1405, %v1404
  %v1666 = vpack.c.b16 %v1407, %v1406
  %v1667 = vpack.c.b16 %v1409, %v1408
  %v1668 = vpack.c.b16 %v1411, %v1410
  %v1669 = vpack.c.b16 %v1413, %v1412
  %v1670 = vpack.c.b16 %v1415, %v1414
  %v1671 = vpack.c.b16 %v1417, %v1416
  %v1672 = vpack.c.b16 %v1419, %v1418
  %v1673 = vpack.c.b16 %v1421, %v1420
  %v1674 = vpack.c.b16 %v1423, %v1422
  %v1675 = vpack.c.b16 %v1425, %v1424
  %v1676 = vpack.c.b16 %v1427, %v1426
  %v1677 = vpack.c.b16 %v1429, %v1428
  %v1678 = vpack.c.b16 %v1431, %v1430
  %v1679 = vpack.c.b16 %v1433, %v1432
  %v1680 = vpack.c.b16 %v1435, %v1434
  %v1681 = vpack.c.b16 %v1437, %v1436
  %v1682 = vpack.c.b16 %v1439, %v1438
  %v1683 = vpack.c.b16 %v1441, %v1440
  %v1684 = vpack.c.b16 %v1443, %v1442
  %v1685 = vpack.c.b16 %v1445, %v1444
  %v1686 = vpack.c.b16 %v1447, %v1446
  %v1687 = vpack.c.b16 %v1449, %v1448
  %v1688 = vpack.c.b16 %v1451, %v1450
  %v1689 = vpack.c.b16 %v1453, %v1452
  %v1690 = vpack.c.b16 %v1455, %v1454
  %v1691 = vpack.c.b16 %v1457, %v1456
  %v1692 = vpack.c.b16 %v1459, %v1458
  %v1693 = vpack.c.b16 %v1461, %v1460
  %v1694 = vpack.c.b16 %v1463, %v1462
  %v1695 = vpack.c.b16 %v1465, %v1464
  %v1696 = vpack.c.b16 %v1467, %v1466
  %v1697 = vpack.c.b16 %v1469, %v1468
  %v1698 = vpack.c.b16 %v1471, %v1470
  %v1699 = vpack.c.b16 %v1473, %v1472
  %v1700 = vpack.c.b16 %v1475, %v1474
  %v1701 = vpack.c.b16 %v1477, %v1476
  %v1702 = vpack.c.b16 %v1479, %v1478
  %v1703 = vpack.c.b16 %v1481, %v1480
  %v1704 = vpack.c.b16 %v1483, %v1482
  %v1705 = vpack.c.b16 %v1485, %v1484
  %v1706 = vpack.c.b16 %v1487, %v1486
  %v1707 = vpack.c.b16 %v1489, %v1488
  %v1708 = vpack.c.b16 %v1491, %v1490
  %v1709 = vpack.c.b16 %v1493, %v1492
  %v1710 = vpack.c.b16 %v1495, %v1494
  %v1711 = vpack.c.b16 %v1497, %v1496
  %v1712 = vpack.c.b16 %v1499, %v1498
  %v1713 = vpack.c.b16 %v1501, %v1500
  %v1714 = vpack.c.b16 %v1503, %v1502
  %v1715 = vpack.c.b16 %v1505, %v1504
  %v1716 = vpack.c.b16 %v1507, %v1506
  %v1717 = vpack.c.b16 %v1509, %v1508
  %v1718 = vpack.c.b16 %v1511, %v1510
  %v1719 = vpack.c.b16 %v1513, %v1512
  %v1720 = vpack.c.b16 %v1515, %v1514
  %v1721 = vpack.c.b16 %v1517, %v1516
  %v1722 = vpack.c.b16 %v1519, %v1518
  %v1723 = vpack.c.b16 %v1521, %v1520
  %v1724 = vpack.c.b16 %v1523, %v1522
  %v1725 = vpack.c.b16 %v1525, %v1524
  %1926 = vmatprep.subr.bf16.mxu0 0
  %1927 = vmatpush1.bf16.msra.mxu0 %v1526
  %1928 = vmatprep.subr.bf16.mxu0 0
  %1929 = vmatpush1.bf16.msra.mxu0 %v1527
  %1930 = vmatprep.subr.bf16.mxu0 0
  %1931 = vmatpush1.bf16.msra.mxu0 %v1528
  %1932 = vmatprep.subr.bf16.mxu0 0
  %1933 = vmatpush1.bf16.msra.mxu0 %v1529
  %1934 = vmatprep.subr.bf16.mxu0 0
  %1935 = vmatpush1.bf16.msra.mxu0 %v1530
  %1936 = vmatprep.subr.bf16.mxu0 0
  %1937 = vmatpush1.bf16.msra.mxu0 %v1531
  %1938 = vmatprep.subr.bf16.mxu0 0
  %1939 = vmatpush1.bf16.msra.mxu0 %v1532
  %1940 = vmatprep.subr.bf16.mxu0 0
  %1941 = vmatpush1.bf16.msra.mxu0 %v1533
  %1942 = vmatprep.subr.bf16.mxu0 0
  %1943 = vmatpush1.bf16.msra.mxu0 %v1534
  %1944 = vmatprep.subr.bf16.mxu0 0
  %1945 = vmatpush1.bf16.msra.mxu0 %v1535
  %1946 = vmatprep.subr.bf16.mxu0 0
  %1947 = vmatpush1.bf16.msra.mxu0 %v1536
  %1948 = vmatprep.subr.bf16.mxu0 0
  %1949 = vmatpush1.bf16.msra.mxu0 %v1537
  %1950 = vmatprep.subr.bf16.mxu0 0
  %1951 = vmatpush1.bf16.msra.mxu0 %v1538
  %1952 = vmatprep.subr.bf16.mxu0 0
  %1953 = vmatpush1.bf16.msra.mxu0 %v1539
  %1954 = vmatprep.subr.bf16.mxu0 0
  %1955 = vmatpush1.bf16.msra.mxu0 %v1540
  %1956 = vmatprep.subr.bf16.mxu0 0
  %1957 = vmatpush1.bf16.msra.mxu0 %v1541
  %1958 = vmatprep.mubr.bf16.mxu0 %v627
  %1959 = vmatmul.mubr.bf16.gmra.mrb[0].mxu0 %v626
  %v1960 = vpop.f32.mrb[0].mxu0
  %v1961 = vadd.f32 %v472, %v1960
  %v1962 = vpop.f32.mrb[0].mxu0
  %v1963 = vpop.f32.mrb[0].mxu0
  %v1964 = vadd.f32 %v472, %v1963
  %v1965 = vpop.f32.mrb[0].mxu0
  %1966 = vmatprep.mubr.bf16.mxu0 %v652
  %1967 = vmatmul.mubr.bf16.gmra.mrb[0].mxu0 %v651
  %v1968 = vpop.f32.mrb[0].mxu0
  %v1969 = vadd.f32 %v472, %v1968
  %v1970 = vpop.f32.mrb[0].mxu0
  %v1971 = vpop.f32.mrb[0].mxu0
  %v1972 = vadd.f32 %v472, %v1971
  %v1973 = vpop.f32.mrb[0].mxu0
  %1974 = vdwg.mxu0
  %1975 = vmatprep.subr.bf16.mxu0 0
  %1976 = vmatpush1.bf16.msra.mxu0 %v1542
  %1977 = vmatprep.subr.bf16.mxu0 0
  %1978 = vmatpush1.bf16.msra.mxu0 %v1543
  %1979 = vmatprep.subr.bf16.mxu0 0
  %1980 = vmatpush1.bf16.msra.mxu0 %v1544
  %1981 = vmatprep.subr.bf16.mxu0 0
  %1982 = vmatpush1.bf16.msra.mxu0 %v1545
  %1983 = vmatprep.subr.bf16.mxu0 0
  %1984 = vmatpush1.bf16.msra.mxu0 %v1546
  %1985 = vmatprep.subr.bf16.mxu0 0
  %1986 = vmatpush1.bf16.msra.mxu0 %v1547
  %1987 = vmatprep.subr.bf16.mxu0 0
  %1988 = vmatpush1.bf16.msra.mxu0 %v1548
  %1989 = vmatprep.subr.bf16.mxu0 0
  %1990 = vmatpush1.bf16.msra.mxu0 %v1549
  %1991 = vmatprep.subr.bf16.mxu0 0
  %1992 = vmatpush1.bf16.msra.mxu0 %v1550
  %1993 = vmatprep.subr.bf16.mxu0 0
  %1994 = vmatpush1.bf16.msra.mxu0 %v1551
  %1995 = vmatprep.subr.bf16.mxu0 0
  %1996 = vmatpush1.bf16.msra.mxu0 %v1552
  %1997 = vmatprep.subr.bf16.mxu0 0
  %1998 = vmatpush1.bf16.msra.mxu0 %v1553
  %1999 = vmatprep.subr.bf16.mxu0 0
  %2000 = vmatpush1.bf16.msra.mxu0 %v1554
  %2001 = vmatprep.subr.bf16.mxu0 0
  %2002 = vmatpush1.bf16.msra.mxu0 %v1555
  %2003 = vmatprep.subr.bf16.mxu0 0
  %2004 = vmatpush1.bf16.msra.mxu0 %v1556
  %2005 = vmatprep.subr.bf16.mxu0 0
  %2006 = vmatpush1.bf16.msra.mxu0 %v1557
  %2007 = vmatprep.mubr.bf16.mxu0 %v629
  %2008 = vmatmul.mubr.bf16.gmra.mrb[0].mxu0 %v628
  %v2009 = vpop.f32.mrb[0].mxu0
  %v2010 = vadd.f32 %v1961, %v2009
  %v2011 = vpop.f32.mrb[0].mxu0
  %v2012 = vpop.f32.mrb[0].mxu0
  %v2013 = vadd.f32 %v1964, %v2012
  %v2014 = vpop.f32.mrb[0].mxu0
  %2015 = vmatprep.mubr.bf16.mxu0 %v654
  %2016 = vmatmul.mubr.bf16.gmra.mrb[0].mxu0 %v653
  %v2017 = vpop.f32.mrb[0].mxu0
  %v2018 = vadd.f32 %v1969, %v2017
  %v2019 = vpop.f32.mrb[0].mxu0
  %v2020 = vpop.f32.mrb[0].mxu0
  %v2021 = vadd.f32 %v1972, %v2020
  %v2022 = vpop.f32.mrb[0].mxu0
  %2023 = vdwg.mxu0
  %2024 = vmatprep.subr.bf16.mxu0 0
  %2025 = vmatpush1.bf16.msra.mxu0 %v1558
  %2026 = vmatprep.subr.bf16.mxu0 0
  %2027 = vmatpush1.bf16.msra.mxu0 %v1559
  %2028 = vmatprep.subr.bf16.mxu0 0
  %2029 = vmatpush1.bf16.msra.mxu0 %v1560
  %2030 = vmatprep.subr.bf16.mxu0 0
  %2031 = vmatpush1.bf16.msra.mxu0 %v1561
  %2032 = vmatprep.subr.bf16.mxu0 0
  %2033 = vmatpush1.bf16.msra.mxu0 %v1562
  %2034 = vmatprep.subr.bf16.mxu0 0
  %2035 = vmatpush1.bf16.msra.mxu0 %v1563
  %2036 = vmatprep.subr.bf16.mxu0 0
  %2037 = vmatpush1.bf16.msra.mxu0 %v1564
  %2038 = vmatprep.subr.bf16.mxu0 0
  %2039 = vmatpush1.bf16.msra.mxu0 %v1565
  %2040 = vmatprep.subr.bf16.mxu0 0
  %2041 = vmatpush1.bf16.msra.mxu0 %v1566
  %2042 = vmatprep.subr.bf16.mxu0 0
  %2043 = vmatpush1.bf16.msra.mxu0 %v1567
  %2044 = vmatprep.subr.bf16.mxu0 0
  %2045 = vmatpush1.bf16.msra.mxu0 %v1568
  %2046 = vmatprep.subr.bf16.mxu0 0
  %2047 = vmatpush1.bf16.msra.mxu0 %v1569
  %2048 = vmatprep.subr.bf16.mxu0 0
  %2049 = vmatpush1.bf16.msra.mxu0 %v1570
  %2050 = vmatprep.subr.bf16.mxu0 0
  %2051 = vmatpush1.bf16.msra.mxu0 %v1571
  %2052 = vmatprep.subr.bf16.mxu0 0
  %2053 = vmatpush1.bf16.msra.mxu0 %v1572
  %2054 = vmatprep.subr.bf16.mxu0 0
  %2055 = vmatpush1.bf16.msra.mxu0 %v1573
  %2056 = vmatprep.mubr.bf16.mxu0 %v631
  %2057 = vmatmul.mubr.bf16.gmra.mrb[0].mxu0 %v630
  %v2058 = vpop.f32.mrb[0].mxu0
  %v2059 = vadd.f32 %v2010, %v2058
  %v2060 = vpop.f32.mrb[0].mxu0
  %v2061 = vpop.f32.mrb[0].mxu0
  %v2062 = vadd.f32 %v2013, %v2061
  %v2063 = vpop.f32.mrb[0].mxu0
  %2064 = vmatprep.mubr.bf16.mxu0 %v656
  %2065 = vmatmul.mubr.bf16.gmra.mrb[0].mxu0 %v655
  %v2066 = vpop.f32.mrb[0].mxu0
  %v2067 = vadd.f32 %v2018, %v2066
  %v2068 = vpop.f32.mrb[0].mxu0
  %v2069 = vpop.f32.mrb[0].mxu0
  %v2070 = vadd.f32 %v2021, %v2069
  %v2071 = vpop.f32.mrb[0].mxu0
  %2072 = vdwg.mxu0
  %2073 = vmatprep.subr.bf16.mxu0 0
  %2074 = vmatpush1.bf16.msra.mxu0 %v1574
  %2075 = vmatprep.subr.bf16.mxu0 0
  %2076 = vmatpush1.bf16.msra.mxu0 %v1575
  %2077 = vmatprep.subr.bf16.mxu0 0
  %2078 = vmatpush1.bf16.msra.mxu0 %v1576
  %2079 = vmatprep.subr.bf16.mxu0 0
  %2080 = vmatpush1.bf16.msra.mxu0 %v1577
  %2081 = vmatprep.subr.bf16.mxu0 0
  %2082 = vmatpush1.bf16.msra.mxu0 %v1578
  %2083 = vmatprep.subr.bf16.mxu0 0
  %2084 = vmatpush1.bf16.msra.mxu0 %v1579
  %2085 = vmatprep.subr.bf16.mxu0 0
  %2086 = vmatpush1.bf16.msra.mxu0 %v1580
  %2087 = vmatprep.subr.bf16.mxu0 0
  %2088 = vmatpush1.bf16.msra.mxu0 %v1581
  %2089 = vmatprep.subr.bf16.mxu0 0
  %2090 = vmatpush1.bf16.msra.mxu0 %v1582
  %2091 = vmatprep.subr.bf16.mxu0 0
  %2092 = vmatpush1.bf16.msra.mxu0 %v1583
  %2093 = vmatprep.subr.bf16.mxu0 0
  %2094 = vmatpush1.bf16.msra.mxu0 %v1584
  %2095 = vmatprep.subr.bf16.mxu0 0
  %2096 = vmatpush1.bf16.msra.mxu0 %v1585
  %2097 = vmatprep.subr.bf16.mxu0 0
  %2098 = vmatpush1.bf16.msra.mxu0 %v1586
  %2099 = vmatprep.subr.bf16.mxu0 0
  %2100 = vmatpush1.bf16.msra.mxu0 %v1587
  %2101 = vmatprep.subr.bf16.mxu0 0
  %2102 = vmatpush1.bf16.msra.mxu0 %v1588
  %2103 = vmatprep.subr.bf16.mxu0 0
  %2104 = vmatpush1.bf16.msra.mxu0 %v1589
  %2105 = vmatprep.mubr.bf16.mxu0 %v633
  %2106 = vmatmul.mubr.bf16.gmra.mrb[0].mxu0 %v632
  %v2107 = vpop.f32.mrb[0].mxu0
  %v2108 = vadd.f32 %v2059, %v2107
  %v2109 = vpop.f32.mrb[0].mxu0
  %v2110 = vpop.f32.mrb[0].mxu0
  %v2111 = vadd.f32 %v2062, %v2110
  %v2112 = vpop.f32.mrb[0].mxu0
  %2113 = vmatprep.mubr.bf16.mxu0 %v658
  %2114 = vmatmul.mubr.bf16.gmra.mrb[0].mxu0 %v657
  %v2115 = vpop.f32.mrb[0].mxu0
  %v2116 = vadd.f32 %v2067, %v2115
  %v2117 = vpop.f32.mrb[0].mxu0
  %v2118 = vpop.f32.mrb[0].mxu0
  %v2119 = vadd.f32 %v2070, %v2118
  %v2120 = vpop.f32.mrb[0].mxu0
  %2121 = vdwg.mxu0
  %2122 = vmatprep.subr.bf16.mxu0 0
  %2123 = vmatpush1.bf16.msra.mxu0 %v1590
  %2124 = vmatprep.subr.bf16.mxu0 0
  %2125 = vmatpush1.bf16.msra.mxu0 %v1591
  %2126 = vmatprep.subr.bf16.mxu0 0
  %2127 = vmatpush1.bf16.msra.mxu0 %v1592
  %2128 = vmatprep.subr.bf16.mxu0 0
  %2129 = vmatpush1.bf16.msra.mxu0 %v1593
  %2130 = vmatprep.subr.bf16.mxu0 0
  %2131 = vmatpush1.bf16.msra.mxu0 %v1594
  %2132 = vmatprep.subr.bf16.mxu0 0
  %2133 = vmatpush1.bf16.msra.mxu0 %v1595
  %2134 = vmatprep.subr.bf16.mxu0 0
  %2135 = vmatpush1.bf16.msra.mxu0 %v1596
  %2136 = vmatprep.subr.bf16.mxu0 0
  %2137 = vmatpush1.bf16.msra.mxu0 %v1597
  %2138 = vmatprep.subr.bf16.mxu0 0
  %2139 = vmatpush1.bf16.msra.mxu0 %v1598
  %2140 = vmatprep.subr.bf16.mxu0 0
  %2141 = vmatpush1.bf16.msra.mxu0 %v1599
  %2142 = vmatprep.subr.bf16.mxu0 0
  %2143 = vmatpush1.bf16.msra.mxu0 %v1600
  %2144 = vmatprep.subr.bf16.mxu0 0
  %2145 = vmatpush1.bf16.msra.mxu0 %v1601
  %2146 = vmatprep.subr.bf16.mxu0 0
  %2147 = vmatpush1.bf16.msra.mxu0 %v1602
  %2148 = vmatprep.subr.bf16.mxu0 0
  %2149 = vmatpush1.bf16.msra.mxu0 %v1603
  %2150 = vmatprep.subr.bf16.mxu0 0
  %2151 = vmatpush1.bf16.msra.mxu0 %v1604
  %2152 = vmatprep.subr.bf16.mxu0 0
  %2153 = vmatpush1.bf16.msra.mxu0 %v1605
  %2154 = vmatprep.mubr.bf16.mxu0 %v635
  %2155 = vmatmul.mubr.bf16.gmra.mrb[0].mxu0 %v634
  %v2156 = vpop.f32.mrb[0].mxu0
  %v2157 = vadd.f32 %v2108, %v2156
  %v2158 = vpop.f32.mrb[0].mxu0
  %v2159 = vpop.f32.mrb[0].mxu0
  %v2160 = vadd.f32 %v2111, %v2159
  %v2161 = vpop.f32.mrb[0].mxu0
  %2162 = vmatprep.mubr.bf16.mxu0 %v660
  %2163 = vmatmul.mubr.bf16.gmra.mrb[0].mxu0 %v659
  %v2164 = vpop.f32.mrb[0].mxu0
  %v2165 = vadd.f32 %v2116, %v2164
  %v2166 = vpop.f32.mrb[0].mxu0
  %v2167 = vpop.f32.mrb[0].mxu0
  %v2168 = vadd.f32 %v2119, %v2167
  %v2169 = vpop.f32.mrb[0].mxu0
  %2170 = vdwg.mxu0
  %2171 = vmatprep.subr.bf16.mxu0 0
  %2172 = vmatpush1.bf16.msra.mxu0 %v1606
  %2173 = vmatprep.subr.bf16.mxu0 0
  %2174 = vmatpush1.bf16.msra.mxu0 %v1607
  %2175 = vmatprep.subr.bf16.mxu0 0
  %2176 = vmatpush1.bf16.msra.mxu0 %v1608
  %2177 = vmatprep.subr.bf16.mxu0 0
  %2178 = vmatpush1.bf16.msra.mxu0 %v1609
  %2179 = vmatprep.subr.bf16.mxu0 0
  %2180 = vmatpush1.bf16.msra.mxu0 %v1610
  %2181 = vmatprep.subr.bf16.mxu0 0
  %2182 = vmatpush1.bf16.msra.mxu0 %v1611
  %2183 = vmatprep.subr.bf16.mxu0 0
  %2184 = vmatpush1.bf16.msra.mxu0 %v1612
  %2185 = vmatprep.subr.bf16.mxu0 0
  %2186 = vmatpush1.bf16.msra.mxu0 %v1613
  %2187 = vmatprep.subr.bf16.mxu0 0
  %2188 = vmatpush1.bf16.msra.mxu0 %v1614
  %2189 = vmatprep.subr.bf16.mxu0 0
  %2190 = vmatpush1.bf16.msra.mxu0 %v1615
  %2191 = vmatprep.subr.bf16.mxu0 0
  %2192 = vmatpush1.bf16.msra.mxu0 %v1616
  %2193 = vmatprep.subr.bf16.mxu0 0
  %2194 = vmatpush1.bf16.msra.mxu0 %v1617
  %2195 = vmatprep.subr.bf16.mxu0 0
  %2196 = vmatpush1.bf16.msra.mxu0 %v1618
  %2197 = vmatprep.subr.bf16.mxu0 0
  %2198 = vmatpush1.bf16.msra.mxu0 %v1619
  %2199 = vmatprep.subr.bf16.mxu0 0
  %2200 = vmatpush1.bf16.msra.mxu0 %v1620
  %2201 = vmatprep.subr.bf16.mxu0 0
  %2202 = vmatpush1.bf16.msra.mxu0 %v1621
  %2203 = vmatprep.mubr.bf16.mxu0 %v637
  %2204 = vmatmul.mubr.bf16.gmra.mrb[0].mxu0 %v636
  %v2205 = vpop.f32.mrb[0].mxu0
  %v2206 = vadd.f32 %v2157, %v2205
  %v2207 = vpop.f32.mrb[0].mxu0
  %v2208 = vpop.f32.mrb[0].mxu0
  %v2209 = vadd.f32 %v2160, %v2208
  %v2210 = vpop.f32.mrb[0].mxu0
  %2211 = vmatprep.mubr.bf16.mxu0 %v662
  %2212 = vmatmul.mubr.bf16.gmra.mrb[0].mxu0 %v661
  %v2213 = vpop.f32.mrb[0].mxu0
  %v2214 = vadd.f32 %v2165, %v2213
  %v2215 = vpop.f32.mrb[0].mxu0
  %v2216 = vpop.f32.mrb[0].mxu0
  %v2217 = vadd.f32 %v2168, %v2216
  %v2218 = vpop.f32.mrb[0].mxu0
  %2219 = vdwg.mxu0
  %2220 = vmatprep.subr.bf16.mxu0 0
  %2221 = vmatpush1.bf16.msra.mxu0 %v1622
  %2222 = vmatprep.subr.bf16.mxu0 0
  %2223 = vmatpush1.bf16.msra.mxu0 %v1623
  %2224 = vmatprep.subr.bf16.mxu0 0
  %2225 = vmatpush1.bf16.msra.mxu0 %v1624
  %2226 = vmatprep.subr.bf16.mxu0 0
  %2227 = vmatpush1.bf16.msra.mxu0 %v1625
  %2228 = vmatprep.subr.bf16.mxu0 0
  %2229 = vmatpush1.bf16.msra.mxu0 %v1626
  %2230 = vmatprep.subr.bf16.mxu0 0
  %2231 = vmatpush1.bf16.msra.mxu0 %v1627
  %2232 = vmatprep.subr.bf16.mxu0 0
  %2233 = vmatpush1.bf16.msra.mxu0 %v1628
  %2234 = vmatprep.subr.bf16.mxu0 0
  %2235 = vmatpush1.bf16.msra.mxu0 %v1629
  %2236 = vmatprep.subr.bf16.mxu0 0
  %2237 = vmatpush1.bf16.msra.mxu0 %v1630
  %2238 = vmatprep.subr.bf16.mxu0 0
  %2239 = vmatpush1.bf16.msra.mxu0 %v1631
  %2240 = vmatprep.subr.bf16.mxu0 0
  %2241 = vmatpush1.bf16.msra.mxu0 %v1632
  %2242 = vmatprep.subr.bf16.mxu0 0
  %2243 = vmatpush1.bf16.msra.mxu0 %v1633
  %2244 = vmatprep.subr.bf16.mxu0 0
  %2245 = vmatpush1.bf16.msra.mxu0 %v1634
  %2246 = vmatprep.subr.bf16.mxu0 0
  %2247 = vmatpush1.bf16.msra.mxu0 %v1635
  %2248 = vmatprep.subr.bf16.mxu0 0
  %2249 = vmatpush1.bf16.msra.mxu0 %v1636
  %2250 = vmatprep.subr.bf16.mxu0 0
  %2251 = vmatpush1.bf16.msra.mxu0 %v1637
  %2252 = vmatprep.mubr.bf16.mxu0 %v639
  %2253 = vmatmul.mubr.bf16.gmra.mrb[0].mxu0 %v638
  %v2254 = vpop.f32.mrb[0].mxu0
  %v2255 = vadd.f32 %v2206, %v2254
  %v2256 = vpop.f32.mrb[0].mxu0
  %v2257 = vpop.f32.mrb[0].mxu0
  %v2258 = vadd.f32 %v2209, %v2257
  %v2259 = vpop.f32.mrb[0].mxu0
  %2260 = vmatprep.mubr.bf16.mxu0 %v664
  %2261 = vmatmul.mubr.bf16.gmra.mrb[0].mxu0 %v663
  %v2262 = vpop.f32.mrb[0].mxu0
  %v2263 = vadd.f32 %v2214, %v2262
  %v2264 = vpop.f32.mrb[0].mxu0
  %v2265 = vpop.f32.mrb[0].mxu0
  %v2266 = vadd.f32 %v2217, %v2265
  %v2267 = vpop.f32.mrb[0].mxu0
  %2268 = vdwg.mxu0
  %2269 = vmatprep.subr.bf16.mxu0 0
  %2270 = vmatpush1.bf16.msra.mxu0 %v1638
  %2271 = vmatprep.subr.bf16.mxu0 0
  %2272 = vmatpush1.bf16.msra.mxu0 %v1639
  %2273 = vmatprep.subr.bf16.mxu0 0
  %2274 = vmatpush1.bf16.msra.mxu0 %v1640
  %2275 = vmatprep.subr.bf16.mxu0 0
  %2276 = vmatpush1.bf16.msra.mxu0 %v1641
  %2277 = vmatprep.subr.bf16.mxu0 0
  %2278 = vmatpush1.bf16.msra.mxu0 %v1642
  %2279 = vmatprep.subr.bf16.mxu0 0
  %2280 = vmatpush1.bf16.msra.mxu0 %v1643
  %2281 = vmatprep.subr.bf16.mxu0 0
  %2282 = vmatpush1.bf16.msra.mxu0 %v1644
  %2283 = vmatprep.subr.bf16.mxu0 0
  %2284 = vmatpush1.bf16.msra.mxu0 %v1645
  %2285 = vmatprep.subr.bf16.mxu0 0
  %2286 = vmatpush1.bf16.msra.mxu0 %v1646
  %2287 = vmatprep.subr.bf16.mxu0 0
  %2288 = vmatpush1.bf16.msra.mxu0 %v1647
  %2289 = vmatprep.subr.bf16.mxu0 0
  %2290 = vmatpush1.bf16.msra.mxu0 %v1648
  %2291 = vmatprep.subr.bf16.mxu0 0
  %2292 = vmatpush1.bf16.msra.mxu0 %v1649
  %2293 = vmatprep.subr.bf16.mxu0 0
  %2294 = vmatpush1.bf16.msra.mxu0 %v1650
  %2295 = vmatprep.subr.bf16.mxu0 0
  %2296 = vmatpush1.bf16.msra.mxu0 %v1651
  %2297 = vmatprep.subr.bf16.mxu0 0
  %2298 = vmatpush1.bf16.msra.mxu0 %v1652
  %2299 = vmatprep.subr.bf16.mxu0 0
  %2300 = vmatpush1.bf16.msra.mxu0 %v1653
  %2301 = vmatprep.mubr.bf16.mxu0 %v641
  %2302 = vmatmul.mubr.bf16.gmra.mrb[0].mxu0 %v640
  %v2303 = vpop.f32.mrb[0].mxu0
  %v2304 = vadd.f32 %v2255, %v2303
  %v2305 = vpop.f32.mrb[0].mxu0
  %v2306 = vpop.f32.mrb[0].mxu0
  %v2307 = vadd.f32 %v2258, %v2306
  %v2308 = vpop.f32.mrb[0].mxu0
  %2309 = vmatprep.mubr.bf16.mxu0 %v666
  %2310 = vmatmul.mubr.bf16.gmra.mrb[0].mxu0 %v665
  %v2311 = vpop.f32.mrb[0].mxu0
  %v2312 = vadd.f32 %v2263, %v2311
  %v2313 = vpop.f32.mrb[0].mxu0
  %v2314 = vpop.f32.mrb[0].mxu0
  %v2315 = vadd.f32 %v2266, %v2314
  %v2316 = vpop.f32.mrb[0].mxu0
  %2317 = vdwg.mxu0
  %2318 = vmatprep.subr.bf16.mxu0 0
  %2319 = vmatpush1.bf16.msra.mxu0 %v1654
  %2320 = vmatprep.subr.bf16.mxu0 0
  %2321 = vmatpush1.bf16.msra.mxu0 %v1655
  %2322 = vmatprep.subr.bf16.mxu0 0
  %2323 = vmatpush1.bf16.msra.mxu0 %v1656
  %2324 = vmatprep.subr.bf16.mxu0 0
  %2325 = vmatpush1.bf16.msra.mxu0 %v1657
  %2326 = vmatprep.subr.bf16.mxu0 0
  %2327 = vmatpush1.bf16.msra.mxu0 %v1658
  %2328 = vmatprep.subr.bf16.mxu0 0
  %2329 = vmatpush1.bf16.msra.mxu0 %v1659
  %2330 = vmatprep.subr.bf16.mxu0 0
  %2331 = vmatpush1.bf16.msra.mxu0 %v1660
  %2332 = vmatprep.subr.bf16.mxu0 0
  %2333 = vmatpush1.bf16.msra.mxu0 %v1661
  %2334 = vmatprep.subr.bf16.mxu0 0
  %2335 = vmatpush1.bf16.msra.mxu0 %v1662
  %2336 = vmatprep.subr.bf16.mxu0 0
  %2337 = vmatpush1.bf16.msra.mxu0 %v1663
  %2338 = vmatprep.subr.bf16.mxu0 0
  %2339 = vmatpush1.bf16.msra.mxu0 %v1664
  %2340 = vmatprep.subr.bf16.mxu0 0
  %2341 = vmatpush1.bf16.msra.mxu0 %v1665
  %2342 = vmatprep.subr.bf16.mxu0 0
  %2343 = vmatpush1.bf16.msra.mxu0 %v1666
  %2344 = vmatprep.subr.bf16.mxu0 0
  %2345 = vmatpush1.bf16.msra.mxu0 %v1667
  %2346 = vmatprep.subr.bf16.mxu0 0
  %2347 = vmatpush1.bf16.msra.mxu0 %v1668
  %2348 = vmatprep.subr.bf16.mxu0 0
  %2349 = vmatpush1.bf16.msra.mxu0 %v1669
  %2350 = vmatprep.mubr.bf16.mxu0 %v643
  %2351 = vmatmul.mubr.bf16.gmra.mrb[0].mxu0 %v642
  %v2352 = vpop.f32.mrb[0].mxu0
  %v2353 = vadd.f32 %v2304, %v2352
  %v2354 = vpop.f32.mrb[0].mxu0
  %v2355 = vpop.f32.mrb[0].mxu0
  %v2356 = vadd.f32 %v2307, %v2355
  %v2357 = vpop.f32.mrb[0].mxu0
  %2358 = vmatprep.mubr.bf16.mxu0 %v668
  %2359 = vmatmul.mubr.bf16.gmra.mrb[0].mxu0 %v667
  %v2360 = vpop.f32.mrb[0].mxu0
  %v2361 = vadd.f32 %v2312, %v2360
  %v2362 = vpop.f32.mrb[0].mxu0
  %v2363 = vpop.f32.mrb[0].mxu0
  %v2364 = vadd.f32 %v2315, %v2363
  %v2365 = vpop.f32.mrb[0].mxu0
  %2366 = vdwg.mxu0
  %2367 = vmatprep.subr.bf16.mxu0 0
  %2368 = vmatpush1.bf16.msra.mxu0 %v1670
  %2369 = vmatprep.subr.bf16.mxu0 0
  %2370 = vmatpush1.bf16.msra.mxu0 %v1671
  %2371 = vmatprep.subr.bf16.mxu0 0
  %2372 = vmatpush1.bf16.msra.mxu0 %v1672
  %2373 = vmatprep.subr.bf16.mxu0 0
  %2374 = vmatpush1.bf16.msra.mxu0 %v1673
  %2375 = vmatprep.subr.bf16.mxu0 0
  %2376 = vmatpush1.bf16.msra.mxu0 %v1674
  %2377 = vmatprep.subr.bf16.mxu0 0
  %2378 = vmatpush1.bf16.msra.mxu0 %v1675
  %2379 = vmatprep.subr.bf16.mxu0 0
  %2380 = vmatpush1.bf16.msra.mxu0 %v1676
  %2381 = vmatprep.subr.bf16.mxu0 0
  %2382 = vmatpush1.bf16.msra.mxu0 %v1677
  %2383 = vmatprep.subr.bf16.mxu0 0
  %2384 = vmatpush1.bf16.msra.mxu0 %v1678
  %2385 = vmatprep.subr.bf16.mxu0 0
  %2386 = vmatpush1.bf16.msra.mxu0 %v1679
  %2387 = vmatprep.subr.bf16.mxu0 0
  %2388 = vmatpush1.bf16.msra.mxu0 %v1680
  %2389 = vmatprep.subr.bf16.mxu0 0
  %2390 = vmatpush1.bf16.msra.mxu0 %v1681
  %2391 = vmatprep.subr.bf16.mxu0 0
  %2392 = vmatpush1.bf16.msra.mxu0 %v1682
  %2393 = vmatprep.subr.bf16.mxu0 0
  %2394 = vmatpush1.bf16.msra.mxu0 %v1683
  %2395 = vmatprep.subr.bf16.mxu0 0
  %2396 = vmatpush1.bf16.msra.mxu0 %v1684
  %2397 = vmatprep.subr.bf16.mxu0 0
  %2398 = vmatpush1.bf16.msra.mxu0 %v1685
  %2399 = vmatprep.mubr.bf16.mxu0 %v645
  %2400 = vmatmul.mubr.bf16.gmra.mrb[0].mxu0 %v644
  %v2401 = vpop.f32.mrb[0].mxu0
  %v2402 = vadd.f32 %v2353, %v2401
  %v2403 = vpop.f32.mrb[0].mxu0
  %v2404 = vpop.f32.mrb[0].mxu0
  %v2405 = vadd.f32 %v2356, %v2404
  %v2406 = vpop.f32.mrb[0].mxu0
  %2407 = vmatprep.mubr.bf16.mxu0 %v670
  %2408 = vmatmul.mubr.bf16.gmra.mrb[0].mxu0 %v669
  %v2409 = vpop.f32.mrb[0].mxu0
  %v2410 = vadd.f32 %v2361, %v2409
  %v2411 = vpop.f32.mrb[0].mxu0
  %v2412 = vpop.f32.mrb[0].mxu0
  %v2413 = vadd.f32 %v2364, %v2412
  %v2414 = vpop.f32.mrb[0].mxu0
  %2415 = vdwg.mxu0
  %2416 = vmatprep.subr.bf16.mxu0 0
  %2417 = vmatpush1.bf16.msra.mxu0 %v1686
  %2418 = vmatprep.subr.bf16.mxu0 0
  %2419 = vmatpush1.bf16.msra.mxu0 %v1687
  %2420 = vmatprep.subr.bf16.mxu0 0
  %2421 = vmatpush1.bf16.msra.mxu0 %v1688
  %2422 = vmatprep.subr.bf16.mxu0 0
  %2423 = vmatpush1.bf16.msra.mxu0 %v1689
  %2424 = vmatprep.subr.bf16.mxu0 0
  %2425 = vmatpush1.bf16.msra.mxu0 %v1690
  %2426 = vmatprep.subr.bf16.mxu0 0
  %2427 = vmatpush1.bf16.msra.mxu0 %v1691
  %2428 = vmatprep.subr.bf16.mxu0 0
  %2429 = vmatpush1.bf16.msra.mxu0 %v1692
  %2430 = vmatprep.subr.bf16.mxu0 0
  %2431 = vmatpush1.bf16.msra.mxu0 %v1693
  %2432 = vmatprep.subr.bf16.mxu0 0
  %2433 = vmatpush1.bf16.msra.mxu0 %v1694
  %2434 = vmatprep.subr.bf16.mxu0 0
  %2435 = vmatpush1.bf16.msra.mxu0 %v1695
  %2436 = vmatprep.subr.bf16.mxu0 0
  %2437 = vmatpush1.bf16.msra.mxu0 %v1696
  %2438 = vmatprep.subr.bf16.mxu0 0
  %2439 = vmatpush1.bf16.msra.mxu0 %v1697
  %2440 = vmatprep.subr.bf16.mxu0 0
  %2441 = vmatpush1.bf16.msra.mxu0 %v1698
  %2442 = vmatprep.subr.bf16.mxu0 0
  %2443 = vmatpush1.bf16.msra.mxu0 %v1699
  %2444 = vmatprep.subr.bf16.mxu0 0
  %2445 = vmatpush1.bf16.msra.mxu0 %v1700
  %2446 = vmatprep.subr.bf16.mxu0 0
  %2447 = vmatpush1.bf16.msra.mxu0 %v1701
  %2448 = vmatprep.mubr.bf16.mxu0 %v647
  %2449 = vmatmul.mubr.bf16.gmra.mrb[0].mxu0 %v646
  %v2450 = vpop.f32.mrb[0].mxu0
  %v2451 = vadd.f32 %v2402, %v2450
  %v2452 = vpop.f32.mrb[0].mxu0
  %v2453 = vpop.f32.mrb[0].mxu0
  %v2454 = vadd.f32 %v2405, %v2453
  %v2455 = vpop.f32.mrb[0].mxu0
  %2456 = vmatprep.mubr.bf16.mxu0 %v672
  %2457 = vmatmul.mubr.bf16.gmra.mrb[0].mxu0 %v671
  %v2458 = vpop.f32.mrb[0].mxu0
  %v2459 = vadd.f32 %v2410, %v2458
  %v2460 = vpop.f32.mrb[0].mxu0
  %v2461 = vpop.f32.mrb[0].mxu0
  %v2462 = vadd.f32 %v2413, %v2461
  %v2463 = vpop.f32.mrb[0].mxu0
  %2464 = vdwg.mxu0
  %2465 = vmatprep.subr.bf16.mxu0 0
  %2466 = vmatpush1.bf16.msra.mxu0 %v1702
  %2467 = vmatprep.subr.bf16.mxu0 0
  %2468 = vmatpush1.bf16.msra.mxu0 %v1703
  %2469 = vmatprep.subr.bf16.mxu0 0
  %2470 = vmatpush1.bf16.msra.mxu0 %v1704
  %2471 = vmatprep.subr.bf16.mxu0 0
  %2472 = vmatpush1.bf16.msra.mxu0 %v1705
  %2473 = vmatprep.subr.bf16.mxu0 0
  %2474 = vmatpush1.bf16.msra.mxu0 %v1706
  %2475 = vmatprep.subr.bf16.mxu0 0
  %2476 = vmatpush1.bf16.msra.mxu0 %v1707
  %2477 = vmatprep.subr.bf16.mxu0 0
  %2478 = vmatpush1.bf16.msra.mxu0 %v1708
  %2479 = vmatprep.subr.bf16.mxu0 0
  %2480 = vmatpush1.bf16.msra.mxu0 %v1709
  %2481 = vmatprep.subr.bf16.mxu0 0
  %2482 = vmatpush1.bf16.msra.mxu0 %v1710
  %2483 = vmatprep.subr.bf16.mxu0 0
  %2484 = vmatpush1.bf16.msra.mxu0 %v1711
  %2485 = vmatprep.subr.bf16.mxu0 0
  %2486 = vmatpush1.bf16.msra.mxu0 %v1712
  %2487 = vmatprep.subr.bf16.mxu0 0
  %2488 = vmatpush1.bf16.msra.mxu0 %v1713
  %2489 = vmatprep.subr.bf16.mxu0 0
  %2490 = vmatpush1.bf16.msra.mxu0 %v1714
  %2491 = vmatprep.subr.bf16.mxu0 0
  %2492 = vmatpush1.bf16.msra.mxu0 %v1715
  %2493 = vmatprep.subr.bf16.mxu0 0
  %2494 = vmatpush1.bf16.msra.mxu0 %v1716
  %2495 = vmatprep.subr.bf16.mxu0 0
  %2496 = vmatpush1.bf16.msra.mxu0 %v1717
  %2497 = vmatprep.mubr.bf16.mxu0 %v649
  %2498 = vmatmul.mubr.bf16.gmra.mrb[0].mxu0 %v648
  %v2499 = vpop.f32.mrb[0].mxu0
  %v2500 = vadd.f32 %v2451, %v2499
  %v2501 = vpop.f32.mrb[0].mxu0
  %v2502 = vpop.f32.mrb[0].mxu0
  %v2503 = vadd.f32 %v2454, %v2502
  %v2504 = vpop.f32.mrb[0].mxu0
  %2505 = vmatprep.mubr.bf16.mxu0 %v674
  %2506 = vmatmul.mubr.bf16.gmra.mrb[0].mxu0 %v673
  %v2507 = vpop.f32.mrb[0].mxu0
  %v2508 = vadd.f32 %v2459, %v2507
  %v2509 = vpop.f32.mrb[0].mxu0
  %v2510 = vpop.f32.mrb[0].mxu0
  %v2511 = vadd.f32 %v2462, %v2510
  %v2512 = vpop.f32.mrb[0].mxu0
  %2513 = vdwg.mxu0
  %2514 = vmatprep.subr.bf16.mxu0 0
  %2515 = vmatpush1.bf16.msra.mxu0 %v1718
  %2516 = vmatprep.subr.bf16.mxu0 0
  %2517 = vmatpush1.bf16.msra.mxu0 %v1719
  %2518 = vmatprep.subr.bf16.mxu0 0
  %2519 = vmatpush1.bf16.msra.mxu0 %v1720
  %2520 = vmatprep.subr.bf16.mxu0 0
  %2521 = vmatpush1.bf16.msra.mxu0 %v1721
  %2522 = vmatprep.subr.bf16.mxu0 0
  %2523 = vmatpush1.bf16.msra.mxu0 %v1722
  %2524 = vmatprep.subr.bf16.mxu0 0
  %2525 = vmatpush1.bf16.msra.mxu0 %v1723
  %2526 = vmatprep.subr.bf16.mxu0 0
  %2527 = vmatpush1.bf16.msra.mxu0 %v1724
  %2528 = vmatprep.subr.bf16.mxu0 0
  %2529 = vmatpush1.bf16.msra.mxu0 %v1725
  %2530 = vmatprep.subr.bf16.mxu0 0
  %2531 = vmatpush1.bf16.msra.mxu0 0
  %2532 = vmatprep.subr.bf16.mxu0 0
  %2533 = vmatpush1.bf16.msra.mxu0 0
  %2534 = vmatprep.subr.bf16.mxu0 0
  %2535 = vmatpush1.bf16.msra.mxu0 0
  %2536 = vmatprep.subr.bf16.mxu0 0
  %2537 = vmatpush1.bf16.msra.mxu0 0
  %2538 = vmatprep.subr.bf16.mxu0 0
  %2539 = vmatpush1.bf16.msra.mxu0 0
  %2540 = vmatprep.subr.bf16.mxu0 0
  %2541 = vmatpush1.bf16.msra.mxu0 0
  %2542 = vmatprep.subr.bf16.mxu0 0
  %2543 = vmatpush1.bf16.msra.mxu0 0
  %2544 = vmatprep.subr.bf16.mxu0 0
  %2545 = vmatpush1.bf16.msra.mxu0 0
  %2546 = vmatprep.mubr.bf16.mxu0 0
  %2547 = vmatmul.mubr.bf16.gmra.mrb[0].mxu0 %v650
  %v2548 = vpop.f32.mrb[0].mxu0
  %v2549 = vadd.f32 %v2500, %v2548
  %v2550 = vpop.f32.mrb[0].mxu0
  %v2551 = vpop.f32.mrb[0].mxu0
  %v2552 = vadd.f32 %v2503, %v2551
  %v2553 = vpop.f32.mrb[0].mxu0
  %2554 = vmatprep.mubr.bf16.mxu0 0
  %2555 = vmatmul.mubr.bf16.gmra.mrb[0].mxu0 %v675
  %v2556 = vpop.f32.mrb[0].mxu0
  %v2557 = vadd.f32 %v2508, %v2556
  %v2558 = vpop.f32.mrb[0].mxu0
  %v2559 = vpop.f32.mrb[0].mxu0
  %v2560 = vadd.f32 %v2511, %v2559
  %v2561 = vpop.f32.mrb[0].mxu0
  %2562 = vdwg.mxu0
  %v2563 = vmax.f32 %v2549, 0.0
  %v2564 = vmax.f32 %v2552, 0.0
  %v2565 = vmax.f32 %v2557, 0.0
  %v2566 = vmax.f32 %v2560, 0.0
  %v2567 = vpack.c.bf16 %v2564, %v2563
  %v2568 = vpack.c.bf16 %v2566, %v2565
  %v2571 = vunpack.c.l.b16 %v2567
  %v2572 = vunpack.c.h.b16 %v2567
  %v2573 = vunpack.c.l.b16 %v2568
  %v2574 = vunpack.c.h.b16 %v2568
  %v2575 = vpack.c.b16 %v2571, %v2571
  %v2576 = vpack.c.b16 %v2572, %v2572
  %v2577 = vpack.c.b16 %v2573, %v2573
  %v2578 = vpack.c.b16 %v2574, %v2574
  %2583 = vst [vmem:[%s3] sm:$0xf] %v2575
  %2584 = vst [vmem:[%s3 + $0x4] sm:$0xf] %v2576
  %2585 = vst [vmem:[%s3 + $0x8] sm:$0xf] %v2577
  %2586 = vst [vmem:[%s3 + $0xc] sm:$0xf] %v2578
  // Predicated region
  $region14: #{_lambda_.6} parent=0 // pred_check
    _
  $region15: #{_lambda_.6} parent=0 // pred_check_branch
    %2588 = sbr.rel (0) target = $region17
  $region16: #{_lambda_.6} parent=0 // pred_region
    _
  $region17: #{_lambda_.6} parent=0 // pred_fallthru
    _
  // Predicated region
  $region18: #{_lambda_.6} parent=0 // pred_check
    _
  $region19: #{_lambda_.6} parent=0 // pred_check_branch
    %2590 = sbr.rel (0) target = $region21
  $region20: #{_lambda_.6} parent=0 // pred_region
    _
  $region21: #{_lambda_.6} parent=0 // pred_fallthru
    _

// kernel: _lambda_.7
$region0: #{_lambda_.7}
  #allocation0 [shape = 'u32[]', space=smem, size = 0x4, offset = 0x4, fixed_abs, tag = 'smem constant byte address 0x4 - core index']
  #allocation1 [shape = 'u32[144,128]{1,0:T(1,128)}', space=vmem, size = 0x12000, scoped, tag = 'internal scratch']
  %s0 = inlined_call_operand.vmem [shape: bf16[8,3200], index: 0, kind: input, shape index: {}]
  %s1 = inlined_call_operand.vmem [shape: bf16[3200,256], index: 1, kind: input, shape index: {}]
  %s2 = inlined_call_operand.vmem [shape: f32[1,256], index: 2, kind: input, shape index: {}]
  %s3 = inlined_call_operand.vmem [shape: f32[1,256], index: 3, kind: input, shape index: {}]
  %s4 = inlined_call_operand.vmem [shape: f32[1,256], index: 4, kind: input, shape index: {}]
  %s5 = inlined_call_operand.vmem [shape: f32[2,8], index: 5, kind: input, shape index: {}]
  %s6 = inlined_call_operand.hbm [shape: f32[2,256], index: 6, kind: output, shape index: {}]
  %s7 = sld [smem:[#allocation0]]
  $region34: #{_lambda_.7} parent=0
    _
  %s9 = ssub.s32 1, %s7
  %s10 = scalar_select 0, %s9, %s7
  $region1: #{_lambda_.7} parent=0
    #allocation2 [shape = 'u8[2048]{0}', space=vmem, size = 0x800, scoped, tag = 'output window, operand 0, single buffered']
    #allocation3 [shape = 's32[1]{0}', space=sflag, size = 0x4, scoped, tag = 'scoped memory for _lambda_.7']
    %11 = vsyncpa [#allocation3], 0
    // Predicated region
    $region2: #{_lambda_.7} parent=1 // pred_check
      _
    $region3: #{_lambda_.7} parent=1 // pred_check_branch
      %13 = sbr.rel (0) target = $region5
    $region4: #{_lambda_.7} parent=1 // pred_region
      _
    $region5: #{_lambda_.7} parent=1 // pred_fallthru
      _
    // Predicated region
    $region6: #{_lambda_.7} parent=1 // pred_check
      _
    $region7: #{_lambda_.7} parent=1 // pred_check_branch
      %15 = sbr.rel (0) target = $region9
    $region8: #{_lambda_.7} parent=1 // pred_region
      _
    $region9: #{_lambda_.7} parent=1 // pred_fallthru
      _
    // Predicated region
    $region10: #{_lambda_.7} parent=1 // pred_check
      _
    $region11: #{_lambda_.7} parent=1 // pred_check_branch
      %17 = sbr.rel (0) target = $region13
    $region12: #{_lambda_.7} parent=1 // pred_region
      _
    $region13: #{_lambda_.7} parent=1 // pred_fallthru
      _
    // Predicated region
    $region14: #{_lambda_.7} parent=1 // pred_check
      _
    $region15: #{_lambda_.7} parent=1 // pred_check_branch
      %19 = sbr.rel (0) target = $region17
    $region16: #{_lambda_.7} parent=1 // pred_region
      _
    $region17: #{_lambda_.7} parent=1 // pred_fallthru
      _
    // Predicated region
    $region18: #{_lambda_.7} parent=1 // pred_check
      _
    $region19: #{_lambda_.7} parent=1 // pred_check_branch
      %21 = sbr.rel (0) target = $region21
    $region20: #{_lambda_.7} parent=1 // pred_region
      _
    $region21: #{_lambda_.7} parent=1 // pred_fallthru
      _
    // Predicated region
    $region22: #{_lambda_.7} parent=1 // pred_check
      _
    $region23: #{_lambda_.7} parent=1 // pred_check_branch
      %23 = sbr.rel (0) target = $region25
    $region24: #{_lambda_.7} parent=1 // pred_region
      _
    $region25: #{_lambda_.7} parent=1 // pred_fallthru
      _
    %v25 = vld [vmem:[%s0] sm:$0xff]
    %v26 = vld [vmem:[%s0 + $0x8] sm:$0xff]
    %v27 = vld [vmem:[%s0 + $0x10] sm:$0xff]
    %v28 = vld [vmem:[%s0 + $0x18] sm:$0xff]
    %v29 = vld [vmem:[%s0 + $0x20] sm:$0xff]
    %v30 = vld [vmem:[%s0 + $0x28] sm:$0xff]
    %v31 = vld [vmem:[%s0 + $0x30] sm:$0xff]
    %v32 = vld [vmem:[%s0 + $0x38] sm:$0xff]
    %v33 = vld [vmem:[%s0 + $0x40] sm:$0xff]
    %v34 = vld [vmem:[%s0 + $0x48] sm:$0xff]
    %v35 = vld [vmem:[%s0 + $0x50] sm:$0xff]
    %v36 = vld [vmem:[%s0 + $0x58] sm:$0xff]
    %v37 = vld [vmem:[%s0 + $0x60] sm:$0xf]
    %v38 = vld [vmem:[%s1] sm:$0xff]
    %v39 = vld [vmem:[%s1 + $0x8] sm:$0xff]
    %v40 = vld [vmem:[%s1 + $0x10] sm:$0xff]
    %v41 = vld [vmem:[%s1 + $0x18] sm:$0xff]
    %v42 = vld [vmem:[%s1 + $0x20] sm:$0xff]
    %v43 = vld [vmem:[%s1 + $0x28] sm:$0xff]
    %v44 = vld [vmem:[%s1 + $0x30] sm:$0xff]
    %v45 = vld [vmem:[%s1 + $0x38] sm:$0xff]
    %v46 = vld [vmem:[%s1 + $0x40] sm:$0xff]
    %v47 = vld [vmem:[%s1 + $0x48] sm:$0xff]
    %v48 = vld [vmem:[%s1 + $0x50] sm:$0xff]
    %v49 = vld [vmem:[%s1 + $0x58] sm:$0xff]
    %v50 = vld [vmem:[%s1 + $0x60] sm:$0xff]
    %v51 = vld [vmem:[%s1 + $0x68] sm:$0xff]
    %v52 = vld [vmem:[%s1 + $0x70] sm:$0xff]
    %v53 = vld [vmem:[%s1 + $0x78] sm:$0xff]
    %v54 = vld [vmem:[%s1 + $0x80] sm:$0xff]
    %v55 = vld [vmem:[%s1 + $0x88] sm:$0xff]
    %v56 = vld [vmem:[%s1 + $0x90] sm:$0xff]
    %v57 = vld [vmem:[%s1 + $0x98] sm:$0xff]
    %v58 = vld [vmem:[%s1 + $0xa0] sm:$0xff]
    %v59 = vld [vmem:[%s1 + $0xa8] sm:$0xff]
    %v60 = vld [vmem:[%s1 + $0xb0] sm:$0xff]
    %v61 = vld [vmem:[%s1 + $0xb8] sm:$0xff]
    %v62 = vld [vmem:[%s1 + $0xc0] sm:$0xff]
    %v63 = vld [vmem:[%s1 + $0xc8] sm:$0xff]
    %v64 = vld [vmem:[%s1 + $0xd0] sm:$0xff]
    %v65 = vld [vmem:[%s1 + $0xd8] sm:$0xff]
    %v66 = vld [vmem:[%s1 + $0xe0] sm:$0xff]
    %v67 = vld [vmem:[%s1 + $0xe8] sm:$0xff]
    %v68 = vld [vmem:[%s1 + $0xf0] sm:$0xff]
    %v69 = vld [vmem:[%s1 + $0xf8] sm:$0xff]
    %v70 = vld [vmem:[%s1 + $0x100] sm:$0xff]
    %v71 = vld [vmem:[%s1 + $0x108] sm:$0xff]
    %v72 = vld [vmem:[%s1 + $0x110] sm:$0xff]
    %v73 = vld [vmem:[%s1 + $0x118] sm:$0xff]
    %v74 = vld [vmem:[%s1 + $0x120] sm:$0xff]
    %v75 = vld [vmem:[%s1 + $0x128] sm:$0xff]
    %v76 = vld [vmem:[%s1 + $0x130] sm:$0xff]
    %v77 = vld [vmem:[%s1 + $0x138] sm:$0xff]
    %v78 = vld [vmem:[%s1 + $0x140] sm:$0xff]
    %v79 = vld [vmem:[%s1 + $0x148] sm:$0xff]
    %v80 = vld [vmem:[%s1 + $0x150] sm:$0xff]
    %v81 = vld [vmem:[%s1 + $0x158] sm:$0xff]
    %v82 = vld [vmem:[%s1 + $0x160] sm:$0xff]
    %v83 = vld [vmem:[%s1 + $0x168] sm:$0xff]
    %v84 = vld [vmem:[%s1 + $0x170] sm:$0xff]
    %v85 = vld [vmem:[%s1 + $0x178] sm:$0xff]
    %v86 = vld [vmem:[%s1 + $0x180] sm:$0xff]
    %v87 = vld [vmem:[%s1 + $0x188] sm:$0xff]
    %v88 = vld [vmem:[%s1 + $0x190] sm:$0xff]
    %v89 = vld [vmem:[%s1 + $0x198] sm:$0xff]
    %v90 = vld [vmem:[%s1 + $0x1a0] sm:$0xff]
    %v91 = vld [vmem:[%s1 + $0x1a8] sm:$0xff]
    %v92 = vld [vmem:[%s1 + $0x1b0] sm:$0xff]
    %v93 = vld [vmem:[%s1 + $0x1b8] sm:$0xff]
    %v94 = vld [vmem:[%s1 + $0x1c0] sm:$0xff]
    %v95 = vld [vmem:[%s1 + $0x1c8] sm:$0xff]
    %v96 = vld [vmem:[%s1 + $0x1d0] sm:$0xff]
    %v97 = vld [vmem:[%s1 + $0x1d8] sm:$0xff]
    %v98 = vld [vmem:[%s1 + $0x1e0] sm:$0xff]
    %v99 = vld [vmem:[%s1 + $0x1e8] sm:$0xff]
    %v100 = vld [vmem:[%s1 + $0x1f0] sm:$0xff]
    %v101 = vld [vmem:[%s1 + $0x1f8] sm:$0xff]
    %v102 = vld [vmem:[%s1 + $0x200] sm:$0xff]
    %v103 = vld [vmem:[%s1 + $0x208] sm:$0xff]
    %v104 = vld [vmem:[%s1 + $0x210] sm:$0xff]
    %v105 = vld [vmem:[%s1 + $0x218] sm:$0xff]
    %v106 = vld [vmem:[%s1 + $0x220] sm:$0xff]
    %v107 = vld [vmem:[%s1 + $0x228] sm:$0xff]
    %v108 = vld [vmem:[%s1 + $0x230] sm:$0xff]
    %v109 = vld [vmem:[%s1 + $0x238] sm:$0xff]
    %v110 = vld [vmem:[%s1 + $0x240] sm:$0xff]
    %v111 = vld [vmem:[%s1 + $0x248] sm:$0xff]
    %v112 = vld [vmem:[%s1 + $0x250] sm:$0xff]
    %v113 = vld [vmem:[%s1 + $0x258] sm:$0xff]
    %v114 = vld [vmem:[%s1 + $0x260] sm:$0xff]
    %v115 = vld [vmem:[%s1 + $0x268] sm:$0xff]
    %v116 = vld [vmem:[%s1 + $0x270] sm:$0xff]
    %v117 = vld [vmem:[%s1 + $0x278] sm:$0xff]
    %v118 = vld [vmem:[%s1 + $0x280] sm:$0xff]
    %v119 = vld [vmem:[%s1 + $0x288] sm:$0xff]
    %v120 = vld [vmem:[%s1 + $0x290] sm:$0xff]
    %v121 = vld [vmem:[%s1 + $0x298] sm:$0xff]
    %v122 = vld [vmem:[%s1 + $0x2a0] sm:$0xff]
    %v123 = vld [vmem:[%s1 + $0x2a8] sm:$0xff]
    %v124 = vld [vmem:[%s1 + $0x2b0] sm:$0xff]
    %v125 = vld [vmem:[%s1 + $0x2b8] sm:$0xff]
    %v126 = vld [vmem:[%s1 + $0x2c0] sm:$0xff]
    %v127 = vld [vmem:[%s1 + $0x2c8] sm:$0xff]
    %v128 = vld [vmem:[%s1 + $0x2d0] sm:$0xff]
    %v129 = vld [vmem:[%s1 + $0x2d8] sm:$0xff]
    %v130 = vld [vmem:[%s1 + $0x2e0] sm:$0xff]
    %v131 = vld [vmem:[%s1 + $0x2e8] sm:$0xff]
    %v132 = vld [vmem:[%s1 + $0x2f0] sm:$0xff]
    %v133 = vld [vmem:[%s1 + $0x2f8] sm:$0xff]
    %v134 = vld [vmem:[%s1 + $0x300] sm:$0xff]
    %v135 = vld [vmem:[%s1 + $0x308] sm:$0xff]
    %v136 = vld [vmem:[%s1 + $0x310] sm:$0xff]
    %v137 = vld [vmem:[%s1 + $0x318] sm:$0xff]
    %v138 = vld [vmem:[%s1 + $0x320] sm:$0xff]
    %v139 = vld [vmem:[%s1 + $0x328] sm:$0xff]
    %v140 = vld [vmem:[%s1 + $0x330] sm:$0xff]
    %v141 = vld [vmem:[%s1 + $0x338] sm:$0xff]
    %v142 = vld [vmem:[%s1 + $0x340] sm:$0xff]
    %v143 = vld [vmem:[%s1 + $0x348] sm:$0xff]
    %v144 = vld [vmem:[%s1 + $0x350] sm:$0xff]
    %v145 = vld [vmem:[%s1 + $0x358] sm:$0xff]
    %v146 = vld [vmem:[%s1 + $0x360] sm:$0xff]
    %v147 = vld [vmem:[%s1 + $0x368] sm:$0xff]
    %v148 = vld [vmem:[%s1 + $0x370] sm:$0xff]
    %v149 = vld [vmem:[%s1 + $0x378] sm:$0xff]
    %v150 = vld [vmem:[%s1 + $0x380] sm:$0xff]
    %v151 = vld [vmem:[%s1 + $0x388] sm:$0xff]
    %v152 = vld [vmem:[%s1 + $0x390] sm:$0xff]
    %v153 = vld [vmem:[%s1 + $0x398] sm:$0xff]
    %v154 = vld [vmem:[%s1 + $0x3a0] sm:$0xff]
    %v155 = vld [vmem:[%s1 + $0x3a8] sm:$0xff]
    %v156 = vld [vmem:[%s1 + $0x3b0] sm:$0xff]
    %v157 = vld [vmem:[%s1 + $0x3b8] sm:$0xff]
    %v158 = vld [vmem:[%s1 + $0x3c0] sm:$0xff]
    %v159 = vld [vmem:[%s1 + $0x3c8] sm:$0xff]
    %v160 = vld [vmem:[%s1 + $0x3d0] sm:$0xff]
    %v161 = vld [vmem:[%s1 + $0x3d8] sm:$0xff]
    %v162 = vld [vmem:[%s1 + $0x3e0] sm:$0xff]
    %v163 = vld [vmem:[%s1 + $0x3e8] sm:$0xff]
    %v164 = vld [vmem:[%s1 + $0x3f0] sm:$0xff]
    %v165 = vld [vmem:[%s1 + $0x3f8] sm:$0xff]
    %v166 = vld [vmem:[%s1 + $0x400] sm:$0xff]
    %v167 = vld [vmem:[%s1 + $0x408] sm:$0xff]
    %v168 = vld [vmem:[%s1 + $0x410] sm:$0xff]
    %v169 = vld [vmem:[%s1 + $0x418] sm:$0xff]
    %v170 = vld [vmem:[%s1 + $0x420] sm:$0xff]
    %v171 = vld [vmem:[%s1 + $0x428] sm:$0xff]
    %v172 = vld [vmem:[%s1 + $0x430] sm:$0xff]
    %v173 = vld [vmem:[%s1 + $0x438] sm:$0xff]
    %v174 = vld [vmem:[%s1 + $0x440] sm:$0xff]
    %v175 = vld [vmem:[%s1 + $0x448] sm:$0xff]
    %v176 = vld [vmem:[%s1 + $0x450] sm:$0xff]
    %v177 = vld [vmem:[%s1 + $0x458] sm:$0xff]
    %v178 = vld [vmem:[%s1 + $0x460] sm:$0xff]
    %v179 = vld [vmem:[%s1 + $0x468] sm:$0xff]
    %v180 = vld [vmem:[%s1 + $0x470] sm:$0xff]
    %v181 = vld [vmem:[%s1 + $0x478] sm:$0xff]
    %v182 = vld [vmem:[%s1 + $0x480] sm:$0xff]
    %v183 = vld [vmem:[%s1 + $0x488] sm:$0xff]
    %v184 = vld [vmem:[%s1 + $0x490] sm:$0xff]
    %v185 = vld [vmem:[%s1 + $0x498] sm:$0xff]
    %v186 = vld [vmem:[%s1 + $0x4a0] sm:$0xff]
    %v187 = vld [vmem:[%s1 + $0x4a8] sm:$0xff]
    %v188 = vld [vmem:[%s1 + $0x4b0] sm:$0xff]
    %v189 = vld [vmem:[%s1 + $0x4b8] sm:$0xff]
    %v190 = vld [vmem:[%s1 + $0x4c0] sm:$0xff]
    %v191 = vld [vmem:[%s1 + $0x4c8] sm:$0xff]
    %v192 = vld [vmem:[%s1 + $0x4d0] sm:$0xff]
    %v193 = vld [vmem:[%s1 + $0x4d8] sm:$0xff]
    %v194 = vld [vmem:[%s1 + $0x4e0] sm:$0xff]
    %v195 = vld [vmem:[%s1 + $0x4e8] sm:$0xff]
    %v196 = vld [vmem:[%s1 + $0x4f0] sm:$0xff]
    %v197 = vld [vmem:[%s1 + $0x4f8] sm:$0xff]
    %v198 = vld [vmem:[%s1 + $0x500] sm:$0xff]
    %v199 = vld [vmem:[%s1 + $0x508] sm:$0xff]
    %v200 = vld [vmem:[%s1 + $0x510] sm:$0xff]
    %v201 = vld [vmem:[%s1 + $0x518] sm:$0xff]
    %v202 = vld [vmem:[%s1 + $0x520] sm:$0xff]
    %v203 = vld [vmem:[%s1 + $0x528] sm:$0xff]
    %v204 = vld [vmem:[%s1 + $0x530] sm:$0xff]
    %v205 = vld [vmem:[%s1 + $0x538] sm:$0xff]
    %v206 = vld [vmem:[%s1 + $0x540] sm:$0xff]
    %v207 = vld [vmem:[%s1 + $0x548] sm:$0xff]
    %v208 = vld [vmem:[%s1 + $0x550] sm:$0xff]
    %v209 = vld [vmem:[%s1 + $0x558] sm:$0xff]
    %v210 = vld [vmem:[%s1 + $0x560] sm:$0xff]
    %v211 = vld [vmem:[%s1 + $0x568] sm:$0xff]
    %v212 = vld [vmem:[%s1 + $0x570] sm:$0xff]
    %v213 = vld [vmem:[%s1 + $0x578] sm:$0xff]
    %v214 = vld [vmem:[%s1 + $0x580] sm:$0xff]
    %v215 = vld [vmem:[%s1 + $0x588] sm:$0xff]
    %v216 = vld [vmem:[%s1 + $0x590] sm:$0xff]
    %v217 = vld [vmem:[%s1 + $0x598] sm:$0xff]
    %v218 = vld [vmem:[%s1 + $0x5a0] sm:$0xff]
    %v219 = vld [vmem:[%s1 + $0x5a8] sm:$0xff]
    %v220 = vld [vmem:[%s1 + $0x5b0] sm:$0xff]
    %v221 = vld [vmem:[%s1 + $0x5b8] sm:$0xff]
    %v222 = vld [vmem:[%s1 + $0x5c0] sm:$0xff]
    %v223 = vld [vmem:[%s1 + $0x5c8] sm:$0xff]
    %v224 = vld [vmem:[%s1 + $0x5d0] sm:$0xff]
    %v225 = vld [vmem:[%s1 + $0x5d8] sm:$0xff]
    %v226 = vld [vmem:[%s1 + $0x5e0] sm:$0xff]
    %v227 = vld [vmem:[%s1 + $0x5e8] sm:$0xff]
    %v228 = vld [vmem:[%s1 + $0x5f0] sm:$0xff]
    %v229 = vld [vmem:[%s1 + $0x5f8] sm:$0xff]
    %v230 = vld [vmem:[%s1 + $0x600] sm:$0xff]
    %v231 = vld [vmem:[%s1 + $0x608] sm:$0xff]
    %v232 = vld [vmem:[%s1 + $0x610] sm:$0xff]
    %v233 = vld [vmem:[%s1 + $0x618] sm:$0xff]
    %v234 = vld [vmem:[%s1 + $0x620] sm:$0xff]
    %v235 = vld [vmem:[%s1 + $0x628] sm:$0xff]
    %v236 = vld [vmem:[%s1 + $0x630] sm:$0xff]
    %v237 = vld [vmem:[%s1 + $0x638] sm:$0xff]
    %v238 = vld [vmem:[%s1 + $0x640] sm:$0xff]
    %v239 = vld [vmem:[%s1 + $0x648] sm:$0xff]
    %v240 = vld [vmem:[%s1 + $0x650] sm:$0xff]
    %v241 = vld [vmem:[%s1 + $0x658] sm:$0xff]
    %v242 = vld [vmem:[%s1 + $0x660] sm:$0xff]
    %v243 = vld [vmem:[%s1 + $0x668] sm:$0xff]
    %v244 = vld [vmem:[%s1 + $0x670] sm:$0xff]
    %v245 = vld [vmem:[%s1 + $0x678] sm:$0xff]
    %v246 = vld [vmem:[%s1 + $0x680] sm:$0xff]
    %v247 = vld [vmem:[%s1 + $0x688] sm:$0xff]
    %v248 = vld [vmem:[%s1 + $0x690] sm:$0xff]
    %v249 = vld [vmem:[%s1 + $0x698] sm:$0xff]
    %v250 = vld [vmem:[%s1 + $0x6a0] sm:$0xff]
    %v251 = vld [vmem:[%s1 + $0x6a8] sm:$0xff]
    %v252 = vld [vmem:[%s1 + $0x6b0] sm:$0xff]
    %v253 = vld [vmem:[%s1 + $0x6b8] sm:$0xff]
    %v254 = vld [vmem:[%s1 + $0x6c0] sm:$0xff]
    %v255 = vld [vmem:[%s1 + $0x6c8] sm:$0xff]
    %v256 = vld [vmem:[%s1 + $0x6d0] sm:$0xff]
    %v257 = vld [vmem:[%s1 + $0x6d8] sm:$0xff]
    %v258 = vld [vmem:[%s1 + $0x6e0] sm:$0xff]
    %v259 = vld [vmem:[%s1 + $0x6e8] sm:$0xff]
    %v260 = vld [vmem:[%s1 + $0x6f0] sm:$0xff]
    %v261 = vld [vmem:[%s1 + $0x6f8] sm:$0xff]
    %v262 = vld [vmem:[%s1 + $0x700] sm:$0xff]
    %v263 = vld [vmem:[%s1 + $0x708] sm:$0xff]
    %v264 = vld [vmem:[%s1 + $0x710] sm:$0xff]
    %v265 = vld [vmem:[%s1 + $0x718] sm:$0xff]
    %v266 = vld [vmem:[%s1 + $0x720] sm:$0xff]
    %v267 = vld [vmem:[%s1 + $0x728] sm:$0xff]
    %v268 = vld [vmem:[%s1 + $0x730] sm:$0xff]
    %v269 = vld [vmem:[%s1 + $0x738] sm:$0xff]
    %v270 = vld [vmem:[%s1 + $0x740] sm:$0xff]
    %v271 = vld [vmem:[%s1 + $0x748] sm:$0xff]
    %v272 = vld [vmem:[%s1 + $0x750] sm:$0xff]
    %v273 = vld [vmem:[%s1 + $0x758] sm:$0xff]
    %v274 = vld [vmem:[%s1 + $0x760] sm:$0xff]
    %v275 = vld [vmem:[%s1 + $0x768] sm:$0xff]
    %v276 = vld [vmem:[%s1 + $0x770] sm:$0xff]
    %v277 = vld [vmem:[%s1 + $0x778] sm:$0xff]
    %v278 = vld [vmem:[%s1 + $0x780] sm:$0xff]
    %v279 = vld [vmem:[%s1 + $0x788] sm:$0xff]
    %v280 = vld [vmem:[%s1 + $0x790] sm:$0xff]
    %v281 = vld [vmem:[%s1 + $0x798] sm:$0xff]
    %v282 = vld [vmem:[%s1 + $0x7a0] sm:$0xff]
    %v283 = vld [vmem:[%s1 + $0x7a8] sm:$0xff]
    %v284 = vld [vmem:[%s1 + $0x7b0] sm:$0xff]
    %v285 = vld [vmem:[%s1 + $0x7b8] sm:$0xff]
    %v286 = vld [vmem:[%s1 + $0x7c0] sm:$0xff]
    %v287 = vld [vmem:[%s1 + $0x7c8] sm:$0xff]
    %v288 = vld [vmem:[%s1 + $0x7d0] sm:$0xff]
    %v289 = vld [vmem:[%s1 + $0x7d8] sm:$0xff]
    %v290 = vld [vmem:[%s1 + $0x7e0] sm:$0xff]
    %v291 = vld [vmem:[%s1 + $0x7e8] sm:$0xff]
    %v292 = vld [vmem:[%s1 + $0x7f0] sm:$0xff]
    %v293 = vld [vmem:[%s1 + $0x7f8] sm:$0xff]
    %v294 = vld [vmem:[%s1 + $0x800] sm:$0xff]
    %v295 = vld [vmem:[%s1 + $0x808] sm:$0xff]
    %v296 = vld [vmem:[%s1 + $0x810] sm:$0xff]
    %v297 = vld [vmem:[%s1 + $0x818] sm:$0xff]
    %v298 = vld [vmem:[%s1 + $0x820] sm:$0xff]
    %v299 = vld [vmem:[%s1 + $0x828] sm:$0xff]
    %v300 = vld [vmem:[%s1 + $0x830] sm:$0xff]
    %v301 = vld [vmem:[%s1 + $0x838] sm:$0xff]
    %v302 = vld [vmem:[%s1 + $0x840] sm:$0xff]
    %v303 = vld [vmem:[%s1 + $0x848] sm:$0xff]
    %v304 = vld [vmem:[%s1 + $0x850] sm:$0xff]
    %v305 = vld [vmem:[%s1 + $0x858] sm:$0xff]
    %v306 = vld [vmem:[%s1 + $0x860] sm:$0xff]
    %v307 = vld [vmem:[%s1 + $0x868] sm:$0xff]
    %v308 = vld [vmem:[%s1 + $0x870] sm:$0xff]
    %v309 = vld [vmem:[%s1 + $0x878] sm:$0xff]
    %v310 = vld [vmem:[%s1 + $0x880] sm:$0xff]
    %v311 = vld [vmem:[%s1 + $0x888] sm:$0xff]
    %v312 = vld [vmem:[%s1 + $0x890] sm:$0xff]
    %v313 = vld [vmem:[%s1 + $0x898] sm:$0xff]
    %v314 = vld [vmem:[%s1 + $0x8a0] sm:$0xff]
    %v315 = vld [vmem:[%s1 + $0x8a8] sm:$0xff]
    %v316 = vld [vmem:[%s1 + $0x8b0] sm:$0xff]
    %v317 = vld [vmem:[%s1 + $0x8b8] sm:$0xff]
    %v318 = vld [vmem:[%s1 + $0x8c0] sm:$0xff]
    %v319 = vld [vmem:[%s1 + $0x8c8] sm:$0xff]
    %v320 = vld [vmem:[%s1 + $0x8d0] sm:$0xff]
    %v321 = vld [vmem:[%s1 + $0x8d8] sm:$0xff]
    %v322 = vld [vmem:[%s1 + $0x8e0] sm:$0xff]
    %v323 = vld [vmem:[%s1 + $0x8e8] sm:$0xff]
    %v324 = vld [vmem:[%s1 + $0x8f0] sm:$0xff]
    %v325 = vld [vmem:[%s1 + $0x8f8] sm:$0xff]
    %v326 = vld [vmem:[%s1 + $0x900] sm:$0xff]
    %v327 = vld [vmem:[%s1 + $0x908] sm:$0xff]
    %v328 = vld [vmem:[%s1 + $0x910] sm:$0xff]
    %v329 = vld [vmem:[%s1 + $0x918] sm:$0xff]
    %v330 = vld [vmem:[%s1 + $0x920] sm:$0xff]
    %v331 = vld [vmem:[%s1 + $0x928] sm:$0xff]
    %v332 = vld [vmem:[%s1 + $0x930] sm:$0xff]
    %v333 = vld [vmem:[%s1 + $0x938] sm:$0xff]
    %v334 = vld [vmem:[%s1 + $0x940] sm:$0xff]
    %v335 = vld [vmem:[%s1 + $0x948] sm:$0xff]
    %v336 = vld [vmem:[%s1 + $0x950] sm:$0xff]
    %v337 = vld [vmem:[%s1 + $0x958] sm:$0xff]
    %v338 = vld [vmem:[%s1 + $0x960] sm:$0xff]
    %v339 = vld [vmem:[%s1 + $0x968] sm:$0xff]
    %v340 = vld [vmem:[%s1 + $0x970] sm:$0xff]
    %v341 = vld [vmem:[%s1 + $0x978] sm:$0xff]
    %v342 = vld [vmem:[%s1 + $0x980] sm:$0xff]
    %v343 = vld [vmem:[%s1 + $0x988] sm:$0xff]
    %v344 = vld [vmem:[%s1 + $0x990] sm:$0xff]
    %v345 = vld [vmem:[%s1 + $0x998] sm:$0xff]
    %v346 = vld [vmem:[%s1 + $0x9a0] sm:$0xff]
    %v347 = vld [vmem:[%s1 + $0x9a8] sm:$0xff]
    %v348 = vld [vmem:[%s1 + $0x9b0] sm:$0xff]
    %v349 = vld [vmem:[%s1 + $0x9b8] sm:$0xff]
    %v350 = vld [vmem:[%s1 + $0x9c0] sm:$0xff]
    %v351 = vld [vmem:[%s1 + $0x9c8] sm:$0xff]
    %v352 = vld [vmem:[%s1 + $0x9d0] sm:$0xff]
    %v353 = vld [vmem:[%s1 + $0x9d8] sm:$0xff]
    %v354 = vld [vmem:[%s1 + $0x9e0] sm:$0xff]
    %v355 = vld [vmem:[%s1 + $0x9e8] sm:$0xff]
    %v356 = vld [vmem:[%s1 + $0x9f0] sm:$0xff]
    %v357 = vld [vmem:[%s1 + $0x9f8] sm:$0xff]
    %v358 = vld [vmem:[%s1 + $0xa00] sm:$0xff]
    %v359 = vld [vmem:[%s1 + $0xa08] sm:$0xff]
    %v360 = vld [vmem:[%s1 + $0xa10] sm:$0xff]
    %v361 = vld [vmem:[%s1 + $0xa18] sm:$0xff]
    %v362 = vld [vmem:[%s1 + $0xa20] sm:$0xff]
    %v363 = vld [vmem:[%s1 + $0xa28] sm:$0xff]
    %v364 = vld [vmem:[%s1 + $0xa30] sm:$0xff]
    %v365 = vld [vmem:[%s1 + $0xa38] sm:$0xff]
    %v366 = vld [vmem:[%s1 + $0xa40] sm:$0xff]
    %v367 = vld [vmem:[%s1 + $0xa48] sm:$0xff]
    %v368 = vld [vmem:[%s1 + $0xa50] sm:$0xff]
    %v369 = vld [vmem:[%s1 + $0xa58] sm:$0xff]
    %v370 = vld [vmem:[%s1 + $0xa60] sm:$0xff]
    %v371 = vld [vmem:[%s1 + $0xa68] sm:$0xff]
    %v372 = vld [vmem:[%s1 + $0xa70] sm:$0xff]
    %v373 = vld [vmem:[%s1 + $0xa78] sm:$0xff]
    %v374 = vld [vmem:[%s1 + $0xa80] sm:$0xff]
    %v375 = vld [vmem:[%s1 + $0xa88] sm:$0xff]
    %v376 = vld [vmem:[%s1 + $0xa90] sm:$0xff]
    %v377 = vld [vmem:[%s1 + $0xa98] sm:$0xff]
    %v378 = vld [vmem:[%s1 + $0xaa0] sm:$0xff]
    %v379 = vld [vmem:[%s1 + $0xaa8] sm:$0xff]
    %v380 = vld [vmem:[%s1 + $0xab0] sm:$0xff]
    %v381 = vld [vmem:[%s1 + $0xab8] sm:$0xff]
    %v382 = vld [vmem:[%s1 + $0xac0] sm:$0xff]
    %v383 = vld [vmem:[%s1 + $0xac8] sm:$0xff]
    %v384 = vld [vmem:[%s1 + $0xad0] sm:$0xff]
    %v385 = vld [vmem:[%s1 + $0xad8] sm:$0xff]
    %v386 = vld [vmem:[%s1 + $0xae0] sm:$0xff]
    %v387 = vld [vmem:[%s1 + $0xae8] sm:$0xff]
    %v388 = vld [vmem:[%s1 + $0xaf0] sm:$0xff]
    %v389 = vld [vmem:[%s1 + $0xaf8] sm:$0xff]
    %v390 = vld [vmem:[%s1 + $0xb00] sm:$0xff]
    %v391 = vld [vmem:[%s1 + $0xb08] sm:$0xff]
    %v392 = vld [vmem:[%s1 + $0xb10] sm:$0xff]
    %v393 = vld [vmem:[%s1 + $0xb18] sm:$0xff]
    %v394 = vld [vmem:[%s1 + $0xb20] sm:$0xff]
    %v395 = vld [vmem:[%s1 + $0xb28] sm:$0xff]
    %v396 = vld [vmem:[%s1 + $0xb30] sm:$0xff]
    %v397 = vld [vmem:[%s1 + $0xb38] sm:$0xff]
    %v398 = vld [vmem:[%s1 + $0xb40] sm:$0xff]
    %v399 = vld [vmem:[%s1 + $0xb48] sm:$0xff]
    %v400 = vld [vmem:[%s1 + $0xb50] sm:$0xff]
    %v401 = vld [vmem:[%s1 + $0xb58] sm:$0xff]
    %v402 = vld [vmem:[%s1 + $0xb60] sm:$0xff]
    %v403 = vld [vmem:[%s1 + $0xb68] sm:$0xff]
    %v404 = vld [vmem:[%s1 + $0xb70] sm:$0xff]
    %v405 = vld [vmem:[%s1 + $0xb78] sm:$0xff]
    %v406 = vld [vmem:[%s1 + $0xb80] sm:$0xff]
    %v407 = vld [vmem:[%s1 + $0xb88] sm:$0xff]
    %v408 = vld [vmem:[%s1 + $0xb90] sm:$0xff]
    %v409 = vld [vmem:[%s1 + $0xb98] sm:$0xff]
    %v410 = vld [vmem:[%s1 + $0xba0] sm:$0xff]
    %v411 = vld [vmem:[%s1 + $0xba8] sm:$0xff]
    %v412 = vld [vmem:[%s1 + $0xbb0] sm:$0xff]
    %v413 = vld [vmem:[%s1 + $0xbb8] sm:$0xff]
    %v414 = vld [vmem:[%s1 + $0xbc0] sm:$0xff]
    %v415 = vld [vmem:[%s1 + $0xbc8] sm:$0xff]
    %v416 = vld [vmem:[%s1 + $0xbd0] sm:$0xff]
    %v417 = vld [vmem:[%s1 + $0xbd8] sm:$0xff]
    %v418 = vld [vmem:[%s1 + $0xbe0] sm:$0xff]
    %v419 = vld [vmem:[%s1 + $0xbe8] sm:$0xff]
    %v420 = vld [vmem:[%s1 + $0xbf0] sm:$0xff]
    %v421 = vld [vmem:[%s1 + $0xbf8] sm:$0xff]
    %v422 = vld [vmem:[%s1 + $0xc00] sm:$0xff]
    %v423 = vld [vmem:[%s1 + $0xc08] sm:$0xff]
    %v424 = vld [vmem:[%s1 + $0xc10] sm:$0xff]
    %v425 = vld [vmem:[%s1 + $0xc18] sm:$0xff]
    %v426 = vld [vmem:[%s1 + $0xc20] sm:$0xff]
    %v427 = vld [vmem:[%s1 + $0xc28] sm:$0xff]
    %v428 = vld [vmem:[%s1 + $0xc30] sm:$0xff]
    %v429 = vld [vmem:[%s1 + $0xc38] sm:$0xff]
    %v430 = vld [vmem:[%s1 + $0xc40] sm:$0xff]
    %v431 = vld [vmem:[%s1 + $0xc48] sm:$0xff]
    %v432 = vld [vmem:[%s1 + $0xc50] sm:$0xff]
    %v433 = vld [vmem:[%s1 + $0xc58] sm:$0xff]
    %v434 = vld [vmem:[%s1 + $0xc60] sm:$0xff]
    %v435 = vld [vmem:[%s1 + $0xc68] sm:$0xff]
    %v436 = vld [vmem:[%s1 + $0xc70] sm:$0xff]
    %v437 = vld [vmem:[%s1 + $0xc78] sm:$0xff]
    %v438 = vld [vmem:[%s2] sm:$0x3]
    %v440 = vlaneseq
    %v441 = vshrl.u32 %v440, 7
    %v442 = vsub.s32 0, %v441
    %v443 = vrot.slane %v438, %v442
    %v444 = vlaneseq
    %v445 = vshrl.u32 %v444, 7
    %v446 = vsub.s32 1, %v445
    %v447 = vrot.slane %v438, %v446
    %v463 = vunpack.c.l.b16 %v25
    %v464 = vunpack.c.h.b16 %v25
    %v465 = vunpack.c.l.b16 %v26
    %v466 = vunpack.c.h.b16 %v26
    %v467 = vunpack.c.l.b16 %v27
    %v468 = vunpack.c.h.b16 %v27
    %v469 = vunpack.c.l.b16 %v28
    %v470 = vunpack.c.h.b16 %v28
    %v471 = vunpack.c.l.b16 %v29
    %v472 = vunpack.c.h.b16 %v29
    %v473 = vunpack.c.l.b16 %v30
    %v474 = vunpack.c.h.b16 %v30
    %v475 = vunpack.c.l.b16 %v31
    %v476 = vunpack.c.h.b16 %v31
    %v477 = vunpack.c.l.b16 %v32
    %v478 = vunpack.c.h.b16 %v32
    %v479 = vunpack.c.l.b16 %v33
    %v480 = vunpack.c.h.b16 %v33
    %v481 = vunpack.c.l.b16 %v34
    %v482 = vunpack.c.h.b16 %v34
    %v483 = vunpack.c.l.b16 %v35
    %v484 = vunpack.c.h.b16 %v35
    %v485 = vunpack.c.l.b16 %v36
    %v486 = vunpack.c.h.b16 %v36
    %v487 = vunpack.c.l.b16 %v37
    %v488 = vpack.c.b16 %v463, %v463
    %v489 = vpack.c.b16 %v464, %v464
    %v490 = vpack.c.b16 %v465, %v465
    %v491 = vpack.c.b16 %v466, %v466
    %v492 = vpack.c.b16 %v467, %v467
    %v493 = vpack.c.b16 %v468, %v468
    %v494 = vpack.c.b16 %v469, %v469
    %v495 = vpack.c.b16 %v470, %v470
    %v496 = vpack.c.b16 %v471, %v471
    %v497 = vpack.c.b16 %v472, %v472
    %v498 = vpack.c.b16 %v473, %v473
    %v499 = vpack.c.b16 %v474, %v474
    %v500 = vpack.c.b16 %v475, %v475
    %v501 = vpack.c.b16 %v476, %v476
    %v502 = vpack.c.b16 %v477, %v477
    %v503 = vpack.c.b16 %v478, %v478
    %v504 = vpack.c.b16 %v479, %v479
    %v505 = vpack.c.b16 %v480, %v480
    %v506 = vpack.c.b16 %v481, %v481
    %v507 = vpack.c.b16 %v482, %v482
    %v508 = vpack.c.b16 %v483, %v483
    %v509 = vpack.c.b16 %v484, %v484
    %v510 = vpack.c.b16 %v485, %v485
    %v511 = vpack.c.b16 %v486, %v486
    %v512 = vpack.c.b16 %v487, %v487
    %v938 = vunpack.c.l.b16 %v38
    %v939 = vunpack.c.h.b16 %v38
    %v940 = vunpack.c.l.b16 %v39
    %v941 = vunpack.c.h.b16 %v39
    %v942 = vunpack.c.l.b16 %v40
    %v943 = vunpack.c.h.b16 %v40
    %v944 = vunpack.c.l.b16 %v41
    %v945 = vunpack.c.h.b16 %v41
    %v946 = vunpack.c.l.b16 %v42
    %v947 = vunpack.c.h.b16 %v42
    %v948 = vunpack.c.l.b16 %v43
    %v949 = vunpack.c.h.b16 %v43
    %v950 = vunpack.c.l.b16 %v44
    %v951 = vunpack.c.h.b16 %v44
    %v952 = vunpack.c.l.b16 %v45
    %v953 = vunpack.c.h.b16 %v45
    %v954 = vunpack.c.l.b16 %v46
    %v955 = vunpack.c.h.b16 %v46
    %v956 = vunpack.c.l.b16 %v47
    %v957 = vunpack.c.h.b16 %v47
    %v958 = vunpack.c.l.b16 %v48
    %v959 = vunpack.c.h.b16 %v48
    %v960 = vunpack.c.l.b16 %v49
    %v961 = vunpack.c.h.b16 %v49
    %v962 = vunpack.c.l.b16 %v50
    %v963 = vunpack.c.h.b16 %v50
    %v964 = vunpack.c.l.b16 %v51
    %v965 = vunpack.c.h.b16 %v51
    %v966 = vunpack.c.l.b16 %v52
    %v967 = vunpack.c.h.b16 %v52
    %v968 = vunpack.c.l.b16 %v53
    %v969 = vunpack.c.h.b16 %v53
    %v970 = vunpack.c.l.b16 %v54
    %v971 = vunpack.c.h.b16 %v54
    %v972 = vunpack.c.l.b16 %v55
    %v973 = vunpack.c.h.b16 %v55
    %v974 = vunpack.c.l.b16 %v56
    %v975 = vunpack.c.h.b16 %v56
    %v976 = vunpack.c.l.b16 %v57
    %v977 = vunpack.c.h.b16 %v57
    %v978 = vunpack.c.l.b16 %v58
    %v979 = vunpack.c.h.b16 %v58
    %v980 = vunpack.c.l.b16 %v59
    %v981 = vunpack.c.h.b16 %v59
    %v982 = vunpack.c.l.b16 %v60
    %v983 = vunpack.c.h.b16 %v60
    %v984 = vunpack.c.l.b16 %v61
    %v985 = vunpack.c.h.b16 %v61
    %v986 = vunpack.c.l.b16 %v62
    %v987 = vunpack.c.h.b16 %v62
    %v988 = vunpack.c.l.b16 %v63
    %v989 = vunpack.c.h.b16 %v63
    %v990 = vunpack.c.l.b16 %v64
    %v991 = vunpack.c.h.b16 %v64
    %v992 = vunpack.c.l.b16 %v65
    %v993 = vunpack.c.h.b16 %v65
    %v994 = vunpack.c.l.b16 %v66
    %v995 = vunpack.c.h.b16 %v66
    %v996 = vunpack.c.l.b16 %v67
    %v997 = vunpack.c.h.b16 %v67
    %v998 = vunpack.c.l.b16 %v68
    %v999 = vunpack.c.h.b16 %v68
    %v1000 = vunpack.c.l.b16 %v69
    %v1001 = vunpack.c.h.b16 %v69
    %v1002 = vunpack.c.l.b16 %v70
    %v1003 = vunpack.c.h.b16 %v70
    %v1004 = vunpack.c.l.b16 %v71
    %v1005 = vunpack.c.h.b16 %v71
    %v1006 = vunpack.c.l.b16 %v72
    %v1007 = vunpack.c.h.b16 %v72
    %v1008 = vunpack.c.l.b16 %v73
    %v1009 = vunpack.c.h.b16 %v73
    %v1010 = vunpack.c.l.b16 %v74
    %v1011 = vunpack.c.h.b16 %v74
    %v1012 = vunpack.c.l.b16 %v75
    %v1013 = vunpack.c.h.b16 %v75
    %v1014 = vunpack.c.l.b16 %v76
    %v1015 = vunpack.c.h.b16 %v76
    %v1016 = vunpack.c.l.b16 %v77
    %v1017 = vunpack.c.h.b16 %v77
    %v1018 = vunpack.c.l.b16 %v78
    %v1019 = vunpack.c.h.b16 %v78
    %v1020 = vunpack.c.l.b16 %v79
    %v1021 = vunpack.c.h.b16 %v79
    %v1022 = vunpack.c.l.b16 %v80
    %v1023 = vunpack.c.h.b16 %v80
    %v1024 = vunpack.c.l.b16 %v81
    %v1025 = vunpack.c.h.b16 %v81
    %v1026 = vunpack.c.l.b16 %v82
    %v1027 = vunpack.c.h.b16 %v82
    %v1028 = vunpack.c.l.b16 %v83
    %v1029 = vunpack.c.h.b16 %v83
    %v1030 = vunpack.c.l.b16 %v84
    %v1031 = vunpack.c.h.b16 %v84
    %v1032 = vunpack.c.l.b16 %v85
    %v1033 = vunpack.c.h.b16 %v85
    %v1034 = vunpack.c.l.b16 %v86
    %v1035 = vunpack.c.h.b16 %v86
    %v1036 = vunpack.c.l.b16 %v87
    %v1037 = vunpack.c.h.b16 %v87
    %v1038 = vunpack.c.l.b16 %v88
    %v1039 = vunpack.c.h.b16 %v88
    %v1040 = vunpack.c.l.b16 %v89
    %v1041 = vunpack.c.h.b16 %v89
    %v1042 = vunpack.c.l.b16 %v90
    %v1043 = vunpack.c.h.b16 %v90
    %v1044 = vunpack.c.l.b16 %v91
    %v1045 = vunpack.c.h.b16 %v91
    %v1046 = vunpack.c.l.b16 %v92
    %v1047 = vunpack.c.h.b16 %v92
    %v1048 = vunpack.c.l.b16 %v93
    %v1049 = vunpack.c.h.b16 %v93
    %v1050 = vunpack.c.l.b16 %v94
    %v1051 = vunpack.c.h.b16 %v94
    %v1052 = vunpack.c.l.b16 %v95
    %v1053 = vunpack.c.h.b16 %v95
    %v1054 = vunpack.c.l.b16 %v96
    %v1055 = vunpack.c.h.b16 %v96
    %v1056 = vunpack.c.l.b16 %v97
    %v1057 = vunpack.c.h.b16 %v97
    %v1058 = vunpack.c.l.b16 %v98
    %v1059 = vunpack.c.h.b16 %v98
    %v1060 = vunpack.c.l.b16 %v99
    %v1061 = vunpack.c.h.b16 %v99
    %v1062 = vunpack.c.l.b16 %v100
    %v1063 = vunpack.c.h.b16 %v100
    %v1064 = vunpack.c.l.b16 %v101
    %v1065 = vunpack.c.h.b16 %v101
    %v1066 = vunpack.c.l.b16 %v102
    %v1067 = vunpack.c.h.b16 %v102
    %v1068 = vunpack.c.l.b16 %v103
    %v1069 = vunpack.c.h.b16 %v103
    %v1070 = vunpack.c.l.b16 %v104
    %v1071 = vunpack.c.h.b16 %v104
    %v1072 = vunpack.c.l.b16 %v105
    %v1073 = vunpack.c.h.b16 %v105
    %v1074 = vunpack.c.l.b16 %v106
    %v1075 = vunpack.c.h.b16 %v106
    %v1076 = vunpack.c.l.b16 %v107
    %v1077 = vunpack.c.h.b16 %v107
    %v1078 = vunpack.c.l.b16 %v108
    %v1079 = vunpack.c.h.b16 %v108
    %v1080 = vunpack.c.l.b16 %v109
    %v1081 = vunpack.c.h.b16 %v109
    %v1082 = vunpack.c.l.b16 %v110
    %v1083 = vunpack.c.h.b16 %v110
    %v1084 = vunpack.c.l.b16 %v111
    %v1085 = vunpack.c.h.b16 %v111
    %v1086 = vunpack.c.l.b16 %v112
    %v1087 = vunpack.c.h.b16 %v112
    %v1088 = vunpack.c.l.b16 %v113
    %v1089 = vunpack.c.h.b16 %v113
    %v1090 = vunpack.c.l.b16 %v114
    %v1091 = vunpack.c.h.b16 %v114
    %v1092 = vunpack.c.l.b16 %v115
    %v1093 = vunpack.c.h.b16 %v115
    %v1094 = vunpack.c.l.b16 %v116
    %v1095 = vunpack.c.h.b16 %v116
    %v1096 = vunpack.c.l.b16 %v117
    %v1097 = vunpack.c.h.b16 %v117
    %v1098 = vunpack.c.l.b16 %v118
    %v1099 = vunpack.c.h.b16 %v118
    %v1100 = vunpack.c.l.b16 %v119
    %v1101 = vunpack.c.h.b16 %v119
    %v1102 = vunpack.c.l.b16 %v120
    %v1103 = vunpack.c.h.b16 %v120
    %v1104 = vunpack.c.l.b16 %v121
    %v1105 = vunpack.c.h.b16 %v121
    %v1106 = vunpack.c.l.b16 %v122
    %v1107 = vunpack.c.h.b16 %v122
    %v1108 = vunpack.c.l.b16 %v123
    %v1109 = vunpack.c.h.b16 %v123
    %v1110 = vunpack.c.l.b16 %v124
    %v1111 = vunpack.c.h.b16 %v124
    %v1112 = vunpack.c.l.b16 %v125
    %v1113 = vunpack.c.h.b16 %v125
    %v1114 = vunpack.c.l.b16 %v126
    %v1115 = vunpack.c.h.b16 %v126
    %v1116 = vunpack.c.l.b16 %v127
    %v1117 = vunpack.c.h.b16 %v127
    %v1118 = vunpack.c.l.b16 %v128
    %v1119 = vunpack.c.h.b16 %v128
    %v1120 = vunpack.c.l.b16 %v129
    %v1121 = vunpack.c.h.b16 %v129
    %v1122 = vunpack.c.l.b16 %v130
    %v1123 = vunpack.c.h.b16 %v130
    %v1124 = vunpack.c.l.b16 %v131
    %v1125 = vunpack.c.h.b16 %v131
    %v1126 = vunpack.c.l.b16 %v132
    %v1127 = vunpack.c.h.b16 %v132
    %v1128 = vunpack.c.l.b16 %v133
    %v1129 = vunpack.c.h.b16 %v133
    %v1130 = vunpack.c.l.b16 %v134
    %v1131 = vunpack.c.h.b16 %v134
    %v1132 = vunpack.c.l.b16 %v135
    %v1133 = vunpack.c.h.b16 %v135
    %v1134 = vunpack.c.l.b16 %v136
    %v1135 = vunpack.c.h.b16 %v136
    %v1136 = vunpack.c.l.b16 %v137
    %v1137 = vunpack.c.h.b16 %v137
    %v1138 = vunpack.c.l.b16 %v138
    %v1139 = vunpack.c.h.b16 %v138
    %v1140 = vunpack.c.l.b16 %v139
    %v1141 = vunpack.c.h.b16 %v139
    %v1142 = vunpack.c.l.b16 %v140
    %v1143 = vunpack.c.h.b16 %v140
    %v1144 = vunpack.c.l.b16 %v141
    %v1145 = vunpack.c.h.b16 %v141
    %v1146 = vunpack.c.l.b16 %v142
    %v1147 = vunpack.c.h.b16 %v142
    %v1148 = vunpack.c.l.b16 %v143
    %v1149 = vunpack.c.h.b16 %v143
    %v1150 = vunpack.c.l.b16 %v144
    %v1151 = vunpack.c.h.b16 %v144
    %v1152 = vunpack.c.l.b16 %v145
    %v1153 = vunpack.c.h.b16 %v145
    %v1154 = vunpack.c.l.b16 %v146
    %v1155 = vunpack.c.h.b16 %v146
    %v1156 = vunpack.c.l.b16 %v147
    %v1157 = vunpack.c.h.b16 %v147
    %v1158 = vunpack.c.l.b16 %v148
    %v1159 = vunpack.c.h.b16 %v148
    %v1160 = vunpack.c.l.b16 %v149
    %v1161 = vunpack.c.h.b16 %v149
    %v1162 = vunpack.c.l.b16 %v150
    %v1163 = vunpack.c.h.b16 %v150
    %v1164 = vunpack.c.l.b16 %v151
    %v1165 = vunpack.c.h.b16 %v151
    %v1166 = vunpack.c.l.b16 %v152
    %v1167 = vunpack.c.h.b16 %v152
    %v1168 = vunpack.c.l.b16 %v153
    %v1169 = vunpack.c.h.b16 %v153
    %v1170 = vunpack.c.l.b16 %v154
    %v1171 = vunpack.c.h.b16 %v154
    %v1172 = vunpack.c.l.b16 %v155
    %v1173 = vunpack.c.h.b16 %v155
    %v1174 = vunpack.c.l.b16 %v156
    %v1175 = vunpack.c.h.b16 %v156
    %v1176 = vunpack.c.l.b16 %v157
    %v1177 = vunpack.c.h.b16 %v157
    %v1178 = vunpack.c.l.b16 %v158
    %v1179 = vunpack.c.h.b16 %v158
    %v1180 = vunpack.c.l.b16 %v159
    %v1181 = vunpack.c.h.b16 %v159
    %v1182 = vunpack.c.l.b16 %v160
    %v1183 = vunpack.c.h.b16 %v160
    %v1184 = vunpack.c.l.b16 %v161
    %v1185 = vunpack.c.h.b16 %v161
    %v1186 = vunpack.c.l.b16 %v162
    %v1187 = vunpack.c.h.b16 %v162
    %v1188 = vunpack.c.l.b16 %v163
    %v1189 = vunpack.c.h.b16 %v163
    %v1190 = vunpack.c.l.b16 %v164
    %v1191 = vunpack.c.h.b16 %v164
    %v1192 = vunpack.c.l.b16 %v165
    %v1193 = vunpack.c.h.b16 %v165
    %v1194 = vunpack.c.l.b16 %v166
    %v1195 = vunpack.c.h.b16 %v166
    %v1196 = vunpack.c.l.b16 %v167
    %v1197 = vunpack.c.h.b16 %v167
    %v1198 = vunpack.c.l.b16 %v168
    %v1199 = vunpack.c.h.b16 %v168
    %v1200 = vunpack.c.l.b16 %v169
    %v1201 = vunpack.c.h.b16 %v169
    %v1202 = vunpack.c.l.b16 %v170
    %v1203 = vunpack.c.h.b16 %v170
    %v1204 = vunpack.c.l.b16 %v171
    %v1205 = vunpack.c.h.b16 %v171
    %v1206 = vunpack.c.l.b16 %v172
    %v1207 = vunpack.c.h.b16 %v172
    %v1208 = vunpack.c.l.b16 %v173
    %v1209 = vunpack.c.h.b16 %v173
    %v1210 = vunpack.c.l.b16 %v174
    %v1211 = vunpack.c.h.b16 %v174
    %v1212 = vunpack.c.l.b16 %v175
    %v1213 = vunpack.c.h.b16 %v175
    %v1214 = vunpack.c.l.b16 %v176
    %v1215 = vunpack.c.h.b16 %v176
    %v1216 = vunpack.c.l.b16 %v177
    %v1217 = vunpack.c.h.b16 %v177
    %v1218 = vunpack.c.l.b16 %v178
    %v1219 = vunpack.c.h.b16 %v178
    %v1220 = vunpack.c.l.b16 %v179
    %v1221 = vunpack.c.h.b16 %v179
    %v1222 = vunpack.c.l.b16 %v180
    %v1223 = vunpack.c.h.b16 %v180
    %v1224 = vunpack.c.l.b16 %v181
    %v1225 = vunpack.c.h.b16 %v181
    %v1226 = vunpack.c.l.b16 %v182
    %v1227 = vunpack.c.h.b16 %v182
    %v1228 = vunpack.c.l.b16 %v183
    %v1229 = vunpack.c.h.b16 %v183
    %v1230 = vunpack.c.l.b16 %v184
    %v1231 = vunpack.c.h.b16 %v184
    %v1232 = vunpack.c.l.b16 %v185
    %v1233 = vunpack.c.h.b16 %v185
    %v1234 = vunpack.c.l.b16 %v186
    %v1235 = vunpack.c.h.b16 %v186
    %v1236 = vunpack.c.l.b16 %v187
    %v1237 = vunpack.c.h.b16 %v187
    %v1238 = vunpack.c.l.b16 %v188
    %v1239 = vunpack.c.h.b16 %v188
    %v1240 = vunpack.c.l.b16 %v189
    %v1241 = vunpack.c.h.b16 %v189
    %v1242 = vunpack.c.l.b16 %v190
    %v1243 = vunpack.c.h.b16 %v190
    %v1244 = vunpack.c.l.b16 %v191
    %v1245 = vunpack.c.h.b16 %v191
    %v1246 = vunpack.c.l.b16 %v192
    %v1247 = vunpack.c.h.b16 %v192
    %v1248 = vunpack.c.l.b16 %v193
    %v1249 = vunpack.c.h.b16 %v193
    %v1250 = vunpack.c.l.b16 %v194
    %v1251 = vunpack.c.h.b16 %v194
    %v1252 = vunpack.c.l.b16 %v195
    %v1253 = vunpack.c.h.b16 %v195
    %v1254 = vunpack.c.l.b16 %v196
    %v1255 = vunpack.c.h.b16 %v196
    %v1256 = vunpack.c.l.b16 %v197
    %v1257 = vunpack.c.h.b16 %v197
    %v1258 = vunpack.c.l.b16 %v198
    %v1259 = vunpack.c.h.b16 %v198
    %v1260 = vunpack.c.l.b16 %v199
    %v1261 = vunpack.c.h.b16 %v199
    %v1262 = vunpack.c.l.b16 %v200
    %v1263 = vunpack.c.h.b16 %v200
    %v1264 = vunpack.c.l.b16 %v201
    %v1265 = vunpack.c.h.b16 %v201
    %v1266 = vunpack.c.l.b16 %v202
    %v1267 = vunpack.c.h.b16 %v202
    %v1268 = vunpack.c.l.b16 %v203
    %v1269 = vunpack.c.h.b16 %v203
    %v1270 = vunpack.c.l.b16 %v204
    %v1271 = vunpack.c.h.b16 %v204
    %v1272 = vunpack.c.l.b16 %v205
    %v1273 = vunpack.c.h.b16 %v205
    %v1274 = vunpack.c.l.b16 %v206
    %v1275 = vunpack.c.h.b16 %v206
    %v1276 = vunpack.c.l.b16 %v207
    %v1277 = vunpack.c.h.b16 %v207
    %v1278 = vunpack.c.l.b16 %v208
    %v1279 = vunpack.c.h.b16 %v208
    %v1280 = vunpack.c.l.b16 %v209
    %v1281 = vunpack.c.h.b16 %v209
    %v1282 = vunpack.c.l.b16 %v210
    %v1283 = vunpack.c.h.b16 %v210
    %v1284 = vunpack.c.l.b16 %v211
    %v1285 = vunpack.c.h.b16 %v211
    %v1286 = vunpack.c.l.b16 %v212
    %v1287 = vunpack.c.h.b16 %v212
    %v1288 = vunpack.c.l.b16 %v213
    %v1289 = vunpack.c.h.b16 %v213
    %v1290 = vunpack.c.l.b16 %v214
    %v1291 = vunpack.c.h.b16 %v214
    %v1292 = vunpack.c.l.b16 %v215
    %v1293 = vunpack.c.h.b16 %v215
    %v1294 = vunpack.c.l.b16 %v216
    %v1295 = vunpack.c.h.b16 %v216
    %v1296 = vunpack.c.l.b16 %v217
    %v1297 = vunpack.c.h.b16 %v217
    %v1298 = vunpack.c.l.b16 %v218
    %v1299 = vunpack.c.h.b16 %v218
    %v1300 = vunpack.c.l.b16 %v219
    %v1301 = vunpack.c.h.b16 %v219
    %v1302 = vunpack.c.l.b16 %v220
    %v1303 = vunpack.c.h.b16 %v220
    %v1304 = vunpack.c.l.b16 %v221
    %v1305 = vunpack.c.h.b16 %v221
    %v1306 = vunpack.c.l.b16 %v222
    %v1307 = vunpack.c.h.b16 %v222
    %v1308 = vunpack.c.l.b16 %v223
    %v1309 = vunpack.c.h.b16 %v223
    %v1310 = vunpack.c.l.b16 %v224
    %v1311 = vunpack.c.h.b16 %v224
    %v1312 = vunpack.c.l.b16 %v225
    %v1313 = vunpack.c.h.b16 %v225
    %v1314 = vunpack.c.l.b16 %v226
    %v1315 = vunpack.c.h.b16 %v226
    %v1316 = vunpack.c.l.b16 %v227
    %v1317 = vunpack.c.h.b16 %v227
    %v1318 = vunpack.c.l.b16 %v228
    %v1319 = vunpack.c.h.b16 %v228
    %v1320 = vunpack.c.l.b16 %v229
    %v1321 = vunpack.c.h.b16 %v229
    %v1322 = vunpack.c.l.b16 %v230
    %v1323 = vunpack.c.h.b16 %v230
    %v1324 = vunpack.c.l.b16 %v231
    %v1325 = vunpack.c.h.b16 %v231
    %v1326 = vunpack.c.l.b16 %v232
    %v1327 = vunpack.c.h.b16 %v232
    %v1328 = vunpack.c.l.b16 %v233
    %v1329 = vunpack.c.h.b16 %v233
    %v1330 = vunpack.c.l.b16 %v234
    %v1331 = vunpack.c.h.b16 %v234
    %v1332 = vunpack.c.l.b16 %v235
    %v1333 = vunpack.c.h.b16 %v235
    %v1334 = vunpack.c.l.b16 %v236
    %v1335 = vunpack.c.h.b16 %v236
    %v1336 = vunpack.c.l.b16 %v237
    %v1337 = vunpack.c.h.b16 %v237
    %v1338 = vunpack.c.l.b16 %v238
    %v1339 = vunpack.c.h.b16 %v238
    %v1340 = vunpack.c.l.b16 %v239
    %v1341 = vunpack.c.h.b16 %v239
    %v1342 = vunpack.c.l.b16 %v240
    %v1343 = vunpack.c.h.b16 %v240
    %v1344 = vunpack.c.l.b16 %v241
    %v1345 = vunpack.c.h.b16 %v241
    %v1346 = vunpack.c.l.b16 %v242
    %v1347 = vunpack.c.h.b16 %v242
    %v1348 = vunpack.c.l.b16 %v243
    %v1349 = vunpack.c.h.b16 %v243
    %v1350 = vunpack.c.l.b16 %v244
    %v1351 = vunpack.c.h.b16 %v244
    %v1352 = vunpack.c.l.b16 %v245
    %v1353 = vunpack.c.h.b16 %v245
    %v1354 = vunpack.c.l.b16 %v246
    %v1355 = vunpack.c.h.b16 %v246
    %v1356 = vunpack.c.l.b16 %v247
    %v1357 = vunpack.c.h.b16 %v247
    %v1358 = vunpack.c.l.b16 %v248
    %v1359 = vunpack.c.h.b16 %v248
    %v1360 = vunpack.c.l.b16 %v249
    %v1361 = vunpack.c.h.b16 %v249
    %v1362 = vunpack.c.l.b16 %v250
    %v1363 = vunpack.c.h.b16 %v250
    %v1364 = vunpack.c.l.b16 %v251
    %v1365 = vunpack.c.h.b16 %v251
    %v1366 = vunpack.c.l.b16 %v252
    %v1367 = vunpack.c.h.b16 %v252
    %v1368 = vunpack.c.l.b16 %v253
    %v1369 = vunpack.c.h.b16 %v253
    %v1370 = vunpack.c.l.b16 %v254
    %v1371 = vunpack.c.h.b16 %v254
    %v1372 = vunpack.c.l.b16 %v255
    %v1373 = vunpack.c.h.b16 %v255
    %v1374 = vunpack.c.l.b16 %v256
    %v1375 = vunpack.c.h.b16 %v256
    %v1376 = vunpack.c.l.b16 %v257
    %v1377 = vunpack.c.h.b16 %v257
    %v1378 = vunpack.c.l.b16 %v258
    %v1379 = vunpack.c.h.b16 %v258
    %v1380 = vunpack.c.l.b16 %v259
    %v1381 = vunpack.c.h.b16 %v259
    %v1382 = vunpack.c.l.b16 %v260
    %v1383 = vunpack.c.h.b16 %v260
    %v1384 = vunpack.c.l.b16 %v261
    %v1385 = vunpack.c.h.b16 %v261
    %v1386 = vunpack.c.l.b16 %v262
    %v1387 = vunpack.c.h.b16 %v262
    %v1388 = vunpack.c.l.b16 %v263
    %v1389 = vunpack.c.h.b16 %v263
    %v1390 = vunpack.c.l.b16 %v264
    %v1391 = vunpack.c.h.b16 %v264
    %v1392 = vunpack.c.l.b16 %v265
    %v1393 = vunpack.c.h.b16 %v265
    %v1394 = vunpack.c.l.b16 %v266
    %v1395 = vunpack.c.h.b16 %v266
    %v1396 = vunpack.c.l.b16 %v267
    %v1397 = vunpack.c.h.b16 %v267
    %v1398 = vunpack.c.l.b16 %v268
    %v1399 = vunpack.c.h.b16 %v268
    %v1400 = vunpack.c.l.b16 %v269
    %v1401 = vunpack.c.h.b16 %v269
    %v1402 = vunpack.c.l.b16 %v270
    %v1403 = vunpack.c.h.b16 %v270
    %v1404 = vunpack.c.l.b16 %v271
    %v1405 = vunpack.c.h.b16 %v271
    %v1406 = vunpack.c.l.b16 %v272
    %v1407 = vunpack.c.h.b16 %v272
    %v1408 = vunpack.c.l.b16 %v273
    %v1409 = vunpack.c.h.b16 %v273
    %v1410 = vunpack.c.l.b16 %v274
    %v1411 = vunpack.c.h.b16 %v274
    %v1412 = vunpack.c.l.b16 %v275
    %v1413 = vunpack.c.h.b16 %v275
    %v1414 = vunpack.c.l.b16 %v276
    %v1415 = vunpack.c.h.b16 %v276
    %v1416 = vunpack.c.l.b16 %v277
    %v1417 = vunpack.c.h.b16 %v277
    %v1418 = vunpack.c.l.b16 %v278
    %v1419 = vunpack.c.h.b16 %v278
    %v1420 = vunpack.c.l.b16 %v279
    %v1421 = vunpack.c.h.b16 %v279
    %v1422 = vunpack.c.l.b16 %v280
    %v1423 = vunpack.c.h.b16 %v280
    %v1424 = vunpack.c.l.b16 %v281
    %v1425 = vunpack.c.h.b16 %v281
    %v1426 = vunpack.c.l.b16 %v282
    %v1427 = vunpack.c.h.b16 %v282
    %v1428 = vunpack.c.l.b16 %v283
    %v1429 = vunpack.c.h.b16 %v283
    %v1430 = vunpack.c.l.b16 %v284
    %v1431 = vunpack.c.h.b16 %v284
    %v1432 = vunpack.c.l.b16 %v285
    %v1433 = vunpack.c.h.b16 %v285
    %v1434 = vunpack.c.l.b16 %v286
    %v1435 = vunpack.c.h.b16 %v286
    %v1436 = vunpack.c.l.b16 %v287
    %v1437 = vunpack.c.h.b16 %v287
    %v1438 = vunpack.c.l.b16 %v288
    %v1439 = vunpack.c.h.b16 %v288
    %v1440 = vunpack.c.l.b16 %v289
    %v1441 = vunpack.c.h.b16 %v289
    %v1442 = vunpack.c.l.b16 %v290
    %v1443 = vunpack.c.h.b16 %v290
    %v1444 = vunpack.c.l.b16 %v291
    %v1445 = vunpack.c.h.b16 %v291
    %v1446 = vunpack.c.l.b16 %v292
    %v1447 = vunpack.c.h.b16 %v292
    %v1448 = vunpack.c.l.b16 %v293
    %v1449 = vunpack.c.h.b16 %v293
    %v1450 = vunpack.c.l.b16 %v294
    %v1451 = vunpack.c.h.b16 %v294
    %v1452 = vunpack.c.l.b16 %v295
    %v1453 = vunpack.c.h.b16 %v295
    %v1454 = vunpack.c.l.b16 %v296
    %v1455 = vunpack.c.h.b16 %v296
    %v1456 = vunpack.c.l.b16 %v297
    %v1457 = vunpack.c.h.b16 %v297
    %v1458 = vunpack.c.l.b16 %v298
    %v1459 = vunpack.c.h.b16 %v298
    %v1460 = vunpack.c.l.b16 %v299
    %v1461 = vunpack.c.h.b16 %v299
    %v1462 = vunpack.c.l.b16 %v300
    %v1463 = vunpack.c.h.b16 %v300
    %v1464 = vunpack.c.l.b16 %v301
    %v1465 = vunpack.c.h.b16 %v301
    %v1466 = vunpack.c.l.b16 %v302
    %v1467 = vunpack.c.h.b16 %v302
    %v1468 = vunpack.c.l.b16 %v303
    %v1469 = vunpack.c.h.b16 %v303
    %v1470 = vunpack.c.l.b16 %v304
    %v1471 = vunpack.c.h.b16 %v304
    %v1472 = vunpack.c.l.b16 %v305
    %v1473 = vunpack.c.h.b16 %v305
    %v1474 = vunpack.c.l.b16 %v306
    %v1475 = vunpack.c.h.b16 %v306
    %v1476 = vunpack.c.l.b16 %v307
    %v1477 = vunpack.c.h.b16 %v307
    %v1478 = vunpack.c.l.b16 %v308
    %v1479 = vunpack.c.h.b16 %v308
    %v1480 = vunpack.c.l.b16 %v309
    %v1481 = vunpack.c.h.b16 %v309
    %v1482 = vunpack.c.l.b16 %v310
    %v1483 = vunpack.c.h.b16 %v310
    %v1484 = vunpack.c.l.b16 %v311
    %v1485 = vunpack.c.h.b16 %v311
    %v1486 = vunpack.c.l.b16 %v312
    %v1487 = vunpack.c.h.b16 %v312
    %v1488 = vunpack.c.l.b16 %v313
    %v1489 = vunpack.c.h.b16 %v313
    %v1490 = vunpack.c.l.b16 %v314
    %v1491 = vunpack.c.h.b16 %v314
    %v1492 = vunpack.c.l.b16 %v315
    %v1493 = vunpack.c.h.b16 %v315
    %v1494 = vunpack.c.l.b16 %v316
    %v1495 = vunpack.c.h.b16 %v316
    %v1496 = vunpack.c.l.b16 %v317
    %v1497 = vunpack.c.h.b16 %v317
    %v1498 = vunpack.c.l.b16 %v318
    %v1499 = vunpack.c.h.b16 %v318
    %v1500 = vunpack.c.l.b16 %v319
    %v1501 = vunpack.c.h.b16 %v319
    %v1502 = vunpack.c.l.b16 %v320
    %v1503 = vunpack.c.h.b16 %v320
    %v1504 = vunpack.c.l.b16 %v321
    %v1505 = vunpack.c.h.b16 %v321
    %v1506 = vunpack.c.l.b16 %v322
    %v1507 = vunpack.c.h.b16 %v322
    %v1508 = vunpack.c.l.b16 %v323
    %v1509 = vunpack.c.h.b16 %v323
    %v1510 = vunpack.c.l.b16 %v324
    %v1511 = vunpack.c.h.b16 %v324
    %v1512 = vunpack.c.l.b16 %v325
    %v1513 = vunpack.c.h.b16 %v325
    %v1514 = vunpack.c.l.b16 %v326
    %v1515 = vunpack.c.h.b16 %v326
    %v1516 = vunpack.c.l.b16 %v327
    %v1517 = vunpack.c.h.b16 %v327
    %v1518 = vunpack.c.l.b16 %v328
    %v1519 = vunpack.c.h.b16 %v328
    %v1520 = vunpack.c.l.b16 %v329
    %v1521 = vunpack.c.h.b16 %v329
    %v1522 = vunpack.c.l.b16 %v330
    %v1523 = vunpack.c.h.b16 %v330
    %v1524 = vunpack.c.l.b16 %v331
    %v1525 = vunpack.c.h.b16 %v331
    %v1526 = vunpack.c.l.b16 %v332
    %v1527 = vunpack.c.h.b16 %v332
    %v1528 = vunpack.c.l.b16 %v333
    %v1529 = vunpack.c.h.b16 %v333
    %v1530 = vunpack.c.l.b16 %v334
    %v1531 = vunpack.c.h.b16 %v334
    %v1532 = vunpack.c.l.b16 %v335
    %v1533 = vunpack.c.h.b16 %v335
    %v1534 = vunpack.c.l.b16 %v336
    %v1535 = vunpack.c.h.b16 %v336
    %v1536 = vunpack.c.l.b16 %v337
    %v1537 = vunpack.c.h.b16 %v337
    %v1538 = vunpack.c.l.b16 %v338
    %v1539 = vunpack.c.h.b16 %v338
    %v1540 = vunpack.c.l.b16 %v339
    %v1541 = vunpack.c.h.b16 %v339
    %v1542 = vunpack.c.l.b16 %v340
    %v1543 = vunpack.c.h.b16 %v340
    %v1544 = vunpack.c.l.b16 %v341
    %v1545 = vunpack.c.h.b16 %v341
    %v1546 = vunpack.c.l.b16 %v342
    %v1547 = vunpack.c.h.b16 %v342
    %v1548 = vunpack.c.l.b16 %v343
    %v1549 = vunpack.c.h.b16 %v343
    %v1550 = vunpack.c.l.b16 %v344
    %v1551 = vunpack.c.h.b16 %v344
    %v1552 = vunpack.c.l.b16 %v345
    %v1553 = vunpack.c.h.b16 %v345
    %v1554 = vunpack.c.l.b16 %v346
    %v1555 = vunpack.c.h.b16 %v346
    %v1556 = vunpack.c.l.b16 %v347
    %v1557 = vunpack.c.h.b16 %v347
    %v1558 = vunpack.c.l.b16 %v348
    %v1559 = vunpack.c.h.b16 %v348
    %v1560 = vunpack.c.l.b16 %v349
    %v1561 = vunpack.c.h.b16 %v349
    %v1562 = vunpack.c.l.b16 %v350
    %v1563 = vunpack.c.h.b16 %v350
    %v1564 = vunpack.c.l.b16 %v351
    %v1565 = vunpack.c.h.b16 %v351
    %v1566 = vunpack.c.l.b16 %v352
    %v1567 = vunpack.c.h.b16 %v352
    %v1568 = vunpack.c.l.b16 %v353
    %v1569 = vunpack.c.h.b16 %v353
    %v1570 = vunpack.c.l.b16 %v354
    %v1571 = vunpack.c.h.b16 %v354
    %v1572 = vunpack.c.l.b16 %v355
    %v1573 = vunpack.c.h.b16 %v355
    %v1574 = vunpack.c.l.b16 %v356
    %v1575 = vunpack.c.h.b16 %v356
    %v1576 = vunpack.c.l.b16 %v357
    %v1577 = vunpack.c.h.b16 %v357
    %v1578 = vunpack.c.l.b16 %v358
    %v1579 = vunpack.c.h.b16 %v358
    %v1580 = vunpack.c.l.b16 %v359
    %v1581 = vunpack.c.h.b16 %v359
    %v1582 = vunpack.c.l.b16 %v360
    %v1583 = vunpack.c.h.b16 %v360
    %v1584 = vunpack.c.l.b16 %v361
    %v1585 = vunpack.c.h.b16 %v361
    %v1586 = vunpack.c.l.b16 %v362
    %v1587 = vunpack.c.h.b16 %v362
    %v1588 = vunpack.c.l.b16 %v363
    %v1589 = vunpack.c.h.b16 %v363
    %v1590 = vunpack.c.l.b16 %v364
    %v1591 = vunpack.c.h.b16 %v364
    %v1592 = vunpack.c.l.b16 %v365
    %v1593 = vunpack.c.h.b16 %v365
    %v1594 = vunpack.c.l.b16 %v366
    %v1595 = vunpack.c.h.b16 %v366
    %v1596 = vunpack.c.l.b16 %v367
    %v1597 = vunpack.c.h.b16 %v367
    %v1598 = vunpack.c.l.b16 %v368
    %v1599 = vunpack.c.h.b16 %v368
    %v1600 = vunpack.c.l.b16 %v369
    %v1601 = vunpack.c.h.b16 %v369
    %v1602 = vunpack.c.l.b16 %v370
    %v1603 = vunpack.c.h.b16 %v370
    %v1604 = vunpack.c.l.b16 %v371
    %v1605 = vunpack.c.h.b16 %v371
    %v1606 = vunpack.c.l.b16 %v372
    %v1607 = vunpack.c.h.b16 %v372
    %v1608 = vunpack.c.l.b16 %v373
    %v1609 = vunpack.c.h.b16 %v373
    %v1610 = vunpack.c.l.b16 %v374
    %v1611 = vunpack.c.h.b16 %v374
    %v1612 = vunpack.c.l.b16 %v375
    %v1613 = vunpack.c.h.b16 %v375
    %v1614 = vunpack.c.l.b16 %v376
    %v1615 = vunpack.c.h.b16 %v376
    %v1616 = vunpack.c.l.b16 %v377
    %v1617 = vunpack.c.h.b16 %v377
    %v1618 = vunpack.c.l.b16 %v378
    %v1619 = vunpack.c.h.b16 %v378
    %v1620 = vunpack.c.l.b16 %v379
    %v1621 = vunpack.c.h.b16 %v379
    %v1622 = vunpack.c.l.b16 %v380
    %v1623 = vunpack.c.h.b16 %v380
    %v1624 = vunpack.c.l.b16 %v381
    %v1625 = vunpack.c.h.b16 %v381
    %v1626 = vunpack.c.l.b16 %v382
    %v1627 = vunpack.c.h.b16 %v382
    %v1628 = vunpack.c.l.b16 %v383
    %v1629 = vunpack.c.h.b16 %v383
    %v1630 = vunpack.c.l.b16 %v384
    %v1631 = vunpack.c.h.b16 %v384
    %v1632 = vunpack.c.l.b16 %v385
    %v1633 = vunpack.c.h.b16 %v385
    %v1634 = vunpack.c.l.b16 %v386
    %v1635 = vunpack.c.h.b16 %v386
    %v1636 = vunpack.c.l.b16 %v387
    %v1637 = vunpack.c.h.b16 %v387
    %v1638 = vunpack.c.l.b16 %v388
    %v1639 = vunpack.c.h.b16 %v388
    %v1640 = vunpack.c.l.b16 %v389
    %v1641 = vunpack.c.h.b16 %v389
    %v1642 = vunpack.c.l.b16 %v390
    %v1643 = vunpack.c.h.b16 %v390
    %v1644 = vunpack.c.l.b16 %v391
    %v1645 = vunpack.c.h.b16 %v391
    %v1646 = vunpack.c.l.b16 %v392
    %v1647 = vunpack.c.h.b16 %v392
    %v1648 = vunpack.c.l.b16 %v393
    %v1649 = vunpack.c.h.b16 %v393
    %v1650 = vunpack.c.l.b16 %v394
    %v1651 = vunpack.c.h.b16 %v394
    %v1652 = vunpack.c.l.b16 %v395
    %v1653 = vunpack.c.h.b16 %v395
    %v1654 = vunpack.c.l.b16 %v396
    %v1655 = vunpack.c.h.b16 %v396
    %v1656 = vunpack.c.l.b16 %v397
    %v1657 = vunpack.c.h.b16 %v397
    %v1658 = vunpack.c.l.b16 %v398
    %v1659 = vunpack.c.h.b16 %v398
    %v1660 = vunpack.c.l.b16 %v399
    %v1661 = vunpack.c.h.b16 %v399
    %v1662 = vunpack.c.l.b16 %v400
    %v1663 = vunpack.c.h.b16 %v400
    %v1664 = vunpack.c.l.b16 %v401
    %v1665 = vunpack.c.h.b16 %v401
    %v1666 = vunpack.c.l.b16 %v402
    %v1667 = vunpack.c.h.b16 %v402
    %v1668 = vunpack.c.l.b16 %v403
    %v1669 = vunpack.c.h.b16 %v403
    %v1670 = vunpack.c.l.b16 %v404
    %v1671 = vunpack.c.h.b16 %v404
    %v1672 = vunpack.c.l.b16 %v405
    %v1673 = vunpack.c.h.b16 %v405
    %v1674 = vunpack.c.l.b16 %v406
    %v1675 = vunpack.c.h.b16 %v406
    %v1676 = vunpack.c.l.b16 %v407
    %v1677 = vunpack.c.h.b16 %v407
    %v1678 = vunpack.c.l.b16 %v408
    %v1679 = vunpack.c.h.b16 %v408
    %v1680 = vunpack.c.l.b16 %v409
    %v1681 = vunpack.c.h.b16 %v409
    %v1682 = vunpack.c.l.b16 %v410
    %v1683 = vunpack.c.h.b16 %v410
    %v1684 = vunpack.c.l.b16 %v411
    %v1685 = vunpack.c.h.b16 %v411
    %v1686 = vunpack.c.l.b16 %v412
    %v1687 = vunpack.c.h.b16 %v412
    %v1688 = vunpack.c.l.b16 %v413
    %v1689 = vunpack.c.h.b16 %v413
    %v1690 = vunpack.c.l.b16 %v414
    %v1691 = vunpack.c.h.b16 %v414
    %v1692 = vunpack.c.l.b16 %v415
    %v1693 = vunpack.c.h.b16 %v415
    %v1694 = vunpack.c.l.b16 %v416
    %v1695 = vunpack.c.h.b16 %v416
    %v1696 = vunpack.c.l.b16 %v417
    %v1697 = vunpack.c.h.b16 %v417
    %v1698 = vunpack.c.l.b16 %v418
    %v1699 = vunpack.c.h.b16 %v418
    %v1700 = vunpack.c.l.b16 %v419
    %v1701 = vunpack.c.h.b16 %v419
    %v1702 = vunpack.c.l.b16 %v420
    %v1703 = vunpack.c.h.b16 %v420
    %v1704 = vunpack.c.l.b16 %v421
    %v1705 = vunpack.c.h.b16 %v421
    %v1706 = vunpack.c.l.b16 %v422
    %v1707 = vunpack.c.h.b16 %v422
    %v1708 = vunpack.c.l.b16 %v423
    %v1709 = vunpack.c.h.b16 %v423
    %v1710 = vunpack.c.l.b16 %v424
    %v1711 = vunpack.c.h.b16 %v424
    %v1712 = vunpack.c.l.b16 %v425
    %v1713 = vunpack.c.h.b16 %v425
    %v1714 = vunpack.c.l.b16 %v426
    %v1715 = vunpack.c.h.b16 %v426
    %v1716 = vunpack.c.l.b16 %v427
    %v1717 = vunpack.c.h.b16 %v427
    %v1718 = vunpack.c.l.b16 %v428
    %v1719 = vunpack.c.h.b16 %v428
    %v1720 = vunpack.c.l.b16 %v429
    %v1721 = vunpack.c.h.b16 %v429
    %v1722 = vunpack.c.l.b16 %v430
    %v1723 = vunpack.c.h.b16 %v430
    %v1724 = vunpack.c.l.b16 %v431
    %v1725 = vunpack.c.h.b16 %v431
    %v1726 = vunpack.c.l.b16 %v432
    %v1727 = vunpack.c.h.b16 %v432
    %v1728 = vunpack.c.l.b16 %v433
    %v1729 = vunpack.c.h.b16 %v433
    %v1730 = vunpack.c.l.b16 %v434
    %v1731 = vunpack.c.h.b16 %v434
    %v1732 = vunpack.c.l.b16 %v435
    %v1733 = vunpack.c.h.b16 %v435
    %v1734 = vunpack.c.l.b16 %v436
    %v1735 = vunpack.c.h.b16 %v436
    %v1736 = vunpack.c.l.b16 %v437
    %v1737 = vunpack.c.h.b16 %v437
    %v1738 = vpack.c.b16 %v940, %v938
    %v1739 = vpack.c.b16 %v941, %v939
    %v1740 = vpack.c.b16 %v944, %v942
    %v1741 = vpack.c.b16 %v945, %v943
    %v1742 = vpack.c.b16 %v948, %v946
    %v1743 = vpack.c.b16 %v949, %v947
    %v1744 = vpack.c.b16 %v952, %v950
    %v1745 = vpack.c.b16 %v953, %v951
    %v1746 = vpack.c.b16 %v956, %v954
    %v1747 = vpack.c.b16 %v957, %v955
    %v1748 = vpack.c.b16 %v960, %v958
    %v1749 = vpack.c.b16 %v961, %v959
    %v1750 = vpack.c.b16 %v964, %v962
    %v1751 = vpack.c.b16 %v965, %v963
    %v1752 = vpack.c.b16 %v968, %v966
    %v1753 = vpack.c.b16 %v969, %v967
    %v1754 = vpack.c.b16 %v972, %v970
    %v1755 = vpack.c.b16 %v973, %v971
    %v1756 = vpack.c.b16 %v976, %v974
    %v1757 = vpack.c.b16 %v977, %v975
    %v1758 = vpack.c.b16 %v980, %v978
    %v1759 = vpack.c.b16 %v981, %v979
    %v1760 = vpack.c.b16 %v984, %v982
    %v1761 = vpack.c.b16 %v985, %v983
    %v1762 = vpack.c.b16 %v988, %v986
    %v1763 = vpack.c.b16 %v989, %v987
    %v1764 = vpack.c.b16 %v992, %v990
    %v1765 = vpack.c.b16 %v993, %v991
    %v1766 = vpack.c.b16 %v996, %v994
    %v1767 = vpack.c.b16 %v997, %v995
    %v1768 = vpack.c.b16 %v1000, %v998
    %v1769 = vpack.c.b16 %v1001, %v999
    %v1770 = vpack.c.b16 %v1004, %v1002
    %v1771 = vpack.c.b16 %v1005, %v1003
    %v1772 = vpack.c.b16 %v1008, %v1006
    %v1773 = vpack.c.b16 %v1009, %v1007
    %v1774 = vpack.c.b16 %v1012, %v1010
    %v1775 = vpack.c.b16 %v1013, %v1011
    %v1776 = vpack.c.b16 %v1016, %v1014
    %v1777 = vpack.c.b16 %v1017, %v1015
    %v1778 = vpack.c.b16 %v1020, %v1018
    %v1779 = vpack.c.b16 %v1021, %v1019
    %v1780 = vpack.c.b16 %v1024, %v1022
    %v1781 = vpack.c.b16 %v1025, %v1023
    %v1782 = vpack.c.b16 %v1028, %v1026
    %v1783 = vpack.c.b16 %v1029, %v1027
    %v1784 = vpack.c.b16 %v1032, %v1030
    %v1785 = vpack.c.b16 %v1033, %v1031
    %v1786 = vpack.c.b16 %v1036, %v1034
    %v1787 = vpack.c.b16 %v1037, %v1035
    %v1788 = vpack.c.b16 %v1040, %v1038
    %v1789 = vpack.c.b16 %v1041, %v1039
    %v1790 = vpack.c.b16 %v1044, %v1042
    %v1791 = vpack.c.b16 %v1045, %v1043
    %v1792 = vpack.c.b16 %v1048, %v1046
    %v1793 = vpack.c.b16 %v1049, %v1047
    %v1794 = vpack.c.b16 %v1052, %v1050
    %v1795 = vpack.c.b16 %v1053, %v1051
    %v1796 = vpack.c.b16 %v1056, %v1054
    %v1797 = vpack.c.b16 %v1057, %v1055
    %v1798 = vpack.c.b16 %v1060, %v1058
    %v1799 = vpack.c.b16 %v1061, %v1059
    %v1800 = vpack.c.b16 %v1064, %v1062
    %v1801 = vpack.c.b16 %v1065, %v1063
    %v1802 = vpack.c.b16 %v1068, %v1066
    %v1803 = vpack.c.b16 %v1069, %v1067
    %v1804 = vpack.c.b16 %v1072, %v1070
    %v1805 = vpack.c.b16 %v1073, %v1071
    %v1806 = vpack.c.b16 %v1076, %v1074
    %v1807 = vpack.c.b16 %v1077, %v1075
    %v1808 = vpack.c.b16 %v1080, %v1078
    %v1809 = vpack.c.b16 %v1081, %v1079
    %v1810 = vpack.c.b16 %v1084, %v1082
    %v1811 = vpack.c.b16 %v1085, %v1083
    %v1812 = vpack.c.b16 %v1088, %v1086
    %v1813 = vpack.c.b16 %v1089, %v1087
    %v1814 = vpack.c.b16 %v1092, %v1090
    %v1815 = vpack.c.b16 %v1093, %v1091
    %v1816 = vpack.c.b16 %v1096, %v1094
    %v1817 = vpack.c.b16 %v1097, %v1095
    %v1818 = vpack.c.b16 %v1100, %v1098
    %v1819 = vpack.c.b16 %v1101, %v1099
    %v1820 = vpack.c.b16 %v1104, %v1102
    %v1821 = vpack.c.b16 %v1105, %v1103
    %v1822 = vpack.c.b16 %v1108, %v1106
    %v1823 = vpack.c.b16 %v1109, %v1107
    %v1824 = vpack.c.b16 %v1112, %v1110
    %v1825 = vpack.c.b16 %v1113, %v1111
    %v1826 = vpack.c.b16 %v1116, %v1114
    %v1827 = vpack.c.b16 %v1117, %v1115
    %v1828 = vpack.c.b16 %v1120, %v1118
    %v1829 = vpack.c.b16 %v1121, %v1119
    %v1830 = vpack.c.b16 %v1124, %v1122
    %v1831 = vpack.c.b16 %v1125, %v1123
    %v1832 = vpack.c.b16 %v1128, %v1126
    %v1833 = vpack.c.b16 %v1129, %v1127
    %v1834 = vpack.c.b16 %v1132, %v1130
    %v1835 = vpack.c.b16 %v1133, %v1131
    %v1836 = vpack.c.b16 %v1136, %v1134
    %v1837 = vpack.c.b16 %v1137, %v1135
    %v1838 = vpack.c.b16 %v1140, %v1138
    %v1839 = vpack.c.b16 %v1141, %v1139
    %v1840 = vpack.c.b16 %v1144, %v1142
    %v1841 = vpack.c.b16 %v1145, %v1143
    %v1842 = vpack.c.b16 %v1148, %v1146
    %v1843 = vpack.c.b16 %v1149, %v1147
    %v1844 = vpack.c.b16 %v1152, %v1150
    %v1845 = vpack.c.b16 %v1153, %v1151
    %v1846 = vpack.c.b16 %v1156, %v1154
    %v1847 = vpack.c.b16 %v1157, %v1155
    %v1848 = vpack.c.b16 %v1160, %v1158
    %v1849 = vpack.c.b16 %v1161, %v1159
    %v1850 = vpack.c.b16 %v1164, %v1162
    %v1851 = vpack.c.b16 %v1165, %v1163
    %v1852 = vpack.c.b16 %v1168, %v1166
    %v1853 = vpack.c.b16 %v1169, %v1167
    %v1854 = vpack.c.b16 %v1172, %v1170
    %v1855 = vpack.c.b16 %v1173, %v1171
    %v1856 = vpack.c.b16 %v1176, %v1174
    %v1857 = vpack.c.b16 %v1177, %v1175
    %v1858 = vpack.c.b16 %v1180, %v1178
    %v1859 = vpack.c.b16 %v1181, %v1179
    %v1860 = vpack.c.b16 %v1184, %v1182
    %v1861 = vpack.c.b16 %v1185, %v1183
    %v1862 = vpack.c.b16 %v1188, %v1186
    %v1863 = vpack.c.b16 %v1189, %v1187
    %v1864 = vpack.c.b16 %v1192, %v1190
    %v1865 = vpack.c.b16 %v1193, %v1191
    %v1866 = vpack.c.b16 %v1196, %v1194
    %v1867 = vpack.c.b16 %v1197, %v1195
    %v1868 = vpack.c.b16 %v1200, %v1198
    %v1869 = vpack.c.b16 %v1201, %v1199
    %v1870 = vpack.c.b16 %v1204, %v1202
    %v1871 = vpack.c.b16 %v1205, %v1203
    %v1872 = vpack.c.b16 %v1208, %v1206
    %v1873 = vpack.c.b16 %v1209, %v1207
    %v1874 = vpack.c.b16 %v1212, %v1210
    %v1875 = vpack.c.b16 %v1213, %v1211
    %v1876 = vpack.c.b16 %v1216, %v1214
    %v1877 = vpack.c.b16 %v1217, %v1215
    %v1878 = vpack.c.b16 %v1220, %v1218
    %v1879 = vpack.c.b16 %v1221, %v1219
    %v1880 = vpack.c.b16 %v1224, %v1222
    %v1881 = vpack.c.b16 %v1225, %v1223
    %v1882 = vpack.c.b16 %v1228, %v1226
    %v1883 = vpack.c.b16 %v1229, %v1227
    %v1884 = vpack.c.b16 %v1232, %v1230
    %v1885 = vpack.c.b16 %v1233, %v1231
    %v1886 = vpack.c.b16 %v1236, %v1234
    %v1887 = vpack.c.b16 %v1237, %v1235
    %v1888 = vpack.c.b16 %v1240, %v1238
    %v1889 = vpack.c.b16 %v1241, %v1239
    %v1890 = vpack.c.b16 %v1244, %v1242
    %v1891 = vpack.c.b16 %v1245, %v1243
    %v1892 = vpack.c.b16 %v1248, %v1246
    %v1893 = vpack.c.b16 %v1249, %v1247
    %v1894 = vpack.c.b16 %v1252, %v1250
    %v1895 = vpack.c.b16 %v1253, %v1251
    %v1896 = vpack.c.b16 %v1256, %v1254
    %v1897 = vpack.c.b16 %v1257, %v1255
    %v1898 = vpack.c.b16 %v1260, %v1258
    %v1899 = vpack.c.b16 %v1261, %v1259
    %v1900 = vpack.c.b16 %v1264, %v1262
    %v1901 = vpack.c.b16 %v1265, %v1263
    %v1902 = vpack.c.b16 %v1268, %v1266
    %v1903 = vpack.c.b16 %v1269, %v1267
    %v1904 = vpack.c.b16 %v1272, %v1270
    %v1905 = vpack.c.b16 %v1273, %v1271
    %v1906 = vpack.c.b16 %v1276, %v1274
    %v1907 = vpack.c.b16 %v1277, %v1275
    %v1908 = vpack.c.b16 %v1280, %v1278
    %v1909 = vpack.c.b16 %v1281, %v1279
    %v1910 = vpack.c.b16 %v1284, %v1282
    %v1911 = vpack.c.b16 %v1285, %v1283
    %v1912 = vpack.c.b16 %v1288, %v1286
    %v1913 = vpack.c.b16 %v1289, %v1287
    %v1914 = vpack.c.b16 %v1292, %v1290
    %v1915 = vpack.c.b16 %v1293, %v1291
    %v1916 = vpack.c.b16 %v1296, %v1294
    %v1917 = vpack.c.b16 %v1297, %v1295
    %v1918 = vpack.c.b16 %v1300, %v1298
    %v1919 = vpack.c.b16 %v1301, %v1299
    %v1920 = vpack.c.b16 %v1304, %v1302
    %v1921 = vpack.c.b16 %v1305, %v1303
    %v1922 = vpack.c.b16 %v1308, %v1306
    %v1923 = vpack.c.b16 %v1309, %v1307
    %v1924 = vpack.c.b16 %v1312, %v1310
    %v1925 = vpack.c.b16 %v1313, %v1311
    %v1926 = vpack.c.b16 %v1316, %v1314
    %v1927 = vpack.c.b16 %v1317, %v1315
    %v1928 = vpack.c.b16 %v1320, %v1318
    %v1929 = vpack.c.b16 %v1321, %v1319
    %v1930 = vpack.c.b16 %v1324, %v1322
    %v1931 = vpack.c.b16 %v1325, %v1323
    %v1932 = vpack.c.b16 %v1328, %v1326
    %v1933 = vpack.c.b16 %v1329, %v1327
    %v1934 = vpack.c.b16 %v1332, %v1330
    %v1935 = vpack.c.b16 %v1333, %v1331
    %v1936 = vpack.c.b16 %v1336, %v1334
    %v1937 = vpack.c.b16 %v1337, %v1335
    %v1938 = vpack.c.b16 %v1340, %v1338
    %v1939 = vpack.c.b16 %v1341, %v1339
    %v1940 = vpack.c.b16 %v1344, %v1342
    %v1941 = vpack.c.b16 %v1345, %v1343
    %v1942 = vpack.c.b16 %v1348, %v1346
    %v1943 = vpack.c.b16 %v1349, %v1347
    %v1944 = vpack.c.b16 %v1352, %v1350
    %v1945 = vpack.c.b16 %v1353, %v1351
    %v1946 = vpack.c.b16 %v1356, %v1354
    %v1947 = vpack.c.b16 %v1357, %v1355
    %v1948 = vpack.c.b16 %v1360, %v1358
    %v1949 = vpack.c.b16 %v1361, %v1359
    %v1950 = vpack.c.b16 %v1364, %v1362
    %v1951 = vpack.c.b16 %v1365, %v1363
    %v1952 = vpack.c.b16 %v1368, %v1366
    %v1953 = vpack.c.b16 %v1369, %v1367
    %v1954 = vpack.c.b16 %v1372, %v1370
    %v1955 = vpack.c.b16 %v1373, %v1371
    %v1956 = vpack.c.b16 %v1376, %v1374
    %v1957 = vpack.c.b16 %v1377, %v1375
    %v1958 = vpack.c.b16 %v1380, %v1378
    %v1959 = vpack.c.b16 %v1381, %v1379
    %v1960 = vpack.c.b16 %v1384, %v1382
    %v1961 = vpack.c.b16 %v1385, %v1383
    %v1962 = vpack.c.b16 %v1388, %v1386
    %v1963 = vpack.c.b16 %v1389, %v1387
    %v1964 = vpack.c.b16 %v1392, %v1390
    %v1965 = vpack.c.b16 %v1393, %v1391
    %v1966 = vpack.c.b16 %v1396, %v1394
    %v1967 = vpack.c.b16 %v1397, %v1395
    %v1968 = vpack.c.b16 %v1400, %v1398
    %v1969 = vpack.c.b16 %v1401, %v1399
    %v1970 = vpack.c.b16 %v1404, %v1402
    %v1971 = vpack.c.b16 %v1405, %v1403
    %v1972 = vpack.c.b16 %v1408, %v1406
    %v1973 = vpack.c.b16 %v1409, %v1407
    %v1974 = vpack.c.b16 %v1412, %v1410
    %v1975 = vpack.c.b16 %v1413, %v1411
    %v1976 = vpack.c.b16 %v1416, %v1414
    %v1977 = vpack.c.b16 %v1417, %v1415
    %v1978 = vpack.c.b16 %v1420, %v1418
    %v1979 = vpack.c.b16 %v1421, %v1419
    %v1980 = vpack.c.b16 %v1424, %v1422
    %v1981 = vpack.c.b16 %v1425, %v1423
    %v1982 = vpack.c.b16 %v1428, %v1426
    %v1983 = vpack.c.b16 %v1429, %v1427
    %v1984 = vpack.c.b16 %v1432, %v1430
    %v1985 = vpack.c.b16 %v1433, %v1431
    %v1986 = vpack.c.b16 %v1436, %v1434
    %v1987 = vpack.c.b16 %v1437, %v1435
    %v1988 = vpack.c.b16 %v1440, %v1438
    %v1989 = vpack.c.b16 %v1441, %v1439
    %v1990 = vpack.c.b16 %v1444, %v1442
    %v1991 = vpack.c.b16 %v1445, %v1443
    %v1992 = vpack.c.b16 %v1448, %v1446
    %v1993 = vpack.c.b16 %v1449, %v1447
    %v1994 = vpack.c.b16 %v1452, %v1450
    %v1995 = vpack.c.b16 %v1453, %v1451
    %v1996 = vpack.c.b16 %v1456, %v1454
    %v1997 = vpack.c.b16 %v1457, %v1455
    %v1998 = vpack.c.b16 %v1460, %v1458
    %v1999 = vpack.c.b16 %v1461, %v1459
    %v2000 = vpack.c.b16 %v1464, %v1462
    %v2001 = vpack.c.b16 %v1465, %v1463
    %v2002 = vpack.c.b16 %v1468, %v1466
    %v2003 = vpack.c.b16 %v1469, %v1467
    %v2004 = vpack.c.b16 %v1472, %v1470
    %v2005 = vpack.c.b16 %v1473, %v1471
    %v2006 = vpack.c.b16 %v1476, %v1474
    %v2007 = vpack.c.b16 %v1477, %v1475
    %v2008 = vpack.c.b16 %v1480, %v1478
    %v2009 = vpack.c.b16 %v1481, %v1479
    %v2010 = vpack.c.b16 %v1484, %v1482
    %v2011 = vpack.c.b16 %v1485, %v1483
    %v2012 = vpack.c.b16 %v1488, %v1486
    %v2013 = vpack.c.b16 %v1489, %v1487
    %v2014 = vpack.c.b16 %v1492, %v1490
    %v2015 = vpack.c.b16 %v1493, %v1491
    %v2016 = vpack.c.b16 %v1496, %v1494
    %v2017 = vpack.c.b16 %v1497, %v1495
    %v2018 = vpack.c.b16 %v1500, %v1498
    %v2019 = vpack.c.b16 %v1501, %v1499
    %v2020 = vpack.c.b16 %v1504, %v1502
    %v2021 = vpack.c.b16 %v1505, %v1503
    %v2022 = vpack.c.b16 %v1508, %v1506
    %v2023 = vpack.c.b16 %v1509, %v1507
    %v2024 = vpack.c.b16 %v1512, %v1510
    %v2025 = vpack.c.b16 %v1513, %v1511
    %v2026 = vpack.c.b16 %v1516, %v1514
    %v2027 = vpack.c.b16 %v1517, %v1515
    %v2028 = vpack.c.b16 %v1520, %v1518
    %v2029 = vpack.c.b16 %v1521, %v1519
    %v2030 = vpack.c.b16 %v1524, %v1522
    %v2031 = vpack.c.b16 %v1525, %v1523
    %v2032 = vpack.c.b16 %v1528, %v1526
    %v2033 = vpack.c.b16 %v1529, %v1527
    %v2034 = vpack.c.b16 %v1532, %v1530
    %v2035 = vpack.c.b16 %v1533, %v1531
    %v2036 = vpack.c.b16 %v1536, %v1534
    %v2037 = vpack.c.b16 %v1537, %v1535
    %v2038 = vpack.c.b16 %v1540, %v1538
    %v2039 = vpack.c.b16 %v1541, %v1539
    %v2040 = vpack.c.b16 %v1544, %v1542
    %v2041 = vpack.c.b16 %v1545, %v1543
    %v2042 = vpack.c.b16 %v1548, %v1546
    %v2043 = vpack.c.b16 %v1549, %v1547
    %v2044 = vpack.c.b16 %v1552, %v1550
    %v2045 = vpack.c.b16 %v1553, %v1551
    %v2046 = vpack.c.b16 %v1556, %v1554
    %v2047 = vpack.c.b16 %v1557, %v1555
    %v2048 = vpack.c.b16 %v1560, %v1558
    %v2049 = vpack.c.b16 %v1561, %v1559
    %v2050 = vpack.c.b16 %v1564, %v1562
    %v2051 = vpack.c.b16 %v1565, %v1563
    %v2052 = vpack.c.b16 %v1568, %v1566
    %v2053 = vpack.c.b16 %v1569, %v1567
    %v2054 = vpack.c.b16 %v1572, %v1570
    %v2055 = vpack.c.b16 %v1573, %v1571
    %v2056 = vpack.c.b16 %v1576, %v1574
    %v2057 = vpack.c.b16 %v1577, %v1575
    %v2058 = vpack.c.b16 %v1580, %v1578
    %v2059 = vpack.c.b16 %v1581, %v1579
    %v2060 = vpack.c.b16 %v1584, %v1582
    %v2061 = vpack.c.b16 %v1585, %v1583
    %v2062 = vpack.c.b16 %v1588, %v1586
    %v2063 = vpack.c.b16 %v1589, %v1587
    %v2064 = vpack.c.b16 %v1592, %v1590
    %v2065 = vpack.c.b16 %v1593, %v1591
    %v2066 = vpack.c.b16 %v1596, %v1594
    %v2067 = vpack.c.b16 %v1597, %v1595
    %v2068 = vpack.c.b16 %v1600, %v1598
    %v2069 = vpack.c.b16 %v1601, %v1599
    %v2070 = vpack.c.b16 %v1604, %v1602
    %v2071 = vpack.c.b16 %v1605, %v1603
    %v2072 = vpack.c.b16 %v1608, %v1606
    %v2073 = vpack.c.b16 %v1609, %v1607
    %v2074 = vpack.c.b16 %v1612, %v1610
    %v2075 = vpack.c.b16 %v1613, %v1611
    %v2076 = vpack.c.b16 %v1616, %v1614
    %v2077 = vpack.c.b16 %v1617, %v1615
    %v2078 = vpack.c.b16 %v1620, %v1618
    %v2079 = vpack.c.b16 %v1621, %v1619
    %v2080 = vpack.c.b16 %v1624, %v1622
    %v2081 = vpack.c.b16 %v1625, %v1623
    %v2082 = vpack.c.b16 %v1628, %v1626
    %v2083 = vpack.c.b16 %v1629, %v1627
    %v2084 = vpack.c.b16 %v1632, %v1630
    %v2085 = vpack.c.b16 %v1633, %v1631
    %v2086 = vpack.c.b16 %v1636, %v1634
    %v2087 = vpack.c.b16 %v1637, %v1635
    %v2088 = vpack.c.b16 %v1640, %v1638
    %v2089 = vpack.c.b16 %v1641, %v1639
    %v2090 = vpack.c.b16 %v1644, %v1642
    %v2091 = vpack.c.b16 %v1645, %v1643
    %v2092 = vpack.c.b16 %v1648, %v1646
    %v2093 = vpack.c.b16 %v1649, %v1647
    %v2094 = vpack.c.b16 %v1652, %v1650
    %v2095 = vpack.c.b16 %v1653, %v1651
    %v2096 = vpack.c.b16 %v1656, %v1654
    %v2097 = vpack.c.b16 %v1657, %v1655
    %v2098 = vpack.c.b16 %v1660, %v1658
    %v2099 = vpack.c.b16 %v1661, %v1659
    %v2100 = vpack.c.b16 %v1664, %v1662
    %v2101 = vpack.c.b16 %v1665, %v1663
    %v2102 = vpack.c.b16 %v1668, %v1666
    %v2103 = vpack.c.b16 %v1669, %v1667
    %v2104 = vpack.c.b16 %v1672, %v1670
    %v2105 = vpack.c.b16 %v1673, %v1671
    %v2106 = vpack.c.b16 %v1676, %v1674
    %v2107 = vpack.c.b16 %v1677, %v1675
    %v2108 = vpack.c.b16 %v1680, %v1678
    %v2109 = vpack.c.b16 %v1681, %v1679
    %v2110 = vpack.c.b16 %v1684, %v1682
    %v2111 = vpack.c.b16 %v1685, %v1683
    %v2112 = vpack.c.b16 %v1688, %v1686
    %v2113 = vpack.c.b16 %v1689, %v1687
    %v2114 = vpack.c.b16 %v1692, %v1690
    %v2115 = vpack.c.b16 %v1693, %v1691
    %v2116 = vpack.c.b16 %v1696, %v1694
    %v2117 = vpack.c.b16 %v1697, %v1695
    %v2118 = vpack.c.b16 %v1700, %v1698
    %v2119 = vpack.c.b16 %v1701, %v1699
    %v2120 = vpack.c.b16 %v1704, %v1702
    %v2121 = vpack.c.b16 %v1705, %v1703
    %v2122 = vpack.c.b16 %v1708, %v1706
    %v2123 = vpack.c.b16 %v1709, %v1707
    %v2124 = vpack.c.b16 %v1712, %v1710
    %v2125 = vpack.c.b16 %v1713, %v1711
    %v2126 = vpack.c.b16 %v1716, %v1714
    %v2127 = vpack.c.b16 %v1717, %v1715
    %v2128 = vpack.c.b16 %v1720, %v1718
    %v2129 = vpack.c.b16 %v1721, %v1719
    %v2130 = vpack.c.b16 %v1724, %v1722
    %v2131 = vpack.c.b16 %v1725, %v1723
    %v2132 = vpack.c.b16 %v1728, %v1726
    %v2133 = vpack.c.b16 %v1729, %v1727
    %v2134 = vpack.c.b16 %v1732, %v1730
    %v2135 = vpack.c.b16 %v1733, %v1731
    %v2136 = vpack.c.b16 %v1736, %v1734
    %v2137 = vpack.c.b16 %v1737, %v1735
    %2538 = vmatprep.subr.bf16.mxu0 %v1739
    %2539 = vmatpush1.bf16.msra.mxu0 %v1738
    %2540 = vmatprep.subr.bf16.mxu0 %v1741
    %2541 = vmatpush1.bf16.msra.mxu0 %v1740
    %2542 = vmatprep.subr.bf16.mxu0 %v1743
    %2543 = vmatpush1.bf16.msra.mxu0 %v1742
    %2544 = vmatprep.subr.bf16.mxu0 %v1745
    %2545 = vmatpush1.bf16.msra.mxu0 %v1744
    %2546 = vmatprep.subr.bf16.mxu0 %v1747
    %2547 = vmatpush1.bf16.msra.mxu0 %v1746
    %2548 = vmatprep.subr.bf16.mxu0 %v1749
    %2549 = vmatpush1.bf16.msra.mxu0 %v1748
    %2550 = vmatprep.subr.bf16.mxu0 %v1751
    %2551 = vmatpush1.bf16.msra.mxu0 %v1750
    %2552 = vmatprep.subr.bf16.mxu0 %v1753
    %2553 = vmatpush1.bf16.msra.mxu0 %v1752
    %2554 = vmatprep.subr.bf16.mxu0 %v1755
    %2555 = vmatpush1.bf16.msra.mxu0 %v1754
    %2556 = vmatprep.subr.bf16.mxu0 %v1757
    %2557 = vmatpush1.bf16.msra.mxu0 %v1756
    %2558 = vmatprep.subr.bf16.mxu0 %v1759
    %2559 = vmatpush1.bf16.msra.mxu0 %v1758
    %2560 = vmatprep.subr.bf16.mxu0 %v1761
    %2561 = vmatpush1.bf16.msra.mxu0 %v1760
    %2562 = vmatprep.subr.bf16.mxu0 %v1763
    %2563 = vmatpush1.bf16.msra.mxu0 %v1762
    %2564 = vmatprep.subr.bf16.mxu0 %v1765
    %2565 = vmatpush1.bf16.msra.mxu0 %v1764
    %2566 = vmatprep.subr.bf16.mxu0 %v1767
    %2567 = vmatpush1.bf16.msra.mxu0 %v1766
    %2568 = vmatprep.subr.bf16.mxu0 %v1769
    %2569 = vmatpush1.bf16.msra.mxu0 %v1768
    %2570 = vmatprep.mubr.bf16.mxu0 %v489
    %2571 = vmatmul.mubr.bf16.gmra.mrb[0].mxu0 %v488
    %v2572 = vpop.f32.mrb[0].mxu0
    %v2573 = vadd.f32 %v443, %v2572
    %v2574 = vpop.f32.mrb[0].mxu0
    %v2575 = vadd.f32 %v447, %v2574
    %v2576 = vpop.f32.mrb[0].mxu0
    %v2577 = vpop.f32.mrb[0].mxu0
    %2578 = vdwg.mxu0
    %2579 = vmatprep.subr.bf16.mxu0 %v1771
    %2580 = vmatpush1.bf16.msra.mxu0 %v1770
    %2581 = vmatprep.subr.bf16.mxu0 %v1773
    %2582 = vmatpush1.bf16.msra.mxu0 %v1772
    %2583 = vmatprep.subr.bf16.mxu0 %v1775
    %2584 = vmatpush1.bf16.msra.mxu0 %v1774
    %2585 = vmatprep.subr.bf16.mxu0 %v1777
    %2586 = vmatpush1.bf16.msra.mxu0 %v1776
    %2587 = vmatprep.subr.bf16.mxu0 %v1779
    %2588 = vmatpush1.bf16.msra.mxu0 %v1778
    %2589 = vmatprep.subr.bf16.mxu0 %v1781
    %2590 = vmatpush1.bf16.msra.mxu0 %v1780
    %2591 = vmatprep.subr.bf16.mxu0 %v1783
    %2592 = vmatpush1.bf16.msra.mxu0 %v1782
    %2593 = vmatprep.subr.bf16.mxu0 %v1785
    %2594 = vmatpush1.bf16.msra.mxu0 %v1784
    %2595 = vmatprep.subr.bf16.mxu0 %v1787
    %2596 = vmatpush1.bf16.msra.mxu0 %v1786
    %2597 = vmatprep.subr.bf16.mxu0 %v1789
    %2598 = vmatpush1.bf16.msra.mxu0 %v1788
    %2599 = vmatprep.subr.bf16.mxu0 %v1791
    %2600 = vmatpush1.bf16.msra.mxu0 %v1790
    %2601 = vmatprep.subr.bf16.mxu0 %v1793
    %2602 = vmatpush1.bf16.msra.mxu0 %v1792
    %2603 = vmatprep.subr.bf16.mxu0 %v1795
    %2604 = vmatpush1.bf16.msra.mxu0 %v1794
    %2605 = vmatprep.subr.bf16.mxu0 %v1797
    %2606 = vmatpush1.bf16.msra.mxu0 %v1796
    %2607 = vmatprep.subr.bf16.mxu0 %v1799
    %2608 = vmatpush1.bf16.msra.mxu0 %v1798
    %2609 = vmatprep.subr.bf16.mxu0 %v1801
    %2610 = vmatpush1.bf16.msra.mxu0 %v1800
    %2611 = vmatprep.mubr.bf16.mxu0 %v491
    %2612 = vmatmul.mubr.bf16.gmra.mrb[0].mxu0 %v490
    %v2613 = vpop.f32.mrb[0].mxu0
    %v2614 = vadd.f32 %v2573, %v2613
    %v2615 = vpop.f32.mrb[0].mxu0
    %v2616 = vadd.f32 %v2575, %v2615
    %v2617 = vpop.f32.mrb[0].mxu0
    %v2618 = vpop.f32.mrb[0].mxu0
    %2619 = vdwg.mxu0
    %2620 = vmatprep.subr.bf16.mxu0 %v1803
    %2621 = vmatpush1.bf16.msra.mxu0 %v1802
    %2622 = vmatprep.subr.bf16.mxu0 %v1805
    %2623 = vmatpush1.bf16.msra.mxu0 %v1804
    %2624 = vmatprep.subr.bf16.mxu0 %v1807
    %2625 = vmatpush1.bf16.msra.mxu0 %v1806
    %2626 = vmatprep.subr.bf16.mxu0 %v1809
    %2627 = vmatpush1.bf16.msra.mxu0 %v1808
    %2628 = vmatprep.subr.bf16.mxu0 %v1811
    %2629 = vmatpush1.bf16.msra.mxu0 %v1810
    %2630 = vmatprep.subr.bf16.mxu0 %v1813
    %2631 = vmatpush1.bf16.msra.mxu0 %v1812
    %2632 = vmatprep.subr.bf16.mxu0 %v1815
    %2633 = vmatpush1.bf16.msra.mxu0 %v1814
    %2634 = vmatprep.subr.bf16.mxu0 %v1817
    %2635 = vmatpush1.bf16.msra.mxu0 %v1816
    %2636 = vmatprep.subr.bf16.mxu0 %v1819
    %2637 = vmatpush1.bf16.msra.mxu0 %v1818
    %2638 = vmatprep.subr.bf16.mxu0 %v1821
    %2639 = vmatpush1.bf16.msra.mxu0 %v1820
    %2640 = vmatprep.subr.bf16.mxu0 %v1823
    %2641 = vmatpush1.bf16.msra.mxu0 %v1822
    %2642 = vmatprep.subr.bf16.mxu0 %v1825
    %2643 = vmatpush1.bf16.msra.mxu0 %v1824
    %2644 = vmatprep.subr.bf16.mxu0 %v1827
    %2645 = vmatpush1.bf16.msra.mxu0 %v1826
    %2646 = vmatprep.subr.bf16.mxu0 %v1829
    %2647 = vmatpush1.bf16.msra.mxu0 %v1828
    %2648 = vmatprep.subr.bf16.mxu0 %v1831
    %2649 = vmatpush1.bf16.msra.mxu0 %v1830
    %2650 = vmatprep.subr.bf16.mxu0 %v1833
    %2651 = vmatpush1.bf16.msra.mxu0 %v1832
    %2652 = vmatprep.mubr.bf16.mxu0 %v493
    %2653 = vmatmul.mubr.bf16.gmra.mrb[0].mxu0 %v492
    %v2654 = vpop.f32.mrb[0].mxu0
    %v2655 = vadd.f32 %v2614, %v2654
    %v2656 = vpop.f32.mrb[0].mxu0
    %v2657 = vadd.f32 %v2616, %v2656
    %v2658 = vpop.f32.mrb[0].mxu0
    %v2659 = vpop.f32.mrb[0].mxu0
    %2660 = vdwg.mxu0
    %2661 = vmatprep.subr.bf16.mxu0 %v1835
    %2662 = vmatpush1.bf16.msra.mxu0 %v1834
    %2663 = vmatprep.subr.bf16.mxu0 %v1837
    %2664 = vmatpush1.bf16.msra.mxu0 %v1836
    %2665 = vmatprep.subr.bf16.mxu0 %v1839
    %2666 = vmatpush1.bf16.msra.mxu0 %v1838
    %2667 = vmatprep.subr.bf16.mxu0 %v1841
    %2668 = vmatpush1.bf16.msra.mxu0 %v1840
    %2669 = vmatprep.subr.bf16.mxu0 %v1843
    %2670 = vmatpush1.bf16.msra.mxu0 %v1842
    %2671 = vmatprep.subr.bf16.mxu0 %v1845
    %2672 = vmatpush1.bf16.msra.mxu0 %v1844
    %2673 = vmatprep.subr.bf16.mxu0 %v1847
    %2674 = vmatpush1.bf16.msra.mxu0 %v1846
    %2675 = vmatprep.subr.bf16.mxu0 %v1849
    %2676 = vmatpush1.bf16.msra.mxu0 %v1848
    %2677 = vmatprep.subr.bf16.mxu0 %v1851
    %2678 = vmatpush1.bf16.msra.mxu0 %v1850
    %2679 = vmatprep.subr.bf16.mxu0 %v1853
    %2680 = vmatpush1.bf16.msra.mxu0 %v1852
    %2681 = vmatprep.subr.bf16.mxu0 %v1855
    %2682 = vmatpush1.bf16.msra.mxu0 %v1854
    %2683 = vmatprep.subr.bf16.mxu0 %v1857
    %2684 = vmatpush1.bf16.msra.mxu0 %v1856
    %2685 = vmatprep.subr.bf16.mxu0 %v1859
    %2686 = vmatpush1.bf16.msra.mxu0 %v1858
    %2687 = vmatprep.subr.bf16.mxu0 %v1861
    %2688 = vmatpush1.bf16.msra.mxu0 %v1860
    %2689 = vmatprep.subr.bf16.mxu0 %v1863
    %2690 = vmatpush1.bf16.msra.mxu0 %v1862
    %2691 = vmatprep.subr.bf16.mxu0 %v1865
    %2692 = vmatpush1.bf16.msra.mxu0 %v1864
    %2693 = vmatprep.mubr.bf16.mxu0 %v495
    %2694 = vmatmul.mubr.bf16.gmra.mrb[0].mxu0 %v494
    %v2695 = vpop.f32.mrb[0].mxu0
    %v2696 = vadd.f32 %v2655, %v2695
    %v2697 = vpop.f32.mrb[0].mxu0
    %v2698 = vadd.f32 %v2657, %v2697
    %v2699 = vpop.f32.mrb[0].mxu0
    %v2700 = vpop.f32.mrb[0].mxu0
    %2701 = vdwg.mxu0
    %2702 = vmatprep.subr.bf16.mxu0 %v1867
    %2703 = vmatpush1.bf16.msra.mxu0 %v1866
    %2704 = vmatprep.subr.bf16.mxu0 %v1869
    %2705 = vmatpush1.bf16.msra.mxu0 %v1868
    %2706 = vmatprep.subr.bf16.mxu0 %v1871
    %2707 = vmatpush1.bf16.msra.mxu0 %v1870
    %2708 = vmatprep.subr.bf16.mxu0 %v1873
    %2709 = vmatpush1.bf16.msra.mxu0 %v1872
    %2710 = vmatprep.subr.bf16.mxu0 %v1875
    %2711 = vmatpush1.bf16.msra.mxu0 %v1874
    %2712 = vmatprep.subr.bf16.mxu0 %v1877
    %2713 = vmatpush1.bf16.msra.mxu0 %v1876
    %2714 = vmatprep.subr.bf16.mxu0 %v1879
    %2715 = vmatpush1.bf16.msra.mxu0 %v1878
    %2716 = vmatprep.subr.bf16.mxu0 %v1881
    %2717 = vmatpush1.bf16.msra.mxu0 %v1880
    %2718 = vmatprep.subr.bf16.mxu0 %v1883
    %2719 = vmatpush1.bf16.msra.mxu0 %v1882
    %2720 = vmatprep.subr.bf16.mxu0 %v1885
    %2721 = vmatpush1.bf16.msra.mxu0 %v1884
    %2722 = vmatprep.subr.bf16.mxu0 %v1887
    %2723 = vmatpush1.bf16.msra.mxu0 %v1886
    %2724 = vmatprep.subr.bf16.mxu0 %v1889
    %2725 = vmatpush1.bf16.msra.mxu0 %v1888
    %2726 = vmatprep.subr.bf16.mxu0 %v1891
    %2727 = vmatpush1.bf16.msra.mxu0 %v1890
    %2728 = vmatprep.subr.bf16.mxu0 %v1893
    %2729 = vmatpush1.bf16.msra.mxu0 %v1892
    %2730 = vmatprep.subr.bf16.mxu0 %v1895
    %2731 = vmatpush1.bf16.msra.mxu0 %v1894
    %2732 = vmatprep.subr.bf16.mxu0 %v1897
    %2733 = vmatpush1.bf16.msra.mxu0 %v1896
    %2734 = vmatprep.mubr.bf16.mxu0 %v497
    %2735 = vmatmul.mubr.bf16.gmra.mrb[0].mxu0 %v496
    %v2736 = vpop.f32.mrb[0].mxu0
    %v2737 = vadd.f32 %v2696, %v2736
    %v2738 = vpop.f32.mrb[0].mxu0
    %v2739 = vadd.f32 %v2698, %v2738
    %v2740 = vpop.f32.mrb[0].mxu0
    %v2741 = vpop.f32.mrb[0].mxu0
    %2742 = vdwg.mxu0
    %2743 = vmatprep.subr.bf16.mxu0 %v1899
    %2744 = vmatpush1.bf16.msra.mxu0 %v1898
    %2745 = vmatprep.subr.bf16.mxu0 %v1901
    %2746 = vmatpush1.bf16.msra.mxu0 %v1900
    %2747 = vmatprep.subr.bf16.mxu0 %v1903
    %2748 = vmatpush1.bf16.msra.mxu0 %v1902
    %2749 = vmatprep.subr.bf16.mxu0 %v1905
    %2750 = vmatpush1.bf16.msra.mxu0 %v1904
    %2751 = vmatprep.subr.bf16.mxu0 %v1907
    %2752 = vmatpush1.bf16.msra.mxu0 %v1906
    %2753 = vmatprep.subr.bf16.mxu0 %v1909
    %2754 = vmatpush1.bf16.msra.mxu0 %v1908
    %2755 = vmatprep.subr.bf16.mxu0 %v1911
    %2756 = vmatpush1.bf16.msra.mxu0 %v1910
    %2757 = vmatprep.subr.bf16.mxu0 %v1913
    %2758 = vmatpush1.bf16.msra.mxu0 %v1912
    %2759 = vmatprep.subr.bf16.mxu0 %v1915
    %2760 = vmatpush1.bf16.msra.mxu0 %v1914
    %2761 = vmatprep.subr.bf16.mxu0 %v1917
    %2762 = vmatpush1.bf16.msra.mxu0 %v1916
    %2763 = vmatprep.subr.bf16.mxu0 %v1919
    %2764 = vmatpush1.bf16.msra.mxu0 %v1918
    %2765 = vmatprep.subr.bf16.mxu0 %v1921
    %2766 = vmatpush1.bf16.msra.mxu0 %v1920
    %2767 = vmatprep.subr.bf16.mxu0 %v1923
    %2768 = vmatpush1.bf16.msra.mxu0 %v1922
    %2769 = vmatprep.subr.bf16.mxu0 %v1925
    %2770 = vmatpush1.bf16.msra.mxu0 %v1924
    %2771 = vmatprep.subr.bf16.mxu0 %v1927
    %2772 = vmatpush1.bf16.msra.mxu0 %v1926
    %2773 = vmatprep.subr.bf16.mxu0 %v1929
    %2774 = vmatpush1.bf16.msra.mxu0 %v1928
    %2775 = vmatprep.mubr.bf16.mxu0 %v499
    %2776 = vmatmul.mubr.bf16.gmra.mrb[0].mxu0 %v498
    %v2777 = vpop.f32.mrb[0].mxu0
    %v2778 = vadd.f32 %v2737, %v2777
    %v2779 = vpop.f32.mrb[0].mxu0
    %v2780 = vadd.f32 %v2739, %v2779
    %v2781 = vpop.f32.mrb[0].mxu0
    %v2782 = vpop.f32.mrb[0].mxu0
    %2783 = vdwg.mxu0
    %2784 = vmatprep.subr.bf16.mxu0 %v1931
    %2785 = vmatpush1.bf16.msra.mxu0 %v1930
    %2786 = vmatprep.subr.bf16.mxu0 %v1933
    %2787 = vmatpush1.bf16.msra.mxu0 %v1932
    %2788 = vmatprep.subr.bf16.mxu0 %v1935
    %2789 = vmatpush1.bf16.msra.mxu0 %v1934
    %2790 = vmatprep.subr.bf16.mxu0 %v1937
    %2791 = vmatpush1.bf16.msra.mxu0 %v1936
    %2792 = vmatprep.subr.bf16.mxu0 %v1939
    %2793 = vmatpush1.bf16.msra.mxu0 %v1938
    %2794 = vmatprep.subr.bf16.mxu0 %v1941
    %2795 = vmatpush1.bf16.msra.mxu0 %v1940
    %2796 = vmatprep.subr.bf16.mxu0 %v1943
    %2797 = vmatpush1.bf16.msra.mxu0 %v1942
    %2798 = vmatprep.subr.bf16.mxu0 %v1945
    %2799 = vmatpush1.bf16.msra.mxu0 %v1944
    %2800 = vmatprep.subr.bf16.mxu0 %v1947
    %2801 = vmatpush1.bf16.msra.mxu0 %v1946
    %2802 = vmatprep.subr.bf16.mxu0 %v1949
    %2803 = vmatpush1.bf16.msra.mxu0 %v1948
    %2804 = vmatprep.subr.bf16.mxu0 %v1951
    %2805 = vmatpush1.bf16.msra.mxu0 %v1950
    %2806 = vmatprep.subr.bf16.mxu0 %v1953
    %2807 = vmatpush1.bf16.msra.mxu0 %v1952
    %2808 = vmatprep.subr.bf16.mxu0 %v1955
    %2809 = vmatpush1.bf16.msra.mxu0 %v1954
    %2810 = vmatprep.subr.bf16.mxu0 %v1957
    %2811 = vmatpush1.bf16.msra.mxu0 %v1956
    %2812 = vmatprep.subr.bf16.mxu0 %v1959
    %2813 = vmatpush1.bf16.msra.mxu0 %v1958
    %2814 = vmatprep.subr.bf16.mxu0 %v1961
    %2815 = vmatpush1.bf16.msra.mxu0 %v1960
    %2816 = vmatprep.mubr.bf16.mxu0 %v501
    %2817 = vmatmul.mubr.bf16.gmra.mrb[0].mxu0 %v500
    %v2818 = vpop.f32.mrb[0].mxu0
    %v2819 = vadd.f32 %v2778, %v2818
    %v2820 = vpop.f32.mrb[0].mxu0
    %v2821 = vadd.f32 %v2780, %v2820
    %v2822 = vpop.f32.mrb[0].mxu0
    %v2823 = vpop.f32.mrb[0].mxu0
    %2824 = vdwg.mxu0
    %2825 = vmatprep.subr.bf16.mxu0 %v1963
    %2826 = vmatpush1.bf16.msra.mxu0 %v1962
    %2827 = vmatprep.subr.bf16.mxu0 %v1965
    %2828 = vmatpush1.bf16.msra.mxu0 %v1964
    %2829 = vmatprep.subr.bf16.mxu0 %v1967
    %2830 = vmatpush1.bf16.msra.mxu0 %v1966
    %2831 = vmatprep.subr.bf16.mxu0 %v1969
    %2832 = vmatpush1.bf16.msra.mxu0 %v1968
    %2833 = vmatprep.subr.bf16.mxu0 %v1971
    %2834 = vmatpush1.bf16.msra.mxu0 %v1970
    %2835 = vmatprep.subr.bf16.mxu0 %v1973
    %2836 = vmatpush1.bf16.msra.mxu0 %v1972
    %2837 = vmatprep.subr.bf16.mxu0 %v1975
    %2838 = vmatpush1.bf16.msra.mxu0 %v1974
    %2839 = vmatprep.subr.bf16.mxu0 %v1977
    %2840 = vmatpush1.bf16.msra.mxu0 %v1976
    %2841 = vmatprep.subr.bf16.mxu0 %v1979
    %2842 = vmatpush1.bf16.msra.mxu0 %v1978
    %2843 = vmatprep.subr.bf16.mxu0 %v1981
    %2844 = vmatpush1.bf16.msra.mxu0 %v1980
    %2845 = vmatprep.subr.bf16.mxu0 %v1983
    %2846 = vmatpush1.bf16.msra.mxu0 %v1982
    %2847 = vmatprep.subr.bf16.mxu0 %v1985
    %2848 = vmatpush1.bf16.msra.mxu0 %v1984
    %2849 = vmatprep.subr.bf16.mxu0 %v1987
    %2850 = vmatpush1.bf16.msra.mxu0 %v1986
    %2851 = vmatprep.subr.bf16.mxu0 %v1989
    %2852 = vmatpush1.bf16.msra.mxu0 %v1988
    %2853 = vmatprep.subr.bf16.mxu0 %v1991
    %2854 = vmatpush1.bf16.msra.mxu0 %v1990
    %2855 = vmatprep.subr.bf16.mxu0 %v1993
    %2856 = vmatpush1.bf16.msra.mxu0 %v1992
    %2857 = vmatprep.mubr.bf16.mxu0 %v503
    %2858 = vmatmul.mubr.bf16.gmra.mrb[0].mxu0 %v502
    %v2859 = vpop.f32.mrb[0].mxu0
    %v2860 = vadd.f32 %v2819, %v2859
    %v2861 = vpop.f32.mrb[0].mxu0
    %v2862 = vadd.f32 %v2821, %v2861
    %v2863 = vpop.f32.mrb[0].mxu0
    %v2864 = vpop.f32.mrb[0].mxu0
    %2865 = vdwg.mxu0
    %2866 = vmatprep.subr.bf16.mxu0 %v1995
    %2867 = vmatpush1.bf16.msra.mxu0 %v1994
    %2868 = vmatprep.subr.bf16.mxu0 %v1997
    %2869 = vmatpush1.bf16.msra.mxu0 %v1996
    %2870 = vmatprep.subr.bf16.mxu0 %v1999
    %2871 = vmatpush1.bf16.msra.mxu0 %v1998
    %2872 = vmatprep.subr.bf16.mxu0 %v2001
    %2873 = vmatpush1.bf16.msra.mxu0 %v2000
    %2874 = vmatprep.subr.bf16.mxu0 %v2003
    %2875 = vmatpush1.bf16.msra.mxu0 %v2002
    %2876 = vmatprep.subr.bf16.mxu0 %v2005
    %2877 = vmatpush1.bf16.msra.mxu0 %v2004
    %2878 = vmatprep.subr.bf16.mxu0 %v2007
    %2879 = vmatpush1.bf16.msra.mxu0 %v2006
    %2880 = vmatprep.subr.bf16.mxu0 %v2009
    %2881 = vmatpush1.bf16.msra.mxu0 %v2008
    %2882 = vmatprep.subr.bf16.mxu0 %v2011
    %2883 = vmatpush1.bf16.msra.mxu0 %v2010
    %2884 = vmatprep.subr.bf16.mxu0 %v2013
    %2885 = vmatpush1.bf16.msra.mxu0 %v2012
    %2886 = vmatprep.subr.bf16.mxu0 %v2015
    %2887 = vmatpush1.bf16.msra.mxu0 %v2014
    %2888 = vmatprep.subr.bf16.mxu0 %v2017
    %2889 = vmatpush1.bf16.msra.mxu0 %v2016
    %2890 = vmatprep.subr.bf16.mxu0 %v2019
    %2891 = vmatpush1.bf16.msra.mxu0 %v2018
    %2892 = vmatprep.subr.bf16.mxu0 %v2021
    %2893 = vmatpush1.bf16.msra.mxu0 %v2020
    %2894 = vmatprep.subr.bf16.mxu0 %v2023
    %2895 = vmatpush1.bf16.msra.mxu0 %v2022
    %2896 = vmatprep.subr.bf16.mxu0 %v2025
    %2897 = vmatpush1.bf16.msra.mxu0 %v2024
    %2898 = vmatprep.mubr.bf16.mxu0 %v505
    %2899 = vmatmul.mubr.bf16.gmra.mrb[0].mxu0 %v504
    %v2900 = vpop.f32.mrb[0].mxu0
    %v2901 = vadd.f32 %v2860, %v2900
    %v2902 = vpop.f32.mrb[0].mxu0
    %v2903 = vadd.f32 %v2862, %v2902
    %v2904 = vpop.f32.mrb[0].mxu0
    %v2905 = vpop.f32.mrb[0].mxu0
    %2906 = vdwg.mxu0
    %2907 = vmatprep.subr.bf16.mxu0 %v2027
    %2908 = vmatpush1.bf16.msra.mxu0 %v2026
    %2909 = vmatprep.subr.bf16.mxu0 %v2029
    %2910 = vmatpush1.bf16.msra.mxu0 %v2028
    %2911 = vmatprep.subr.bf16.mxu0 %v2031
    %2912 = vmatpush1.bf16.msra.mxu0 %v2030
    %2913 = vmatprep.subr.bf16.mxu0 %v2033
    %2914 = vmatpush1.bf16.msra.mxu0 %v2032
    %2915 = vmatprep.subr.bf16.mxu0 %v2035
    %2916 = vmatpush1.bf16.msra.mxu0 %v2034
    %2917 = vmatprep.subr.bf16.mxu0 %v2037
    %2918 = vmatpush1.bf16.msra.mxu0 %v2036
    %2919 = vmatprep.subr.bf16.mxu0 %v2039
    %2920 = vmatpush1.bf16.msra.mxu0 %v2038
    %2921 = vmatprep.subr.bf16.mxu0 %v2041
    %2922 = vmatpush1.bf16.msra.mxu0 %v2040
    %2923 = vmatprep.subr.bf16.mxu0 %v2043
    %2924 = vmatpush1.bf16.msra.mxu0 %v2042
    %2925 = vmatprep.subr.bf16.mxu0 %v2045
    %2926 = vmatpush1.bf16.msra.mxu0 %v2044
    %2927 = vmatprep.subr.bf16.mxu0 %v2047
    %2928 = vmatpush1.bf16.msra.mxu0 %v2046
    %2929 = vmatprep.subr.bf16.mxu0 %v2049
    %2930 = vmatpush1.bf16.msra.mxu0 %v2048
    %2931 = vmatprep.subr.bf16.mxu0 %v2051
    %2932 = vmatpush1.bf16.msra.mxu0 %v2050
    %2933 = vmatprep.subr.bf16.mxu0 %v2053
    %2934 = vmatpush1.bf16.msra.mxu0 %v2052
    %2935 = vmatprep.subr.bf16.mxu0 %v2055
    %2936 = vmatpush1.bf16.msra.mxu0 %v2054
    %2937 = vmatprep.subr.bf16.mxu0 %v2057
    %2938 = vmatpush1.bf16.msra.mxu0 %v2056
    %2939 = vmatprep.mubr.bf16.mxu0 %v507
    %2940 = vmatmul.mubr.bf16.gmra.mrb[0].mxu0 %v506
    %v2941 = vpop.f32.mrb[0].mxu0
    %v2942 = vadd.f32 %v2901, %v2941
    %v2943 = vpop.f32.mrb[0].mxu0
    %v2944 = vadd.f32 %v2903, %v2943
    %v2945 = vpop.f32.mrb[0].mxu0
    %v2946 = vpop.f32.mrb[0].mxu0
    %2947 = vdwg.mxu0
    %2948 = vmatprep.subr.bf16.mxu0 %v2059
    %2949 = vmatpush1.bf16.msra.mxu0 %v2058
    %2950 = vmatprep.subr.bf16.mxu0 %v2061
    %2951 = vmatpush1.bf16.msra.mxu0 %v2060
    %2952 = vmatprep.subr.bf16.mxu0 %v2063
    %2953 = vmatpush1.bf16.msra.mxu0 %v2062
    %2954 = vmatprep.subr.bf16.mxu0 %v2065
    %2955 = vmatpush1.bf16.msra.mxu0 %v2064
    %2956 = vmatprep.subr.bf16.mxu0 %v2067
    %2957 = vmatpush1.bf16.msra.mxu0 %v2066
    %2958 = vmatprep.subr.bf16.mxu0 %v2069
    %2959 = vmatpush1.bf16.msra.mxu0 %v2068
    %2960 = vmatprep.subr.bf16.mxu0 %v2071
    %2961 = vmatpush1.bf16.msra.mxu0 %v2070
    %2962 = vmatprep.subr.bf16.mxu0 %v2073
    %2963 = vmatpush1.bf16.msra.mxu0 %v2072
    %2964 = vmatprep.subr.bf16.mxu0 %v2075
    %2965 = vmatpush1.bf16.msra.mxu0 %v2074
    %2966 = vmatprep.subr.bf16.mxu0 %v2077
    %2967 = vmatpush1.bf16.msra.mxu0 %v2076
    %2968 = vmatprep.subr.bf16.mxu0 %v2079
    %2969 = vmatpush1.bf16.msra.mxu0 %v2078
    %2970 = vmatprep.subr.bf16.mxu0 %v2081
    %2971 = vmatpush1.bf16.msra.mxu0 %v2080
    %2972 = vmatprep.subr.bf16.mxu0 %v2083
    %2973 = vmatpush1.bf16.msra.mxu0 %v2082
    %2974 = vmatprep.subr.bf16.mxu0 %v2085
    %2975 = vmatpush1.bf16.msra.mxu0 %v2084
    %2976 = vmatprep.subr.bf16.mxu0 %v2087
    %2977 = vmatpush1.bf16.msra.mxu0 %v2086
    %2978 = vmatprep.subr.bf16.mxu0 %v2089
    %2979 = vmatpush1.bf16.msra.mxu0 %v2088
    %2980 = vmatprep.mubr.bf16.mxu0 %v509
    %2981 = vmatmul.mubr.bf16.gmra.mrb[0].mxu0 %v508
    %v2982 = vpop.f32.mrb[0].mxu0
    %v2983 = vadd.f32 %v2942, %v2982
    %v2984 = vpop.f32.mrb[0].mxu0
    %v2985 = vadd.f32 %v2944, %v2984
    %v2986 = vpop.f32.mrb[0].mxu0
    %v2987 = vpop.f32.mrb[0].mxu0
    %2988 = vdwg.mxu0
    %2989 = vmatprep.subr.bf16.mxu0 %v2091
    %2990 = vmatpush1.bf16.msra.mxu0 %v2090
    %2991 = vmatprep.subr.bf16.mxu0 %v2093
    %2992 = vmatpush1.bf16.msra.mxu0 %v2092
    %2993 = vmatprep.subr.bf16.mxu0 %v2095
    %2994 = vmatpush1.bf16.msra.mxu0 %v2094
    %2995 = vmatprep.subr.bf16.mxu0 %v2097
    %2996 = vmatpush1.bf16.msra.mxu0 %v2096
    %2997 = vmatprep.subr.bf16.mxu0 %v2099
    %2998 = vmatpush1.bf16.msra.mxu0 %v2098
    %2999 = vmatprep.subr.bf16.mxu0 %v2101
    %3000 = vmatpush1.bf16.msra.mxu0 %v2100
    %3001 = vmatprep.subr.bf16.mxu0 %v2103
    %3002 = vmatpush1.bf16.msra.mxu0 %v2102
    %3003 = vmatprep.subr.bf16.mxu0 %v2105
    %3004 = vmatpush1.bf16.msra.mxu0 %v2104
    %3005 = vmatprep.subr.bf16.mxu0 %v2107
    %3006 = vmatpush1.bf16.msra.mxu0 %v2106
    %3007 = vmatprep.subr.bf16.mxu0 %v2109
    %3008 = vmatpush1.bf16.msra.mxu0 %v2108
    %3009 = vmatprep.subr.bf16.mxu0 %v2111
    %3010 = vmatpush1.bf16.msra.mxu0 %v2110
    %3011 = vmatprep.subr.bf16.mxu0 %v2113
    %3012 = vmatpush1.bf16.msra.mxu0 %v2112
    %3013 = vmatprep.subr.bf16.mxu0 %v2115
    %3014 = vmatpush1.bf16.msra.mxu0 %v2114
    %3015 = vmatprep.subr.bf16.mxu0 %v2117
    %3016 = vmatpush1.bf16.msra.mxu0 %v2116
    %3017 = vmatprep.subr.bf16.mxu0 %v2119
    %3018 = vmatpush1.bf16.msra.mxu0 %v2118
    %3019 = vmatprep.subr.bf16.mxu0 %v2121
    %3020 = vmatpush1.bf16.msra.mxu0 %v2120
    %3021 = vmatprep.mubr.bf16.mxu0 %v511
    %3022 = vmatmul.mubr.bf16.gmra.mrb[0].mxu0 %v510
    %v3023 = vpop.f32.mrb[0].mxu0
    %v3024 = vadd.f32 %v2983, %v3023
    %v3025 = vpop.f32.mrb[0].mxu0
    %v3026 = vadd.f32 %v2985, %v3025
    %v3027 = vpop.f32.mrb[0].mxu0
    %v3028 = vpop.f32.mrb[0].mxu0
    %3029 = vdwg.mxu0
    %3030 = vmatprep.subr.bf16.mxu0 %v2123
    %3031 = vmatpush1.bf16.msra.mxu0 %v2122
    %3032 = vmatprep.subr.bf16.mxu0 %v2125
    %3033 = vmatpush1.bf16.msra.mxu0 %v2124
    %3034 = vmatprep.subr.bf16.mxu0 %v2127
    %3035 = vmatpush1.bf16.msra.mxu0 %v2126
    %3036 = vmatprep.subr.bf16.mxu0 %v2129
    %3037 = vmatpush1.bf16.msra.mxu0 %v2128
    %3038 = vmatprep.subr.bf16.mxu0 %v2131
    %3039 = vmatpush1.bf16.msra.mxu0 %v2130
    %3040 = vmatprep.subr.bf16.mxu0 %v2133
    %3041 = vmatpush1.bf16.msra.mxu0 %v2132
    %3042 = vmatprep.subr.bf16.mxu0 %v2135
    %3043 = vmatpush1.bf16.msra.mxu0 %v2134
    %3044 = vmatprep.subr.bf16.mxu0 %v2137
    %3045 = vmatpush1.bf16.msra.mxu0 %v2136
    %3046 = vmatprep.subr.bf16.mxu0 0
    %3047 = vmatpush1.bf16.msra.mxu0 0
    %3048 = vmatprep.subr.bf16.mxu0 0
    %3049 = vmatpush1.bf16.msra.mxu0 0
    %3050 = vmatprep.subr.bf16.mxu0 0
    %3051 = vmatpush1.bf16.msra.mxu0 0
    %3052 = vmatprep.subr.bf16.mxu0 0
    %3053 = vmatpush1.bf16.msra.mxu0 0
    %3054 = vmatprep.subr.bf16.mxu0 0
    %3055 = vmatpush1.bf16.msra.mxu0 0
    %3056 = vmatprep.subr.bf16.mxu0 0
    %3057 = vmatpush1.bf16.msra.mxu0 0
    %3058 = vmatprep.subr.bf16.mxu0 0
    %3059 = vmatpush1.bf16.msra.mxu0 0
    %3060 = vmatprep.subr.bf16.mxu0 0
    %3061 = vmatpush1.bf16.msra.mxu0 0
    %3062 = vmatprep.mubr.bf16.mxu0 0
    %3063 = vmatmul.mubr.bf16.gmra.mrb[0].mxu0 %v512
    %v3064 = vpop.f32.mrb[0].mxu0
    %v3065 = vadd.f32 %v3024, %v3064
    %v3066 = vpop.f32.mrb[0].mxu0
    %v3067 = vadd.f32 %v3026, %v3066
    %v3068 = vpop.f32.mrb[0].mxu0
    %v3069 = vpop.f32.mrb[0].mxu0
    %3070 = vdwg.mxu0
    %v3071 = vrot.slane %v3065, 4
    %v3072 = vadd.f32 %v3065, %v3071
    %v3073 = vrot.slane %v3072, 2
    %v3074 = vadd.f32 %v3072, %v3073
    %v3075 = vrot.slane %v3074, 1
    %v3076 = vadd.f32 %v3074, %v3075
    %v3077 = vrot.slane %v3067, 4
    %v3078 = vadd.f32 %v3067, %v3077
    %v3079 = vrot.slane %v3078, 2
    %v3080 = vadd.f32 %v3078, %v3079
    %v3081 = vrot.slane %v3080, 1
    %v3082 = vadd.f32 %v3080, %v3081
    %v3083 = vmul.f32 %v3076, 0.125
    %v3084 = vmul.f32 %v3082, 0.125
    %v3085 = vsub.f32 %v3065, %v3083
    %v3086 = vsub.f32 %v3067, %v3084
    %v3087 = vmul.f32 %v3085, %v3085
    %v3088 = vmul.f32 %v3086, %v3086
    %v3089 = vrot.slane %v3087, 4
    %v3090 = vadd.f32 %v3087, %v3089
    %v3091 = vrot.slane %v3090, 2
    %v3092 = vadd.f32 %v3090, %v3091
    %v3093 = vrot.slane %v3092, 1
    %v3094 = vadd.f32 %v3092, %v3093
    %v3095 = vrot.slane %v3088, 4
    %v3096 = vadd.f32 %v3088, %v3095
    %v3097 = vrot.slane %v3096, 2
    %v3098 = vadd.f32 %v3096, %v3097
    %v3099 = vrot.slane %v3098, 1
    %v3100 = vadd.f32 %v3098, %v3099
    %v3101 = vmul.f32 %v3094, 0.125
    %v3102 = vmul.f32 %v3100, 0.125
    %v3103 = vld [vmem:[%s3] sm:$0x3]
    %v3104 = vadd.f32 %v3101, 1e-05
    %v3105 = vadd.f32 %v3102, 1e-05
    %v3106 = vrsqrt.pop %v3104
    %v3107 = vrsqrt.pop %v3105
    %v3110 = vcombine.low %v3106, %v3107
    %v3112 = vunpack.c.l.s4 1966171168
    %v3113 = vunpack.c.0.s8 %v3112
    %v3114 = vlaneseq
    %v3115 = vshrl.u32 %v3114, 7
    %v3116 = vsub.s32 %v3113, %v3115
    %v3117 = vrot.slane %v3110, %v3116
    %v3119 = vunpack.c.l.s4 1966171168
    %v3120 = vunpack.c.0.s8 %v3119
    %v3121 = vlaneseq
    %v3122 = vshrl.u32 %v3121, 7
    %v3123 = vsub.s32 %v3120, %v3122
    %v3124 = vrot.slane %v3117, %v3123
    %v3126 = vmul.f32 %v3103, %v3124
    %v3128 = vlaneseq
    %v3129 = vshrl.u32 %v3128, 7
    %v3130 = vsub.s32 0, %v3129
    %v3131 = vrot.slane %v3126, %v3130
    %v3132 = vlaneseq
    %v3133 = vshrl.u32 %v3132, 7
    %v3134 = vsub.s32 1, %v3133
    %v3135 = vrot.slane %v3126, %v3134
    %v3138 = vmul.f32 %v3085, %v3131
    %v3139 = vmul.f32 %v3086, %v3135
    %v3140 = vld [vmem:[%s4] sm:$0x3]
    %v3142 = vlaneseq
    %v3143 = vshrl.u32 %v3142, 7
    %v3144 = vsub.s32 0, %v3143
    %v3145 = vrot.slane %v3140, %v3144
    %v3146 = vlaneseq
    %v3147 = vshrl.u32 %v3146, 7
    %v3148 = vsub.s32 1, %v3147
    %v3149 = vrot.slane %v3140, %v3148
    %v3152 = vadd.f32 %v3138, %v3145
    %v3153 = vadd.f32 %v3139, %v3149
    %v3154 = vmax.f32 %v3152, 0.0
    %v3155 = vmax.f32 %v3153, 0.0
    %v3156 = vld [vmem:[%s5] sm:$0x3]
    %vm3157 = vcmask 64512
    %v3159 = vsel %vm3157, %v3156, 0
    %3161 = vmatprep.subr.mxu0 %v3155
    %3162 = vmatpush1.msra.mxu0 %v3154
    %3163 = vmatprep.subr.mxu0 0.0
    %3164 = vmatpush1.msra.mxu0 0.0
    %3165 = vmatprep.subr.mxu0 0.0
    %3166 = vmatpush1.msra.mxu0 0.0
    %3167 = vmatprep.subr.mxu0 0.0
    %3168 = vmatpush1.msra.mxu0 0.0
    %3169 = vmatprep.subr.mxu0 0.0
    %3170 = vmatpush1.msra.mxu0 0.0
    %3171 = vmatprep.subr.mxu0 0.0
    %3172 = vmatpush1.msra.mxu0 0.0
    %3173 = vmatprep.subr.mxu0 0.0
    %3174 = vmatpush1.msra.mxu0 0.0
    %3175 = vmatprep.subr.mxu0 0.0
    %3176 = vmatpush1.msra.mxu0 0.0
    %3177 = vmatprep.subr.mxu0 0.0
    %3178 = vmatpush1.msra.mxu0 0.0
    %3179 = vmatprep.subr.mxu0 0.0
    %3180 = vmatpush1.msra.mxu0 0.0
    %3181 = vmatprep.subr.mxu0 0.0
    %3182 = vmatpush1.msra.mxu0 0.0
    %3183 = vmatprep.subr.mxu0 0.0
    %3184 = vmatpush1.msra.mxu0 0.0
    %3185 = vmatprep.subr.mxu0 0.0
    %3186 = vmatpush1.msra.mxu0 0.0
    %3187 = vmatprep.subr.mxu0 0.0
    %3188 = vmatpush1.msra.mxu0 0.0
    %3189 = vmatprep.subr.mxu0 0.0
    %3190 = vmatpush1.msra.mxu0 0.0
    %3191 = vmatprep.subr.mxu0 0.0
    %3192 = vmatpush1.msra.mxu0 0.0
    %3193 = vmatprep.subr.mxu0 0.0
    %3194 = vmatpush1.msra.mxu0 0.0
    %3195 = vmatprep.subr.mxu0 0.0
    %3196 = vmatpush1.msra.mxu0 0.0
    %3197 = vmatprep.subr.mxu0 0.0
    %3198 = vmatpush1.msra.mxu0 0.0
    %3199 = vmatprep.subr.mxu0 0.0
    %3200 = vmatpush1.msra.mxu0 0.0
    %3201 = vmatprep.subr.mxu0 0.0
    %3202 = vmatpush1.msra.mxu0 0.0
    %3203 = vmatprep.subr.mxu0 0.0
    %3204 = vmatpush1.msra.mxu0 0.0
    %3205 = vmatprep.subr.mxu0 0.0
    %3206 = vmatpush1.msra.mxu0 0.0
    %3207 = vmatprep.subr.mxu0 0.0
    %3208 = vmatpush1.msra.mxu0 0.0
    %3209 = vmatprep.subr.mxu0 0.0
    %3210 = vmatpush1.msra.mxu0 0.0
    %3211 = vmatprep.subr.mxu0 0.0
    %3212 = vmatpush1.msra.mxu0 0.0
    %3213 = vmatprep.subr.mxu0 0.0
    %3214 = vmatpush1.msra.mxu0 0.0
    %3215 = vmatprep.subr.mxu0 0.0
    %3216 = vmatpush1.msra.mxu0 0.0
    %3217 = vmatprep.subr.mxu0 0.0
    %3218 = vmatpush1.msra.mxu0 0.0
    %3219 = vmatprep.subr.mxu0 0.0
    %3220 = vmatpush1.msra.mxu0 0.0
    %3221 = vmatprep.subr.mxu0 0.0
    %3222 = vmatpush1.msra.mxu0 0.0
    %3223 = vmatprep.subr.mxu0 0.0
    %3224 = vmatpush1.msra.mxu0 0.0
    %3225 = vmatprep.mubr.f32.mxu0 0.0
    %3226 = vmatmul.mubr.f32.gmra.mrb[0].mxu0 %v3159
    %v3227 = vpop.f32.mrb[0].mxu0
    %v3228 = vadd.f32 0.0, %v3227
    %v3229 = vpop.f32.mrb[0].mxu0
    %v3230 = vadd.f32 0.0, %v3229
    %3231 = vdwg.mxu0
    %v3234 = vcombine.low %v3228, %v3230
    %v3236 = vunpack.c.l.s4 1983009808
    %v3237 = vunpack.c.0.s8 %v3236
    %v3238 = vlaneseq
    %v3239 = vshrl.u32 %v3238, 7
    %v3240 = vsub.s32 %v3237, %v3239
    %v3241 = vrot.slane %v3234, %v3240
    %3243 = vst [vmem:[#allocation2] sm:$0xf] %v3241
    // Predicated region
    $region26: #{_lambda_.7} parent=1 // pred_check
      _
    $region27: #{_lambda_.7} parent=1 // pred_check_branch
      %3245 = sbr.rel (0) target = $region29
    $region28: #{_lambda_.7} parent=1 // pred_region
      %s3247 = ssub.s32 64, 64
      %3248 = vsyncadd [#allocation3], %s3247
      %s3250 = sshll.u32 [#allocation2], 4
      %s3251 = int_to_ptr.vmem [resolvable:$true] %s3250
      %3253 = dma.vmem_to_hbm [thread:$0]  %s3251, 64, %s6, [#allocation3]
    $region29: #{_lambda_.7} parent=1 // pred_fallthru
      _
    // Predicated region
    $region30: #{_lambda_.7} parent=1 // pred_check
      _
    $region31: #{_lambda_.7} parent=1 // pred_check_branch
      %3255 = sbr.rel (0) target = $region33
    $region32: #{_lambda_.7} parent=1 // pred_region
      %3256 = dma.done [#allocation3], 64
    $region33: #{_lambda_.7} parent=1 // pred_fallthru
      _
    %3257 = vsyncpa [#allocation3], 1

</llo_original>
